<compile_context>
chip_gen: v7x
topology: tpu7x:2x2x1
jax: 0.10.0
libtpu: 0.0.40
codegen_flags: <defaults>
</compile_context>

<pallas_src>
import functools

import jax
import jax.numpy as jnp
from jax.experimental import pallas as pl
from jax.experimental.pallas import tpu as pltpu

EPS = 1e-5
LANE = 128


def _round_up(x, m):
    return (x + m - 1) // m * m


def _pick_lane_tile(span, cap=4096):
    """Pass-B lane tile: full extent when small, else a 128-multiple cap used with a
    pl.cdiv grid (padded final block). No divisibility requirement on span."""
    assert cap % LANE == 0
    return span if span <= cap else cap


# ---------------------------------------------------------------------------------------
# Pass A: fused 4-branch conv (staged tap slab -> one dense matmul per branch) + per-sample
# batch-stat partials.  One batch element per grid step ("parallel" -> both TCs on v7x).
# ---------------------------------------------------------------------------------------
def _conv_stats_kernel(x_ref, w_ref, mask_ref, y_ref, ssum_ref, ssq_ref, slab_ref, *,
                       branch_taps, span, cin):
    """
    x_ref    : (Cin, FLAT)         bf16  max-padded, flattened input of sample n
    w_ref    : (C, TOT_TAPS*Cin)   bf16  all four branch weights, concatenated on columns
    mask_ref : (1, SPAN)           f32   1.0 on valid output columns, 0.0 on pad columns
    y_ref    : (4, C, SPAN)        bf16  raw (pre-BN) conv output, "wide" layout, branch-major
    ssum_ref : (4, C, 1)           f32   per-sample per-channel sum over valid columns
    ssq_ref  : (4, C, 1)           f32   per-sample per-channel sum of squares
    slab_ref : (TOT_TAPS*Cin, SPAN) bf16 VMEM scratch: stacked shifted slices (in-VMEM im2col)
    """
    # Stage the stacked tap slab once: static shifted lane-slices of the flat input.
    r = 0
    for offs in branch_taps:                            # static unroll over branches/taps
        for off in offs:
            slab_ref[r:r + cin, :] = x_ref[:, off:off + span]
            r += cin

    mask = mask_ref[...]
    col = 0
    for b, offs in enumerate(branch_taps):
        kdim = len(offs) * cin
        # One dense matmul per branch: full-depth MXU contraction, no VALU tap accumulation.
        y_b = jnp.dot(w_ref[:, col:col + kdim], slab_ref[col:col + kdim, :],
                      preferred_element_type=jnp.float32)            # (C, SPAN) f32
        y_ref[b] = y_b.astype(y_ref.dtype)                            # bf16 store, full tile
        # Per-channel batch statistics over VALID columns only (f32, before the bf16 cast).
        ym = y_b * mask
        ssum_ref[b] = jnp.sum(ym, axis=1, keepdims=True)
        ssq_ref[b] = jnp.sum(ym * y_b, axis=1, keepdims=True)         # mask is 0/1: ym*y = m*y^2
        col += kdim


# ---------------------------------------------------------------------------------------
# Pass B: folded BatchNorm + ReLU as a single per-channel FMA + max, tiled over lanes.
# ---------------------------------------------------------------------------------------
def _bn_relu_kernel(y_ref, scale_ref, shift_ref, o_ref):
    y = y_ref[...].astype(jnp.float32)
    o_ref[...] = jnp.maximum(y * scale_ref[...] + shift_ref[...], 0.0)


# ---------------------------------------------------------------------------------------
# Wrapper
# ---------------------------------------------------------------------------------------
def multi_scale_conv_block(x, params, kernel_sizes, paddings, dilations,
                           *, matmul_dtype=jnp.bfloat16):
    """x: (N, Cin, H, W) NCHW.  params[i] = (weight, bias, gamma, beta) for branch i."""
    assert len(params) == 4
    N, Cin, H, W = x.shape
    C = params[0][0].shape[0]
    Ctot = 4 * C

    # All branches must produce the same spatial size (true for NuClick's "same" convs).
    out_hw = [(H + 2 * paddings[i] - dilations[i] * (kernel_sizes[i] - 1),
               W + 2 * paddings[i] - dilations[i] * (kernel_sizes[i] - 1))
              for i in range(4)]
    Ho, Wo = out_hw[0]
    assert all(hw == (Ho, Wo) for hw in out_hw), "branch output sizes differ"

    max_pad = max(paddings)
    Hp, Wp = H + 2 * max_pad, W + 2 * max_pad
    SPAN = Ho * Wp                                        # "wide" output: row stride Wp

    # Per-branch, per-tap flat offsets into the max-padded flattened input.
    branch_taps = []
    for i in range(4):
        K, pad, dil = kernel_sizes[i], paddings[i], dilations[i]
        base = max_pad - pad
        branch_taps.append(tuple((base + kh * dil) * Wp + (base + kw * dil)
                                 for kh in range(K) for kw in range(K)))
    max_off = max(max(o) for o in branch_taps)
    TOT_TAPS = sum(len(t) for t in branch_taps)
    FLAT = _round_up(max(max_off + SPAN, Hp * Wp), LANE)

    # ---- glue: pad + flatten x ONCE (the only activation read of the fused conv pass) ----
    xp = jnp.pad(x, ((0, 0), (0, 0), (max_pad, max_pad), (max_pad, max_pad)))
    x_flat = xp.reshape(N, Cin, Hp * Wp)
    x_flat = jnp.pad(x_flat, ((0, 0), (0, 0), (0, FLAT - Hp * Wp))).astype(matmul_dtype)

    # Single merged weight buffer; columns ordered (branch, tap, Cin) to match the slab rows.
    # NOTE: the conv bias params[i][1] is intentionally unused -- it is exactly cancelled by
    # the train-mode BN mean subtraction.
    w_cat = jnp.concatenate(
        [params[i][0].transpose(0, 2, 3, 1).reshape(C, kernel_sizes[i] ** 2 * Cin)
         for i in range(4)], axis=1).astype(matmul_dtype)             # (C, TOT_TAPS*Cin)

    # Valid-column mask for the wide layout (kills the Wp-Wo pad columns in the stats).
    col = jnp.arange(SPAN, dtype=jnp.int32) % Wp
    mask = (col < Wo).astype(jnp.float32).reshape(1, SPAN)

    kernel_a = functools.partial(_conv_stats_kernel, branch_taps=tuple(branch_taps),
                                 span=SPAN, cin=Cin)

    # TODO(synk): production patches (256x256, Cin=128) need a halo'd row-tile grid axis in
    # pass A (per-sample slab + scratch exceed v7x's 64 MiB VMEM); the demo sample fits, so
    # one whole sample is processed per grid step here.
    y_wide, ssum, ssq = pl.pallas_call(
        kernel_a,
        grid=(N,),
        in_specs=[
            pl.BlockSpec((None, Cin, FLAT), lambda n: (n, 0, 0)),
            pl.BlockSpec((C, TOT_TAPS * Cin), lambda n: (0, 0)),      # resident, one DMA
            pl.BlockSpec((1, SPAN), lambda n: (0, 0)),                # resident
        ],
        out_specs=[
            pl.BlockSpec((None, 4, C, SPAN), lambda n: (n, 0, 0, 0)),
            pl.BlockSpec((None, 4, C, 1), lambda n: (n, 0, 0, 0)),
            pl.BlockSpec((None, 4, C, 1), lambda n: (n, 0, 0, 0)),
        ],
        out_shape=[
            jax.ShapeDtypeStruct((N, 4, C, SPAN), matmul_dtype),      # bf16: halves HBM traffic
            jax.ShapeDtypeStruct((N, 4, C, 1), jnp.float32),
            jax.ShapeDtypeStruct((N, 4, C, 1), jnp.float32),
        ],
        scratch_shapes=[pltpu.VMEM((TOT_TAPS * Cin, SPAN), matmul_dtype)],
        compiler_params=pltpu.CompilerParams(
            dimension_semantics=("parallel",),                        # v7x: use both TCs
            vmem_limit_bytes=32 * 1024 * 1024),
    )(x_flat, w_cat, mask)

    # ---- fold BN + affine into a single per-channel scale/shift (tiny host-side XLA) ----
    count = float(N * Ho * Wo)
    mean = ssum.sum(axis=0).reshape(Ctot, 1) / count
    var = jnp.maximum(ssq.sum(axis=0).reshape(Ctot, 1) / count - mean * mean, 0.0)
    # TODO(synk): one-pass E[y^2]-mean^2 can cancel in f32 at production activation scales;
    # switch to a shifted / two-pass variance there.
    gamma = jnp.concatenate([params[i][2] for i in range(4)]).reshape(Ctot, 1)
    beta = jnp.concatenate([params[i][3] for i in range(4)]).reshape(Ctot, 1)
    scale = gamma * jax.lax.rsqrt(var + EPS)
    shift = beta - mean * scale

    # ---- pass B: normalize + ReLU, lane-tiled, fully parallel ----
    y_flat = y_wide.reshape(N, Ctot, SPAN)                            # contiguous dims: free
    TB = _pick_lane_tile(SPAN)
    out_wide = pl.pallas_call(
        _bn_relu_kernel,
        grid=(N, pl.cdiv(SPAN, TB)),
        in_specs=[
            pl.BlockSpec((None, Ctot, TB), lambda n, j: (n, 0, j)),
            pl.BlockSpec((Ctot, 1), lambda n, j: (0, 0)),
            pl.BlockSpec((Ctot, 1), lambda n, j: (0, 0)),
        ],
        out_specs=pl.BlockSpec((None, Ctot, TB), lambda n, j: (n, 0, j)),
        out_shape=jax.ShapeDtypeStruct((N, Ctot, SPAN), jnp.float32),
        compiler_params=pltpu.CompilerParams(
            dimension_semantics=("parallel", "parallel"),
            vmem_limit_bytes=32 * 1024 * 1024),
    )(y_flat, scale, shift)

    # Crop the wide layout back to NCHW.  Channels are already stacked in branch order.
    # TODO(synk): when Wo % 128 == 0 (production patches) fold this crop into pass B's
    # out_spec (row-tiled grid writing (Ctot, rows, Wo) blocks) to save an output HBM
    # roundtrip; at the demo's Wo=16 it would force masked vst.msk stores (per review).
    return out_wide.reshape(N, Ctot, Ho, Wp)[:, :, :, :Wo]


# ------------------------- pure-JAX reference (for validation) -------------------------
def _ref_conv_block(x, weight, bias, gamma, beta, K, pad, dil, matmul_dtype):
    # Conv inputs cast to the same MXU input precision (bf16) as the kernel; BN in f32.
    y = jax.lax.conv_general_dilated(
        x.astype(matmul_dtype), weight.astype(matmul_dtype),
        window_strides=(1, 1), padding=[(pad, pad), (pad, pad)],
        rhs_dilation=(dil, dil), dimension_numbers=("NCHW", "OIHW", "NCHW"),
        preferred_element_type=jnp.float32)
    y = y + bias.reshape(1, -1, 1, 1)
    mean = jnp.mean(y, axis=(0, 2, 3), keepdims=True)
    var = jnp.mean(jnp.square(y - mean), axis=(0, 2, 3), keepdims=True)
    y_hat = (y - mean) * jax.lax.rsqrt(var + EPS)
    return jnp.maximum(y_hat * gamma.reshape(1, -1, 1, 1) + beta.reshape(1, -1, 1, 1), 0.0)


if __name__ == "__main__":
    channels = 4                                   # per-branch output channels (small demo)
    # One of NuClick's actual multi-scale configs (all "same" convolutions).
    kernel_sizes = [3, 3, 5, 5]
    paddings = [1, 3, 6, 12]
    dilations = [1, 3, 3, 6]
    N, H, W = 2, 16, 16
    Cin = 4 * channels                             # each branch consumes 4*channels inputs

    key = jax.random.PRNGKey(0)
    keys = jax.random.split(key, 1 + 4 * 4)
    x = jax.random.normal(keys[0], (N, Cin, H, W), jnp.float32)

    params = []
    ki = 1
    for i in range(4):
        K = kernel_sizes[i]
        w = 0.1 * jax.random.normal(keys[ki + 0], (channels, Cin, K, K), jnp.float32)
        b = 0.1 * jax.random.normal(keys[ki + 1], (channels,), jnp.float32)
        g = 1.0 + 0.1 * jax.random.normal(keys[ki + 2], (channels,), jnp.float32)
        bt = 0.1 * jax.random.normal(keys[ki + 3], (channels,), jnp.float32)
        params.append((w, b, g, bt))
        ki += 4

    out = multi_scale_conv_block(x, params, kernel_sizes, paddings, dilations)
    out = jax.block_until_ready(out)

    ref = jnp.concatenate(
        [_ref_conv_block(x, *params[i], kernel_sizes[i], paddings[i], dilations[i],
                         jnp.bfloat16) for i in range(4)], axis=1)

    assert out.shape == (N, 4 * channels, H, W), out.shape
    err = float(jnp.max(jnp.abs(out - ref)))
    # Tolerance widened slightly vs f32 intermediates: pre-BN activations are stored in bf16
    # (per perf review) while the reference keeps them in f32.
    assert jnp.allclose(out, ref, atol=3e-3, rtol=3e-3), err
    print("KERNEL_OK")
</pallas_src>

<mosaic_0001>
module attributes {stable_mosaic.version = 11 : i64} {
  func.func @_conv_stats_kernel(%arg0: i32, %arg1: memref<1x16x1664xbf16, #tpu.memory_space<vmem>>, %arg2: memref<4x1088xbf16, #tpu.memory_space<vmem>>, %arg3: memref<1x640xf32, #tpu.memory_space<vmem>>, %arg4: memref<1x4x4x640xbf16, #tpu.memory_space<vmem>>, %arg5: memref<1x4x4x1xf32, #tpu.memory_space<vmem>>, %arg6: memref<1x4x4x1xf32, #tpu.memory_space<vmem>>, %arg7: memref<1088x640xbf16, #tpu.memory_space<vmem>>) attributes {dimension_semantics = [#tpu.dimension_semantics<parallel>], iteration_bounds = array<i64: 2>, scalar_prefetch = 0 : i64, scratch_operands = 1 : i64, tpu.core_type = #tpu.core_type<tc>, window_params = [{transform_indices = @transform_0, window_bounds = array<i64: 1, 16, 1664>}, {pipeline_mode = #tpu.pipeline_mode<synchronous>, transform_indices = @transform_1, window_bounds = array<i64: 4, 1088>}, {pipeline_mode = #tpu.pipeline_mode<synchronous>, transform_indices = @transform_2, window_bounds = array<i64: 1, 640>}, {transform_indices = @transform_3, window_bounds = array<i64: 1, 4, 4, 640>}, {transform_indices = @transform_4, window_bounds = array<i64: 1, 4, 4, 1>}, {transform_indices = @transform_5, window_bounds = array<i64: 1, 4, 4, 1>}]} {
    %c0 = arith.constant 0 : index
    %c0_0 = arith.constant 0 : index
    %c451 = arith.constant 451 : index
    %0 = vector.load %arg1[%c0, %c0_0, %c451] : memref<1x16x1664xbf16, #tpu.memory_space<vmem>>, vector<1x16x640xbf16>
    %1 = vector.shape_cast %0 : vector<1x16x640xbf16> to vector<16x640xbf16>
    %c0_1 = arith.constant 0 : index
    %c0_2 = arith.constant 0 : index
    %2 = vector.load %arg7[%c0_1, %c0_2] : memref<1088x640xbf16, #tpu.memory_space<vmem>>, vector<16x640xbf16>
    tpu.vector_store %arg7[%c0_1, %c0_2], %1 {strides = array<i32>} : memref<1088x640xbf16, #tpu.memory_space<vmem>>, vector<16x640xbf16>,
    %c0_3 = arith.constant 0 : index
    %c0_4 = arith.constant 0 : index
    %c452 = arith.constant 452 : index
    %3 = vector.load %arg1[%c0_3, %c0_4, %c452] : memref<1x16x1664xbf16, #tpu.memory_space<vmem>>, vector<1x16x640xbf16>
    %4 = vector.shape_cast %3 : vector<1x16x640xbf16> to vector<16x640xbf16>
    %c16 = arith.constant 16 : index
    %c0_5 = arith.constant 0 : index
    %5 = vector.load %arg7[%c16, %c0_5] : memref<1088x640xbf16, #tpu.memory_space<vmem>>, vector<16x640xbf16>
    tpu.vector_store %arg7[%c16, %c0_5], %4 {strides = array<i32>} : memref<1088x640xbf16, #tpu.memory_space<vmem>>, vector<16x640xbf16>,
    %c0_6 = arith.constant 0 : index
    %c0_7 = arith.constant 0 : index
    %c453 = arith.constant 453 : index
    %6 = vector.load %arg1[%c0_6, %c0_7, %c453] : memref<1x16x1664xbf16, #tpu.memory_space<vmem>>, vector<1x16x640xbf16>
    %7 = vector.shape_cast %6 : vector<1x16x640xbf16> to vector<16x640xbf16>
    %c32 = arith.constant 32 : index
    %c0_8 = arith.constant 0 : index
    %8 = vector.load %arg7[%c32, %c0_8] : memref<1088x640xbf16, #tpu.memory_space<vmem>>, vector<16x640xbf16>
    tpu.vector_store %arg7[%c32, %c0_8], %7 {strides = array<i32>} : memref<1088x640xbf16, #tpu.memory_space<vmem>>, vector<16x640xbf16>,
    %c0_9 = arith.constant 0 : index
    %c0_10 = arith.constant 0 : index
    %c491 = arith.constant 491 : index
    %9 = vector.load %arg1[%c0_9, %c0_10, %c491] : memref<1x16x1664xbf16, #tpu.memory_space<vmem>>, vector<1x16x640xbf16>
    %10 = vector.shape_cast %9 : vector<1x16x640xbf16> to vector<16x640xbf16>
    %c48 = arith.constant 48 : index
    %c0_11 = arith.constant 0 : index
    %11 = vector.load %arg7[%c48, %c0_11] : memref<1088x640xbf16, #tpu.memory_space<vmem>>, vector<16x640xbf16>
    tpu.vector_store %arg7[%c48, %c0_11], %10 {strides = array<i32>} : memref<1088x640xbf16, #tpu.memory_space<vmem>>, vector<16x640xbf16>,
    %c0_12 = arith.constant 0 : index
    %c0_13 = arith.constant 0 : index
    %c492 = arith.constant 492 : index
    %12 = vector.load %arg1[%c0_12, %c0_13, %c492] : memref<1x16x1664xbf16, #tpu.memory_space<vmem>>, vector<1x16x640xbf16>
    %13 = vector.shape_cast %12 : vector<1x16x640xbf16> to vector<16x640xbf16>
    %c64 = arith.constant 64 : index
    %c0_14 = arith.constant 0 : index
    %14 = vector.load %arg7[%c64, %c0_14] : memref<1088x640xbf16, #tpu.memory_space<vmem>>, vector<16x640xbf16>
    tpu.vector_store %arg7[%c64, %c0_14], %13 {strides = array<i32>} : memref<1088x640xbf16, #tpu.memory_space<vmem>>, vector<16x640xbf16>,
    %c0_15 = arith.constant 0 : index
    %c0_16 = arith.constant 0 : index
    %c493 = arith.constant 493 : index
    %15 = vector.load %arg1[%c0_15, %c0_16, %c493] : memref<1x16x1664xbf16, #tpu.memory_space<vmem>>, vector<1x16x640xbf16>
    %16 = vector.shape_cast %15 : vector<1x16x640xbf16> to vector<16x640xbf16>
    %c80 = arith.constant 80 : index
    %c0_17 = arith.constant 0 : index
    %17 = vector.load %arg7[%c80, %c0_17] : memref<1088x640xbf16, #tpu.memory_space<vmem>>, vector<16x640xbf16>
    tpu.vector_store %arg7[%c80, %c0_17], %16 {strides = array<i32>} : memref<1088x640xbf16, #tpu.memory_space<vmem>>, vector<16x640xbf16>,
    %c0_18 = arith.constant 0 : index
    %c0_19 = arith.constant 0 : index
    %c531 = arith.constant 531 : index
    %18 = vector.load %arg1[%c0_18, %c0_19, %c531] : memref<1x16x1664xbf16, #tpu.memory_space<vmem>>, vector<1x16x640xbf16>
    %19 = vector.shape_cast %18 : vector<1x16x640xbf16> to vector<16x640xbf16>
    %c96 = arith.constant 96 : index
    %c0_20 = arith.constant 0 : index
    %20 = vector.load %arg7[%c96, %c0_20] : memref<1088x640xbf16, #tpu.memory_space<vmem>>, vector<16x640xbf16>
    tpu.vector_store %arg7[%c96, %c0_20], %19 {strides = array<i32>} : memref<1088x640xbf16, #tpu.memory_space<vmem>>, vector<16x640xbf16>,
    %c0_21 = arith.constant 0 : index
    %c0_22 = arith.constant 0 : index
    %c532 = arith.constant 532 : index
    %21 = vector.load %arg1[%c0_21, %c0_22, %c532] : memref<1x16x1664xbf16, #tpu.memory_space<vmem>>, vector<1x16x640xbf16>
    %22 = vector.shape_cast %21 : vector<1x16x640xbf16> to vector<16x640xbf16>
    %c112 = arith.constant 112 : index
    %c0_23 = arith.constant 0 : index
    %23 = vector.load %arg7[%c112, %c0_23] : memref<1088x640xbf16, #tpu.memory_space<vmem>>, vector<16x640xbf16>
    tpu.vector_store %arg7[%c112, %c0_23], %22 {strides = array<i32>} : memref<1088x640xbf16, #tpu.memory_space<vmem>>, vector<16x640xbf16>,
    %c0_24 = arith.constant 0 : index
    %c0_25 = arith.constant 0 : index
    %c533 = arith.constant 533 : index
    %24 = vector.load %arg1[%c0_24, %c0_25, %c533] : memref<1x16x1664xbf16, #tpu.memory_space<vmem>>, vector<1x16x640xbf16>
    %25 = vector.shape_cast %24 : vector<1x16x640xbf16> to vector<16x640xbf16>
    %c128 = arith.constant 128 : index
    %c0_26 = arith.constant 0 : index
    %26 = vector.load %arg7[%c128, %c0_26] : memref<1088x640xbf16, #tpu.memory_space<vmem>>, vector<16x640xbf16>
    tpu.vector_store %arg7[%c128, %c0_26], %25 {strides = array<i32>} : memref<1088x640xbf16, #tpu.memory_space<vmem>>, vector<16x640xbf16>,
    %c0_27 = arith.constant 0 : index
    %c0_28 = arith.constant 0 : index
    %c369 = arith.constant 369 : index
    %27 = vector.load %arg1[%c0_27, %c0_28, %c369] : memref<1x16x1664xbf16, #tpu.memory_space<vmem>>, vector<1x16x640xbf16>
    %28 = vector.shape_cast %27 : vector<1x16x640xbf16> to vector<16x640xbf16>
    %c144 = arith.constant 144 : index
    %c0_29 = arith.constant 0 : index
    %29 = vector.load %arg7[%c144, %c0_29] : memref<1088x640xbf16, #tpu.memory_space<vmem>>, vector<16x640xbf16>
    tpu.vector_store %arg7[%c144, %c0_29], %28 {strides = array<i32>} : memref<1088x640xbf16, #tpu.memory_space<vmem>>, vector<16x640xbf16>,
    %c0_30 = arith.constant 0 : index
    %c0_31 = arith.constant 0 : index
    %c372 = arith.constant 372 : index
    %30 = vector.load %arg1[%c0_30, %c0_31, %c372] : memref<1x16x1664xbf16, #tpu.memory_space<vmem>>, vector<1x16x640xbf16>
    %31 = vector.shape_cast %30 : vector<1x16x640xbf16> to vector<16x640xbf16>
    %c160 = arith.constant 160 : index
    %c0_32 = arith.constant 0 : index
    %32 = vector.load %arg7[%c160, %c0_32] : memref<1088x640xbf16, #tpu.memory_space<vmem>>, vector<16x640xbf16>
    tpu.vector_store %arg7[%c160, %c0_32], %31 {strides = array<i32>} : memref<1088x640xbf16, #tpu.memory_space<vmem>>, vector<16x640xbf16>,
    %c0_33 = arith.constant 0 : index
    %c0_34 = arith.constant 0 : index
    %c375 = arith.constant 375 : index
    %33 = vector.load %arg1[%c0_33, %c0_34, %c375] : memref<1x16x1664xbf16, #tpu.memory_space<vmem>>, vector<1x16x640xbf16>
    %34 = vector.shape_cast %33 : vector<1x16x640xbf16> to vector<16x640xbf16>
    %c176 = arith.constant 176 : index
    %c0_35 = arith.constant 0 : index
    %35 = vector.load %arg7[%c176, %c0_35] : memref<1088x640xbf16, #tpu.memory_space<vmem>>, vector<16x640xbf16>
    tpu.vector_store %arg7[%c176, %c0_35], %34 {strides = array<i32>} : memref<1088x640xbf16, #tpu.memory_space<vmem>>, vector<16x640xbf16>,
    %c0_36 = arith.constant 0 : index
    %c0_37 = arith.constant 0 : index
    %c489 = arith.constant 489 : index
    %36 = vector.load %arg1[%c0_36, %c0_37, %c489] : memref<1x16x1664xbf16, #tpu.memory_space<vmem>>, vector<1x16x640xbf16>
    %37 = vector.shape_cast %36 : vector<1x16x640xbf16> to vector<16x640xbf16>
    %c192 = arith.constant 192 : index
    %c0_38 = arith.constant 0 : index
    %38 = vector.load %arg7[%c192, %c0_38] : memref<1088x640xbf16, #tpu.memory_space<vmem>>, vector<16x640xbf16>
    tpu.vector_store %arg7[%c192, %c0_38], %37 {strides = array<i32>} : memref<1088x640xbf16, #tpu.memory_space<vmem>>, vector<16x640xbf16>,
    %c0_39 = arith.constant 0 : index
    %c0_40 = arith.constant 0 : index
    %c492_41 = arith.constant 492 : index
    %39 = vector.load %arg1[%c0_39, %c0_40, %c492_41] : memref<1x16x1664xbf16, #tpu.memory_space<vmem>>, vector<1x16x640xbf16>
    %40 = vector.shape_cast %39 : vector<1x16x640xbf16> to vector<16x640xbf16>
    %c208 = arith.constant 208 : index
    %c0_42 = arith.constant 0 : index
    %41 = vector.load %arg7[%c208, %c0_42] : memref<1088x640xbf16, #tpu.memory_space<vmem>>, vector<16x640xbf16>
    tpu.vector_store %arg7[%c208, %c0_42], %40 {strides = array<i32>} : memref<1088x640xbf16, #tpu.memory_space<vmem>>, vector<16x640xbf16>,
    %c0_43 = arith.constant 0 : index
    %c0_44 = arith.constant 0 : index
    %c495 = arith.constant 495 : index
    %42 = vector.load %arg1[%c0_43, %c0_44, %c495] : memref<1x16x1664xbf16, #tpu.memory_space<vmem>>, vector<1x16x640xbf16>
    %43 = vector.shape_cast %42 : vector<1x16x640xbf16> to vector<16x640xbf16>
    %c224 = arith.constant 224 : index
    %c0_45 = arith.constant 0 : index
    %44 = vector.load %arg7[%c224, %c0_45] : memref<1088x640xbf16, #tpu.memory_space<vmem>>, vector<16x640xbf16>
    tpu.vector_store %arg7[%c224, %c0_45], %43 {strides = array<i32>} : memref<1088x640xbf16, #tpu.memory_space<vmem>>, vector<16x640xbf16>,
    %c0_46 = arith.constant 0 : index
    %c0_47 = arith.constant 0 : index
    %c609 = arith.constant 609 : index
    %45 = vector.load %arg1[%c0_46, %c0_47, %c609] : memref<1x16x1664xbf16, #tpu.memory_space<vmem>>, vector<1x16x640xbf16>
    %46 = vector.shape_cast %45 : vector<1x16x640xbf16> to vector<16x640xbf16>
    %c240 = arith.constant 240 : index
    %c0_48 = arith.constant 0 : index
    %47 = vector.load %arg7[%c240, %c0_48] : memref<1088x640xbf16, #tpu.memory_space<vmem>>, vector<16x640xbf16>
    tpu.vector_store %arg7[%c240, %c0_48], %46 {strides = array<i32>} : memref<1088x640xbf16, #tpu.memory_space<vmem>>, vector<16x640xbf16>,
    %c0_49 = arith.constant 0 : index
    %c0_50 = arith.constant 0 : index
    %c612 = arith.constant 612 : index
    %48 = vector.load %arg1[%c0_49, %c0_50, %c612] : memref<1x16x1664xbf16, #tpu.memory_space<vmem>>, vector<1x16x640xbf16>
    %49 = vector.shape_cast %48 : vector<1x16x640xbf16> to vector<16x640xbf16>
    %c256 = arith.constant 256 : index
    %c0_51 = arith.constant 0 : index
    %50 = vector.load %arg7[%c256, %c0_51] : memref<1088x640xbf16, #tpu.memory_space<vmem>>, vector<16x640xbf16>
    tpu.vector_store %arg7[%c256, %c0_51], %49 {strides = array<i32>} : memref<1088x640xbf16, #tpu.memory_space<vmem>>, vector<16x640xbf16>,
    %c0_52 = arith.constant 0 : index
    %c0_53 = arith.constant 0 : index
    %c615 = arith.constant 615 : index
    %51 = vector.load %arg1[%c0_52, %c0_53, %c615] : memref<1x16x1664xbf16, #tpu.memory_space<vmem>>, vector<1x16x640xbf16>
    %52 = vector.shape_cast %51 : vector<1x16x640xbf16> to vector<16x640xbf16>
    %c272 = arith.constant 272 : index
    %c0_54 = arith.constant 0 : index
    %53 = vector.load %arg7[%c272, %c0_54] : memref<1088x640xbf16, #tpu.memory_space<vmem>>, vector<16x640xbf16>
    tpu.vector_store %arg7[%c272, %c0_54], %52 {strides = array<i32>} : memref<1088x640xbf16, #tpu.memory_space<vmem>>, vector<16x640xbf16>,
    %c0_55 = arith.constant 0 : index
    %c0_56 = arith.constant 0 : index
    %c246 = arith.constant 246 : index
    %54 = vector.load %arg1[%c0_55, %c0_56, %c246] : memref<1x16x1664xbf16, #tpu.memory_space<vmem>>, vector<1x16x640xbf16>
    %55 = vector.shape_cast %54 : vector<1x16x640xbf16> to vector<16x640xbf16>
    %c288 = arith.constant 288 : index
    %c0_57 = arith.constant 0 : index
    %56 = vector.load %arg7[%c288, %c0_57] : memref<1088x640xbf16, #tpu.memory_space<vmem>>, vector<16x640xbf16>
    tpu.vector_store %arg7[%c288, %c0_57], %55 {strides = array<i32>} : memref<1088x640xbf16, #tpu.memory_space<vmem>>, vector<16x640xbf16>,
    %c0_58 = arith.constant 0 : index
    %c0_59 = arith.constant 0 : index
    %c249 = arith.constant 249 : index
    %57 = vector.load %arg1[%c0_58, %c0_59, %c249] : memref<1x16x1664xbf16, #tpu.memory_space<vmem>>, vector<1x16x640xbf16>
    %58 = vector.shape_cast %57 : vector<1x16x640xbf16> to vector<16x640xbf16>
    %c304 = arith.constant 304 : index
    %c0_60 = arith.constant 0 : index
    %59 = vector.load %arg7[%c304, %c0_60] : memref<1088x640xbf16, #tpu.memory_space<vmem>>, vector<16x640xbf16>
    tpu.vector_store %arg7[%c304, %c0_60], %58 {strides = array<i32>} : memref<1088x640xbf16, #tpu.memory_space<vmem>>, vector<16x640xbf16>,
    %c0_61 = arith.constant 0 : index
    %c0_62 = arith.constant 0 : index
    %c252 = arith.constant 252 : index
    %60 = vector.load %arg1[%c0_61, %c0_62, %c252] : memref<1x16x1664xbf16, #tpu.memory_space<vmem>>, vector<1x16x640xbf16>
    %61 = vector.shape_cast %60 : vector<1x16x640xbf16> to vector<16x640xbf16>
    %c320 = arith.constant 320 : index
    %c0_63 = arith.constant 0 : index
    %62 = vector.load %arg7[%c320, %c0_63] : memref<1088x640xbf16, #tpu.memory_space<vmem>>, vector<16x640xbf16>
    tpu.vector_store %arg7[%c320, %c0_63], %61 {strides = array<i32>} : memref<1088x640xbf16, #tpu.memory_space<vmem>>, vector<16x640xbf16>,
    %c0_64 = arith.constant 0 : index
    %c0_65 = arith.constant 0 : index
    %c255 = arith.constant 255 : index
    %63 = vector.load %arg1[%c0_64, %c0_65, %c255] : memref<1x16x1664xbf16, #tpu.memory_space<vmem>>, vector<1x16x640xbf16>
    %64 = vector.shape_cast %63 : vector<1x16x640xbf16> to vector<16x640xbf16>
    %c336 = arith.constant 336 : index
    %c0_66 = arith.constant 0 : index
    %65 = vector.load %arg7[%c336, %c0_66] : memref<1088x640xbf16, #tpu.memory_space<vmem>>, vector<16x640xbf16>
    tpu.vector_store %arg7[%c336, %c0_66], %64 {strides = array<i32>} : memref<1088x640xbf16, #tpu.memory_space<vmem>>, vector<16x640xbf16>,
    %c0_67 = arith.constant 0 : index
    %c0_68 = arith.constant 0 : index
    %c258 = arith.constant 258 : index
    %66 = vector.load %arg1[%c0_67, %c0_68, %c258] : memref<1x16x1664xbf16, #tpu.memory_space<vmem>>, vector<1x16x640xbf16>
    %67 = vector.shape_cast %66 : vector<1x16x640xbf16> to vector<16x640xbf16>
    %c352 = arith.constant 352 : index
    %c0_69 = arith.constant 0 : index
    %68 = vector.load %arg7[%c352, %c0_69] : memref<1088x640xbf16, #tpu.memory_space<vmem>>, vector<16x640xbf16>
    tpu.vector_store %arg7[%c352, %c0_69], %67 {strides = array<i32>} : memref<1088x640xbf16, #tpu.memory_space<vmem>>, vector<16x640xbf16>,
    %c0_70 = arith.constant 0 : index
    %c0_71 = arith.constant 0 : index
    %c366 = arith.constant 366 : index
    %69 = vector.load %arg1[%c0_70, %c0_71, %c366] : memref<1x16x1664xbf16, #tpu.memory_space<vmem>>, vector<1x16x640xbf16>
    %70 = vector.shape_cast %69 : vector<1x16x640xbf16> to vector<16x640xbf16>
    %c368 = arith.constant 368 : index
    %c0_72 = arith.constant 0 : index
    %71 = vector.load %arg7[%c368, %c0_72] : memref<1088x640xbf16, #tpu.memory_space<vmem>>, vector<16x640xbf16>
    tpu.vector_store %arg7[%c368, %c0_72], %70 {strides = array<i32>} : memref<1088x640xbf16, #tpu.memory_space<vmem>>, vector<16x640xbf16>,
    %c0_73 = arith.constant 0 : index
    %c0_74 = arith.constant 0 : index
    %c369_75 = arith.constant 369 : index
    %72 = vector.load %arg1[%c0_73, %c0_74, %c369_75] : memref<1x16x1664xbf16, #tpu.memory_space<vmem>>, vector<1x16x640xbf16>
    %73 = vector.shape_cast %72 : vector<1x16x640xbf16> to vector<16x640xbf16>
    %c384 = arith.constant 384 : index
    %c0_76 = arith.constant 0 : index
    %74 = vector.load %arg7[%c384, %c0_76] : memref<1088x640xbf16, #tpu.memory_space<vmem>>, vector<16x640xbf16>
    tpu.vector_store %arg7[%c384, %c0_76], %73 {strides = array<i32>} : memref<1088x640xbf16, #tpu.memory_space<vmem>>, vector<16x640xbf16>,
    %c0_77 = arith.constant 0 : index
    %c0_78 = arith.constant 0 : index
    %c372_79 = arith.constant 372 : index
    %75 = vector.load %arg1[%c0_77, %c0_78, %c372_79] : memref<1x16x1664xbf16, #tpu.memory_space<vmem>>, vector<1x16x640xbf16>
    %76 = vector.shape_cast %75 : vector<1x16x640xbf16> to vector<16x640xbf16>
    %c400 = arith.constant 400 : index
    %c0_80 = arith.constant 0 : index
    %77 = vector.load %arg7[%c400, %c0_80] : memref<1088x640xbf16, #tpu.memory_space<vmem>>, vector<16x640xbf16>
    tpu.vector_store %arg7[%c400, %c0_80], %76 {strides = array<i32>} : memref<1088x640xbf16, #tpu.memory_space<vmem>>, vector<16x640xbf16>,
    %c0_81 = arith.constant 0 : index
    %c0_82 = arith.constant 0 : index
    %c375_83 = arith.constant 375 : index
    %78 = vector.load %arg1[%c0_81, %c0_82, %c375_83] : memref<1x16x1664xbf16, #tpu.memory_space<vmem>>, vector<1x16x640xbf16>
    %79 = vector.shape_cast %78 : vector<1x16x640xbf16> to vector<16x640xbf16>
    %c416 = arith.constant 416 : index
    %c0_84 = arith.constant 0 : index
    %80 = vector.load %arg7[%c416, %c0_84] : memref<1088x640xbf16, #tpu.memory_space<vmem>>, vector<16x640xbf16>
    tpu.vector_store %arg7[%c416, %c0_84], %79 {strides = array<i32>} : memref<1088x640xbf16, #tpu.memory_space<vmem>>, vector<16x640xbf16>,
    %c0_85 = arith.constant 0 : index
    %c0_86 = arith.constant 0 : index
    %c378 = arith.constant 378 : index
    %81 = vector.load %arg1[%c0_85, %c0_86, %c378] : memref<1x16x1664xbf16, #tpu.memory_space<vmem>>, vector<1x16x640xbf16>
    %82 = vector.shape_cast %81 : vector<1x16x640xbf16> to vector<16x640xbf16>
    %c432 = arith.constant 432 : index
    %c0_87 = arith.constant 0 : index
    %83 = vector.load %arg7[%c432, %c0_87] : memref<1088x640xbf16, #tpu.memory_space<vmem>>, vector<16x640xbf16>
    tpu.vector_store %arg7[%c432, %c0_87], %82 {strides = array<i32>} : memref<1088x640xbf16, #tpu.memory_space<vmem>>, vector<16x640xbf16>,
    %c0_88 = arith.constant 0 : index
    %c0_89 = arith.constant 0 : index
    %c486 = arith.constant 486 : index
    %84 = vector.load %arg1[%c0_88, %c0_89, %c486] : memref<1x16x1664xbf16, #tpu.memory_space<vmem>>, vector<1x16x640xbf16>
    %85 = vector.shape_cast %84 : vector<1x16x640xbf16> to vector<16x640xbf16>
    %c448 = arith.constant 448 : index
    %c0_90 = arith.constant 0 : index
    %86 = vector.load %arg7[%c448, %c0_90] : memref<1088x640xbf16, #tpu.memory_space<vmem>>, vector<16x640xbf16>
    tpu.vector_store %arg7[%c448, %c0_90], %85 {strides = array<i32>} : memref<1088x640xbf16, #tpu.memory_space<vmem>>, vector<16x640xbf16>,
    %c0_91 = arith.constant 0 : index
    %c0_92 = arith.constant 0 : index
    %c489_93 = arith.constant 489 : index
    %87 = vector.load %arg1[%c0_91, %c0_92, %c489_93] : memref<1x16x1664xbf16, #tpu.memory_space<vmem>>, vector<1x16x640xbf16>
    %88 = vector.shape_cast %87 : vector<1x16x640xbf16> to vector<16x640xbf16>
    %c464 = arith.constant 464 : index
    %c0_94 = arith.constant 0 : index
    %89 = vector.load %arg7[%c464, %c0_94] : memref<1088x640xbf16, #tpu.memory_space<vmem>>, vector<16x640xbf16>
    tpu.vector_store %arg7[%c464, %c0_94], %88 {strides = array<i32>} : memref<1088x640xbf16, #tpu.memory_space<vmem>>, vector<16x640xbf16>,
    %c0_95 = arith.constant 0 : index
    %c0_96 = arith.constant 0 : index
    %c492_97 = arith.constant 492 : index
    %90 = vector.load %arg1[%c0_95, %c0_96, %c492_97] : memref<1x16x1664xbf16, #tpu.memory_space<vmem>>, vector<1x16x640xbf16>
    %91 = vector.shape_cast %90 : vector<1x16x640xbf16> to vector<16x640xbf16>
    %c480 = arith.constant 480 : index
    %c0_98 = arith.constant 0 : index
    %92 = vector.load %arg7[%c480, %c0_98] : memref<1088x640xbf16, #tpu.memory_space<vmem>>, vector<16x640xbf16>
    tpu.vector_store %arg7[%c480, %c0_98], %91 {strides = array<i32>} : memref<1088x640xbf16, #tpu.memory_space<vmem>>, vector<16x640xbf16>,
    %c0_99 = arith.constant 0 : index
    %c0_100 = arith.constant 0 : index
    %c495_101 = arith.constant 495 : index
    %93 = vector.load %arg1[%c0_99, %c0_100, %c495_101] : memref<1x16x1664xbf16, #tpu.memory_space<vmem>>, vector<1x16x640xbf16>
    %94 = vector.shape_cast %93 : vector<1x16x640xbf16> to vector<16x640xbf16>
    %c496 = arith.constant 496 : index
    %c0_102 = arith.constant 0 : index
    %95 = vector.load %arg7[%c496, %c0_102] : memref<1088x640xbf16, #tpu.memory_space<vmem>>, vector<16x640xbf16>
    tpu.vector_store %arg7[%c496, %c0_102], %94 {strides = array<i32>} : memref<1088x640xbf16, #tpu.memory_space<vmem>>, vector<16x640xbf16>,
    %c0_103 = arith.constant 0 : index
    %c0_104 = arith.constant 0 : index
    %c498 = arith.constant 498 : index
    %96 = vector.load %arg1[%c0_103, %c0_104, %c498] : memref<1x16x1664xbf16, #tpu.memory_space<vmem>>, vector<1x16x640xbf16>
    %97 = vector.shape_cast %96 : vector<1x16x640xbf16> to vector<16x640xbf16>
    %c512 = arith.constant 512 : index
    %c0_105 = arith.constant 0 : index
    %98 = vector.load %arg7[%c512, %c0_105] : memref<1088x640xbf16, #tpu.memory_space<vmem>>, vector<16x640xbf16>
    tpu.vector_store %arg7[%c512, %c0_105], %97 {strides = array<i32>} : memref<1088x640xbf16, #tpu.memory_space<vmem>>, vector<16x640xbf16>,
    %c0_106 = arith.constant 0 : index
    %c0_107 = arith.constant 0 : index
    %c606 = arith.constant 606 : index
    %99 = vector.load %arg1[%c0_106, %c0_107, %c606] : memref<1x16x1664xbf16, #tpu.memory_space<vmem>>, vector<1x16x640xbf16>
    %100 = vector.shape_cast %99 : vector<1x16x640xbf16> to vector<16x640xbf16>
    %c528 = arith.constant 528 : index
    %c0_108 = arith.constant 0 : index
    %101 = vector.load %arg7[%c528, %c0_108] : memref<1088x640xbf16, #tpu.memory_space<vmem>>, vector<16x640xbf16>
    tpu.vector_store %arg7[%c528, %c0_108], %100 {strides = array<i32>} : memref<1088x640xbf16, #tpu.memory_space<vmem>>, vector<16x640xbf16>,
    %c0_109 = arith.constant 0 : index
    %c0_110 = arith.constant 0 : index
    %c609_111 = arith.constant 609 : index
    %102 = vector.load %arg1[%c0_109, %c0_110, %c609_111] : memref<1x16x1664xbf16, #tpu.memory_space<vmem>>, vector<1x16x640xbf16>
    %103 = vector.shape_cast %102 : vector<1x16x640xbf16> to vector<16x640xbf16>
    %c544 = arith.constant 544 : index
    %c0_112 = arith.constant 0 : index
    %104 = vector.load %arg7[%c544, %c0_112] : memref<1088x640xbf16, #tpu.memory_space<vmem>>, vector<16x640xbf16>
    tpu.vector_store %arg7[%c544, %c0_112], %103 {strides = array<i32>} : memref<1088x640xbf16, #tpu.memory_space<vmem>>, vector<16x640xbf16>,
    %c0_113 = arith.constant 0 : index
    %c0_114 = arith.constant 0 : index
    %c612_115 = arith.constant 612 : index
    %105 = vector.load %arg1[%c0_113, %c0_114, %c612_115] : memref<1x16x1664xbf16, #tpu.memory_space<vmem>>, vector<1x16x640xbf16>
    %106 = vector.shape_cast %105 : vector<1x16x640xbf16> to vector<16x640xbf16>
    %c560 = arith.constant 560 : index
    %c0_116 = arith.constant 0 : index
    %107 = vector.load %arg7[%c560, %c0_116] : memref<1088x640xbf16, #tpu.memory_space<vmem>>, vector<16x640xbf16>
    tpu.vector_store %arg7[%c560, %c0_116], %106 {strides = array<i32>} : memref<1088x640xbf16, #tpu.memory_space<vmem>>, vector<16x640xbf16>,
    %c0_117 = arith.constant 0 : index
    %c0_118 = arith.constant 0 : index
    %c615_119 = arith.constant 615 : index
    %108 = vector.load %arg1[%c0_117, %c0_118, %c615_119] : memref<1x16x1664xbf16, #tpu.memory_space<vmem>>, vector<1x16x640xbf16>
    %109 = vector.shape_cast %108 : vector<1x16x640xbf16> to vector<16x640xbf16>
    %c576 = arith.constant 576 : index
    %c0_120 = arith.constant 0 : index
    %110 = vector.load %arg7[%c576, %c0_120] : memref<1088x640xbf16, #tpu.memory_space<vmem>>, vector<16x640xbf16>
    tpu.vector_store %arg7[%c576, %c0_120], %109 {strides = array<i32>} : memref<1088x640xbf16, #tpu.memory_space<vmem>>, vector<16x640xbf16>,
    %c0_121 = arith.constant 0 : index
    %c0_122 = arith.constant 0 : index
    %c618 = arith.constant 618 : index
    %111 = vector.load %arg1[%c0_121, %c0_122, %c618] : memref<1x16x1664xbf16, #tpu.memory_space<vmem>>, vector<1x16x640xbf16>
    %112 = vector.shape_cast %111 : vector<1x16x640xbf16> to vector<16x640xbf16>
    %c592 = arith.constant 592 : index
    %c0_123 = arith.constant 0 : index
    %113 = vector.load %arg7[%c592, %c0_123] : memref<1088x640xbf16, #tpu.memory_space<vmem>>, vector<16x640xbf16>
    tpu.vector_store %arg7[%c592, %c0_123], %112 {strides = array<i32>} : memref<1088x640xbf16, #tpu.memory_space<vmem>>, vector<16x640xbf16>,
    %c0_124 = arith.constant 0 : index
    %c0_125 = arith.constant 0 : index
    %c726 = arith.constant 726 : index
    %114 = vector.load %arg1[%c0_124, %c0_125, %c726] : memref<1x16x1664xbf16, #tpu.memory_space<vmem>>, vector<1x16x640xbf16>
    %115 = vector.shape_cast %114 : vector<1x16x640xbf16> to vector<16x640xbf16>
    %c608 = arith.constant 608 : index
    %c0_126 = arith.constant 0 : index
    %116 = vector.load %arg7[%c608, %c0_126] : memref<1088x640xbf16, #tpu.memory_space<vmem>>, vector<16x640xbf16>
    tpu.vector_store %arg7[%c608, %c0_126], %115 {strides = array<i32>} : memref<1088x640xbf16, #tpu.memory_space<vmem>>, vector<16x640xbf16>,
    %c0_127 = arith.constant 0 : index
    %c0_128 = arith.constant 0 : index
    %c729 = arith.constant 729 : index
    %117 = vector.load %arg1[%c0_127, %c0_128, %c729] : memref<1x16x1664xbf16, #tpu.memory_space<vmem>>, vector<1x16x640xbf16>
    %118 = vector.shape_cast %117 : vector<1x16x640xbf16> to vector<16x640xbf16>
    %c624 = arith.constant 624 : index
    %c0_129 = arith.constant 0 : index
    %119 = vector.load %arg7[%c624, %c0_129] : memref<1088x640xbf16, #tpu.memory_space<vmem>>, vector<16x640xbf16>
    tpu.vector_store %arg7[%c624, %c0_129], %118 {strides = array<i32>} : memref<1088x640xbf16, #tpu.memory_space<vmem>>, vector<16x640xbf16>,
    %c0_130 = arith.constant 0 : index
    %c0_131 = arith.constant 0 : index
    %c732 = arith.constant 732 : index
    %120 = vector.load %arg1[%c0_130, %c0_131, %c732] : memref<1x16x1664xbf16, #tpu.memory_space<vmem>>, vector<1x16x640xbf16>
    %121 = vector.shape_cast %120 : vector<1x16x640xbf16> to vector<16x640xbf16>
    %c640 = arith.constant 640 : index
    %c0_132 = arith.constant 0 : index
    %122 = vector.load %arg7[%c640, %c0_132] : memref<1088x640xbf16, #tpu.memory_space<vmem>>, vector<16x640xbf16>
    tpu.vector_store %arg7[%c640, %c0_132], %121 {strides = array<i32>} : memref<1088x640xbf16, #tpu.memory_space<vmem>>, vector<16x640xbf16>,
    %c0_133 = arith.constant 0 : index
    %c0_134 = arith.constant 0 : index
    %c735 = arith.constant 735 : index
    %123 = vector.load %arg1[%c0_133, %c0_134, %c735] : memref<1x16x1664xbf16, #tpu.memory_space<vmem>>, vector<1x16x640xbf16>
    %124 = vector.shape_cast %123 : vector<1x16x640xbf16> to vector<16x640xbf16>
    %c656 = arith.constant 656 : index
    %c0_135 = arith.constant 0 : index
    %125 = vector.load %arg7[%c656, %c0_135] : memref<1088x640xbf16, #tpu.memory_space<vmem>>, vector<16x640xbf16>
    tpu.vector_store %arg7[%c656, %c0_135], %124 {strides = array<i32>} : memref<1088x640xbf16, #tpu.memory_space<vmem>>, vector<16x640xbf16>,
    %c0_136 = arith.constant 0 : index
    %c0_137 = arith.constant 0 : index
    %c738 = arith.constant 738 : index
    %126 = vector.load %arg1[%c0_136, %c0_137, %c738] : memref<1x16x1664xbf16, #tpu.memory_space<vmem>>, vector<1x16x640xbf16>
    %127 = vector.shape_cast %126 : vector<1x16x640xbf16> to vector<16x640xbf16>
    %c672 = arith.constant 672 : index
    %c0_138 = arith.constant 0 : index
    %128 = vector.load %arg7[%c672, %c0_138] : memref<1088x640xbf16, #tpu.memory_space<vmem>>, vector<16x640xbf16>
    tpu.vector_store %arg7[%c672, %c0_138], %127 {strides = array<i32>} : memref<1088x640xbf16, #tpu.memory_space<vmem>>, vector<16x640xbf16>,
    %c0_139 = arith.constant 0 : index
    %c0_140 = arith.constant 0 : index
    %c0_141 = arith.constant 0 : index
    %129 = vector.load %arg1[%c0_139, %c0_140, %c0_141] : memref<1x16x1664xbf16, #tpu.memory_space<vmem>>, vector<1x16x640xbf16>
    %130 = vector.shape_cast %129 : vector<1x16x640xbf16> to vector<16x640xbf16>
    %c688 = arith.constant 688 : index
    %c0_142 = arith.constant 0 : index
    %131 = vector.load %arg7[%c688, %c0_142] : memref<1088x640xbf16, #tpu.memory_space<vmem>>, vector<16x640xbf16>
    tpu.vector_store %arg7[%c688, %c0_142], %130 {strides = array<i32>} : memref<1088x640xbf16, #tpu.memory_space<vmem>>, vector<16x640xbf16>,
    %c0_143 = arith.constant 0 : index
    %c0_144 = arith.constant 0 : index
    %c6 = arith.constant 6 : index
    %132 = vector.load %arg1[%c0_143, %c0_144, %c6] : memref<1x16x1664xbf16, #tpu.memory_space<vmem>>, vector<1x16x640xbf16>
    %133 = vector.shape_cast %132 : vector<1x16x640xbf16> to vector<16x640xbf16>
    %c704 = arith.constant 704 : index
    %c0_145 = arith.constant 0 : index
    %134 = vector.load %arg7[%c704, %c0_145] : memref<1088x640xbf16, #tpu.memory_space<vmem>>, vector<16x640xbf16>
    tpu.vector_store %arg7[%c704, %c0_145], %133 {strides = array<i32>} : memref<1088x640xbf16, #tpu.memory_space<vmem>>, vector<16x640xbf16>,
    %c0_146 = arith.constant 0 : index
    %c0_147 = arith.constant 0 : index
    %c12 = arith.constant 12 : index
    %135 = vector.load %arg1[%c0_146, %c0_147, %c12] : memref<1x16x1664xbf16, #tpu.memory_space<vmem>>, vector<1x16x640xbf16>
    %136 = vector.shape_cast %135 : vector<1x16x640xbf16> to vector<16x640xbf16>
    %c720 = arith.constant 720 : index
    %c0_148 = arith.constant 0 : index
    %137 = vector.load %arg7[%c720, %c0_148] : memref<1088x640xbf16, #tpu.memory_space<vmem>>, vector<16x640xbf16>
    tpu.vector_store %arg7[%c720, %c0_148], %136 {strides = array<i32>} : memref<1088x640xbf16, #tpu.memory_space<vmem>>, vector<16x640xbf16>,
    %c0_149 = arith.constant 0 : index
    %c0_150 = arith.constant 0 : index
    %c18 = arith.constant 18 : index
    %138 = vector.load %arg1[%c0_149, %c0_150, %c18] : memref<1x16x1664xbf16, #tpu.memory_space<vmem>>, vector<1x16x640xbf16>
    %139 = vector.shape_cast %138 : vector<1x16x640xbf16> to vector<16x640xbf16>
    %c736 = arith.constant 736 : index
    %c0_151 = arith.constant 0 : index
    %140 = vector.load %arg7[%c736, %c0_151] : memref<1088x640xbf16, #tpu.memory_space<vmem>>, vector<16x640xbf16>
    tpu.vector_store %arg7[%c736, %c0_151], %139 {strides = array<i32>} : memref<1088x640xbf16, #tpu.memory_space<vmem>>, vector<16x640xbf16>,
    %c0_152 = arith.constant 0 : index
    %c0_153 = arith.constant 0 : index
    %c24 = arith.constant 24 : index
    %141 = vector.load %arg1[%c0_152, %c0_153, %c24] : memref<1x16x1664xbf16, #tpu.memory_space<vmem>>, vector<1x16x640xbf16>
    %142 = vector.shape_cast %141 : vector<1x16x640xbf16> to vector<16x640xbf16>
    %c752 = arith.constant 752 : index
    %c0_154 = arith.constant 0 : index
    %143 = vector.load %arg7[%c752, %c0_154] : memref<1088x640xbf16, #tpu.memory_space<vmem>>, vector<16x640xbf16>
    tpu.vector_store %arg7[%c752, %c0_154], %142 {strides = array<i32>} : memref<1088x640xbf16, #tpu.memory_space<vmem>>, vector<16x640xbf16>,
    %c0_155 = arith.constant 0 : index
    %c0_156 = arith.constant 0 : index
    %c240_157 = arith.constant 240 : index
    %144 = vector.load %arg1[%c0_155, %c0_156, %c240_157] : memref<1x16x1664xbf16, #tpu.memory_space<vmem>>, vector<1x16x640xbf16>
    %145 = vector.shape_cast %144 : vector<1x16x640xbf16> to vector<16x640xbf16>
    %c768 = arith.constant 768 : index
    %c0_158 = arith.constant 0 : index
    %146 = vector.load %arg7[%c768, %c0_158] : memref<1088x640xbf16, #tpu.memory_space<vmem>>, vector<16x640xbf16>
    tpu.vector_store %arg7[%c768, %c0_158], %145 {strides = array<i32>} : memref<1088x640xbf16, #tpu.memory_space<vmem>>, vector<16x640xbf16>,
    %c0_159 = arith.constant 0 : index
    %c0_160 = arith.constant 0 : index
    %c246_161 = arith.constant 246 : index
    %147 = vector.load %arg1[%c0_159, %c0_160, %c246_161] : memref<1x16x1664xbf16, #tpu.memory_space<vmem>>, vector<1x16x640xbf16>
    %148 = vector.shape_cast %147 : vector<1x16x640xbf16> to vector<16x640xbf16>
    %c784 = arith.constant 784 : index
    %c0_162 = arith.constant 0 : index
    %149 = vector.load %arg7[%c784, %c0_162] : memref<1088x640xbf16, #tpu.memory_space<vmem>>, vector<16x640xbf16>
    tpu.vector_store %arg7[%c784, %c0_162], %148 {strides = array<i32>} : memref<1088x640xbf16, #tpu.memory_space<vmem>>, vector<16x640xbf16>,
    %c0_163 = arith.constant 0 : index
    %c0_164 = arith.constant 0 : index
    %c252_165 = arith.constant 252 : index
    %150 = vector.load %arg1[%c0_163, %c0_164, %c252_165] : memref<1x16x1664xbf16, #tpu.memory_space<vmem>>, vector<1x16x640xbf16>
    %151 = vector.shape_cast %150 : vector<1x16x640xbf16> to vector<16x640xbf16>
    %c800 = arith.constant 800 : index
    %c0_166 = arith.constant 0 : index
    %152 = vector.load %arg7[%c800, %c0_166] : memref<1088x640xbf16, #tpu.memory_space<vmem>>, vector<16x640xbf16>
    tpu.vector_store %arg7[%c800, %c0_166], %151 {strides = array<i32>} : memref<1088x640xbf16, #tpu.memory_space<vmem>>, vector<16x640xbf16>,
    %c0_167 = arith.constant 0 : index
    %c0_168 = arith.constant 0 : index
    %c258_169 = arith.constant 258 : index
    %153 = vector.load %arg1[%c0_167, %c0_168, %c258_169] : memref<1x16x1664xbf16, #tpu.memory_space<vmem>>, vector<1x16x640xbf16>
    %154 = vector.shape_cast %153 : vector<1x16x640xbf16> to vector<16x640xbf16>
    %c816 = arith.constant 816 : index
    %c0_170 = arith.constant 0 : index
    %155 = vector.load %arg7[%c816, %c0_170] : memref<1088x640xbf16, #tpu.memory_space<vmem>>, vector<16x640xbf16>
    tpu.vector_store %arg7[%c816, %c0_170], %154 {strides = array<i32>} : memref<1088x640xbf16, #tpu.memory_space<vmem>>, vector<16x640xbf16>,
    %c0_171 = arith.constant 0 : index
    %c0_172 = arith.constant 0 : index
    %c264 = arith.constant 264 : index
    %156 = vector.load %arg1[%c0_171, %c0_172, %c264] : memref<1x16x1664xbf16, #tpu.memory_space<vmem>>, vector<1x16x640xbf16>
    %157 = vector.shape_cast %156 : vector<1x16x640xbf16> to vector<16x640xbf16>
    %c832 = arith.constant 832 : index
    %c0_173 = arith.constant 0 : index
    %158 = vector.load %arg7[%c832, %c0_173] : memref<1088x640xbf16, #tpu.memory_space<vmem>>, vector<16x640xbf16>
    tpu.vector_store %arg7[%c832, %c0_173], %157 {strides = array<i32>} : memref<1088x640xbf16, #tpu.memory_space<vmem>>, vector<16x640xbf16>,
    %c0_174 = arith.constant 0 : index
    %c0_175 = arith.constant 0 : index
    %c480_176 = arith.constant 480 : index
    %159 = vector.load %arg1[%c0_174, %c0_175, %c480_176] : memref<1x16x1664xbf16, #tpu.memory_space<vmem>>, vector<1x16x640xbf16>
    %160 = vector.shape_cast %159 : vector<1x16x640xbf16> to vector<16x640xbf16>
    %c848 = arith.constant 848 : index
    %c0_177 = arith.constant 0 : index
    %161 = vector.load %arg7[%c848, %c0_177] : memref<1088x640xbf16, #tpu.memory_space<vmem>>, vector<16x640xbf16>
    tpu.vector_store %arg7[%c848, %c0_177], %160 {strides = array<i32>} : memref<1088x640xbf16, #tpu.memory_space<vmem>>, vector<16x640xbf16>,
    %c0_178 = arith.constant 0 : index
    %c0_179 = arith.constant 0 : index
    %c486_180 = arith.constant 486 : index
    %162 = vector.load %arg1[%c0_178, %c0_179, %c486_180] : memref<1x16x1664xbf16, #tpu.memory_space<vmem>>, vector<1x16x640xbf16>
    %163 = vector.shape_cast %162 : vector<1x16x640xbf16> to vector<16x640xbf16>
    %c864 = arith.constant 864 : index
    %c0_181 = arith.constant 0 : index
    %164 = vector.load %arg7[%c864, %c0_181] : memref<1088x640xbf16, #tpu.memory_space<vmem>>, vector<16x640xbf16>
    tpu.vector_store %arg7[%c864, %c0_181], %163 {strides = array<i32>} : memref<1088x640xbf16, #tpu.memory_space<vmem>>, vector<16x640xbf16>,
    %c0_182 = arith.constant 0 : index
    %c0_183 = arith.constant 0 : index
    %c492_184 = arith.constant 492 : index
    %165 = vector.load %arg1[%c0_182, %c0_183, %c492_184] : memref<1x16x1664xbf16, #tpu.memory_space<vmem>>, vector<1x16x640xbf16>
    %166 = vector.shape_cast %165 : vector<1x16x640xbf16> to vector<16x640xbf16>
    %c880 = arith.constant 880 : index
    %c0_185 = arith.constant 0 : index
    %167 = vector.load %arg7[%c880, %c0_185] : memref<1088x640xbf16, #tpu.memory_space<vmem>>, vector<16x640xbf16>
    tpu.vector_store %arg7[%c880, %c0_185], %166 {strides = array<i32>} : memref<1088x640xbf16, #tpu.memory_space<vmem>>, vector<16x640xbf16>,
    %c0_186 = arith.constant 0 : index
    %c0_187 = arith.constant 0 : index
    %c498_188 = arith.constant 498 : index
    %168 = vector.load %arg1[%c0_186, %c0_187, %c498_188] : memref<1x16x1664xbf16, #tpu.memory_space<vmem>>, vector<1x16x640xbf16>
    %169 = vector.shape_cast %168 : vector<1x16x640xbf16> to vector<16x640xbf16>
    %c896 = arith.constant 896 : index
    %c0_189 = arith.constant 0 : index
    %170 = vector.load %arg7[%c896, %c0_189] : memref<1088x640xbf16, #tpu.memory_space<vmem>>, vector<16x640xbf16>
    tpu.vector_store %arg7[%c896, %c0_189], %169 {strides = array<i32>} : memref<1088x640xbf16, #tpu.memory_space<vmem>>, vector<16x640xbf16>,
    %c0_190 = arith.constant 0 : index
    %c0_191 = arith.constant 0 : index
    %c504 = arith.constant 504 : index
    %171 = vector.load %arg1[%c0_190, %c0_191, %c504] : memref<1x16x1664xbf16, #tpu.memory_space<vmem>>, vector<1x16x640xbf16>
    %172 = vector.shape_cast %171 : vector<1x16x640xbf16> to vector<16x640xbf16>
    %c912 = arith.constant 912 : index
    %c0_192 = arith.constant 0 : index
    %173 = vector.load %arg7[%c912, %c0_192] : memref<1088x640xbf16, #tpu.memory_space<vmem>>, vector<16x640xbf16>
    tpu.vector_store %arg7[%c912, %c0_192], %172 {strides = array<i32>} : memref<1088x640xbf16, #tpu.memory_space<vmem>>, vector<16x640xbf16>,
    %c0_193 = arith.constant 0 : index
    %c0_194 = arith.constant 0 : index
    %c720_195 = arith.constant 720 : index
    %174 = vector.load %arg1[%c0_193, %c0_194, %c720_195] : memref<1x16x1664xbf16, #tpu.memory_space<vmem>>, vector<1x16x640xbf16>
    %175 = vector.shape_cast %174 : vector<1x16x640xbf16> to vector<16x640xbf16>
    %c928 = arith.constant 928 : index
    %c0_196 = arith.constant 0 : index
    %176 = vector.load %arg7[%c928, %c0_196] : memref<1088x640xbf16, #tpu.memory_space<vmem>>, vector<16x640xbf16>
    tpu.vector_store %arg7[%c928, %c0_196], %175 {strides = array<i32>} : memref<1088x640xbf16, #tpu.memory_space<vmem>>, vector<16x640xbf16>,
    %c0_197 = arith.constant 0 : index
    %c0_198 = arith.constant 0 : index
    %c726_199 = arith.constant 726 : index
    %177 = vector.load %arg1[%c0_197, %c0_198, %c726_199] : memref<1x16x1664xbf16, #tpu.memory_space<vmem>>, vector<1x16x640xbf16>
    %178 = vector.shape_cast %177 : vector<1x16x640xbf16> to vector<16x640xbf16>
    %c944 = arith.constant 944 : index
    %c0_200 = arith.constant 0 : index
    %179 = vector.load %arg7[%c944, %c0_200] : memref<1088x640xbf16, #tpu.memory_space<vmem>>, vector<16x640xbf16>
    tpu.vector_store %arg7[%c944, %c0_200], %178 {strides = array<i32>} : memref<1088x640xbf16, #tpu.memory_space<vmem>>, vector<16x640xbf16>,
    %c0_201 = arith.constant 0 : index
    %c0_202 = arith.constant 0 : index
    %c732_203 = arith.constant 732 : index
    %180 = vector.load %arg1[%c0_201, %c0_202, %c732_203] : memref<1x16x1664xbf16, #tpu.memory_space<vmem>>, vector<1x16x640xbf16>
    %181 = vector.shape_cast %180 : vector<1x16x640xbf16> to vector<16x640xbf16>
    %c960 = arith.constant 960 : index
    %c0_204 = arith.constant 0 : index
    %182 = vector.load %arg7[%c960, %c0_204] : memref<1088x640xbf16, #tpu.memory_space<vmem>>, vector<16x640xbf16>
    tpu.vector_store %arg7[%c960, %c0_204], %181 {strides = array<i32>} : memref<1088x640xbf16, #tpu.memory_space<vmem>>, vector<16x640xbf16>,
    %c0_205 = arith.constant 0 : index
    %c0_206 = arith.constant 0 : index
    %c738_207 = arith.constant 738 : index
    %183 = vector.load %arg1[%c0_205, %c0_206, %c738_207] : memref<1x16x1664xbf16, #tpu.memory_space<vmem>>, vector<1x16x640xbf16>
    %184 = vector.shape_cast %183 : vector<1x16x640xbf16> to vector<16x640xbf16>
    %c976 = arith.constant 976 : index
    %c0_208 = arith.constant 0 : index
    %185 = vector.load %arg7[%c976, %c0_208] : memref<1088x640xbf16, #tpu.memory_space<vmem>>, vector<16x640xbf16>
    tpu.vector_store %arg7[%c976, %c0_208], %184 {strides = array<i32>} : memref<1088x640xbf16, #tpu.memory_space<vmem>>, vector<16x640xbf16>,
    %c0_209 = arith.constant 0 : index
    %c0_210 = arith.constant 0 : index
    %c744 = arith.constant 744 : index
    %186 = vector.load %arg1[%c0_209, %c0_210, %c744] : memref<1x16x1664xbf16, #tpu.memory_space<vmem>>, vector<1x16x640xbf16>
    %187 = vector.shape_cast %186 : vector<1x16x640xbf16> to vector<16x640xbf16>
    %c992 = arith.constant 992 : index
    %c0_211 = arith.constant 0 : index
    %188 = vector.load %arg7[%c992, %c0_211] : memref<1088x640xbf16, #tpu.memory_space<vmem>>, vector<16x640xbf16>
    tpu.vector_store %arg7[%c992, %c0_211], %187 {strides = array<i32>} : memref<1088x640xbf16, #tpu.memory_space<vmem>>, vector<16x640xbf16>,
    %c0_212 = arith.constant 0 : index
    %c0_213 = arith.constant 0 : index
    %c960_214 = arith.constant 960 : index
    %189 = vector.load %arg1[%c0_212, %c0_213, %c960_214] : memref<1x16x1664xbf16, #tpu.memory_space<vmem>>, vector<1x16x640xbf16>
    %190 = vector.shape_cast %189 : vector<1x16x640xbf16> to vector<16x640xbf16>
    %c1008 = arith.constant 1008 : index
    %c0_215 = arith.constant 0 : index
    %191 = vector.load %arg7[%c1008, %c0_215] : memref<1088x640xbf16, #tpu.memory_space<vmem>>, vector<16x640xbf16>
    tpu.vector_store %arg7[%c1008, %c0_215], %190 {strides = array<i32>} : memref<1088x640xbf16, #tpu.memory_space<vmem>>, vector<16x640xbf16>,
    %c0_216 = arith.constant 0 : index
    %c0_217 = arith.constant 0 : index
    %c966 = arith.constant 966 : index
    %192 = vector.load %arg1[%c0_216, %c0_217, %c966] : memref<1x16x1664xbf16, #tpu.memory_space<vmem>>, vector<1x16x640xbf16>
    %193 = vector.shape_cast %192 : vector<1x16x640xbf16> to vector<16x640xbf16>
    %c1024 = arith.constant 1024 : index
    %c0_218 = arith.constant 0 : index
    %194 = vector.load %arg7[%c1024, %c0_218] : memref<1088x640xbf16, #tpu.memory_space<vmem>>, vector<16x640xbf16>
    tpu.vector_store %arg7[%c1024, %c0_218], %193 {strides = array<i32>} : memref<1088x640xbf16, #tpu.memory_space<vmem>>, vector<16x640xbf16>,
    %c0_219 = arith.constant 0 : index
    %c0_220 = arith.constant 0 : index
    %c972 = arith.constant 972 : index
    %195 = vector.load %arg1[%c0_219, %c0_220, %c972] : memref<1x16x1664xbf16, #tpu.memory_space<vmem>>, vector<1x16x640xbf16>
    %196 = vector.shape_cast %195 : vector<1x16x640xbf16> to vector<16x640xbf16>
    %c1040 = arith.constant 1040 : index
    %c0_221 = arith.constant 0 : index
    %197 = vector.load %arg7[%c1040, %c0_221] : memref<1088x640xbf16, #tpu.memory_space<vmem>>, vector<16x640xbf16>
    tpu.vector_store %arg7[%c1040, %c0_221], %196 {strides = array<i32>} : memref<1088x640xbf16, #tpu.memory_space<vmem>>, vector<16x640xbf16>,
    %c0_222 = arith.constant 0 : index
    %c0_223 = arith.constant 0 : index
    %c978 = arith.constant 978 : index
    %198 = vector.load %arg1[%c0_222, %c0_223, %c978] : memref<1x16x1664xbf16, #tpu.memory_space<vmem>>, vector<1x16x640xbf16>
    %199 = vector.shape_cast %198 : vector<1x16x640xbf16> to vector<16x640xbf16>
    %c1056 = arith.constant 1056 : index
    %c0_224 = arith.constant 0 : index
    %200 = vector.load %arg7[%c1056, %c0_224] : memref<1088x640xbf16, #tpu.memory_space<vmem>>, vector<16x640xbf16>
    tpu.vector_store %arg7[%c1056, %c0_224], %199 {strides = array<i32>} : memref<1088x640xbf16, #tpu.memory_space<vmem>>, vector<16x640xbf16>,
    %c0_225 = arith.constant 0 : index
    %c0_226 = arith.constant 0 : index
    %c984 = arith.constant 984 : index
    %201 = vector.load %arg1[%c0_225, %c0_226, %c984] : memref<1x16x1664xbf16, #tpu.memory_space<vmem>>, vector<1x16x640xbf16>
    %202 = vector.shape_cast %201 : vector<1x16x640xbf16> to vector<16x640xbf16>
    %c1072 = arith.constant 1072 : index
    %c0_227 = arith.constant 0 : index
    %203 = vector.load %arg7[%c1072, %c0_227] : memref<1088x640xbf16, #tpu.memory_space<vmem>>, vector<16x640xbf16>
    tpu.vector_store %arg7[%c1072, %c0_227], %202 {strides = array<i32>} : memref<1088x640xbf16, #tpu.memory_space<vmem>>, vector<16x640xbf16>,
    %c0_228 = arith.constant 0 : index
    %c0_229 = arith.constant 0 : index
    %204 = vector.load %arg3[%c0_228, %c0_229] : memref<1x640xf32, #tpu.memory_space<vmem>>, vector<1x640xf32>
    %c0_230 = arith.constant 0 : index
    %c0_231 = arith.constant 0 : index
    %205 = vector.load %arg2[%c0_230, %c0_231] : memref<4x1088xbf16, #tpu.memory_space<vmem>>, vector<4x144xbf16>
    %c0_232 = arith.constant 0 : index
    %c0_233 = arith.constant 0 : index
    %206 = vector.load %arg7[%c0_232, %c0_233] : memref<1088x640xbf16, #tpu.memory_space<vmem>>, vector<144x640xbf16>
    %cst = arith.constant dense<0.000000e+00> : vector<4x640xf32>
    %207 = tpu.matmul %205, %206, %cst {dimension_numbers = #tpu.dot_dimension_numbers<[1], [0], [0], [1], [0, 0, 1, 1], [], []>} : vector<4x144xbf16>, vector<144x640xbf16>, vector<4x640xf32> -> vector<4x640xf32>
    %208 = arith.truncf %207 : vector<4x640xf32> to vector<4x640xbf16>
    %c0_234 = arith.constant 0 : index
    %c0_235 = arith.constant 0 : index
    %c0_236 = arith.constant 0 : index
    %c0_237 = arith.constant 0 : index
    %209 = vector.load %arg4[%c0_234, %c0_235, %c0_236, %c0_237] : memref<1x4x4x640xbf16, #tpu.memory_space<vmem>>, vector<1x1x4x640xbf16>
    %210 = vector.shape_cast %209 : vector<1x1x4x640xbf16> to vector<4x640xbf16>
    %211 = vector.shape_cast %208 : vector<4x640xbf16> to vector<1x1x4x640xbf16>
    tpu.vector_store %arg4[%c0_234, %c0_235, %c0_236, %c0_237], %211 {strides = array<i32>} : memref<1x4x4x640xbf16, #tpu.memory_space<vmem>>, vector<1x1x4x640xbf16>,
    %212 = vector.broadcast %204 : vector<1x640xf32> to vector<4x640xf32>
    %213 = arith.mulf %207, %212 : vector<4x640xf32>
    %cst_238 = arith.constant dense<0.000000e+00> : vector<4xf32>
    %214 = vector.multi_reduction <add>, %213, %cst_238 [1] : vector<4x640xf32> to vector<4xf32>
    %215 = vector.shape_cast %214 : vector<4xf32> to vector<4x1xf32>
    %c0_239 = arith.constant 0 : index
    %c0_240 = arith.constant 0 : index
    %c0_241 = arith.constant 0 : index
    %c0_242 = arith.constant 0 : index
    %216 = vector.load %arg5[%c0_239, %c0_240, %c0_241, %c0_242] : memref<1x4x4x1xf32, #tpu.memory_space<vmem>>, vector<1x1x4x1xf32>
    %217 = vector.shape_cast %216 : vector<1x1x4x1xf32> to vector<4x1xf32>
    %218 = vector.shape_cast %215 : vector<4x1xf32> to vector<1x1x4x1xf32>
    tpu.vector_store %arg5[%c0_239, %c0_240, %c0_241, %c0_242], %218 {strides = array<i32>} : memref<1x4x4x1xf32, #tpu.memory_space<vmem>>, vector<1x1x4x1xf32>,
    %219 = arith.mulf %213, %207 : vector<4x640xf32>
    %cst_243 = arith.constant dense<0.000000e+00> : vector<4xf32>
    %220 = vector.multi_reduction <add>, %219, %cst_243 [1] : vector<4x640xf32> to vector<4xf32>
    %221 = vector.shape_cast %220 : vector<4xf32> to vector<4x1xf32>
    %c0_244 = arith.constant 0 : index
    %c0_245 = arith.constant 0 : index
    %c0_246 = arith.constant 0 : index
    %c0_247 = arith.constant 0 : index
    %222 = vector.load %arg6[%c0_244, %c0_245, %c0_246, %c0_247] : memref<1x4x4x1xf32, #tpu.memory_space<vmem>>, vector<1x1x4x1xf32>
    %223 = vector.shape_cast %222 : vector<1x1x4x1xf32> to vector<4x1xf32>
    %224 = vector.shape_cast %221 : vector<4x1xf32> to vector<1x1x4x1xf32>
    tpu.vector_store %arg6[%c0_244, %c0_245, %c0_246, %c0_247], %224 {strides = array<i32>} : memref<1x4x4x1xf32, #tpu.memory_space<vmem>>, vector<1x1x4x1xf32>,
    %c0_248 = arith.constant 0 : index
    %c144_249 = arith.constant 144 : index
    %225 = vector.load %arg2[%c0_248, %c144_249] : memref<4x1088xbf16, #tpu.memory_space<vmem>>, vector<4x144xbf16>
    %c144_250 = arith.constant 144 : index
    %c0_251 = arith.constant 0 : index
    %226 = vector.load %arg7[%c144_250, %c0_251] : memref<1088x640xbf16, #tpu.memory_space<vmem>>, vector<144x640xbf16>
    %cst_252 = arith.constant dense<0.000000e+00> : vector<4x640xf32>
    %227 = tpu.matmul %225, %226, %cst_252 {dimension_numbers = #tpu.dot_dimension_numbers<[1], [0], [0], [1], [0, 0, 1, 1], [], []>} : vector<4x144xbf16>, vector<144x640xbf16>, vector<4x640xf32> -> vector<4x640xf32>
    %228 = arith.truncf %227 : vector<4x640xf32> to vector<4x640xbf16>
    %c0_253 = arith.constant 0 : index
    %c1 = arith.constant 1 : index
    %c0_254 = arith.constant 0 : index
    %c0_255 = arith.constant 0 : index
    %229 = vector.load %arg4[%c0_253, %c1, %c0_254, %c0_255] : memref<1x4x4x640xbf16, #tpu.memory_space<vmem>>, vector<1x1x4x640xbf16>
    %230 = vector.shape_cast %229 : vector<1x1x4x640xbf16> to vector<4x640xbf16>
    %231 = vector.shape_cast %228 : vector<4x640xbf16> to vector<1x1x4x640xbf16>
    tpu.vector_store %arg4[%c0_253, %c1, %c0_254, %c0_255], %231 {strides = array<i32>} : memref<1x4x4x640xbf16, #tpu.memory_space<vmem>>, vector<1x1x4x640xbf16>,
    %232 = vector.broadcast %204 : vector<1x640xf32> to vector<4x640xf32>
    %233 = arith.mulf %227, %232 : vector<4x640xf32>
    %cst_256 = arith.constant dense<0.000000e+00> : vector<4xf32>
    %234 = vector.multi_reduction <add>, %233, %cst_256 [1] : vector<4x640xf32> to vector<4xf32>
    %235 = vector.shape_cast %234 : vector<4xf32> to vector<4x1xf32>
    %c0_257 = arith.constant 0 : index
    %c1_258 = arith.constant 1 : index
    %c0_259 = arith.constant 0 : index
    %c0_260 = arith.constant 0 : index
    %236 = vector.load %arg5[%c0_257, %c1_258, %c0_259, %c0_260] : memref<1x4x4x1xf32, #tpu.memory_space<vmem>>, vector<1x1x4x1xf32>
    %237 = vector.shape_cast %236 : vector<1x1x4x1xf32> to vector<4x1xf32>
    %238 = vector.shape_cast %235 : vector<4x1xf32> to vector<1x1x4x1xf32>
    tpu.vector_store %arg5[%c0_257, %c1_258, %c0_259, %c0_260], %238 {strides = array<i32>} : memref<1x4x4x1xf32, #tpu.memory_space<vmem>>, vector<1x1x4x1xf32>,
    %239 = arith.mulf %233, %227 : vector<4x640xf32>
    %cst_261 = arith.constant dense<0.000000e+00> : vector<4xf32>
    %240 = vector.multi_reduction <add>, %239, %cst_261 [1] : vector<4x640xf32> to vector<4xf32>
    %241 = vector.shape_cast %240 : vector<4xf32> to vector<4x1xf32>
    %c0_262 = arith.constant 0 : index
    %c1_263 = arith.constant 1 : index
    %c0_264 = arith.constant 0 : index
    %c0_265 = arith.constant 0 : index
    %242 = vector.load %arg6[%c0_262, %c1_263, %c0_264, %c0_265] : memref<1x4x4x1xf32, #tpu.memory_space<vmem>>, vector<1x1x4x1xf32>
    %243 = vector.shape_cast %242 : vector<1x1x4x1xf32> to vector<4x1xf32>
    %244 = vector.shape_cast %241 : vector<4x1xf32> to vector<1x1x4x1xf32>
    tpu.vector_store %arg6[%c0_262, %c1_263, %c0_264, %c0_265], %244 {strides = array<i32>} : memref<1x4x4x1xf32, #tpu.memory_space<vmem>>, vector<1x1x4x1xf32>,
    %c0_266 = arith.constant 0 : index
    %c288_267 = arith.constant 288 : index
    %245 = vector.load %arg2[%c0_266, %c288_267] : memref<4x1088xbf16, #tpu.memory_space<vmem>>, vector<4x400xbf16>
    %c288_268 = arith.constant 288 : index
    %c0_269 = arith.constant 0 : index
    %246 = vector.load %arg7[%c288_268, %c0_269] : memref<1088x640xbf16, #tpu.memory_space<vmem>>, vector<400x640xbf16>
    %cst_270 = arith.constant dense<0.000000e+00> : vector<4x640xf32>
    %247 = tpu.matmul %245, %246, %cst_270 {dimension_numbers = #tpu.dot_dimension_numbers<[1], [0], [0], [1], [0, 0, 1, 1], [], []>} : vector<4x400xbf16>, vector<400x640xbf16>, vector<4x640xf32> -> vector<4x640xf32>
    %248 = arith.truncf %247 : vector<4x640xf32> to vector<4x640xbf16>
    %c0_271 = arith.constant 0 : index
    %c2 = arith.constant 2 : index
    %c0_272 = arith.constant 0 : index
    %c0_273 = arith.constant 0 : index
    %249 = vector.load %arg4[%c0_271, %c2, %c0_272, %c0_273] : memref<1x4x4x640xbf16, #tpu.memory_space<vmem>>, vector<1x1x4x640xbf16>
    %250 = vector.shape_cast %249 : vector<1x1x4x640xbf16> to vector<4x640xbf16>
    %251 = vector.shape_cast %248 : vector<4x640xbf16> to vector<1x1x4x640xbf16>
    tpu.vector_store %arg4[%c0_271, %c2, %c0_272, %c0_273], %251 {strides = array<i32>} : memref<1x4x4x640xbf16, #tpu.memory_space<vmem>>, vector<1x1x4x640xbf16>,
    %252 = vector.broadcast %204 : vector<1x640xf32> to vector<4x640xf32>
    %253 = arith.mulf %247, %252 : vector<4x640xf32>
    %cst_274 = arith.constant dense<0.000000e+00> : vector<4xf32>
    %254 = vector.multi_reduction <add>, %253, %cst_274 [1] : vector<4x640xf32> to vector<4xf32>
    %255 = vector.shape_cast %254 : vector<4xf32> to vector<4x1xf32>
    %c0_275 = arith.constant 0 : index
    %c2_276 = arith.constant 2 : index
    %c0_277 = arith.constant 0 : index
    %c0_278 = arith.constant 0 : index
    %256 = vector.load %arg5[%c0_275, %c2_276, %c0_277, %c0_278] : memref<1x4x4x1xf32, #tpu.memory_space<vmem>>, vector<1x1x4x1xf32>
    %257 = vector.shape_cast %256 : vector<1x1x4x1xf32> to vector<4x1xf32>
    %258 = vector.shape_cast %255 : vector<4x1xf32> to vector<1x1x4x1xf32>
    tpu.vector_store %arg5[%c0_275, %c2_276, %c0_277, %c0_278], %258 {strides = array<i32>} : memref<1x4x4x1xf32, #tpu.memory_space<vmem>>, vector<1x1x4x1xf32>,
    %259 = arith.mulf %253, %247 : vector<4x640xf32>
    %cst_279 = arith.constant dense<0.000000e+00> : vector<4xf32>
    %260 = vector.multi_reduction <add>, %259, %cst_279 [1] : vector<4x640xf32> to vector<4xf32>
    %261 = vector.shape_cast %260 : vector<4xf32> to vector<4x1xf32>
    %c0_280 = arith.constant 0 : index
    %c2_281 = arith.constant 2 : index
    %c0_282 = arith.constant 0 : index
    %c0_283 = arith.constant 0 : index
    %262 = vector.load %arg6[%c0_280, %c2_281, %c0_282, %c0_283] : memref<1x4x4x1xf32, #tpu.memory_space<vmem>>, vector<1x1x4x1xf32>
    %263 = vector.shape_cast %262 : vector<1x1x4x1xf32> to vector<4x1xf32>
    %264 = vector.shape_cast %261 : vector<4x1xf32> to vector<1x1x4x1xf32>
    tpu.vector_store %arg6[%c0_280, %c2_281, %c0_282, %c0_283], %264 {strides = array<i32>} : memref<1x4x4x1xf32, #tpu.memory_space<vmem>>, vector<1x1x4x1xf32>,
    %c0_284 = arith.constant 0 : index
    %c688_285 = arith.constant 688 : index
    %265 = vector.load %arg2[%c0_284, %c688_285] : memref<4x1088xbf16, #tpu.memory_space<vmem>>, vector<4x400xbf16>
    %c688_286 = arith.constant 688 : index
    %c0_287 = arith.constant 0 : index
    %266 = vector.load %arg7[%c688_286, %c0_287] : memref<1088x640xbf16, #tpu.memory_space<vmem>>, vector<400x640xbf16>
    %cst_288 = arith.constant dense<0.000000e+00> : vector<4x640xf32>
    %267 = tpu.matmul %265, %266, %cst_288 {dimension_numbers = #tpu.dot_dimension_numbers<[1], [0], [0], [1], [0, 0, 1, 1], [], []>} : vector<4x400xbf16>, vector<400x640xbf16>, vector<4x640xf32> -> vector<4x640xf32>
    %268 = arith.truncf %267 : vector<4x640xf32> to vector<4x640xbf16>
    %c0_289 = arith.constant 0 : index
    %c3 = arith.constant 3 : index
    %c0_290 = arith.constant 0 : index
    %c0_291 = arith.constant 0 : index
    %269 = vector.load %arg4[%c0_289, %c3, %c0_290, %c0_291] : memref<1x4x4x640xbf16, #tpu.memory_space<vmem>>, vector<1x1x4x640xbf16>
    %270 = vector.shape_cast %269 : vector<1x1x4x640xbf16> to vector<4x640xbf16>
    %271 = vector.shape_cast %268 : vector<4x640xbf16> to vector<1x1x4x640xbf16>
    tpu.vector_store %arg4[%c0_289, %c3, %c0_290, %c0_291], %271 {strides = array<i32>} : memref<1x4x4x640xbf16, #tpu.memory_space<vmem>>, vector<1x1x4x640xbf16>,
    %272 = vector.broadcast %204 : vector<1x640xf32> to vector<4x640xf32>
    %273 = arith.mulf %267, %272 : vector<4x640xf32>
    %cst_292 = arith.constant dense<0.000000e+00> : vector<4xf32>
    %274 = vector.multi_reduction <add>, %273, %cst_292 [1] : vector<4x640xf32> to vector<4xf32>
    %275 = vector.shape_cast %274 : vector<4xf32> to vector<4x1xf32>
    %c0_293 = arith.constant 0 : index
    %c3_294 = arith.constant 3 : index
    %c0_295 = arith.constant 0 : index
    %c0_296 = arith.constant 0 : index
    %276 = vector.load %arg5[%c0_293, %c3_294, %c0_295, %c0_296] : memref<1x4x4x1xf32, #tpu.memory_space<vmem>>, vector<1x1x4x1xf32>
    %277 = vector.shape_cast %276 : vector<1x1x4x1xf32> to vector<4x1xf32>
    %278 = vector.shape_cast %275 : vector<4x1xf32> to vector<1x1x4x1xf32>
    tpu.vector_store %arg5[%c0_293, %c3_294, %c0_295, %c0_296], %278 {strides = array<i32>} : memref<1x4x4x1xf32, #tpu.memory_space<vmem>>, vector<1x1x4x1xf32>,
    %279 = arith.mulf %273, %267 : vector<4x640xf32>
    %cst_297 = arith.constant dense<0.000000e+00> : vector<4xf32>
    %280 = vector.multi_reduction <add>, %279, %cst_297 [1] : vector<4x640xf32> to vector<4xf32>
    %281 = vector.shape_cast %280 : vector<4xf32> to vector<4x1xf32>
    %c0_298 = arith.constant 0 : index
    %c3_299 = arith.constant 3 : index
    %c0_300 = arith.constant 0 : index
    %c0_301 = arith.constant 0 : index
    %282 = vector.load %arg6[%c0_298, %c3_299, %c0_300, %c0_301] : memref<1x4x4x1xf32, #tpu.memory_space<vmem>>, vector<1x1x4x1xf32>
    %283 = vector.shape_cast %282 : vector<1x1x4x1xf32> to vector<4x1xf32>
    %284 = vector.shape_cast %281 : vector<4x1xf32> to vector<1x1x4x1xf32>
    tpu.vector_store %arg6[%c0_298, %c3_299, %c0_300, %c0_301], %284 {strides = array<i32>} : memref<1x4x4x1xf32, #tpu.memory_space<vmem>>, vector<1x1x4x1xf32>,
    return
  }
  func.func @transform_0(%arg0: i32) -> (i32, i32, i32) {
    %c0_i32 = arith.constant 0 : i32
    %c0_i32_0 = arith.constant 0 : i32
    %c0_i32_1 = arith.constant 0 : i32
    return %arg0, %c0_i32, %c0_i32_0 : i32, i32, i32
  }
  func.func @transform_1(%arg0: i32) -> (i32, i32) {
    %c0_i32 = arith.constant 0 : i32
    %c0_i32_0 = arith.constant 0 : i32
    %c0_i32_1 = arith.constant 0 : i32
    return %c0_i32, %c0_i32_0 : i32, i32
  }
  func.func @transform_2(%arg0: i32) -> (i32, i32) {
    %c0_i32 = arith.constant 0 : i32
    %c0_i32_0 = arith.constant 0 : i32
    %c0_i32_1 = arith.constant 0 : i32
    return %c0_i32, %c0_i32_0 : i32, i32
  }
  func.func @transform_3(%arg0: i32) -> (i32, i32, i32, i32) {
    %c0_i32 = arith.constant 0 : i32
    %c0_i32_0 = arith.constant 0 : i32
    %c0_i32_1 = arith.constant 0 : i32
    %c0_i32_2 = arith.constant 0 : i32
    return %arg0, %c0_i32, %c0_i32_0, %c0_i32_1 : i32, i32, i32, i32
  }
  func.func @transform_4(%arg0: i32) -> (i32, i32, i32, i32) {
    %c0_i32 = arith.constant 0 : i32
    %c0_i32_0 = arith.constant 0 : i32
    %c0_i32_1 = arith.constant 0 : i32
    %c0_i32_2 = arith.constant 0 : i32
    return %arg0, %c0_i32, %c0_i32_0, %c0_i32_1 : i32, i32, i32, i32
  }
  func.func @transform_5(%arg0: i32) -> (i32, i32, i32, i32) {
    %c0_i32 = arith.constant 0 : i32
    %c0_i32_0 = arith.constant 0 : i32
    %c0_i32_1 = arith.constant 0 : i32
    %c0_i32_2 = arith.constant 0 : i32
    return %arg0, %c0_i32, %c0_i32_0, %c0_i32_1 : i32, i32, i32, i32
  }
}

</mosaic_0001>

<llo_original>
// kernel: tpu_custom_call.1
$region0: #{tpu_custom_call.1}
  #allocation0 [shape = 'u32[]', space=smem, size = 0x4, offset = 0x4, fixed_abs, tag = 'smem constant byte address 0x4 - core index']
  #allocation1 [shape = 'u32[144,128]{1,0:T(1,128)}', space=vmem, size = 0x12000, scoped, tag = 'internal scratch']
  #allocation2 [shape = 'bf16[1088,640]{1,0:T(16,128)(2,1)}', space=vmem, size = 0x154000, scoped, tag = 'scratch operand']
  %s0 = inlined_call_operand.hbm [shape: bf16[2,16,1664], index: 0, kind: input, shape index: {}]
  %s1 = inlined_call_operand.hbm [shape: bf16[4,1088], index: 1, kind: input, shape index: {}]
  %s2 = inlined_call_operand.vmem [shape: f32[1,640], index: 2, kind: input, shape index: {}]
  %s3 = inlined_call_operand.hbm [shape: bf16[2,4,4,640], index: 3, kind: output, shape index: {0}]
  %s4 = inlined_call_operand.vmem [shape: f32[2,4,4,1], index: 4, kind: output, shape index: {1}]
  %s5 = inlined_call_operand.vmem [shape: f32[2,4,4,1], index: 5, kind: output, shape index: {2}]
  %6 = xla_tuple %s3, %s4, %s5
  %s7 = sld [smem:[#allocation0]]
  $region69: #{tpu_custom_call.1} parent=0
    _
  %s9 = ssub.s32 1, %s7
  %s10 = scalar_select 0, %s9, %s7
  $region1: #{tpu_custom_call.1} parent=0
    #allocation3 [shape = 'u8[106496]{0}', space=vmem, size = 0x1a000, scoped, tag = 'input window, operand 0']
    #allocation4 [shape = 's32[2]{0}', space=sflag, size = 0x8, scoped, tag = 'scoped memory for tpu_custom_call.1']
    #allocation5 [shape = 's32[2]{0}', space=sflag, size = 0x8, scoped, tag = 'scoped memory for tpu_custom_call.1']
    #allocation6 [shape = 'u8[9216]{0}', space=vmem, size = 0x2400, scoped, tag = 'input window, operand 1, single buffered']
    #allocation7 [shape = 's32[1]{0}', space=sflag, size = 0x4, scoped, tag = 'scoped memory for tpu_custom_call.1']
    #allocation8 [shape = 'u8[40960]{0}', space=vmem, size = 0xa000, scoped, tag = 'output window, operand 0']
    %11 = vsyncpa [#allocation4], 0
    %s12 = scalar_lea.sflag [#allocation4], 1
    %13 = vsyncpa %s12, 0
    %14 = vsyncpa [#allocation7], 0
    %15 = vsyncpa [#allocation5], 0
    %s16 = scalar_lea.sflag [#allocation5], 1
    %17 = vsyncpa %s16, 0
    loop: start=0, step=1, limit=4
    $region2: #{tpu_custom_call.1} parent=1 // loop_pre_header
      _
    $region3: #{tpu_custom_call.1} parent=1 // loop_header
      %s19 = sphi 0, %s23
      %p20 = scmp.ge.s32.totalorder %s19, 4
      %s29 = sphi 0, %s31
      %s32 = sphi 0, %s29
      %s33 = sphi 0, %s32
      %s49 = sphi 0, %s33
      %s53 = sphi 0, %s53
      %s55 = sphi 0, %s53
      %s56 = sphi 0, %s55
      %s70 = sphi 0, %s56
      %s74 = sphi 0, %s74
      %s76 = sphi 0, %s74
      %s77 = sphi 0, %s76
      %s91 = sphi 0, %s77
      %s97 = sphi 0, %s99
      %s100 = sphi 0, %s97
      %s101 = sphi 0, %s100
      %s117 = sphi 0, %s101
      %s123 = sphi 0, %s125
      %s126 = sphi 0, %s123
      %s127 = sphi 0, %s126
      %s143 = sphi 0, %s127
      %s149 = sphi 0, %s151
      %s152 = sphi 0, %s149
      %s153 = sphi 0, %s152
      %s169 = sphi 0, %s153
    $region4: #{tpu_custom_call.1} parent=1 // loop_header_branch
      %22 = sbr.rel (%p20) target = $region8
    $region5: #{tpu_custom_call.1} parent=1 // loop_body
      %s24 = ssub.s32 %s19, 1
      %s25 = ssub.s32 %s19, 2
      %s26 = sadd.s32 %s19, 1
      %s27 = ssub.s32 %s19, %s26
      %p28 = scmp.eq.s32.totalorder %s27, 0
      %s30 = sadd.s32 %s29, 1
      %s31 = scalar_select %p28, %s29, %s30
      %p34 = pneg %p28
      %p35 = scmp.eq.s32.totalorder %s19, 1
      %p36 = por %p34, %p35
      %p37 = scmp.ne.s32.totalorder %s29, %s32
      %p38 = scmp.eq.s32.totalorder %s19, 0
      %p39 = por %p37, %p38
      %p40 = scmp.ne.s32.totalorder %s29, %s32
      %p41 = scmp.eq.s32.totalorder %s24, 1
      %p42 = por %p40, %p41
      %p43 = scmp.ne.s32.totalorder %s32, %s33
      %p44 = scmp.eq.s32.totalorder %s24, 0
      %p45 = por %p43, %p44
      %p46 = scmp.ne.s32.totalorder %s32, %s33
      %p47 = scmp.eq.s32.totalorder %s25, 1
      %p48 = por %p46, %p47
      %p50 = scmp.ne.s32.totalorder %s33, %s49
      %p51 = scmp.eq.s32.totalorder %s25, 0
      %p52 = por %p50, %p51
      %s54 = sadd.s32 %s53, 1
      %p57 = scmp.eq.s32.totalorder %s19, 1
      %p58 = scmp.ne.s32.totalorder %s53, %s55
      %p59 = scmp.eq.s32.totalorder %s19, 0
      %p60 = por %p58, %p59
      %p61 = scmp.ne.s32.totalorder %s53, %s55
      %p62 = scmp.eq.s32.totalorder %s24, 1
      %p63 = por %p61, %p62
      %p64 = scmp.ne.s32.totalorder %s55, %s56
      %p65 = scmp.eq.s32.totalorder %s24, 0
      %p66 = por %p64, %p65
      %p67 = scmp.ne.s32.totalorder %s55, %s56
      %p68 = scmp.eq.s32.totalorder %s25, 1
      %p69 = por %p67, %p68
      %p71 = scmp.ne.s32.totalorder %s56, %s70
      %p72 = scmp.eq.s32.totalorder %s25, 0
      %p73 = por %p71, %p72
      %s75 = sadd.s32 %s74, 1
      %p78 = scmp.eq.s32.totalorder %s19, 1
      %p79 = scmp.ne.s32.totalorder %s74, %s76
      %p80 = scmp.eq.s32.totalorder %s19, 0
      %p81 = por %p79, %p80
      %p82 = scmp.ne.s32.totalorder %s74, %s76
      %p83 = scmp.eq.s32.totalorder %s24, 1
      %p84 = por %p82, %p83
      %p85 = scmp.ne.s32.totalorder %s76, %s77
      %p86 = scmp.eq.s32.totalorder %s24, 0
      %p87 = por %p85, %p86
      %p88 = scmp.ne.s32.totalorder %s76, %s77
      %p89 = scmp.eq.s32.totalorder %s25, 1
      %p90 = por %p88, %p89
      %p92 = scmp.ne.s32.totalorder %s77, %s91
      %p93 = scmp.eq.s32.totalorder %s25, 0
      %p94 = por %p92, %p93
      %s95 = ssub.s32 %s19, %s26
      %p96 = scmp.eq.s32.totalorder %s95, 0
      %s98 = sadd.s32 %s97, 1
      %s99 = scalar_select %p96, %s97, %s98
      %p102 = pneg %p96
      %p103 = scmp.eq.s32.totalorder %s19, 1
      %p104 = por %p102, %p103
      %p105 = scmp.ne.s32.totalorder %s97, %s100
      %p106 = scmp.eq.s32.totalorder %s19, 0
      %p107 = por %p105, %p106
      %p108 = scmp.ne.s32.totalorder %s97, %s100
      %p109 = scmp.eq.s32.totalorder %s24, 1
      %p110 = por %p108, %p109
      %p111 = scmp.ne.s32.totalorder %s100, %s101
      %p112 = scmp.eq.s32.totalorder %s24, 0
      %p113 = por %p111, %p112
      %p114 = scmp.ne.s32.totalorder %s100, %s101
      %p115 = scmp.eq.s32.totalorder %s25, 1
      %p116 = por %p114, %p115
      %p118 = scmp.ne.s32.totalorder %s101, %s117
      %p119 = scmp.eq.s32.totalorder %s25, 0
      %p120 = por %p118, %p119
      %s121 = ssub.s32 %s19, %s26
      %p122 = scmp.eq.s32.totalorder %s121, 0
      %s124 = sadd.s32 %s123, 1
      %s125 = scalar_select %p122, %s123, %s124
      %p128 = pneg %p122
      %p129 = scmp.eq.s32.totalorder %s19, 1
      %p130 = por %p128, %p129
      %p131 = scmp.ne.s32.totalorder %s123, %s126
      %p132 = scmp.eq.s32.totalorder %s19, 0
      %p133 = por %p131, %p132
      %p134 = scmp.ne.s32.totalorder %s123, %s126
      %p135 = scmp.eq.s32.totalorder %s24, 1
      %p136 = por %p134, %p135
      %p137 = scmp.ne.s32.totalorder %s126, %s127
      %p138 = scmp.eq.s32.totalorder %s24, 0
      %p139 = por %p137, %p138
      %p140 = scmp.ne.s32.totalorder %s126, %s127
      %p141 = scmp.eq.s32.totalorder %s25, 1
      %p142 = por %p140, %p141
      %p144 = scmp.ne.s32.totalorder %s127, %s143
      %p145 = scmp.eq.s32.totalorder %s25, 0
      %p146 = por %p144, %p145
      %s147 = ssub.s32 %s19, %s26
      %p148 = scmp.eq.s32.totalorder %s147, 0
      %s150 = sadd.s32 %s149, 1
      %s151 = scalar_select %p148, %s149, %s150
      %p154 = pneg %p148
      %p155 = scmp.eq.s32.totalorder %s19, 1
      %p156 = por %p154, %p155
      %p157 = scmp.ne.s32.totalorder %s149, %s152
      %p158 = scmp.eq.s32.totalorder %s19, 0
      %p159 = por %p157, %p158
      %p160 = scmp.ne.s32.totalorder %s149, %s152
      %p161 = scmp.eq.s32.totalorder %s24, 1
      %p162 = por %p160, %p161
      %p163 = scmp.ne.s32.totalorder %s152, %s153
      %p164 = scmp.eq.s32.totalorder %s24, 0
      %p165 = por %p163, %p164
      %p166 = scmp.ne.s32.totalorder %s152, %s153
      %p167 = scmp.eq.s32.totalorder %s25, 1
      %p168 = por %p166, %p167
      %p170 = scmp.ne.s32.totalorder %s153, %s169
      %p171 = scmp.eq.s32.totalorder %s25, 0
      %p172 = por %p170, %p171
      %p173 = scmp.le.s32.totalorder 1, %s19
      %p174 = scmp.lt.s32.totalorder %s19, 3
      %p175 = pnand %p173, %p174
      %p176 = pneg %p175
      // Predicated region
      $region9: #{tpu_custom_call.1} parent=5 // pred_check
        _
      $region10: #{tpu_custom_call.1} parent=5 // pred_check_branch
        %178 = sbr.rel (%p175) target = $region12
      $region11: #{tpu_custom_call.1} parent=5 // pred_region
        %s179 = ssub.s32 %s19, 1
        // Predicated region
        $region13: #{tpu_custom_call.1} parent=11 // pred_check
          %p180 = pneg %p66
        $region14: #{tpu_custom_call.1} parent=11 // pred_check_branch
          %182 = sbr.rel (%p180) target = $region16
        $region15: #{tpu_custom_call.1} parent=11 // pred_region
          %s184 = ssub.s32 288, 288
          %185 = vsyncadd [#allocation7], %s184
          %s187 = sshll.u32 [#allocation6], 4
          %s188 = int_to_ptr.vmem [resolvable:$true] %s187
          %190 = dma.hbm_to_vmem [thread:$0]  %s1, 288, %s188, [#allocation7]
        $region16: #{tpu_custom_call.1} parent=11 // pred_fallthru
          _
        // Predicated region
        $region17: #{tpu_custom_call.1} parent=11 // pred_check
          %p191 = pneg %p87
        $region18: #{tpu_custom_call.1} parent=11 // pred_check_branch
          %193 = sbr.rel (%p191) target = $region20
        $region19: #{tpu_custom_call.1} parent=11 // pred_region
          _
        $region20: #{tpu_custom_call.1} parent=11 // pred_fallthru
          _
      $region12: #{tpu_custom_call.1} parent=5 // pred_fallthru
        _
      %p194 = scmp.lt.s32.totalorder %s19, 2
      // Predicated region
      $region21: #{tpu_custom_call.1} parent=5 // pred_check
        %p195 = pneg %p194
      $region22: #{tpu_custom_call.1} parent=5 // pred_check_branch
        %197 = sbr.rel (%p195) target = $region24
      $region23: #{tpu_custom_call.1} parent=5 // pred_region
        // Predicated region
        $region25: #{tpu_custom_call.1} parent=23 // pred_check
          %p198 = pneg %p39
        $region26: #{tpu_custom_call.1} parent=23 // pred_check_branch
          %200 = sbr.rel (%p198) target = $region28
        $region27: #{tpu_custom_call.1} parent=23 // pred_region
          %s201 = sand.u32 %s29, 1
          %s202 = scalar_lea.sflag [#allocation4], %s201
          %s203 = sand.u32 %s29, 1
          %s204 = smul.addr %s203, 104
          %s205 = scalar_lea.vmem [#allocation3], %s204
          %s207 = ssub.s32 1664, 1664
          %208 = vsyncadd %s202, %s207
          %s209 = smul.addr %s19, 26
          %s210 = smul.addr %s209, 64
          %s211 = scalar_lea.hbm %s0, %s210
          %s212 = sshll.u32 %s205, 4
          %s213 = int_to_ptr.vmem [resolvable:$true] %s212
          %218 = dma.hbm_to_vmem [thread:$0]  %s211, 1664, %s213, %s202, 832, 832, 52
        $region28: #{tpu_custom_call.1} parent=23 // pred_fallthru
          _
      $region24: #{tpu_custom_call.1} parent=5 // pred_fallthru
        _
      %p219 = scmp.le.s32.totalorder 1, %s19
      %p220 = scmp.lt.s32.totalorder %s19, 3
      %p221 = pnand %p219, %p220
      %p222 = pneg %p221
      // Predicated region
      $region29: #{tpu_custom_call.1} parent=5 // pred_check
        _
      $region30: #{tpu_custom_call.1} parent=5 // pred_check_branch
        %224 = sbr.rel (%p221) target = $region32
      $region31: #{tpu_custom_call.1} parent=5 // pred_region
        %s225 = ssub.s32 %s19, 1
        %s226 = sand.u32 %s32, 1
        %s227 = scalar_lea.sflag [#allocation4], %s226
        %s228 = sand.u32 %s32, 1
        %s229 = smul.addr %s228, 104
        %s230 = scalar_lea.vmem [#allocation3], %s229
        // Predicated region
        $region33: #{tpu_custom_call.1} parent=31 // pred_check
          %p231 = pneg %p45
        $region34: #{tpu_custom_call.1} parent=31 // pred_check_branch
          %233 = sbr.rel (%p231) target = $region36
        $region35: #{tpu_custom_call.1} parent=31 // pred_region
          %234 = dma.done %s227, 1664
        $region36: #{tpu_custom_call.1} parent=31 // pred_fallthru
          _
        // Predicated region
        $region37: #{tpu_custom_call.1} parent=31 // pred_check
          %p235 = pneg %p66
        $region38: #{tpu_custom_call.1} parent=31 // pred_check_branch
          %237 = sbr.rel (%p235) target = $region40
        $region39: #{tpu_custom_call.1} parent=31 // pred_region
          %238 = dma.done [#allocation7], 288
        $region40: #{tpu_custom_call.1} parent=31 // pred_fallthru
          _
        %s239 = sand.u32 %s32, 1
        %s240 = scalar_lea.sflag [#allocation4], %s239
        %s241 = sand.u32 %s32, 1
        %s242 = smul.addr %s241, 104
        %s243 = scalar_lea.vmem [#allocation3], %s242
        %p244 = pneg %p45
        %p245 = pneg %p42
        %p246 = pneg %p66
        %p247 = pneg %p63
        %p248 = pneg %p87
        %p249 = pneg %p84
        %p250 = pneg %p113
        %p251 = pneg %p110
        %s252 = sand.u32 %s100, 1
        %s253 = scalar_lea.sflag [#allocation5], %s252
        %s254 = sand.u32 %s100, 1
        %s255 = smul.addr %s254, 40
        %s256 = scalar_lea.vmem [#allocation8], %s255
        %p257 = pneg %p139
        %p258 = pneg %p136
        %p259 = scmp.lt.s32.totalorder %s24, 1
        %s260 = scalar_select %p259, %s24, 1
        %s261 = smul.addr %s260, 4
        %s262 = smul.addr %s261, 4
        %s263 = scalar_lea.vmem %s4, %s262
        %p264 = pneg %p165
        %p265 = pneg %p162
        %p266 = scmp.lt.s32.totalorder %s24, 1
        %s267 = scalar_select %p266, %s24, 1
        %s268 = smul.addr %s267, 4
        %s269 = smul.addr %s268, 4
        %s270 = scalar_lea.vmem %s5, %s269
        %p271 = scmp.lt.s32.totalorder %s24, 1
        %s272 = scalar_select %p271, %s24, 1
        %s273 = smul.addr %s272, 4
        %s274 = smul.addr %s273, 4
        %s275 = scalar_lea.vmem %s4, %s274
        %p276 = scmp.lt.s32.totalorder %s24, 1
        %s277 = scalar_select %p276, %s24, 1
        %s278 = smul.addr %s277, 4
        %s279 = smul.addr %s278, 4
        %s280 = scalar_lea.vmem %s5, %s279
        %v282 = vld [vmem:[%s230 + $0xc] sm:$0xff]
        %v283 = vld [vmem:[%s230 + $0x14] sm:$0xff]
        %v284 = vld [vmem:[%s230 + $0x1c] sm:$0xff]
        %v285 = vld [vmem:[%s230 + $0x40] sm:$0xff]
        %v286 = vld [vmem:[%s230 + $0x48] sm:$0xff]
        %v287 = vld [vmem:[%s230 + $0x50] sm:$0xff]
        %v294 = vunpack.c.l.b16 %v282
        %v295 = vunpack.c.h.b16 %v282
        %v296 = vunpack.c.l.b16 %v283
        %v297 = vunpack.c.h.b16 %v283
        %v298 = vunpack.c.l.b16 %v284
        %v299 = vunpack.c.h.b16 %v284
        %v300 = vunpack.c.l.b16 %v285
        %v301 = vunpack.c.h.b16 %v285
        %v302 = vunpack.c.l.b16 %v286
        %v303 = vunpack.c.h.b16 %v286
        %v304 = vunpack.c.l.b16 %v287
        %v305 = vunpack.c.h.b16 %v287
        %v306 = vpack.c.b16 %v300, %v294
        %v307 = vpack.c.b16 %v301, %v295
        %v308 = vpack.c.b16 %v302, %v296
        %v309 = vpack.c.b16 %v303, %v297
        %v310 = vpack.c.b16 %v304, %v298
        %v311 = vpack.c.b16 %v305, %v299
        %312 = vrot.lane.b32.xlu0 %v306, 61
        %v313 = vpop.permute.xlu0 %312
        %314 = vrot.lane.b32.xlu0 %v307, 61
        %v315 = vpop.permute.xlu0 %314
        %316 = vrot.lane.b32.xlu0 %v308, 61
        %v317 = vpop.permute.xlu0 %316
        %318 = vrot.lane.b32.xlu0 %v309, 61
        %v319 = vpop.permute.xlu0 %318
        %320 = vrot.lane.b32.xlu0 %v310, 61
        %v321 = vpop.permute.xlu0 %320
        %322 = vrot.lane.b32.xlu0 %v311, 61
        %v323 = vpop.permute.xlu0 %322
        %vm324 = vcmask 498688
        %v325 = vsel %vm324, %v313, %v315
        %v326 = vsel %vm324, %v315, %v317
        %v327 = vsel %vm324, %v317, %v319
        %v328 = vsel %vm324, %v319, %v321
        %v329 = vsel %vm324, %v321, %v323
        %335 = vst [vmem:[#allocation2] sm:$0xff] %v325
        %336 = vst [vmem:[#allocation2 + $0x8] sm:$0xff] %v326
        %337 = vst [vmem:[#allocation2 + $0x10] sm:$0xff] %v327
        %338 = vst [vmem:[#allocation2 + $0x18] sm:$0xff] %v328
        %339 = vst [vmem:[#allocation2 + $0x20] sm:$0xff] %v329
        %v340 = vld [vmem:[%s230 + $0xc] sm:$0xff]
        %v341 = vld [vmem:[%s230 + $0x14] sm:$0xff]
        %v342 = vld [vmem:[%s230 + $0x1c] sm:$0xff]
        %v343 = vld [vmem:[%s230 + $0x40] sm:$0xff]
        %v344 = vld [vmem:[%s230 + $0x48] sm:$0xff]
        %v345 = vld [vmem:[%s230 + $0x50] sm:$0xff]
        %v352 = vunpack.c.l.b16 %v340
        %v353 = vunpack.c.h.b16 %v340
        %v354 = vunpack.c.l.b16 %v341
        %v355 = vunpack.c.h.b16 %v341
        %v356 = vunpack.c.l.b16 %v342
        %v357 = vunpack.c.h.b16 %v342
        %v358 = vunpack.c.l.b16 %v343
        %v359 = vunpack.c.h.b16 %v343
        %v360 = vunpack.c.l.b16 %v344
        %v361 = vunpack.c.h.b16 %v344
        %v362 = vunpack.c.l.b16 %v345
        %v363 = vunpack.c.h.b16 %v345
        %v364 = vpack.c.b16 %v358, %v352
        %v365 = vpack.c.b16 %v359, %v353
        %v366 = vpack.c.b16 %v360, %v354
        %v367 = vpack.c.b16 %v361, %v355
        %v368 = vpack.c.b16 %v362, %v356
        %v369 = vpack.c.b16 %v363, %v357
        %370 = vrot.lane.b32.xlu0 %v364, 60
        %v371 = vpop.permute.xlu0 %370
        %372 = vrot.lane.b32.xlu0 %v365, 60
        %v373 = vpop.permute.xlu0 %372
        %374 = vrot.lane.b32.xlu0 %v366, 60
        %v375 = vpop.permute.xlu0 %374
        %376 = vrot.lane.b32.xlu0 %v367, 60
        %v377 = vpop.permute.xlu0 %376
        %378 = vrot.lane.b32.xlu0 %v368, 60
        %v379 = vpop.permute.xlu0 %378
        %380 = vrot.lane.b32.xlu0 %v369, 60
        %v381 = vpop.permute.xlu0 %380
        %vm382 = vcmask 490496
        %v383 = vsel %vm382, %v371, %v373
        %v384 = vsel %vm382, %v373, %v375
        %v385 = vsel %vm382, %v375, %v377
        %v386 = vsel %vm382, %v377, %v379
        %v387 = vsel %vm382, %v379, %v381
        %393 = vst [vmem:[#allocation2 + $0x28] sm:$0xff] %v383
        %394 = vst [vmem:[#allocation2 + $0x30] sm:$0xff] %v384
        %395 = vst [vmem:[#allocation2 + $0x38] sm:$0xff] %v385
        %396 = vst [vmem:[#allocation2 + $0x40] sm:$0xff] %v386
        %397 = vst [vmem:[#allocation2 + $0x48] sm:$0xff] %v387
        %v398 = vld [vmem:[%s230 + $0xc] sm:$0xff]
        %v399 = vld [vmem:[%s230 + $0x14] sm:$0xff]
        %v400 = vld [vmem:[%s230 + $0x1c] sm:$0xff]
        %v401 = vld [vmem:[%s230 + $0x40] sm:$0xff]
        %v402 = vld [vmem:[%s230 + $0x48] sm:$0xff]
        %v403 = vld [vmem:[%s230 + $0x50] sm:$0xff]
        %v410 = vunpack.c.l.b16 %v398
        %v411 = vunpack.c.h.b16 %v398
        %v412 = vunpack.c.l.b16 %v399
        %v413 = vunpack.c.h.b16 %v399
        %v414 = vunpack.c.l.b16 %v400
        %v415 = vunpack.c.h.b16 %v400
        %v416 = vunpack.c.l.b16 %v401
        %v417 = vunpack.c.h.b16 %v401
        %v418 = vunpack.c.l.b16 %v402
        %v419 = vunpack.c.h.b16 %v402
        %v420 = vunpack.c.l.b16 %v403
        %v421 = vunpack.c.h.b16 %v403
        %v422 = vpack.c.b16 %v416, %v410
        %v423 = vpack.c.b16 %v417, %v411
        %v424 = vpack.c.b16 %v418, %v412
        %v425 = vpack.c.b16 %v419, %v413
        %v426 = vpack.c.b16 %v420, %v414
        %v427 = vpack.c.b16 %v421, %v415
        %428 = vrot.lane.b32.xlu0 %v422, 59
        %v429 = vpop.permute.xlu0 %428
        %430 = vrot.lane.b32.xlu0 %v423, 59
        %v431 = vpop.permute.xlu0 %430
        %432 = vrot.lane.b32.xlu0 %v424, 59
        %v433 = vpop.permute.xlu0 %432
        %434 = vrot.lane.b32.xlu0 %v425, 59
        %v435 = vpop.permute.xlu0 %434
        %436 = vrot.lane.b32.xlu0 %v426, 59
        %v437 = vpop.permute.xlu0 %436
        %438 = vrot.lane.b32.xlu0 %v427, 59
        %v439 = vpop.permute.xlu0 %438
        %vm440 = vcmask 482304
        %v441 = vsel %vm440, %v429, %v431
        %v442 = vsel %vm440, %v431, %v433
        %v443 = vsel %vm440, %v433, %v435
        %v444 = vsel %vm440, %v435, %v437
        %v445 = vsel %vm440, %v437, %v439
        %451 = vst [vmem:[#allocation2 + $0x50] sm:$0xff] %v441
        %452 = vst [vmem:[#allocation2 + $0x58] sm:$0xff] %v442
        %453 = vst [vmem:[#allocation2 + $0x60] sm:$0xff] %v443
        %454 = vst [vmem:[#allocation2 + $0x68] sm:$0xff] %v444
        %455 = vst [vmem:[#allocation2 + $0x70] sm:$0xff] %v445
        %v456 = vld [vmem:[%s230 + $0xc] sm:$0xff]
        %v457 = vld [vmem:[%s230 + $0x14] sm:$0xff]
        %v458 = vld [vmem:[%s230 + $0x1c] sm:$0xff]
        %v459 = vld [vmem:[%s230 + $0x40] sm:$0xff]
        %v460 = vld [vmem:[%s230 + $0x48] sm:$0xff]
        %v461 = vld [vmem:[%s230 + $0x50] sm:$0xff]
        %v468 = vunpack.c.l.b16 %v456
        %v469 = vunpack.c.h.b16 %v456
        %v470 = vunpack.c.l.b16 %v457
        %v471 = vunpack.c.h.b16 %v457
        %v472 = vunpack.c.l.b16 %v458
        %v473 = vunpack.c.h.b16 %v458
        %v474 = vunpack.c.l.b16 %v459
        %v475 = vunpack.c.h.b16 %v459
        %v476 = vunpack.c.l.b16 %v460
        %v477 = vunpack.c.h.b16 %v460
        %v478 = vunpack.c.l.b16 %v461
        %v479 = vunpack.c.h.b16 %v461
        %v480 = vpack.c.b16 %v474, %v468
        %v481 = vpack.c.b16 %v475, %v469
        %v482 = vpack.c.b16 %v476, %v470
        %v483 = vpack.c.b16 %v477, %v471
        %v484 = vpack.c.b16 %v478, %v472
        %v485 = vpack.c.b16 %v479, %v473
        %486 = vrot.lane.b32.xlu0 %v480, 21
        %v487 = vpop.permute.xlu0 %486
        %488 = vrot.lane.b32.xlu0 %v481, 21
        %v489 = vpop.permute.xlu0 %488
        %490 = vrot.lane.b32.xlu0 %v482, 21
        %v491 = vpop.permute.xlu0 %490
        %492 = vrot.lane.b32.xlu0 %v483, 21
        %v493 = vpop.permute.xlu0 %492
        %494 = vrot.lane.b32.xlu0 %v484, 21
        %v495 = vpop.permute.xlu0 %494
        %496 = vrot.lane.b32.xlu0 %v485, 21
        %v497 = vpop.permute.xlu0 %496
        %vm498 = vcmask 171008
        %v499 = vsel %vm498, %v487, %v489
        %v500 = vsel %vm498, %v489, %v491
        %v501 = vsel %vm498, %v491, %v493
        %v502 = vsel %vm498, %v493, %v495
        %v503 = vsel %vm498, %v495, %v497
        %509 = vst [vmem:[#allocation2 + $0x78] sm:$0xff] %v499
        %510 = vst [vmem:[#allocation2 + $0x80] sm:$0xff] %v500
        %511 = vst [vmem:[#allocation2 + $0x88] sm:$0xff] %v501
        %512 = vst [vmem:[#allocation2 + $0x90] sm:$0xff] %v502
        %513 = vst [vmem:[#allocation2 + $0x98] sm:$0xff] %v503
        %v514 = vld [vmem:[%s230 + $0xc] sm:$0xff]
        %v515 = vld [vmem:[%s230 + $0x14] sm:$0xff]
        %v516 = vld [vmem:[%s230 + $0x1c] sm:$0xff]
        %v517 = vld [vmem:[%s230 + $0x40] sm:$0xff]
        %v518 = vld [vmem:[%s230 + $0x48] sm:$0xff]
        %v519 = vld [vmem:[%s230 + $0x50] sm:$0xff]
        %v526 = vunpack.c.l.b16 %v514
        %v527 = vunpack.c.h.b16 %v514
        %v528 = vunpack.c.l.b16 %v515
        %v529 = vunpack.c.h.b16 %v515
        %v530 = vunpack.c.l.b16 %v516
        %v531 = vunpack.c.h.b16 %v516
        %v532 = vunpack.c.l.b16 %v517
        %v533 = vunpack.c.h.b16 %v517
        %v534 = vunpack.c.l.b16 %v518
        %v535 = vunpack.c.h.b16 %v518
        %v536 = vunpack.c.l.b16 %v519
        %v537 = vunpack.c.h.b16 %v519
        %v538 = vpack.c.b16 %v532, %v526
        %v539 = vpack.c.b16 %v533, %v527
        %v540 = vpack.c.b16 %v534, %v528
        %v541 = vpack.c.b16 %v535, %v529
        %v542 = vpack.c.b16 %v536, %v530
        %v543 = vpack.c.b16 %v537, %v531
        %544 = vrot.lane.b32.xlu0 %v538, 20
        %v545 = vpop.permute.xlu0 %544
        %546 = vrot.lane.b32.xlu0 %v539, 20
        %v547 = vpop.permute.xlu0 %546
        %548 = vrot.lane.b32.xlu0 %v540, 20
        %v549 = vpop.permute.xlu0 %548
        %550 = vrot.lane.b32.xlu0 %v541, 20
        %v551 = vpop.permute.xlu0 %550
        %552 = vrot.lane.b32.xlu0 %v542, 20
        %v553 = vpop.permute.xlu0 %552
        %554 = vrot.lane.b32.xlu0 %v543, 20
        %v555 = vpop.permute.xlu0 %554
        %vm556 = vcmask 162816
        %v557 = vsel %vm556, %v545, %v547
        %v558 = vsel %vm556, %v547, %v549
        %v559 = vsel %vm556, %v549, %v551
        %v560 = vsel %vm556, %v551, %v553
        %v561 = vsel %vm556, %v553, %v555
        %567 = vst [vmem:[#allocation2 + $0xa0] sm:$0xff] %v557
        %568 = vst [vmem:[#allocation2 + $0xa8] sm:$0xff] %v558
        %569 = vst [vmem:[#allocation2 + $0xb0] sm:$0xff] %v559
        %570 = vst [vmem:[#allocation2 + $0xb8] sm:$0xff] %v560
        %571 = vst [vmem:[#allocation2 + $0xc0] sm:$0xff] %v561
        %v572 = vld [vmem:[%s230 + $0xc] sm:$0xff]
        %v573 = vld [vmem:[%s230 + $0x14] sm:$0xff]
        %v574 = vld [vmem:[%s230 + $0x1c] sm:$0xff]
        %v575 = vld [vmem:[%s230 + $0x40] sm:$0xff]
        %v576 = vld [vmem:[%s230 + $0x48] sm:$0xff]
        %v577 = vld [vmem:[%s230 + $0x50] sm:$0xff]
        %v584 = vunpack.c.l.b16 %v572
        %v585 = vunpack.c.h.b16 %v572
        %v586 = vunpack.c.l.b16 %v573
        %v587 = vunpack.c.h.b16 %v573
        %v588 = vunpack.c.l.b16 %v574
        %v589 = vunpack.c.h.b16 %v574
        %v590 = vunpack.c.l.b16 %v575
        %v591 = vunpack.c.h.b16 %v575
        %v592 = vunpack.c.l.b16 %v576
        %v593 = vunpack.c.h.b16 %v576
        %v594 = vunpack.c.l.b16 %v577
        %v595 = vunpack.c.h.b16 %v577
        %v596 = vpack.c.b16 %v590, %v584
        %v597 = vpack.c.b16 %v591, %v585
        %v598 = vpack.c.b16 %v592, %v586
        %v599 = vpack.c.b16 %v593, %v587
        %v600 = vpack.c.b16 %v594, %v588
        %v601 = vpack.c.b16 %v595, %v589
        %602 = vrot.lane.b32.xlu0 %v596, 19
        %v603 = vpop.permute.xlu0 %602
        %604 = vrot.lane.b32.xlu0 %v597, 19
        %v605 = vpop.permute.xlu0 %604
        %606 = vrot.lane.b32.xlu0 %v598, 19
        %v607 = vpop.permute.xlu0 %606
        %608 = vrot.lane.b32.xlu0 %v599, 19
        %v609 = vpop.permute.xlu0 %608
        %610 = vrot.lane.b32.xlu0 %v600, 19
        %v611 = vpop.permute.xlu0 %610
        %612 = vrot.lane.b32.xlu0 %v601, 19
        %v613 = vpop.permute.xlu0 %612
        %vm614 = vcmask 154624
        %v615 = vsel %vm614, %v603, %v605
        %v616 = vsel %vm614, %v605, %v607
        %v617 = vsel %vm614, %v607, %v609
        %v618 = vsel %vm614, %v609, %v611
        %v619 = vsel %vm614, %v611, %v613
        %625 = vst [vmem:[#allocation2 + $0xc8] sm:$0xff] %v615
        %626 = vst [vmem:[#allocation2 + $0xd0] sm:$0xff] %v616
        %627 = vst [vmem:[#allocation2 + $0xd8] sm:$0xff] %v617
        %628 = vst [vmem:[#allocation2 + $0xe0] sm:$0xff] %v618
        %629 = vst [vmem:[#allocation2 + $0xe8] sm:$0xff] %v619
        %v630 = vld [vmem:[%s230 + $0x10] sm:$0xff]
        %v631 = vld [vmem:[%s230 + $0x18] sm:$0xff]
        %v632 = vld [vmem:[%s230 + $0x20] sm:$0xff]
        %v633 = vld [vmem:[%s230 + $0x44] sm:$0xff]
        %v634 = vld [vmem:[%s230 + $0x4c] sm:$0xff]
        %v635 = vld [vmem:[%s230 + $0x54] sm:$0xff]
        %v642 = vunpack.c.l.b16 %v630
        %v643 = vunpack.c.h.b16 %v630
        %v644 = vunpack.c.l.b16 %v631
        %v645 = vunpack.c.h.b16 %v631
        %v646 = vunpack.c.l.b16 %v632
        %v647 = vunpack.c.h.b16 %v632
        %v648 = vunpack.c.l.b16 %v633
        %v649 = vunpack.c.h.b16 %v633
        %v650 = vunpack.c.l.b16 %v634
        %v651 = vunpack.c.h.b16 %v634
        %v652 = vunpack.c.l.b16 %v635
        %v653 = vunpack.c.h.b16 %v635
        %v654 = vpack.c.b16 %v648, %v642
        %v655 = vpack.c.b16 %v649, %v643
        %v656 = vpack.c.b16 %v650, %v644
        %v657 = vpack.c.b16 %v651, %v645
        %v658 = vpack.c.b16 %v652, %v646
        %v659 = vpack.c.b16 %v653, %v647
        %660 = vrot.lane.b32.xlu0 %v654, 109
        %v661 = vpop.permute.xlu0 %660
        %662 = vrot.lane.b32.xlu0 %v655, 109
        %v663 = vpop.permute.xlu0 %662
        %664 = vrot.lane.b32.xlu0 %v656, 109
        %v665 = vpop.permute.xlu0 %664
        %666 = vrot.lane.b32.xlu0 %v657, 109
        %v667 = vpop.permute.xlu0 %666
        %668 = vrot.lane.b32.xlu0 %v658, 109
        %v669 = vpop.permute.xlu0 %668
        %670 = vrot.lane.b32.xlu0 %v659, 109
        %v671 = vpop.permute.xlu0 %670
        %vm672 = vcmask 891904
        %v673 = vsel %vm672, %v661, %v663
        %v674 = vsel %vm672, %v663, %v665
        %v675 = vsel %vm672, %v665, %v667
        %v676 = vsel %vm672, %v667, %v669
        %v677 = vsel %vm672, %v669, %v671
        %683 = vst [vmem:[#allocation2 + $0xf0] sm:$0xff] %v673
        %684 = vst [vmem:[#allocation2 + $0xf8] sm:$0xff] %v674
        %685 = vst [vmem:[#allocation2 + $0x100] sm:$0xff] %v675
        %686 = vst [vmem:[#allocation2 + $0x108] sm:$0xff] %v676
        %687 = vst [vmem:[#allocation2 + $0x110] sm:$0xff] %v677
        %v688 = vld [vmem:[%s230 + $0x10] sm:$0xff]
        %v689 = vld [vmem:[%s230 + $0x18] sm:$0xff]
        %v690 = vld [vmem:[%s230 + $0x20] sm:$0xff]
        %v691 = vld [vmem:[%s230 + $0x44] sm:$0xff]
        %v692 = vld [vmem:[%s230 + $0x4c] sm:$0xff]
        %v693 = vld [vmem:[%s230 + $0x54] sm:$0xff]
        %v700 = vunpack.c.l.b16 %v688
        %v701 = vunpack.c.h.b16 %v688
        %v702 = vunpack.c.l.b16 %v689
        %v703 = vunpack.c.h.b16 %v689
        %v704 = vunpack.c.l.b16 %v690
        %v705 = vunpack.c.h.b16 %v690
        %v706 = vunpack.c.l.b16 %v691
        %v707 = vunpack.c.h.b16 %v691
        %v708 = vunpack.c.l.b16 %v692
        %v709 = vunpack.c.h.b16 %v692
        %v710 = vunpack.c.l.b16 %v693
        %v711 = vunpack.c.h.b16 %v693
        %v712 = vpack.c.b16 %v706, %v700
        %v713 = vpack.c.b16 %v707, %v701
        %v714 = vpack.c.b16 %v708, %v702
        %v715 = vpack.c.b16 %v709, %v703
        %v716 = vpack.c.b16 %v710, %v704
        %v717 = vpack.c.b16 %v711, %v705
        %718 = vrot.lane.b32.xlu0 %v712, 108
        %v719 = vpop.permute.xlu0 %718
        %720 = vrot.lane.b32.xlu0 %v713, 108
        %v721 = vpop.permute.xlu0 %720
        %722 = vrot.lane.b32.xlu0 %v714, 108
        %v723 = vpop.permute.xlu0 %722
        %724 = vrot.lane.b32.xlu0 %v715, 108
        %v725 = vpop.permute.xlu0 %724
        %726 = vrot.lane.b32.xlu0 %v716, 108
        %v727 = vpop.permute.xlu0 %726
        %728 = vrot.lane.b32.xlu0 %v717, 108
        %v729 = vpop.permute.xlu0 %728
        %vm730 = vcmask 883712
        %v731 = vsel %vm730, %v719, %v721
        %v732 = vsel %vm730, %v721, %v723
        %v733 = vsel %vm730, %v723, %v725
        %v734 = vsel %vm730, %v725, %v727
        %v735 = vsel %vm730, %v727, %v729
        %741 = vst [vmem:[#allocation2 + $0x118] sm:$0xff] %v731
        %742 = vst [vmem:[#allocation2 + $0x120] sm:$0xff] %v732
        %743 = vst [vmem:[#allocation2 + $0x128] sm:$0xff] %v733
        %744 = vst [vmem:[#allocation2 + $0x130] sm:$0xff] %v734
        %745 = vst [vmem:[#allocation2 + $0x138] sm:$0xff] %v735
        %v746 = vld [vmem:[%s230 + $0x10] sm:$0xff]
        %v747 = vld [vmem:[%s230 + $0x18] sm:$0xff]
        %v748 = vld [vmem:[%s230 + $0x20] sm:$0xff]
        %v749 = vld [vmem:[%s230 + $0x44] sm:$0xff]
        %v750 = vld [vmem:[%s230 + $0x4c] sm:$0xff]
        %v751 = vld [vmem:[%s230 + $0x54] sm:$0xff]
        %v758 = vunpack.c.l.b16 %v746
        %v759 = vunpack.c.h.b16 %v746
        %v760 = vunpack.c.l.b16 %v747
        %v761 = vunpack.c.h.b16 %v747
        %v762 = vunpack.c.l.b16 %v748
        %v763 = vunpack.c.h.b16 %v748
        %v764 = vunpack.c.l.b16 %v749
        %v765 = vunpack.c.h.b16 %v749
        %v766 = vunpack.c.l.b16 %v750
        %v767 = vunpack.c.h.b16 %v750
        %v768 = vunpack.c.l.b16 %v751
        %v769 = vunpack.c.h.b16 %v751
        %v770 = vpack.c.b16 %v764, %v758
        %v771 = vpack.c.b16 %v765, %v759
        %v772 = vpack.c.b16 %v766, %v760
        %v773 = vpack.c.b16 %v767, %v761
        %v774 = vpack.c.b16 %v768, %v762
        %v775 = vpack.c.b16 %v769, %v763
        %776 = vrot.lane.b32.xlu0 %v770, 107
        %v777 = vpop.permute.xlu0 %776
        %778 = vrot.lane.b32.xlu0 %v771, 107
        %v779 = vpop.permute.xlu0 %778
        %780 = vrot.lane.b32.xlu0 %v772, 107
        %v781 = vpop.permute.xlu0 %780
        %782 = vrot.lane.b32.xlu0 %v773, 107
        %v783 = vpop.permute.xlu0 %782
        %784 = vrot.lane.b32.xlu0 %v774, 107
        %v785 = vpop.permute.xlu0 %784
        %786 = vrot.lane.b32.xlu0 %v775, 107
        %v787 = vpop.permute.xlu0 %786
        %vm788 = vcmask 875520
        %v789 = vsel %vm788, %v777, %v779
        %v790 = vsel %vm788, %v779, %v781
        %v791 = vsel %vm788, %v781, %v783
        %v792 = vsel %vm788, %v783, %v785
        %v793 = vsel %vm788, %v785, %v787
        %799 = vst [vmem:[#allocation2 + $0x140] sm:$0xff] %v789
        %800 = vst [vmem:[#allocation2 + $0x148] sm:$0xff] %v790
        %801 = vst [vmem:[#allocation2 + $0x150] sm:$0xff] %v791
        %802 = vst [vmem:[#allocation2 + $0x158] sm:$0xff] %v792
        %803 = vst [vmem:[#allocation2 + $0x160] sm:$0xff] %v793
        %v804 = vld [vmem:[%s230 + $0x8] sm:$0xff]
        %v805 = vld [vmem:[%s230 + $0x10] sm:$0xff]
        %v806 = vld [vmem:[%s230 + $0x18] sm:$0xff]
        %v807 = vld [vmem:[%s230 + $0x3c] sm:$0xff]
        %v808 = vld [vmem:[%s230 + $0x44] sm:$0xff]
        %v809 = vld [vmem:[%s230 + $0x4c] sm:$0xff]
        %v816 = vunpack.c.l.b16 %v804
        %v817 = vunpack.c.h.b16 %v804
        %v818 = vunpack.c.l.b16 %v805
        %v819 = vunpack.c.h.b16 %v805
        %v820 = vunpack.c.l.b16 %v806
        %v821 = vunpack.c.h.b16 %v806
        %v822 = vunpack.c.l.b16 %v807
        %v823 = vunpack.c.h.b16 %v807
        %v824 = vunpack.c.l.b16 %v808
        %v825 = vunpack.c.h.b16 %v808
        %v826 = vunpack.c.l.b16 %v809
        %v827 = vunpack.c.h.b16 %v809
        %v828 = vpack.c.b16 %v822, %v816
        %v829 = vpack.c.b16 %v823, %v817
        %v830 = vpack.c.b16 %v824, %v818
        %v831 = vpack.c.b16 %v825, %v819
        %v832 = vpack.c.b16 %v826, %v820
        %v833 = vpack.c.b16 %v827, %v821
        %834 = vrot.lane.b32.xlu0 %v828, 15
        %v835 = vpop.permute.xlu0 %834
        %836 = vrot.lane.b32.xlu0 %v829, 15
        %v837 = vpop.permute.xlu0 %836
        %838 = vrot.lane.b32.xlu0 %v830, 15
        %v839 = vpop.permute.xlu0 %838
        %840 = vrot.lane.b32.xlu0 %v831, 15
        %v841 = vpop.permute.xlu0 %840
        %842 = vrot.lane.b32.xlu0 %v832, 15
        %v843 = vpop.permute.xlu0 %842
        %844 = vrot.lane.b32.xlu0 %v833, 15
        %v845 = vpop.permute.xlu0 %844
        %vm846 = vcmask 121856
        %v847 = vsel %vm846, %v835, %v837
        %v848 = vsel %vm846, %v837, %v839
        %v849 = vsel %vm846, %v839, %v841
        %v850 = vsel %vm846, %v841, %v843
        %v851 = vsel %vm846, %v843, %v845
        %857 = vst [vmem:[#allocation2 + $0x168] sm:$0xff] %v847
        %858 = vst [vmem:[#allocation2 + $0x170] sm:$0xff] %v848
        %859 = vst [vmem:[#allocation2 + $0x178] sm:$0xff] %v849
        %860 = vst [vmem:[#allocation2 + $0x180] sm:$0xff] %v850
        %861 = vst [vmem:[#allocation2 + $0x188] sm:$0xff] %v851
        %v862 = vld [vmem:[%s230 + $0x8] sm:$0xff]
        %v863 = vld [vmem:[%s230 + $0x10] sm:$0xff]
        %v864 = vld [vmem:[%s230 + $0x18] sm:$0xff]
        %v865 = vld [vmem:[%s230 + $0x3c] sm:$0xff]
        %v866 = vld [vmem:[%s230 + $0x44] sm:$0xff]
        %v867 = vld [vmem:[%s230 + $0x4c] sm:$0xff]
        %v874 = vunpack.c.l.b16 %v862
        %v875 = vunpack.c.h.b16 %v862
        %v876 = vunpack.c.l.b16 %v863
        %v877 = vunpack.c.h.b16 %v863
        %v878 = vunpack.c.l.b16 %v864
        %v879 = vunpack.c.h.b16 %v864
        %v880 = vunpack.c.l.b16 %v865
        %v881 = vunpack.c.h.b16 %v865
        %v882 = vunpack.c.l.b16 %v866
        %v883 = vunpack.c.h.b16 %v866
        %v884 = vunpack.c.l.b16 %v867
        %v885 = vunpack.c.h.b16 %v867
        %v886 = vpack.c.b16 %v880, %v874
        %v887 = vpack.c.b16 %v881, %v875
        %v888 = vpack.c.b16 %v882, %v876
        %v889 = vpack.c.b16 %v883, %v877
        %v890 = vpack.c.b16 %v884, %v878
        %v891 = vpack.c.b16 %v885, %v879
        %892 = vrot.lane.b32.xlu0 %v886, 12
        %v893 = vpop.permute.xlu0 %892
        %894 = vrot.lane.b32.xlu0 %v887, 12
        %v895 = vpop.permute.xlu0 %894
        %896 = vrot.lane.b32.xlu0 %v888, 12
        %v897 = vpop.permute.xlu0 %896
        %898 = vrot.lane.b32.xlu0 %v889, 12
        %v899 = vpop.permute.xlu0 %898
        %900 = vrot.lane.b32.xlu0 %v890, 12
        %v901 = vpop.permute.xlu0 %900
        %902 = vrot.lane.b32.xlu0 %v891, 12
        %v903 = vpop.permute.xlu0 %902
        %vm904 = vcmask 97280
        %v905 = vsel %vm904, %v893, %v895
        %v906 = vsel %vm904, %v895, %v897
        %v907 = vsel %vm904, %v897, %v899
        %v908 = vsel %vm904, %v899, %v901
        %v909 = vsel %vm904, %v901, %v903
        %915 = vst [vmem:[#allocation2 + $0x190] sm:$0xff] %v905
        %916 = vst [vmem:[#allocation2 + $0x198] sm:$0xff] %v906
        %917 = vst [vmem:[#allocation2 + $0x1a0] sm:$0xff] %v907
        %918 = vst [vmem:[#allocation2 + $0x1a8] sm:$0xff] %v908
        %919 = vst [vmem:[#allocation2 + $0x1b0] sm:$0xff] %v909
        %v920 = vld [vmem:[%s230 + $0x8] sm:$0xff]
        %v921 = vld [vmem:[%s230 + $0x10] sm:$0xff]
        %v922 = vld [vmem:[%s230 + $0x18] sm:$0xff]
        %v923 = vld [vmem:[%s230 + $0x3c] sm:$0xff]
        %v924 = vld [vmem:[%s230 + $0x44] sm:$0xff]
        %v925 = vld [vmem:[%s230 + $0x4c] sm:$0xff]
        %v932 = vunpack.c.l.b16 %v920
        %v933 = vunpack.c.h.b16 %v920
        %v934 = vunpack.c.l.b16 %v921
        %v935 = vunpack.c.h.b16 %v921
        %v936 = vunpack.c.l.b16 %v922
        %v937 = vunpack.c.h.b16 %v922
        %v938 = vunpack.c.l.b16 %v923
        %v939 = vunpack.c.h.b16 %v923
        %v940 = vunpack.c.l.b16 %v924
        %v941 = vunpack.c.h.b16 %v924
        %v942 = vunpack.c.l.b16 %v925
        %v943 = vunpack.c.h.b16 %v925
        %v944 = vpack.c.b16 %v938, %v932
        %v945 = vpack.c.b16 %v939, %v933
        %v946 = vpack.c.b16 %v940, %v934
        %v947 = vpack.c.b16 %v941, %v935
        %v948 = vpack.c.b16 %v942, %v936
        %v949 = vpack.c.b16 %v943, %v937
        %950 = vrot.lane.b32.xlu0 %v944, 9
        %v951 = vpop.permute.xlu0 %950
        %952 = vrot.lane.b32.xlu0 %v945, 9
        %v953 = vpop.permute.xlu0 %952
        %954 = vrot.lane.b32.xlu0 %v946, 9
        %v955 = vpop.permute.xlu0 %954
        %956 = vrot.lane.b32.xlu0 %v947, 9
        %v957 = vpop.permute.xlu0 %956
        %958 = vrot.lane.b32.xlu0 %v948, 9
        %v959 = vpop.permute.xlu0 %958
        %960 = vrot.lane.b32.xlu0 %v949, 9
        %v961 = vpop.permute.xlu0 %960
        %vm962 = vcmask 72704
        %v963 = vsel %vm962, %v951, %v953
        %v964 = vsel %vm962, %v953, %v955
        %v965 = vsel %vm962, %v955, %v957
        %v966 = vsel %vm962, %v957, %v959
        %v967 = vsel %vm962, %v959, %v961
        %973 = vst [vmem:[#allocation2 + $0x1b8] sm:$0xff] %v963
        %974 = vst [vmem:[#allocation2 + $0x1c0] sm:$0xff] %v964
        %975 = vst [vmem:[#allocation2 + $0x1c8] sm:$0xff] %v965
        %976 = vst [vmem:[#allocation2 + $0x1d0] sm:$0xff] %v966
        %977 = vst [vmem:[#allocation2 + $0x1d8] sm:$0xff] %v967
        %v978 = vld [vmem:[%s230 + $0xc] sm:$0xff]
        %v979 = vld [vmem:[%s230 + $0x14] sm:$0xff]
        %v980 = vld [vmem:[%s230 + $0x1c] sm:$0xff]
        %v981 = vld [vmem:[%s230 + $0x40] sm:$0xff]
        %v982 = vld [vmem:[%s230 + $0x48] sm:$0xff]
        %v983 = vld [vmem:[%s230 + $0x50] sm:$0xff]
        %v990 = vunpack.c.l.b16 %v978
        %v991 = vunpack.c.h.b16 %v978
        %v992 = vunpack.c.l.b16 %v979
        %v993 = vunpack.c.h.b16 %v979
        %v994 = vunpack.c.l.b16 %v980
        %v995 = vunpack.c.h.b16 %v980
        %v996 = vunpack.c.l.b16 %v981
        %v997 = vunpack.c.h.b16 %v981
        %v998 = vunpack.c.l.b16 %v982
        %v999 = vunpack.c.h.b16 %v982
        %v1000 = vunpack.c.l.b16 %v983
        %v1001 = vunpack.c.h.b16 %v983
        %v1002 = vpack.c.b16 %v996, %v990
        %v1003 = vpack.c.b16 %v997, %v991
        %v1004 = vpack.c.b16 %v998, %v992
        %v1005 = vpack.c.b16 %v999, %v993
        %v1006 = vpack.c.b16 %v1000, %v994
        %v1007 = vpack.c.b16 %v1001, %v995
        %1008 = vrot.lane.b32.xlu0 %v1002, 23
        %v1009 = vpop.permute.xlu0 %1008
        %1010 = vrot.lane.b32.xlu0 %v1003, 23
        %v1011 = vpop.permute.xlu0 %1010
        %1012 = vrot.lane.b32.xlu0 %v1004, 23
        %v1013 = vpop.permute.xlu0 %1012
        %1014 = vrot.lane.b32.xlu0 %v1005, 23
        %v1015 = vpop.permute.xlu0 %1014
        %1016 = vrot.lane.b32.xlu0 %v1006, 23
        %v1017 = vpop.permute.xlu0 %1016
        %1018 = vrot.lane.b32.xlu0 %v1007, 23
        %v1019 = vpop.permute.xlu0 %1018
        %vm1020 = vcmask 187392
        %v1021 = vsel %vm1020, %v1009, %v1011
        %v1022 = vsel %vm1020, %v1011, %v1013
        %v1023 = vsel %vm1020, %v1013, %v1015
        %v1024 = vsel %vm1020, %v1015, %v1017
        %v1025 = vsel %vm1020, %v1017, %v1019
        %1031 = vst [vmem:[#allocation2 + $0x1e0] sm:$0xff] %v1021
        %1032 = vst [vmem:[#allocation2 + $0x1e8] sm:$0xff] %v1022
        %1033 = vst [vmem:[#allocation2 + $0x1f0] sm:$0xff] %v1023
        %1034 = vst [vmem:[#allocation2 + $0x1f8] sm:$0xff] %v1024
        %1035 = vst [vmem:[#allocation2 + $0x200] sm:$0xff] %v1025
        %v1036 = vld [vmem:[%s230 + $0xc] sm:$0xff]
        %v1037 = vld [vmem:[%s230 + $0x14] sm:$0xff]
        %v1038 = vld [vmem:[%s230 + $0x1c] sm:$0xff]
        %v1039 = vld [vmem:[%s230 + $0x40] sm:$0xff]
        %v1040 = vld [vmem:[%s230 + $0x48] sm:$0xff]
        %v1041 = vld [vmem:[%s230 + $0x50] sm:$0xff]
        %v1048 = vunpack.c.l.b16 %v1036
        %v1049 = vunpack.c.h.b16 %v1036
        %v1050 = vunpack.c.l.b16 %v1037
        %v1051 = vunpack.c.h.b16 %v1037
        %v1052 = vunpack.c.l.b16 %v1038
        %v1053 = vunpack.c.h.b16 %v1038
        %v1054 = vunpack.c.l.b16 %v1039
        %v1055 = vunpack.c.h.b16 %v1039
        %v1056 = vunpack.c.l.b16 %v1040
        %v1057 = vunpack.c.h.b16 %v1040
        %v1058 = vunpack.c.l.b16 %v1041
        %v1059 = vunpack.c.h.b16 %v1041
        %v1060 = vpack.c.b16 %v1054, %v1048
        %v1061 = vpack.c.b16 %v1055, %v1049
        %v1062 = vpack.c.b16 %v1056, %v1050
        %v1063 = vpack.c.b16 %v1057, %v1051
        %v1064 = vpack.c.b16 %v1058, %v1052
        %v1065 = vpack.c.b16 %v1059, %v1053
        %1066 = vrot.lane.b32.xlu0 %v1060, 20
        %v1067 = vpop.permute.xlu0 %1066
        %1068 = vrot.lane.b32.xlu0 %v1061, 20
        %v1069 = vpop.permute.xlu0 %1068
        %1070 = vrot.lane.b32.xlu0 %v1062, 20
        %v1071 = vpop.permute.xlu0 %1070
        %1072 = vrot.lane.b32.xlu0 %v1063, 20
        %v1073 = vpop.permute.xlu0 %1072
        %1074 = vrot.lane.b32.xlu0 %v1064, 20
        %v1075 = vpop.permute.xlu0 %1074
        %1076 = vrot.lane.b32.xlu0 %v1065, 20
        %v1077 = vpop.permute.xlu0 %1076
        %v1078 = vsel %vm556, %v1067, %v1069
        %v1079 = vsel %vm556, %v1069, %v1071
        %v1080 = vsel %vm556, %v1071, %v1073
        %v1081 = vsel %vm556, %v1073, %v1075
        %v1082 = vsel %vm556, %v1075, %v1077
        %1088 = vst [vmem:[#allocation2 + $0x208] sm:$0xff] %v1078
        %1089 = vst [vmem:[#allocation2 + $0x210] sm:$0xff] %v1079
        %1090 = vst [vmem:[#allocation2 + $0x218] sm:$0xff] %v1080
        %1091 = vst [vmem:[#allocation2 + $0x220] sm:$0xff] %v1081
        %1092 = vst [vmem:[#allocation2 + $0x228] sm:$0xff] %v1082
        %v1093 = vld [vmem:[%s230 + $0xc] sm:$0xff]
        %v1094 = vld [vmem:[%s230 + $0x14] sm:$0xff]
        %v1095 = vld [vmem:[%s230 + $0x1c] sm:$0xff]
        %v1096 = vld [vmem:[%s230 + $0x40] sm:$0xff]
        %v1097 = vld [vmem:[%s230 + $0x48] sm:$0xff]
        %v1098 = vld [vmem:[%s230 + $0x50] sm:$0xff]
        %v1105 = vunpack.c.l.b16 %v1093
        %v1106 = vunpack.c.h.b16 %v1093
        %v1107 = vunpack.c.l.b16 %v1094
        %v1108 = vunpack.c.h.b16 %v1094
        %v1109 = vunpack.c.l.b16 %v1095
        %v1110 = vunpack.c.h.b16 %v1095
        %v1111 = vunpack.c.l.b16 %v1096
        %v1112 = vunpack.c.h.b16 %v1096
        %v1113 = vunpack.c.l.b16 %v1097
        %v1114 = vunpack.c.h.b16 %v1097
        %v1115 = vunpack.c.l.b16 %v1098
        %v1116 = vunpack.c.h.b16 %v1098
        %v1117 = vpack.c.b16 %v1111, %v1105
        %v1118 = vpack.c.b16 %v1112, %v1106
        %v1119 = vpack.c.b16 %v1113, %v1107
        %v1120 = vpack.c.b16 %v1114, %v1108
        %v1121 = vpack.c.b16 %v1115, %v1109
        %v1122 = vpack.c.b16 %v1116, %v1110
        %1123 = vrot.lane.b32.xlu0 %v1117, 17
        %v1124 = vpop.permute.xlu0 %1123
        %1125 = vrot.lane.b32.xlu0 %v1118, 17
        %v1126 = vpop.permute.xlu0 %1125
        %1127 = vrot.lane.b32.xlu0 %v1119, 17
        %v1128 = vpop.permute.xlu0 %1127
        %1129 = vrot.lane.b32.xlu0 %v1120, 17
        %v1130 = vpop.permute.xlu0 %1129
        %1131 = vrot.lane.b32.xlu0 %v1121, 17
        %v1132 = vpop.permute.xlu0 %1131
        %1133 = vrot.lane.b32.xlu0 %v1122, 17
        %v1134 = vpop.permute.xlu0 %1133
        %vm1135 = vcmask 138240
        %v1136 = vsel %vm1135, %v1124, %v1126
        %v1137 = vsel %vm1135, %v1126, %v1128
        %v1138 = vsel %vm1135, %v1128, %v1130
        %v1139 = vsel %vm1135, %v1130, %v1132
        %v1140 = vsel %vm1135, %v1132, %v1134
        %1146 = vst [vmem:[#allocation2 + $0x230] sm:$0xff] %v1136
        %1147 = vst [vmem:[#allocation2 + $0x238] sm:$0xff] %v1137
        %1148 = vst [vmem:[#allocation2 + $0x240] sm:$0xff] %v1138
        %1149 = vst [vmem:[#allocation2 + $0x248] sm:$0xff] %v1139
        %1150 = vst [vmem:[#allocation2 + $0x250] sm:$0xff] %v1140
        %v1151 = vld [vmem:[%s230 + $0x10] sm:$0xff]
        %v1152 = vld [vmem:[%s230 + $0x18] sm:$0xff]
        %v1153 = vld [vmem:[%s230 + $0x20] sm:$0xff]
        %v1154 = vld [vmem:[%s230 + $0x44] sm:$0xff]
        %v1155 = vld [vmem:[%s230 + $0x4c] sm:$0xff]
        %v1156 = vld [vmem:[%s230 + $0x54] sm:$0xff]
        %v1163 = vunpack.c.l.b16 %v1151
        %v1164 = vunpack.c.h.b16 %v1151
        %v1165 = vunpack.c.l.b16 %v1152
        %v1166 = vunpack.c.h.b16 %v1152
        %v1167 = vunpack.c.l.b16 %v1153
        %v1168 = vunpack.c.h.b16 %v1153
        %v1169 = vunpack.c.l.b16 %v1154
        %v1170 = vunpack.c.h.b16 %v1154
        %v1171 = vunpack.c.l.b16 %v1155
        %v1172 = vunpack.c.h.b16 %v1155
        %v1173 = vunpack.c.l.b16 %v1156
        %v1174 = vunpack.c.h.b16 %v1156
        %v1175 = vpack.c.b16 %v1169, %v1163
        %v1176 = vpack.c.b16 %v1170, %v1164
        %v1177 = vpack.c.b16 %v1171, %v1165
        %v1178 = vpack.c.b16 %v1172, %v1166
        %v1179 = vpack.c.b16 %v1173, %v1167
        %v1180 = vpack.c.b16 %v1174, %v1168
        %1181 = vrot.lane.b32.xlu0 %v1175, 31
        %v1182 = vpop.permute.xlu0 %1181
        %1183 = vrot.lane.b32.xlu0 %v1176, 31
        %v1184 = vpop.permute.xlu0 %1183
        %1185 = vrot.lane.b32.xlu0 %v1177, 31
        %v1186 = vpop.permute.xlu0 %1185
        %1187 = vrot.lane.b32.xlu0 %v1178, 31
        %v1188 = vpop.permute.xlu0 %1187
        %1189 = vrot.lane.b32.xlu0 %v1179, 31
        %v1190 = vpop.permute.xlu0 %1189
        %1191 = vrot.lane.b32.xlu0 %v1180, 31
        %v1192 = vpop.permute.xlu0 %1191
        %vm1193 = vcmask 252928
        %v1194 = vsel %vm1193, %v1182, %v1184
        %v1195 = vsel %vm1193, %v1184, %v1186
        %v1196 = vsel %vm1193, %v1186, %v1188
        %v1197 = vsel %vm1193, %v1188, %v1190
        %v1198 = vsel %vm1193, %v1190, %v1192
        %1204 = vst [vmem:[#allocation2 + $0x258] sm:$0xff] %v1194
        %1205 = vst [vmem:[#allocation2 + $0x260] sm:$0xff] %v1195
        %1206 = vst [vmem:[#allocation2 + $0x268] sm:$0xff] %v1196
        %1207 = vst [vmem:[#allocation2 + $0x270] sm:$0xff] %v1197
        %1208 = vst [vmem:[#allocation2 + $0x278] sm:$0xff] %v1198
        %v1209 = vld [vmem:[%s230 + $0x10] sm:$0xff]
        %v1210 = vld [vmem:[%s230 + $0x18] sm:$0xff]
        %v1211 = vld [vmem:[%s230 + $0x20] sm:$0xff]
        %v1212 = vld [vmem:[%s230 + $0x44] sm:$0xff]
        %v1213 = vld [vmem:[%s230 + $0x4c] sm:$0xff]
        %v1214 = vld [vmem:[%s230 + $0x54] sm:$0xff]
        %v1221 = vunpack.c.l.b16 %v1209
        %v1222 = vunpack.c.h.b16 %v1209
        %v1223 = vunpack.c.l.b16 %v1210
        %v1224 = vunpack.c.h.b16 %v1210
        %v1225 = vunpack.c.l.b16 %v1211
        %v1226 = vunpack.c.h.b16 %v1211
        %v1227 = vunpack.c.l.b16 %v1212
        %v1228 = vunpack.c.h.b16 %v1212
        %v1229 = vunpack.c.l.b16 %v1213
        %v1230 = vunpack.c.h.b16 %v1213
        %v1231 = vunpack.c.l.b16 %v1214
        %v1232 = vunpack.c.h.b16 %v1214
        %v1233 = vpack.c.b16 %v1227, %v1221
        %v1234 = vpack.c.b16 %v1228, %v1222
        %v1235 = vpack.c.b16 %v1229, %v1223
        %v1236 = vpack.c.b16 %v1230, %v1224
        %v1237 = vpack.c.b16 %v1231, %v1225
        %v1238 = vpack.c.b16 %v1232, %v1226
        %1239 = vrot.lane.b32.xlu0 %v1233, 28
        %v1240 = vpop.permute.xlu0 %1239
        %1241 = vrot.lane.b32.xlu0 %v1234, 28
        %v1242 = vpop.permute.xlu0 %1241
        %1243 = vrot.lane.b32.xlu0 %v1235, 28
        %v1244 = vpop.permute.xlu0 %1243
        %1245 = vrot.lane.b32.xlu0 %v1236, 28
        %v1246 = vpop.permute.xlu0 %1245
        %1247 = vrot.lane.b32.xlu0 %v1237, 28
        %v1248 = vpop.permute.xlu0 %1247
        %1249 = vrot.lane.b32.xlu0 %v1238, 28
        %v1250 = vpop.permute.xlu0 %1249
        %vm1251 = vcmask 228352
        %v1252 = vsel %vm1251, %v1240, %v1242
        %v1253 = vsel %vm1251, %v1242, %v1244
        %v1254 = vsel %vm1251, %v1244, %v1246
        %v1255 = vsel %vm1251, %v1246, %v1248
        %v1256 = vsel %vm1251, %v1248, %v1250
        %1262 = vst [vmem:[#allocation2 + $0x280] sm:$0xff] %v1252
        %1263 = vst [vmem:[#allocation2 + $0x288] sm:$0xff] %v1253
        %1264 = vst [vmem:[#allocation2 + $0x290] sm:$0xff] %v1254
        %1265 = vst [vmem:[#allocation2 + $0x298] sm:$0xff] %v1255
        %1266 = vst [vmem:[#allocation2 + $0x2a0] sm:$0xff] %v1256
        %v1267 = vld [vmem:[%s230 + $0x10] sm:$0xff]
        %v1268 = vld [vmem:[%s230 + $0x18] sm:$0xff]
        %v1269 = vld [vmem:[%s230 + $0x20] sm:$0xff]
        %v1270 = vld [vmem:[%s230 + $0x44] sm:$0xff]
        %v1271 = vld [vmem:[%s230 + $0x4c] sm:$0xff]
        %v1272 = vld [vmem:[%s230 + $0x54] sm:$0xff]
        %v1279 = vunpack.c.l.b16 %v1267
        %v1280 = vunpack.c.h.b16 %v1267
        %v1281 = vunpack.c.l.b16 %v1268
        %v1282 = vunpack.c.h.b16 %v1268
        %v1283 = vunpack.c.l.b16 %v1269
        %v1284 = vunpack.c.h.b16 %v1269
        %v1285 = vunpack.c.l.b16 %v1270
        %v1286 = vunpack.c.h.b16 %v1270
        %v1287 = vunpack.c.l.b16 %v1271
        %v1288 = vunpack.c.h.b16 %v1271
        %v1289 = vunpack.c.l.b16 %v1272
        %v1290 = vunpack.c.h.b16 %v1272
        %v1291 = vpack.c.b16 %v1285, %v1279
        %v1292 = vpack.c.b16 %v1286, %v1280
        %v1293 = vpack.c.b16 %v1287, %v1281
        %v1294 = vpack.c.b16 %v1288, %v1282
        %v1295 = vpack.c.b16 %v1289, %v1283
        %v1296 = vpack.c.b16 %v1290, %v1284
        %1297 = vrot.lane.b32.xlu0 %v1291, 25
        %v1298 = vpop.permute.xlu0 %1297
        %1299 = vrot.lane.b32.xlu0 %v1292, 25
        %v1300 = vpop.permute.xlu0 %1299
        %1301 = vrot.lane.b32.xlu0 %v1293, 25
        %v1302 = vpop.permute.xlu0 %1301
        %1303 = vrot.lane.b32.xlu0 %v1294, 25
        %v1304 = vpop.permute.xlu0 %1303
        %1305 = vrot.lane.b32.xlu0 %v1295, 25
        %v1306 = vpop.permute.xlu0 %1305
        %1307 = vrot.lane.b32.xlu0 %v1296, 25
        %v1308 = vpop.permute.xlu0 %1307
        %vm1309 = vcmask 203776
        %v1310 = vsel %vm1309, %v1298, %v1300
        %v1311 = vsel %vm1309, %v1300, %v1302
        %v1312 = vsel %vm1309, %v1302, %v1304
        %v1313 = vsel %vm1309, %v1304, %v1306
        %v1314 = vsel %vm1309, %v1306, %v1308
        %1320 = vst [vmem:[#allocation2 + $0x2a8] sm:$0xff] %v1310
        %1321 = vst [vmem:[#allocation2 + $0x2b0] sm:$0xff] %v1311
        %1322 = vst [vmem:[#allocation2 + $0x2b8] sm:$0xff] %v1312
        %1323 = vst [vmem:[#allocation2 + $0x2c0] sm:$0xff] %v1313
        %1324 = vst [vmem:[#allocation2 + $0x2c8] sm:$0xff] %v1314
        %v1325 = vld [vmem:[%s230 + $0x4] sm:$0xff]
        %v1326 = vld [vmem:[%s230 + $0xc] sm:$0xff]
        %v1327 = vld [vmem:[%s230 + $0x14] sm:$0xff]
        %v1328 = vld [vmem:[%s230 + $0x38] sm:$0xff]
        %v1329 = vld [vmem:[%s230 + $0x40] sm:$0xff]
        %v1330 = vld [vmem:[%s230 + $0x48] sm:$0xff]
        %v1337 = vunpack.c.l.b16 %v1325
        %v1338 = vunpack.c.h.b16 %v1325
        %v1339 = vunpack.c.l.b16 %v1326
        %v1340 = vunpack.c.h.b16 %v1326
        %v1341 = vunpack.c.l.b16 %v1327
        %v1342 = vunpack.c.h.b16 %v1327
        %v1343 = vunpack.c.l.b16 %v1328
        %v1344 = vunpack.c.h.b16 %v1328
        %v1345 = vunpack.c.l.b16 %v1329
        %v1346 = vunpack.c.h.b16 %v1329
        %v1347 = vunpack.c.l.b16 %v1330
        %v1348 = vunpack.c.h.b16 %v1330
        %v1349 = vpack.c.b16 %v1343, %v1337
        %v1350 = vpack.c.b16 %v1344, %v1338
        %v1351 = vpack.c.b16 %v1345, %v1339
        %v1352 = vpack.c.b16 %v1346, %v1340
        %v1353 = vpack.c.b16 %v1347, %v1341
        %v1354 = vpack.c.b16 %v1348, %v1342
        %1355 = vrot.lane.b32.xlu0 %v1349, 10
        %v1356 = vpop.permute.xlu0 %1355
        %1357 = vrot.lane.b32.xlu0 %v1350, 10
        %v1358 = vpop.permute.xlu0 %1357
        %1359 = vrot.lane.b32.xlu0 %v1351, 10
        %v1360 = vpop.permute.xlu0 %1359
        %1361 = vrot.lane.b32.xlu0 %v1352, 10
        %v1362 = vpop.permute.xlu0 %1361
        %1363 = vrot.lane.b32.xlu0 %v1353, 10
        %v1364 = vpop.permute.xlu0 %1363
        %1365 = vrot.lane.b32.xlu0 %v1354, 10
        %v1366 = vpop.permute.xlu0 %1365
        %vm1367 = vcmask 80896
        %v1368 = vsel %vm1367, %v1356, %v1358
        %v1369 = vsel %vm1367, %v1358, %v1360
        %v1370 = vsel %vm1367, %v1360, %v1362
        %v1371 = vsel %vm1367, %v1362, %v1364
        %v1372 = vsel %vm1367, %v1364, %v1366
        %1378 = vst [vmem:[#allocation2 + $0x2d0] sm:$0xff] %v1368
        %1379 = vst [vmem:[#allocation2 + $0x2d8] sm:$0xff] %v1369
        %1380 = vst [vmem:[#allocation2 + $0x2e0] sm:$0xff] %v1370
        %1381 = vst [vmem:[#allocation2 + $0x2e8] sm:$0xff] %v1371
        %1382 = vst [vmem:[#allocation2 + $0x2f0] sm:$0xff] %v1372
        %v1383 = vld [vmem:[%s230 + $0x4] sm:$0xff]
        %v1384 = vld [vmem:[%s230 + $0xc] sm:$0xff]
        %v1385 = vld [vmem:[%s230 + $0x14] sm:$0xff]
        %v1386 = vld [vmem:[%s230 + $0x38] sm:$0xff]
        %v1387 = vld [vmem:[%s230 + $0x40] sm:$0xff]
        %v1388 = vld [vmem:[%s230 + $0x48] sm:$0xff]
        %v1395 = vunpack.c.l.b16 %v1383
        %v1396 = vunpack.c.h.b16 %v1383
        %v1397 = vunpack.c.l.b16 %v1384
        %v1398 = vunpack.c.h.b16 %v1384
        %v1399 = vunpack.c.l.b16 %v1385
        %v1400 = vunpack.c.h.b16 %v1385
        %v1401 = vunpack.c.l.b16 %v1386
        %v1402 = vunpack.c.h.b16 %v1386
        %v1403 = vunpack.c.l.b16 %v1387
        %v1404 = vunpack.c.h.b16 %v1387
        %v1405 = vunpack.c.l.b16 %v1388
        %v1406 = vunpack.c.h.b16 %v1388
        %v1407 = vpack.c.b16 %v1401, %v1395
        %v1408 = vpack.c.b16 %v1402, %v1396
        %v1409 = vpack.c.b16 %v1403, %v1397
        %v1410 = vpack.c.b16 %v1404, %v1398
        %v1411 = vpack.c.b16 %v1405, %v1399
        %v1412 = vpack.c.b16 %v1406, %v1400
        %1413 = vrot.lane.b32.xlu0 %v1407, 7
        %v1414 = vpop.permute.xlu0 %1413
        %1415 = vrot.lane.b32.xlu0 %v1408, 7
        %v1416 = vpop.permute.xlu0 %1415
        %1417 = vrot.lane.b32.xlu0 %v1409, 7
        %v1418 = vpop.permute.xlu0 %1417
        %1419 = vrot.lane.b32.xlu0 %v1410, 7
        %v1420 = vpop.permute.xlu0 %1419
        %1421 = vrot.lane.b32.xlu0 %v1411, 7
        %v1422 = vpop.permute.xlu0 %1421
        %1423 = vrot.lane.b32.xlu0 %v1412, 7
        %v1424 = vpop.permute.xlu0 %1423
        %vm1425 = vcmask 56320
        %v1426 = vsel %vm1425, %v1414, %v1416
        %v1427 = vsel %vm1425, %v1416, %v1418
        %v1428 = vsel %vm1425, %v1418, %v1420
        %v1429 = vsel %vm1425, %v1420, %v1422
        %v1430 = vsel %vm1425, %v1422, %v1424
        %1436 = vst [vmem:[#allocation2 + $0x2f8] sm:$0xff] %v1426
        %1437 = vst [vmem:[#allocation2 + $0x300] sm:$0xff] %v1427
        %1438 = vst [vmem:[#allocation2 + $0x308] sm:$0xff] %v1428
        %1439 = vst [vmem:[#allocation2 + $0x310] sm:$0xff] %v1429
        %1440 = vst [vmem:[#allocation2 + $0x318] sm:$0xff] %v1430
        %v1441 = vld [vmem:[%s230 + $0x4] sm:$0xff]
        %v1442 = vld [vmem:[%s230 + $0xc] sm:$0xff]
        %v1443 = vld [vmem:[%s230 + $0x14] sm:$0xff]
        %v1444 = vld [vmem:[%s230 + $0x38] sm:$0xff]
        %v1445 = vld [vmem:[%s230 + $0x40] sm:$0xff]
        %v1446 = vld [vmem:[%s230 + $0x48] sm:$0xff]
        %v1453 = vunpack.c.l.b16 %v1441
        %v1454 = vunpack.c.h.b16 %v1441
        %v1455 = vunpack.c.l.b16 %v1442
        %v1456 = vunpack.c.h.b16 %v1442
        %v1457 = vunpack.c.l.b16 %v1443
        %v1458 = vunpack.c.h.b16 %v1443
        %v1459 = vunpack.c.l.b16 %v1444
        %v1460 = vunpack.c.h.b16 %v1444
        %v1461 = vunpack.c.l.b16 %v1445
        %v1462 = vunpack.c.h.b16 %v1445
        %v1463 = vunpack.c.l.b16 %v1446
        %v1464 = vunpack.c.h.b16 %v1446
        %v1465 = vpack.c.b16 %v1459, %v1453
        %v1466 = vpack.c.b16 %v1460, %v1454
        %v1467 = vpack.c.b16 %v1461, %v1455
        %v1468 = vpack.c.b16 %v1462, %v1456
        %v1469 = vpack.c.b16 %v1463, %v1457
        %v1470 = vpack.c.b16 %v1464, %v1458
        %1471 = vrot.lane.b32.xlu0 %v1465, 4
        %v1472 = vpop.permute.xlu0 %1471
        %1473 = vrot.lane.b32.xlu0 %v1466, 4
        %v1474 = vpop.permute.xlu0 %1473
        %1475 = vrot.lane.b32.xlu0 %v1467, 4
        %v1476 = vpop.permute.xlu0 %1475
        %1477 = vrot.lane.b32.xlu0 %v1468, 4
        %v1478 = vpop.permute.xlu0 %1477
        %1479 = vrot.lane.b32.xlu0 %v1469, 4
        %v1480 = vpop.permute.xlu0 %1479
        %1481 = vrot.lane.b32.xlu0 %v1470, 4
        %v1482 = vpop.permute.xlu0 %1481
        %vm1483 = vcmask 31744
        %v1484 = vsel %vm1483, %v1472, %v1474
        %v1485 = vsel %vm1483, %v1474, %v1476
        %v1486 = vsel %vm1483, %v1476, %v1478
        %v1487 = vsel %vm1483, %v1478, %v1480
        %v1488 = vsel %vm1483, %v1480, %v1482
        %1494 = vst [vmem:[#allocation2 + $0x320] sm:$0xff] %v1484
        %1495 = vst [vmem:[#allocation2 + $0x328] sm:$0xff] %v1485
        %1496 = vst [vmem:[#allocation2 + $0x330] sm:$0xff] %v1486
        %1497 = vst [vmem:[#allocation2 + $0x338] sm:$0xff] %v1487
        %1498 = vst [vmem:[#allocation2 + $0x340] sm:$0xff] %v1488
        %v1499 = vld [vmem:[%s230 + $0x4] sm:$0xff]
        %v1500 = vld [vmem:[%s230 + $0xc] sm:$0xff]
        %v1501 = vld [vmem:[%s230 + $0x14] sm:$0xff]
        %v1502 = vld [vmem:[%s230 + $0x38] sm:$0xff]
        %v1503 = vld [vmem:[%s230 + $0x40] sm:$0xff]
        %v1504 = vld [vmem:[%s230 + $0x48] sm:$0xff]
        %v1511 = vunpack.c.l.b16 %v1499
        %v1512 = vunpack.c.h.b16 %v1499
        %v1513 = vunpack.c.l.b16 %v1500
        %v1514 = vunpack.c.h.b16 %v1500
        %v1515 = vunpack.c.l.b16 %v1501
        %v1516 = vunpack.c.h.b16 %v1501
        %v1517 = vunpack.c.l.b16 %v1502
        %v1518 = vunpack.c.h.b16 %v1502
        %v1519 = vunpack.c.l.b16 %v1503
        %v1520 = vunpack.c.h.b16 %v1503
        %v1521 = vunpack.c.l.b16 %v1504
        %v1522 = vunpack.c.h.b16 %v1504
        %v1523 = vpack.c.b16 %v1517, %v1511
        %v1524 = vpack.c.b16 %v1518, %v1512
        %v1525 = vpack.c.b16 %v1519, %v1513
        %v1526 = vpack.c.b16 %v1520, %v1514
        %v1527 = vpack.c.b16 %v1521, %v1515
        %v1528 = vpack.c.b16 %v1522, %v1516
        %1529 = vrot.lane.b32.xlu0 %v1523, 1
        %v1530 = vpop.permute.xlu0 %1529
        %1531 = vrot.lane.b32.xlu0 %v1524, 1
        %v1532 = vpop.permute.xlu0 %1531
        %1533 = vrot.lane.b32.xlu0 %v1525, 1
        %v1534 = vpop.permute.xlu0 %1533
        %1535 = vrot.lane.b32.xlu0 %v1526, 1
        %v1536 = vpop.permute.xlu0 %1535
        %1537 = vrot.lane.b32.xlu0 %v1527, 1
        %v1538 = vpop.permute.xlu0 %1537
        %1539 = vrot.lane.b32.xlu0 %v1528, 1
        %v1540 = vpop.permute.xlu0 %1539
        %vm1541 = vcmask 7168
        %v1542 = vsel %vm1541, %v1530, %v1532
        %v1543 = vsel %vm1541, %v1532, %v1534
        %v1544 = vsel %vm1541, %v1534, %v1536
        %v1545 = vsel %vm1541, %v1536, %v1538
        %v1546 = vsel %vm1541, %v1538, %v1540
        %1552 = vst [vmem:[#allocation2 + $0x348] sm:$0xff] %v1542
        %1553 = vst [vmem:[#allocation2 + $0x350] sm:$0xff] %v1543
        %1554 = vst [vmem:[#allocation2 + $0x358] sm:$0xff] %v1544
        %1555 = vst [vmem:[#allocation2 + $0x360] sm:$0xff] %v1545
        %1556 = vst [vmem:[#allocation2 + $0x368] sm:$0xff] %v1546
        %v1557 = vld [vmem:[%s230 + $0x8] sm:$0xff]
        %v1558 = vld [vmem:[%s230 + $0x10] sm:$0xff]
        %v1559 = vld [vmem:[%s230 + $0x18] sm:$0xff]
        %v1560 = vld [vmem:[%s230 + $0x3c] sm:$0xff]
        %v1561 = vld [vmem:[%s230 + $0x44] sm:$0xff]
        %v1562 = vld [vmem:[%s230 + $0x4c] sm:$0xff]
        %v1569 = vunpack.c.l.b16 %v1557
        %v1570 = vunpack.c.h.b16 %v1557
        %v1571 = vunpack.c.l.b16 %v1558
        %v1572 = vunpack.c.h.b16 %v1558
        %v1573 = vunpack.c.l.b16 %v1559
        %v1574 = vunpack.c.h.b16 %v1559
        %v1575 = vunpack.c.l.b16 %v1560
        %v1576 = vunpack.c.h.b16 %v1560
        %v1577 = vunpack.c.l.b16 %v1561
        %v1578 = vunpack.c.h.b16 %v1561
        %v1579 = vunpack.c.l.b16 %v1562
        %v1580 = vunpack.c.h.b16 %v1562
        %v1581 = vpack.c.b16 %v1575, %v1569
        %v1582 = vpack.c.b16 %v1576, %v1570
        %v1583 = vpack.c.b16 %v1577, %v1571
        %v1584 = vpack.c.b16 %v1578, %v1572
        %v1585 = vpack.c.b16 %v1579, %v1573
        %v1586 = vpack.c.b16 %v1580, %v1574
        %1587 = vrot.lane.b32.xlu0 %v1581, 126
        %v1588 = vpop.permute.xlu0 %1587
        %1589 = vrot.lane.b32.xlu0 %v1582, 126
        %v1590 = vpop.permute.xlu0 %1589
        %1591 = vrot.lane.b32.xlu0 %v1583, 126
        %v1592 = vpop.permute.xlu0 %1591
        %1593 = vrot.lane.b32.xlu0 %v1584, 126
        %v1594 = vpop.permute.xlu0 %1593
        %1595 = vrot.lane.b32.xlu0 %v1585, 126
        %v1596 = vpop.permute.xlu0 %1595
        %1597 = vrot.lane.b32.xlu0 %v1586, 126
        %v1598 = vpop.permute.xlu0 %1597
        %vm1599 = vcmask 1031168
        %v1600 = vsel %vm1599, %v1588, %v1590
        %v1601 = vsel %vm1599, %v1590, %v1592
        %v1602 = vsel %vm1599, %v1592, %v1594
        %v1603 = vsel %vm1599, %v1594, %v1596
        %v1604 = vsel %vm1599, %v1596, %v1598
        %1610 = vst [vmem:[#allocation2 + $0x370] sm:$0xff] %v1600
        %1611 = vst [vmem:[#allocation2 + $0x378] sm:$0xff] %v1601
        %1612 = vst [vmem:[#allocation2 + $0x380] sm:$0xff] %v1602
        %1613 = vst [vmem:[#allocation2 + $0x388] sm:$0xff] %v1603
        %1614 = vst [vmem:[#allocation2 + $0x390] sm:$0xff] %v1604
        %v1615 = vld [vmem:[%s230 + $0x8] sm:$0xff]
        %v1616 = vld [vmem:[%s230 + $0x10] sm:$0xff]
        %v1617 = vld [vmem:[%s230 + $0x18] sm:$0xff]
        %v1618 = vld [vmem:[%s230 + $0x3c] sm:$0xff]
        %v1619 = vld [vmem:[%s230 + $0x44] sm:$0xff]
        %v1620 = vld [vmem:[%s230 + $0x4c] sm:$0xff]
        %v1627 = vunpack.c.l.b16 %v1615
        %v1628 = vunpack.c.h.b16 %v1615
        %v1629 = vunpack.c.l.b16 %v1616
        %v1630 = vunpack.c.h.b16 %v1616
        %v1631 = vunpack.c.l.b16 %v1617
        %v1632 = vunpack.c.h.b16 %v1617
        %v1633 = vunpack.c.l.b16 %v1618
        %v1634 = vunpack.c.h.b16 %v1618
        %v1635 = vunpack.c.l.b16 %v1619
        %v1636 = vunpack.c.h.b16 %v1619
        %v1637 = vunpack.c.l.b16 %v1620
        %v1638 = vunpack.c.h.b16 %v1620
        %v1639 = vpack.c.b16 %v1633, %v1627
        %v1640 = vpack.c.b16 %v1634, %v1628
        %v1641 = vpack.c.b16 %v1635, %v1629
        %v1642 = vpack.c.b16 %v1636, %v1630
        %v1643 = vpack.c.b16 %v1637, %v1631
        %v1644 = vpack.c.b16 %v1638, %v1632
        %1645 = vrot.lane.b32.xlu0 %v1639, 18
        %v1646 = vpop.permute.xlu0 %1645
        %1647 = vrot.lane.b32.xlu0 %v1640, 18
        %v1648 = vpop.permute.xlu0 %1647
        %1649 = vrot.lane.b32.xlu0 %v1641, 18
        %v1650 = vpop.permute.xlu0 %1649
        %1651 = vrot.lane.b32.xlu0 %v1642, 18
        %v1652 = vpop.permute.xlu0 %1651
        %1653 = vrot.lane.b32.xlu0 %v1643, 18
        %v1654 = vpop.permute.xlu0 %1653
        %1655 = vrot.lane.b32.xlu0 %v1644, 18
        %v1656 = vpop.permute.xlu0 %1655
        %vm1657 = vcmask 146432
        %v1658 = vsel %vm1657, %v1646, %v1648
        %v1659 = vsel %vm1657, %v1648, %v1650
        %v1660 = vsel %vm1657, %v1650, %v1652
        %v1661 = vsel %vm1657, %v1652, %v1654
        %v1662 = vsel %vm1657, %v1654, %v1656
        %1668 = vst [vmem:[#allocation2 + $0x398] sm:$0xff] %v1658
        %1669 = vst [vmem:[#allocation2 + $0x3a0] sm:$0xff] %v1659
        %1670 = vst [vmem:[#allocation2 + $0x3a8] sm:$0xff] %v1660
        %1671 = vst [vmem:[#allocation2 + $0x3b0] sm:$0xff] %v1661
        %1672 = vst [vmem:[#allocation2 + $0x3b8] sm:$0xff] %v1662
        %v1673 = vld [vmem:[%s230 + $0x8] sm:$0xff]
        %v1674 = vld [vmem:[%s230 + $0x10] sm:$0xff]
        %v1675 = vld [vmem:[%s230 + $0x18] sm:$0xff]
        %v1676 = vld [vmem:[%s230 + $0x3c] sm:$0xff]
        %v1677 = vld [vmem:[%s230 + $0x44] sm:$0xff]
        %v1678 = vld [vmem:[%s230 + $0x4c] sm:$0xff]
        %v1685 = vunpack.c.l.b16 %v1673
        %v1686 = vunpack.c.h.b16 %v1673
        %v1687 = vunpack.c.l.b16 %v1674
        %v1688 = vunpack.c.h.b16 %v1674
        %v1689 = vunpack.c.l.b16 %v1675
        %v1690 = vunpack.c.h.b16 %v1675
        %v1691 = vunpack.c.l.b16 %v1676
        %v1692 = vunpack.c.h.b16 %v1676
        %v1693 = vunpack.c.l.b16 %v1677
        %v1694 = vunpack.c.h.b16 %v1677
        %v1695 = vunpack.c.l.b16 %v1678
        %v1696 = vunpack.c.h.b16 %v1678
        %v1697 = vpack.c.b16 %v1691, %v1685
        %v1698 = vpack.c.b16 %v1692, %v1686
        %v1699 = vpack.c.b16 %v1693, %v1687
        %v1700 = vpack.c.b16 %v1694, %v1688
        %v1701 = vpack.c.b16 %v1695, %v1689
        %v1702 = vpack.c.b16 %v1696, %v1690
        %1703 = vrot.lane.b32.xlu0 %v1697, 15
        %v1704 = vpop.permute.xlu0 %1703
        %1705 = vrot.lane.b32.xlu0 %v1698, 15
        %v1706 = vpop.permute.xlu0 %1705
        %1707 = vrot.lane.b32.xlu0 %v1699, 15
        %v1708 = vpop.permute.xlu0 %1707
        %1709 = vrot.lane.b32.xlu0 %v1700, 15
        %v1710 = vpop.permute.xlu0 %1709
        %1711 = vrot.lane.b32.xlu0 %v1701, 15
        %v1712 = vpop.permute.xlu0 %1711
        %1713 = vrot.lane.b32.xlu0 %v1702, 15
        %v1714 = vpop.permute.xlu0 %1713
        %v1715 = vsel %vm846, %v1704, %v1706
        %v1716 = vsel %vm846, %v1706, %v1708
        %v1717 = vsel %vm846, %v1708, %v1710
        %v1718 = vsel %vm846, %v1710, %v1712
        %v1719 = vsel %vm846, %v1712, %v1714
        %1725 = vst [vmem:[#allocation2 + $0x3c0] sm:$0xff] %v1715
        %1726 = vst [vmem:[#allocation2 + $0x3c8] sm:$0xff] %v1716
        %1727 = vst [vmem:[#allocation2 + $0x3d0] sm:$0xff] %v1717
        %1728 = vst [vmem:[#allocation2 + $0x3d8] sm:$0xff] %v1718
        %1729 = vst [vmem:[#allocation2 + $0x3e0] sm:$0xff] %v1719
        %v1730 = vld [vmem:[%s230 + $0x8] sm:$0xff]
        %v1731 = vld [vmem:[%s230 + $0x10] sm:$0xff]
        %v1732 = vld [vmem:[%s230 + $0x18] sm:$0xff]
        %v1733 = vld [vmem:[%s230 + $0x3c] sm:$0xff]
        %v1734 = vld [vmem:[%s230 + $0x44] sm:$0xff]
        %v1735 = vld [vmem:[%s230 + $0x4c] sm:$0xff]
        %v1742 = vunpack.c.l.b16 %v1730
        %v1743 = vunpack.c.h.b16 %v1730
        %v1744 = vunpack.c.l.b16 %v1731
        %v1745 = vunpack.c.h.b16 %v1731
        %v1746 = vunpack.c.l.b16 %v1732
        %v1747 = vunpack.c.h.b16 %v1732
        %v1748 = vunpack.c.l.b16 %v1733
        %v1749 = vunpack.c.h.b16 %v1733
        %v1750 = vunpack.c.l.b16 %v1734
        %v1751 = vunpack.c.h.b16 %v1734
        %v1752 = vunpack.c.l.b16 %v1735
        %v1753 = vunpack.c.h.b16 %v1735
        %v1754 = vpack.c.b16 %v1748, %v1742
        %v1755 = vpack.c.b16 %v1749, %v1743
        %v1756 = vpack.c.b16 %v1750, %v1744
        %v1757 = vpack.c.b16 %v1751, %v1745
        %v1758 = vpack.c.b16 %v1752, %v1746
        %v1759 = vpack.c.b16 %v1753, %v1747
        %1760 = vrot.lane.b32.xlu0 %v1754, 12
        %v1761 = vpop.permute.xlu0 %1760
        %1762 = vrot.lane.b32.xlu0 %v1755, 12
        %v1763 = vpop.permute.xlu0 %1762
        %1764 = vrot.lane.b32.xlu0 %v1756, 12
        %v1765 = vpop.permute.xlu0 %1764
        %1766 = vrot.lane.b32.xlu0 %v1757, 12
        %v1767 = vpop.permute.xlu0 %1766
        %1768 = vrot.lane.b32.xlu0 %v1758, 12
        %v1769 = vpop.permute.xlu0 %1768
        %1770 = vrot.lane.b32.xlu0 %v1759, 12
        %v1771 = vpop.permute.xlu0 %1770
        %v1772 = vsel %vm904, %v1761, %v1763
        %v1773 = vsel %vm904, %v1763, %v1765
        %v1774 = vsel %vm904, %v1765, %v1767
        %v1775 = vsel %vm904, %v1767, %v1769
        %v1776 = vsel %vm904, %v1769, %v1771
        %1782 = vst [vmem:[#allocation2 + $0x3e8] sm:$0xff] %v1772
        %1783 = vst [vmem:[#allocation2 + $0x3f0] sm:$0xff] %v1773
        %1784 = vst [vmem:[#allocation2 + $0x3f8] sm:$0xff] %v1774
        %1785 = vst [vmem:[#allocation2 + $0x400] sm:$0xff] %v1775
        %1786 = vst [vmem:[#allocation2 + $0x408] sm:$0xff] %v1776
        %v1787 = vld [vmem:[%s230 + $0x8] sm:$0xff]
        %v1788 = vld [vmem:[%s230 + $0x10] sm:$0xff]
        %v1789 = vld [vmem:[%s230 + $0x18] sm:$0xff]
        %v1790 = vld [vmem:[%s230 + $0x3c] sm:$0xff]
        %v1791 = vld [vmem:[%s230 + $0x44] sm:$0xff]
        %v1792 = vld [vmem:[%s230 + $0x4c] sm:$0xff]
        %v1799 = vunpack.c.l.b16 %v1787
        %v1800 = vunpack.c.h.b16 %v1787
        %v1801 = vunpack.c.l.b16 %v1788
        %v1802 = vunpack.c.h.b16 %v1788
        %v1803 = vunpack.c.l.b16 %v1789
        %v1804 = vunpack.c.h.b16 %v1789
        %v1805 = vunpack.c.l.b16 %v1790
        %v1806 = vunpack.c.h.b16 %v1790
        %v1807 = vunpack.c.l.b16 %v1791
        %v1808 = vunpack.c.h.b16 %v1791
        %v1809 = vunpack.c.l.b16 %v1792
        %v1810 = vunpack.c.h.b16 %v1792
        %v1811 = vpack.c.b16 %v1805, %v1799
        %v1812 = vpack.c.b16 %v1806, %v1800
        %v1813 = vpack.c.b16 %v1807, %v1801
        %v1814 = vpack.c.b16 %v1808, %v1802
        %v1815 = vpack.c.b16 %v1809, %v1803
        %v1816 = vpack.c.b16 %v1810, %v1804
        %1817 = vrot.lane.b32.xlu0 %v1811, 9
        %v1818 = vpop.permute.xlu0 %1817
        %1819 = vrot.lane.b32.xlu0 %v1812, 9
        %v1820 = vpop.permute.xlu0 %1819
        %1821 = vrot.lane.b32.xlu0 %v1813, 9
        %v1822 = vpop.permute.xlu0 %1821
        %1823 = vrot.lane.b32.xlu0 %v1814, 9
        %v1824 = vpop.permute.xlu0 %1823
        %1825 = vrot.lane.b32.xlu0 %v1815, 9
        %v1826 = vpop.permute.xlu0 %1825
        %1827 = vrot.lane.b32.xlu0 %v1816, 9
        %v1828 = vpop.permute.xlu0 %1827
        %v1829 = vsel %vm962, %v1818, %v1820
        %v1830 = vsel %vm962, %v1820, %v1822
        %v1831 = vsel %vm962, %v1822, %v1824
        %v1832 = vsel %vm962, %v1824, %v1826
        %v1833 = vsel %vm962, %v1826, %v1828
        %1839 = vst [vmem:[#allocation2 + $0x410] sm:$0xff] %v1829
        %1840 = vst [vmem:[#allocation2 + $0x418] sm:$0xff] %v1830
        %1841 = vst [vmem:[#allocation2 + $0x420] sm:$0xff] %v1831
        %1842 = vst [vmem:[#allocation2 + $0x428] sm:$0xff] %v1832
        %1843 = vst [vmem:[#allocation2 + $0x430] sm:$0xff] %v1833
        %v1844 = vld [vmem:[%s230 + $0x8] sm:$0xff]
        %v1845 = vld [vmem:[%s230 + $0x10] sm:$0xff]
        %v1846 = vld [vmem:[%s230 + $0x18] sm:$0xff]
        %v1847 = vld [vmem:[%s230 + $0x3c] sm:$0xff]
        %v1848 = vld [vmem:[%s230 + $0x44] sm:$0xff]
        %v1849 = vld [vmem:[%s230 + $0x4c] sm:$0xff]
        %v1856 = vunpack.c.l.b16 %v1844
        %v1857 = vunpack.c.h.b16 %v1844
        %v1858 = vunpack.c.l.b16 %v1845
        %v1859 = vunpack.c.h.b16 %v1845
        %v1860 = vunpack.c.l.b16 %v1846
        %v1861 = vunpack.c.h.b16 %v1846
        %v1862 = vunpack.c.l.b16 %v1847
        %v1863 = vunpack.c.h.b16 %v1847
        %v1864 = vunpack.c.l.b16 %v1848
        %v1865 = vunpack.c.h.b16 %v1848
        %v1866 = vunpack.c.l.b16 %v1849
        %v1867 = vunpack.c.h.b16 %v1849
        %v1868 = vpack.c.b16 %v1862, %v1856
        %v1869 = vpack.c.b16 %v1863, %v1857
        %v1870 = vpack.c.b16 %v1864, %v1858
        %v1871 = vpack.c.b16 %v1865, %v1859
        %v1872 = vpack.c.b16 %v1866, %v1860
        %v1873 = vpack.c.b16 %v1867, %v1861
        %1874 = vrot.lane.b32.xlu0 %v1868, 6
        %v1875 = vpop.permute.xlu0 %1874
        %1876 = vrot.lane.b32.xlu0 %v1869, 6
        %v1877 = vpop.permute.xlu0 %1876
        %1878 = vrot.lane.b32.xlu0 %v1870, 6
        %v1879 = vpop.permute.xlu0 %1878
        %1880 = vrot.lane.b32.xlu0 %v1871, 6
        %v1881 = vpop.permute.xlu0 %1880
        %1882 = vrot.lane.b32.xlu0 %v1872, 6
        %v1883 = vpop.permute.xlu0 %1882
        %1884 = vrot.lane.b32.xlu0 %v1873, 6
        %v1885 = vpop.permute.xlu0 %1884
        %vm1886 = vcmask 48128
        %v1887 = vsel %vm1886, %v1875, %v1877
        %v1888 = vsel %vm1886, %v1877, %v1879
        %v1889 = vsel %vm1886, %v1879, %v1881
        %v1890 = vsel %vm1886, %v1881, %v1883
        %v1891 = vsel %vm1886, %v1883, %v1885
        %1897 = vst [vmem:[#allocation2 + $0x438] sm:$0xff] %v1887
        %1898 = vst [vmem:[#allocation2 + $0x440] sm:$0xff] %v1888
        %1899 = vst [vmem:[#allocation2 + $0x448] sm:$0xff] %v1889
        %1900 = vst [vmem:[#allocation2 + $0x450] sm:$0xff] %v1890
        %1901 = vst [vmem:[#allocation2 + $0x458] sm:$0xff] %v1891
        %v1902 = vld [vmem:[%s230 + $0xc] sm:$0xff]
        %v1903 = vld [vmem:[%s230 + $0x14] sm:$0xff]
        %v1904 = vld [vmem:[%s230 + $0x1c] sm:$0xff]
        %v1905 = vld [vmem:[%s230 + $0x40] sm:$0xff]
        %v1906 = vld [vmem:[%s230 + $0x48] sm:$0xff]
        %v1907 = vld [vmem:[%s230 + $0x50] sm:$0xff]
        %v1914 = vunpack.c.l.b16 %v1902
        %v1915 = vunpack.c.h.b16 %v1902
        %v1916 = vunpack.c.l.b16 %v1903
        %v1917 = vunpack.c.h.b16 %v1903
        %v1918 = vunpack.c.l.b16 %v1904
        %v1919 = vunpack.c.h.b16 %v1904
        %v1920 = vunpack.c.l.b16 %v1905
        %v1921 = vunpack.c.h.b16 %v1905
        %v1922 = vunpack.c.l.b16 %v1906
        %v1923 = vunpack.c.h.b16 %v1906
        %v1924 = vunpack.c.l.b16 %v1907
        %v1925 = vunpack.c.h.b16 %v1907
        %v1926 = vpack.c.b16 %v1920, %v1914
        %v1927 = vpack.c.b16 %v1921, %v1915
        %v1928 = vpack.c.b16 %v1922, %v1916
        %v1929 = vpack.c.b16 %v1923, %v1917
        %v1930 = vpack.c.b16 %v1924, %v1918
        %v1931 = vpack.c.b16 %v1925, %v1919
        %1932 = vrot.lane.b32.xlu0 %v1926, 26
        %v1933 = vpop.permute.xlu0 %1932
        %1934 = vrot.lane.b32.xlu0 %v1927, 26
        %v1935 = vpop.permute.xlu0 %1934
        %1936 = vrot.lane.b32.xlu0 %v1928, 26
        %v1937 = vpop.permute.xlu0 %1936
        %1938 = vrot.lane.b32.xlu0 %v1929, 26
        %v1939 = vpop.permute.xlu0 %1938
        %1940 = vrot.lane.b32.xlu0 %v1930, 26
        %v1941 = vpop.permute.xlu0 %1940
        %1942 = vrot.lane.b32.xlu0 %v1931, 26
        %v1943 = vpop.permute.xlu0 %1942
        %vm1944 = vcmask 211968
        %v1945 = vsel %vm1944, %v1933, %v1935
        %v1946 = vsel %vm1944, %v1935, %v1937
        %v1947 = vsel %vm1944, %v1937, %v1939
        %v1948 = vsel %vm1944, %v1939, %v1941
        %v1949 = vsel %vm1944, %v1941, %v1943
        %1955 = vst [vmem:[#allocation2 + $0x460] sm:$0xff] %v1945
        %1956 = vst [vmem:[#allocation2 + $0x468] sm:$0xff] %v1946
        %1957 = vst [vmem:[#allocation2 + $0x470] sm:$0xff] %v1947
        %1958 = vst [vmem:[#allocation2 + $0x478] sm:$0xff] %v1948
        %1959 = vst [vmem:[#allocation2 + $0x480] sm:$0xff] %v1949
        %v1960 = vld [vmem:[%s230 + $0xc] sm:$0xff]
        %v1961 = vld [vmem:[%s230 + $0x14] sm:$0xff]
        %v1962 = vld [vmem:[%s230 + $0x1c] sm:$0xff]
        %v1963 = vld [vmem:[%s230 + $0x40] sm:$0xff]
        %v1964 = vld [vmem:[%s230 + $0x48] sm:$0xff]
        %v1965 = vld [vmem:[%s230 + $0x50] sm:$0xff]
        %v1972 = vunpack.c.l.b16 %v1960
        %v1973 = vunpack.c.h.b16 %v1960
        %v1974 = vunpack.c.l.b16 %v1961
        %v1975 = vunpack.c.h.b16 %v1961
        %v1976 = vunpack.c.l.b16 %v1962
        %v1977 = vunpack.c.h.b16 %v1962
        %v1978 = vunpack.c.l.b16 %v1963
        %v1979 = vunpack.c.h.b16 %v1963
        %v1980 = vunpack.c.l.b16 %v1964
        %v1981 = vunpack.c.h.b16 %v1964
        %v1982 = vunpack.c.l.b16 %v1965
        %v1983 = vunpack.c.h.b16 %v1965
        %v1984 = vpack.c.b16 %v1978, %v1972
        %v1985 = vpack.c.b16 %v1979, %v1973
        %v1986 = vpack.c.b16 %v1980, %v1974
        %v1987 = vpack.c.b16 %v1981, %v1975
        %v1988 = vpack.c.b16 %v1982, %v1976
        %v1989 = vpack.c.b16 %v1983, %v1977
        %1990 = vrot.lane.b32.xlu0 %v1984, 23
        %v1991 = vpop.permute.xlu0 %1990
        %1992 = vrot.lane.b32.xlu0 %v1985, 23
        %v1993 = vpop.permute.xlu0 %1992
        %1994 = vrot.lane.b32.xlu0 %v1986, 23
        %v1995 = vpop.permute.xlu0 %1994
        %1996 = vrot.lane.b32.xlu0 %v1987, 23
        %v1997 = vpop.permute.xlu0 %1996
        %1998 = vrot.lane.b32.xlu0 %v1988, 23
        %v1999 = vpop.permute.xlu0 %1998
        %2000 = vrot.lane.b32.xlu0 %v1989, 23
        %v2001 = vpop.permute.xlu0 %2000
        %v2002 = vsel %vm1020, %v1991, %v1993
        %v2003 = vsel %vm1020, %v1993, %v1995
        %v2004 = vsel %vm1020, %v1995, %v1997
        %v2005 = vsel %vm1020, %v1997, %v1999
        %v2006 = vsel %vm1020, %v1999, %v2001
        %2012 = vst [vmem:[#allocation2 + $0x488] sm:$0xff] %v2002
        %2013 = vst [vmem:[#allocation2 + $0x490] sm:$0xff] %v2003
        %2014 = vst [vmem:[#allocation2 + $0x498] sm:$0xff] %v2004
        %2015 = vst [vmem:[#allocation2 + $0x4a0] sm:$0xff] %v2005
        %2016 = vst [vmem:[#allocation2 + $0x4a8] sm:$0xff] %v2006
        %v2017 = vld [vmem:[%s230 + $0xc] sm:$0xff]
        %v2018 = vld [vmem:[%s230 + $0x14] sm:$0xff]
        %v2019 = vld [vmem:[%s230 + $0x1c] sm:$0xff]
        %v2020 = vld [vmem:[%s230 + $0x40] sm:$0xff]
        %v2021 = vld [vmem:[%s230 + $0x48] sm:$0xff]
        %v2022 = vld [vmem:[%s230 + $0x50] sm:$0xff]
        %v2029 = vunpack.c.l.b16 %v2017
        %v2030 = vunpack.c.h.b16 %v2017
        %v2031 = vunpack.c.l.b16 %v2018
        %v2032 = vunpack.c.h.b16 %v2018
        %v2033 = vunpack.c.l.b16 %v2019
        %v2034 = vunpack.c.h.b16 %v2019
        %v2035 = vunpack.c.l.b16 %v2020
        %v2036 = vunpack.c.h.b16 %v2020
        %v2037 = vunpack.c.l.b16 %v2021
        %v2038 = vunpack.c.h.b16 %v2021
        %v2039 = vunpack.c.l.b16 %v2022
        %v2040 = vunpack.c.h.b16 %v2022
        %v2041 = vpack.c.b16 %v2035, %v2029
        %v2042 = vpack.c.b16 %v2036, %v2030
        %v2043 = vpack.c.b16 %v2037, %v2031
        %v2044 = vpack.c.b16 %v2038, %v2032
        %v2045 = vpack.c.b16 %v2039, %v2033
        %v2046 = vpack.c.b16 %v2040, %v2034
        %2047 = vrot.lane.b32.xlu0 %v2041, 20
        %v2048 = vpop.permute.xlu0 %2047
        %2049 = vrot.lane.b32.xlu0 %v2042, 20
        %v2050 = vpop.permute.xlu0 %2049
        %2051 = vrot.lane.b32.xlu0 %v2043, 20
        %v2052 = vpop.permute.xlu0 %2051
        %2053 = vrot.lane.b32.xlu0 %v2044, 20
        %v2054 = vpop.permute.xlu0 %2053
        %2055 = vrot.lane.b32.xlu0 %v2045, 20
        %v2056 = vpop.permute.xlu0 %2055
        %2057 = vrot.lane.b32.xlu0 %v2046, 20
        %v2058 = vpop.permute.xlu0 %2057
        %v2059 = vsel %vm556, %v2048, %v2050
        %v2060 = vsel %vm556, %v2050, %v2052
        %v2061 = vsel %vm556, %v2052, %v2054
        %v2062 = vsel %vm556, %v2054, %v2056
        %v2063 = vsel %vm556, %v2056, %v2058
        %2069 = vst [vmem:[#allocation2 + $0x4b0] sm:$0xff] %v2059
        %2070 = vst [vmem:[#allocation2 + $0x4b8] sm:$0xff] %v2060
        %2071 = vst [vmem:[#allocation2 + $0x4c0] sm:$0xff] %v2061
        %2072 = vst [vmem:[#allocation2 + $0x4c8] sm:$0xff] %v2062
        %2073 = vst [vmem:[#allocation2 + $0x4d0] sm:$0xff] %v2063
        %v2074 = vld [vmem:[%s230 + $0xc] sm:$0xff]
        %v2075 = vld [vmem:[%s230 + $0x14] sm:$0xff]
        %v2076 = vld [vmem:[%s230 + $0x1c] sm:$0xff]
        %v2077 = vld [vmem:[%s230 + $0x40] sm:$0xff]
        %v2078 = vld [vmem:[%s230 + $0x48] sm:$0xff]
        %v2079 = vld [vmem:[%s230 + $0x50] sm:$0xff]
        %v2086 = vunpack.c.l.b16 %v2074
        %v2087 = vunpack.c.h.b16 %v2074
        %v2088 = vunpack.c.l.b16 %v2075
        %v2089 = vunpack.c.h.b16 %v2075
        %v2090 = vunpack.c.l.b16 %v2076
        %v2091 = vunpack.c.h.b16 %v2076
        %v2092 = vunpack.c.l.b16 %v2077
        %v2093 = vunpack.c.h.b16 %v2077
        %v2094 = vunpack.c.l.b16 %v2078
        %v2095 = vunpack.c.h.b16 %v2078
        %v2096 = vunpack.c.l.b16 %v2079
        %v2097 = vunpack.c.h.b16 %v2079
        %v2098 = vpack.c.b16 %v2092, %v2086
        %v2099 = vpack.c.b16 %v2093, %v2087
        %v2100 = vpack.c.b16 %v2094, %v2088
        %v2101 = vpack.c.b16 %v2095, %v2089
        %v2102 = vpack.c.b16 %v2096, %v2090
        %v2103 = vpack.c.b16 %v2097, %v2091
        %2104 = vrot.lane.b32.xlu0 %v2098, 17
        %v2105 = vpop.permute.xlu0 %2104
        %2106 = vrot.lane.b32.xlu0 %v2099, 17
        %v2107 = vpop.permute.xlu0 %2106
        %2108 = vrot.lane.b32.xlu0 %v2100, 17
        %v2109 = vpop.permute.xlu0 %2108
        %2110 = vrot.lane.b32.xlu0 %v2101, 17
        %v2111 = vpop.permute.xlu0 %2110
        %2112 = vrot.lane.b32.xlu0 %v2102, 17
        %v2113 = vpop.permute.xlu0 %2112
        %2114 = vrot.lane.b32.xlu0 %v2103, 17
        %v2115 = vpop.permute.xlu0 %2114
        %v2116 = vsel %vm1135, %v2105, %v2107
        %v2117 = vsel %vm1135, %v2107, %v2109
        %v2118 = vsel %vm1135, %v2109, %v2111
        %v2119 = vsel %vm1135, %v2111, %v2113
        %v2120 = vsel %vm1135, %v2113, %v2115
        %2126 = vst [vmem:[#allocation2 + $0x4d8] sm:$0xff] %v2116
        %2127 = vst [vmem:[#allocation2 + $0x4e0] sm:$0xff] %v2117
        %2128 = vst [vmem:[#allocation2 + $0x4e8] sm:$0xff] %v2118
        %2129 = vst [vmem:[#allocation2 + $0x4f0] sm:$0xff] %v2119
        %2130 = vst [vmem:[#allocation2 + $0x4f8] sm:$0xff] %v2120
        %v2131 = vld [vmem:[%s230 + $0xc] sm:$0xff]
        %v2132 = vld [vmem:[%s230 + $0x14] sm:$0xff]
        %v2133 = vld [vmem:[%s230 + $0x1c] sm:$0xff]
        %v2134 = vld [vmem:[%s230 + $0x40] sm:$0xff]
        %v2135 = vld [vmem:[%s230 + $0x48] sm:$0xff]
        %v2136 = vld [vmem:[%s230 + $0x50] sm:$0xff]
        %v2143 = vunpack.c.l.b16 %v2131
        %v2144 = vunpack.c.h.b16 %v2131
        %v2145 = vunpack.c.l.b16 %v2132
        %v2146 = vunpack.c.h.b16 %v2132
        %v2147 = vunpack.c.l.b16 %v2133
        %v2148 = vunpack.c.h.b16 %v2133
        %v2149 = vunpack.c.l.b16 %v2134
        %v2150 = vunpack.c.h.b16 %v2134
        %v2151 = vunpack.c.l.b16 %v2135
        %v2152 = vunpack.c.h.b16 %v2135
        %v2153 = vunpack.c.l.b16 %v2136
        %v2154 = vunpack.c.h.b16 %v2136
        %v2155 = vpack.c.b16 %v2149, %v2143
        %v2156 = vpack.c.b16 %v2150, %v2144
        %v2157 = vpack.c.b16 %v2151, %v2145
        %v2158 = vpack.c.b16 %v2152, %v2146
        %v2159 = vpack.c.b16 %v2153, %v2147
        %v2160 = vpack.c.b16 %v2154, %v2148
        %2161 = vrot.lane.b32.xlu0 %v2155, 14
        %v2162 = vpop.permute.xlu0 %2161
        %2163 = vrot.lane.b32.xlu0 %v2156, 14
        %v2164 = vpop.permute.xlu0 %2163
        %2165 = vrot.lane.b32.xlu0 %v2157, 14
        %v2166 = vpop.permute.xlu0 %2165
        %2167 = vrot.lane.b32.xlu0 %v2158, 14
        %v2168 = vpop.permute.xlu0 %2167
        %2169 = vrot.lane.b32.xlu0 %v2159, 14
        %v2170 = vpop.permute.xlu0 %2169
        %2171 = vrot.lane.b32.xlu0 %v2160, 14
        %v2172 = vpop.permute.xlu0 %2171
        %vm2173 = vcmask 113664
        %v2174 = vsel %vm2173, %v2162, %v2164
        %v2175 = vsel %vm2173, %v2164, %v2166
        %v2176 = vsel %vm2173, %v2166, %v2168
        %v2177 = vsel %vm2173, %v2168, %v2170
        %v2178 = vsel %vm2173, %v2170, %v2172
        %2184 = vst [vmem:[#allocation2 + $0x500] sm:$0xff] %v2174
        %2185 = vst [vmem:[#allocation2 + $0x508] sm:$0xff] %v2175
        %2186 = vst [vmem:[#allocation2 + $0x510] sm:$0xff] %v2176
        %2187 = vst [vmem:[#allocation2 + $0x518] sm:$0xff] %v2177
        %2188 = vst [vmem:[#allocation2 + $0x520] sm:$0xff] %v2178
        %v2189 = vld [vmem:[%s230 + $0x10] sm:$0xff]
        %v2190 = vld [vmem:[%s230 + $0x18] sm:$0xff]
        %v2191 = vld [vmem:[%s230 + $0x20] sm:$0xff]
        %v2192 = vld [vmem:[%s230 + $0x44] sm:$0xff]
        %v2193 = vld [vmem:[%s230 + $0x4c] sm:$0xff]
        %v2194 = vld [vmem:[%s230 + $0x54] sm:$0xff]
        %v2201 = vunpack.c.l.b16 %v2189
        %v2202 = vunpack.c.h.b16 %v2189
        %v2203 = vunpack.c.l.b16 %v2190
        %v2204 = vunpack.c.h.b16 %v2190
        %v2205 = vunpack.c.l.b16 %v2191
        %v2206 = vunpack.c.h.b16 %v2191
        %v2207 = vunpack.c.l.b16 %v2192
        %v2208 = vunpack.c.h.b16 %v2192
        %v2209 = vunpack.c.l.b16 %v2193
        %v2210 = vunpack.c.h.b16 %v2193
        %v2211 = vunpack.c.l.b16 %v2194
        %v2212 = vunpack.c.h.b16 %v2194
        %v2213 = vpack.c.b16 %v2207, %v2201
        %v2214 = vpack.c.b16 %v2208, %v2202
        %v2215 = vpack.c.b16 %v2209, %v2203
        %v2216 = vpack.c.b16 %v2210, %v2204
        %v2217 = vpack.c.b16 %v2211, %v2205
        %v2218 = vpack.c.b16 %v2212, %v2206
        %2219 = vrot.lane.b32.xlu0 %v2213, 34
        %v2220 = vpop.permute.xlu0 %2219
        %2221 = vrot.lane.b32.xlu0 %v2214, 34
        %v2222 = vpop.permute.xlu0 %2221
        %2223 = vrot.lane.b32.xlu0 %v2215, 34
        %v2224 = vpop.permute.xlu0 %2223
        %2225 = vrot.lane.b32.xlu0 %v2216, 34
        %v2226 = vpop.permute.xlu0 %2225
        %2227 = vrot.lane.b32.xlu0 %v2217, 34
        %v2228 = vpop.permute.xlu0 %2227
        %2229 = vrot.lane.b32.xlu0 %v2218, 34
        %v2230 = vpop.permute.xlu0 %2229
        %vm2231 = vcmask 277504
        %v2232 = vsel %vm2231, %v2220, %v2222
        %v2233 = vsel %vm2231, %v2222, %v2224
        %v2234 = vsel %vm2231, %v2224, %v2226
        %v2235 = vsel %vm2231, %v2226, %v2228
        %v2236 = vsel %vm2231, %v2228, %v2230
        %2242 = vst [vmem:[#allocation2 + $0x528] sm:$0xff] %v2232
        %2243 = vst [vmem:[#allocation2 + $0x530] sm:$0xff] %v2233
        %2244 = vst [vmem:[#allocation2 + $0x538] sm:$0xff] %v2234
        %2245 = vst [vmem:[#allocation2 + $0x540] sm:$0xff] %v2235
        %2246 = vst [vmem:[#allocation2 + $0x548] sm:$0xff] %v2236
        %v2247 = vld [vmem:[%s230 + $0x10] sm:$0xff]
        %v2248 = vld [vmem:[%s230 + $0x18] sm:$0xff]
        %v2249 = vld [vmem:[%s230 + $0x20] sm:$0xff]
        %v2250 = vld [vmem:[%s230 + $0x44] sm:$0xff]
        %v2251 = vld [vmem:[%s230 + $0x4c] sm:$0xff]
        %v2252 = vld [vmem:[%s230 + $0x54] sm:$0xff]
        %v2259 = vunpack.c.l.b16 %v2247
        %v2260 = vunpack.c.h.b16 %v2247
        %v2261 = vunpack.c.l.b16 %v2248
        %v2262 = vunpack.c.h.b16 %v2248
        %v2263 = vunpack.c.l.b16 %v2249
        %v2264 = vunpack.c.h.b16 %v2249
        %v2265 = vunpack.c.l.b16 %v2250
        %v2266 = vunpack.c.h.b16 %v2250
        %v2267 = vunpack.c.l.b16 %v2251
        %v2268 = vunpack.c.h.b16 %v2251
        %v2269 = vunpack.c.l.b16 %v2252
        %v2270 = vunpack.c.h.b16 %v2252
        %v2271 = vpack.c.b16 %v2265, %v2259
        %v2272 = vpack.c.b16 %v2266, %v2260
        %v2273 = vpack.c.b16 %v2267, %v2261
        %v2274 = vpack.c.b16 %v2268, %v2262
        %v2275 = vpack.c.b16 %v2269, %v2263
        %v2276 = vpack.c.b16 %v2270, %v2264
        %2277 = vrot.lane.b32.xlu0 %v2271, 31
        %v2278 = vpop.permute.xlu0 %2277
        %2279 = vrot.lane.b32.xlu0 %v2272, 31
        %v2280 = vpop.permute.xlu0 %2279
        %2281 = vrot.lane.b32.xlu0 %v2273, 31
        %v2282 = vpop.permute.xlu0 %2281
        %2283 = vrot.lane.b32.xlu0 %v2274, 31
        %v2284 = vpop.permute.xlu0 %2283
        %2285 = vrot.lane.b32.xlu0 %v2275, 31
        %v2286 = vpop.permute.xlu0 %2285
        %2287 = vrot.lane.b32.xlu0 %v2276, 31
        %v2288 = vpop.permute.xlu0 %2287
        %v2289 = vsel %vm1193, %v2278, %v2280
        %v2290 = vsel %vm1193, %v2280, %v2282
        %v2291 = vsel %vm1193, %v2282, %v2284
        %v2292 = vsel %vm1193, %v2284, %v2286
        %v2293 = vsel %vm1193, %v2286, %v2288
        %2299 = vst [vmem:[#allocation2 + $0x550] sm:$0xff] %v2289
        %2300 = vst [vmem:[#allocation2 + $0x558] sm:$0xff] %v2290
        %2301 = vst [vmem:[#allocation2 + $0x560] sm:$0xff] %v2291
        %2302 = vst [vmem:[#allocation2 + $0x568] sm:$0xff] %v2292
        %2303 = vst [vmem:[#allocation2 + $0x570] sm:$0xff] %v2293
        %v2304 = vld [vmem:[%s230 + $0x10] sm:$0xff]
        %v2305 = vld [vmem:[%s230 + $0x18] sm:$0xff]
        %v2306 = vld [vmem:[%s230 + $0x20] sm:$0xff]
        %v2307 = vld [vmem:[%s230 + $0x44] sm:$0xff]
        %v2308 = vld [vmem:[%s230 + $0x4c] sm:$0xff]
        %v2309 = vld [vmem:[%s230 + $0x54] sm:$0xff]
        %v2316 = vunpack.c.l.b16 %v2304
        %v2317 = vunpack.c.h.b16 %v2304
        %v2318 = vunpack.c.l.b16 %v2305
        %v2319 = vunpack.c.h.b16 %v2305
        %v2320 = vunpack.c.l.b16 %v2306
        %v2321 = vunpack.c.h.b16 %v2306
        %v2322 = vunpack.c.l.b16 %v2307
        %v2323 = vunpack.c.h.b16 %v2307
        %v2324 = vunpack.c.l.b16 %v2308
        %v2325 = vunpack.c.h.b16 %v2308
        %v2326 = vunpack.c.l.b16 %v2309
        %v2327 = vunpack.c.h.b16 %v2309
        %v2328 = vpack.c.b16 %v2322, %v2316
        %v2329 = vpack.c.b16 %v2323, %v2317
        %v2330 = vpack.c.b16 %v2324, %v2318
        %v2331 = vpack.c.b16 %v2325, %v2319
        %v2332 = vpack.c.b16 %v2326, %v2320
        %v2333 = vpack.c.b16 %v2327, %v2321
        %2334 = vrot.lane.b32.xlu0 %v2328, 28
        %v2335 = vpop.permute.xlu0 %2334
        %2336 = vrot.lane.b32.xlu0 %v2329, 28
        %v2337 = vpop.permute.xlu0 %2336
        %2338 = vrot.lane.b32.xlu0 %v2330, 28
        %v2339 = vpop.permute.xlu0 %2338
        %2340 = vrot.lane.b32.xlu0 %v2331, 28
        %v2341 = vpop.permute.xlu0 %2340
        %2342 = vrot.lane.b32.xlu0 %v2332, 28
        %v2343 = vpop.permute.xlu0 %2342
        %2344 = vrot.lane.b32.xlu0 %v2333, 28
        %v2345 = vpop.permute.xlu0 %2344
        %v2346 = vsel %vm1251, %v2335, %v2337
        %v2347 = vsel %vm1251, %v2337, %v2339
        %v2348 = vsel %vm1251, %v2339, %v2341
        %v2349 = vsel %vm1251, %v2341, %v2343
        %v2350 = vsel %vm1251, %v2343, %v2345
        %2356 = vst [vmem:[#allocation2 + $0x578] sm:$0xff] %v2346
        %2357 = vst [vmem:[#allocation2 + $0x580] sm:$0xff] %v2347
        %2358 = vst [vmem:[#allocation2 + $0x588] sm:$0xff] %v2348
        %2359 = vst [vmem:[#allocation2 + $0x590] sm:$0xff] %v2349
        %2360 = vst [vmem:[#allocation2 + $0x598] sm:$0xff] %v2350
        %v2361 = vld [vmem:[%s230 + $0x10] sm:$0xff]
        %v2362 = vld [vmem:[%s230 + $0x18] sm:$0xff]
        %v2363 = vld [vmem:[%s230 + $0x20] sm:$0xff]
        %v2364 = vld [vmem:[%s230 + $0x44] sm:$0xff]
        %v2365 = vld [vmem:[%s230 + $0x4c] sm:$0xff]
        %v2366 = vld [vmem:[%s230 + $0x54] sm:$0xff]
        %v2373 = vunpack.c.l.b16 %v2361
        %v2374 = vunpack.c.h.b16 %v2361
        %v2375 = vunpack.c.l.b16 %v2362
        %v2376 = vunpack.c.h.b16 %v2362
        %v2377 = vunpack.c.l.b16 %v2363
        %v2378 = vunpack.c.h.b16 %v2363
        %v2379 = vunpack.c.l.b16 %v2364
        %v2380 = vunpack.c.h.b16 %v2364
        %v2381 = vunpack.c.l.b16 %v2365
        %v2382 = vunpack.c.h.b16 %v2365
        %v2383 = vunpack.c.l.b16 %v2366
        %v2384 = vunpack.c.h.b16 %v2366
        %v2385 = vpack.c.b16 %v2379, %v2373
        %v2386 = vpack.c.b16 %v2380, %v2374
        %v2387 = vpack.c.b16 %v2381, %v2375
        %v2388 = vpack.c.b16 %v2382, %v2376
        %v2389 = vpack.c.b16 %v2383, %v2377
        %v2390 = vpack.c.b16 %v2384, %v2378
        %2391 = vrot.lane.b32.xlu0 %v2385, 25
        %v2392 = vpop.permute.xlu0 %2391
        %2393 = vrot.lane.b32.xlu0 %v2386, 25
        %v2394 = vpop.permute.xlu0 %2393
        %2395 = vrot.lane.b32.xlu0 %v2387, 25
        %v2396 = vpop.permute.xlu0 %2395
        %2397 = vrot.lane.b32.xlu0 %v2388, 25
        %v2398 = vpop.permute.xlu0 %2397
        %2399 = vrot.lane.b32.xlu0 %v2389, 25
        %v2400 = vpop.permute.xlu0 %2399
        %2401 = vrot.lane.b32.xlu0 %v2390, 25
        %v2402 = vpop.permute.xlu0 %2401
        %v2403 = vsel %vm1309, %v2392, %v2394
        %v2404 = vsel %vm1309, %v2394, %v2396
        %v2405 = vsel %vm1309, %v2396, %v2398
        %v2406 = vsel %vm1309, %v2398, %v2400
        %v2407 = vsel %vm1309, %v2400, %v2402
        %2413 = vst [vmem:[#allocation2 + $0x5a0] sm:$0xff] %v2403
        %2414 = vst [vmem:[#allocation2 + $0x5a8] sm:$0xff] %v2404
        %2415 = vst [vmem:[#allocation2 + $0x5b0] sm:$0xff] %v2405
        %2416 = vst [vmem:[#allocation2 + $0x5b8] sm:$0xff] %v2406
        %2417 = vst [vmem:[#allocation2 + $0x5c0] sm:$0xff] %v2407
        %v2418 = vld [vmem:[%s230 + $0x10] sm:$0xff]
        %v2419 = vld [vmem:[%s230 + $0x18] sm:$0xff]
        %v2420 = vld [vmem:[%s230 + $0x20] sm:$0xff]
        %v2421 = vld [vmem:[%s230 + $0x44] sm:$0xff]
        %v2422 = vld [vmem:[%s230 + $0x4c] sm:$0xff]
        %v2423 = vld [vmem:[%s230 + $0x54] sm:$0xff]
        %v2430 = vunpack.c.l.b16 %v2418
        %v2431 = vunpack.c.h.b16 %v2418
        %v2432 = vunpack.c.l.b16 %v2419
        %v2433 = vunpack.c.h.b16 %v2419
        %v2434 = vunpack.c.l.b16 %v2420
        %v2435 = vunpack.c.h.b16 %v2420
        %v2436 = vunpack.c.l.b16 %v2421
        %v2437 = vunpack.c.h.b16 %v2421
        %v2438 = vunpack.c.l.b16 %v2422
        %v2439 = vunpack.c.h.b16 %v2422
        %v2440 = vunpack.c.l.b16 %v2423
        %v2441 = vunpack.c.h.b16 %v2423
        %v2442 = vpack.c.b16 %v2436, %v2430
        %v2443 = vpack.c.b16 %v2437, %v2431
        %v2444 = vpack.c.b16 %v2438, %v2432
        %v2445 = vpack.c.b16 %v2439, %v2433
        %v2446 = vpack.c.b16 %v2440, %v2434
        %v2447 = vpack.c.b16 %v2441, %v2435
        %2448 = vrot.lane.b32.xlu0 %v2442, 22
        %v2449 = vpop.permute.xlu0 %2448
        %2450 = vrot.lane.b32.xlu0 %v2443, 22
        %v2451 = vpop.permute.xlu0 %2450
        %2452 = vrot.lane.b32.xlu0 %v2444, 22
        %v2453 = vpop.permute.xlu0 %2452
        %2454 = vrot.lane.b32.xlu0 %v2445, 22
        %v2455 = vpop.permute.xlu0 %2454
        %2456 = vrot.lane.b32.xlu0 %v2446, 22
        %v2457 = vpop.permute.xlu0 %2456
        %2458 = vrot.lane.b32.xlu0 %v2447, 22
        %v2459 = vpop.permute.xlu0 %2458
        %vm2460 = vcmask 179200
        %v2461 = vsel %vm2460, %v2449, %v2451
        %v2462 = vsel %vm2460, %v2451, %v2453
        %v2463 = vsel %vm2460, %v2453, %v2455
        %v2464 = vsel %vm2460, %v2455, %v2457
        %v2465 = vsel %vm2460, %v2457, %v2459
        %2471 = vst [vmem:[#allocation2 + $0x5c8] sm:$0xff] %v2461
        %2472 = vst [vmem:[#allocation2 + $0x5d0] sm:$0xff] %v2462
        %2473 = vst [vmem:[#allocation2 + $0x5d8] sm:$0xff] %v2463
        %2474 = vst [vmem:[#allocation2 + $0x5e0] sm:$0xff] %v2464
        %2475 = vst [vmem:[#allocation2 + $0x5e8] sm:$0xff] %v2465
        %v2476 = vld [vmem:[%s230 + $0x14] sm:$0xff]
        %v2477 = vld [vmem:[%s230 + $0x1c] sm:$0xff]
        %v2478 = vld [vmem:[%s230 + $0x24] sm:$0xff]
        %v2479 = vld [vmem:[%s230 + $0x48] sm:$0xff]
        %v2480 = vld [vmem:[%s230 + $0x50] sm:$0xff]
        %v2481 = vld [vmem:[%s230 + $0x58] sm:$0xff]
        %v2488 = vunpack.c.l.b16 %v2476
        %v2489 = vunpack.c.h.b16 %v2476
        %v2490 = vunpack.c.l.b16 %v2477
        %v2491 = vunpack.c.h.b16 %v2477
        %v2492 = vunpack.c.l.b16 %v2478
        %v2493 = vunpack.c.h.b16 %v2478
        %v2494 = vunpack.c.l.b16 %v2479
        %v2495 = vunpack.c.h.b16 %v2479
        %v2496 = vunpack.c.l.b16 %v2480
        %v2497 = vunpack.c.h.b16 %v2480
        %v2498 = vunpack.c.l.b16 %v2481
        %v2499 = vunpack.c.h.b16 %v2481
        %v2500 = vpack.c.b16 %v2494, %v2488
        %v2501 = vpack.c.b16 %v2495, %v2489
        %v2502 = vpack.c.b16 %v2496, %v2490
        %v2503 = vpack.c.b16 %v2497, %v2491
        %v2504 = vpack.c.b16 %v2498, %v2492
        %v2505 = vpack.c.b16 %v2499, %v2493
        %2506 = vrot.lane.b32.xlu0 %v2500, 42
        %v2507 = vpop.permute.xlu0 %2506
        %2508 = vrot.lane.b32.xlu0 %v2501, 42
        %v2509 = vpop.permute.xlu0 %2508
        %2510 = vrot.lane.b32.xlu0 %v2502, 42
        %v2511 = vpop.permute.xlu0 %2510
        %2512 = vrot.lane.b32.xlu0 %v2503, 42
        %v2513 = vpop.permute.xlu0 %2512
        %2514 = vrot.lane.b32.xlu0 %v2504, 42
        %v2515 = vpop.permute.xlu0 %2514
        %2516 = vrot.lane.b32.xlu0 %v2505, 42
        %v2517 = vpop.permute.xlu0 %2516
        %vm2518 = vcmask 343040
        %v2519 = vsel %vm2518, %v2507, %v2509
        %v2520 = vsel %vm2518, %v2509, %v2511
        %v2521 = vsel %vm2518, %v2511, %v2513
        %v2522 = vsel %vm2518, %v2513, %v2515
        %v2523 = vsel %vm2518, %v2515, %v2517
        %2529 = vst [vmem:[#allocation2 + $0x5f0] sm:$0xff] %v2519
        %2530 = vst [vmem:[#allocation2 + $0x5f8] sm:$0xff] %v2520
        %2531 = vst [vmem:[#allocation2 + $0x600] sm:$0xff] %v2521
        %2532 = vst [vmem:[#allocation2 + $0x608] sm:$0xff] %v2522
        %2533 = vst [vmem:[#allocation2 + $0x610] sm:$0xff] %v2523
        %v2534 = vld [vmem:[%s230 + $0x14] sm:$0xff]
        %v2535 = vld [vmem:[%s230 + $0x1c] sm:$0xff]
        %v2536 = vld [vmem:[%s230 + $0x24] sm:$0xff]
        %v2537 = vld [vmem:[%s230 + $0x48] sm:$0xff]
        %v2538 = vld [vmem:[%s230 + $0x50] sm:$0xff]
        %v2539 = vld [vmem:[%s230 + $0x58] sm:$0xff]
        %v2546 = vunpack.c.l.b16 %v2534
        %v2547 = vunpack.c.h.b16 %v2534
        %v2548 = vunpack.c.l.b16 %v2535
        %v2549 = vunpack.c.h.b16 %v2535
        %v2550 = vunpack.c.l.b16 %v2536
        %v2551 = vunpack.c.h.b16 %v2536
        %v2552 = vunpack.c.l.b16 %v2537
        %v2553 = vunpack.c.h.b16 %v2537
        %v2554 = vunpack.c.l.b16 %v2538
        %v2555 = vunpack.c.h.b16 %v2538
        %v2556 = vunpack.c.l.b16 %v2539
        %v2557 = vunpack.c.h.b16 %v2539
        %v2558 = vpack.c.b16 %v2552, %v2546
        %v2559 = vpack.c.b16 %v2553, %v2547
        %v2560 = vpack.c.b16 %v2554, %v2548
        %v2561 = vpack.c.b16 %v2555, %v2549
        %v2562 = vpack.c.b16 %v2556, %v2550
        %v2563 = vpack.c.b16 %v2557, %v2551
        %2564 = vrot.lane.b32.xlu0 %v2558, 39
        %v2565 = vpop.permute.xlu0 %2564
        %2566 = vrot.lane.b32.xlu0 %v2559, 39
        %v2567 = vpop.permute.xlu0 %2566
        %2568 = vrot.lane.b32.xlu0 %v2560, 39
        %v2569 = vpop.permute.xlu0 %2568
        %2570 = vrot.lane.b32.xlu0 %v2561, 39
        %v2571 = vpop.permute.xlu0 %2570
        %2572 = vrot.lane.b32.xlu0 %v2562, 39
        %v2573 = vpop.permute.xlu0 %2572
        %2574 = vrot.lane.b32.xlu0 %v2563, 39
        %v2575 = vpop.permute.xlu0 %2574
        %vm2576 = vcmask 318464
        %v2577 = vsel %vm2576, %v2565, %v2567
        %v2578 = vsel %vm2576, %v2567, %v2569
        %v2579 = vsel %vm2576, %v2569, %v2571
        %v2580 = vsel %vm2576, %v2571, %v2573
        %v2581 = vsel %vm2576, %v2573, %v2575
        %2587 = vst [vmem:[#allocation2 + $0x618] sm:$0xff] %v2577
        %2588 = vst [vmem:[#allocation2 + $0x620] sm:$0xff] %v2578
        %2589 = vst [vmem:[#allocation2 + $0x628] sm:$0xff] %v2579
        %2590 = vst [vmem:[#allocation2 + $0x630] sm:$0xff] %v2580
        %2591 = vst [vmem:[#allocation2 + $0x638] sm:$0xff] %v2581
        %v2592 = vld [vmem:[%s230 + $0x14] sm:$0xff]
        %v2593 = vld [vmem:[%s230 + $0x1c] sm:$0xff]
        %v2594 = vld [vmem:[%s230 + $0x24] sm:$0xff]
        %v2595 = vld [vmem:[%s230 + $0x48] sm:$0xff]
        %v2596 = vld [vmem:[%s230 + $0x50] sm:$0xff]
        %v2597 = vld [vmem:[%s230 + $0x58] sm:$0xff]
        %v2604 = vunpack.c.l.b16 %v2592
        %v2605 = vunpack.c.h.b16 %v2592
        %v2606 = vunpack.c.l.b16 %v2593
        %v2607 = vunpack.c.h.b16 %v2593
        %v2608 = vunpack.c.l.b16 %v2594
        %v2609 = vunpack.c.h.b16 %v2594
        %v2610 = vunpack.c.l.b16 %v2595
        %v2611 = vunpack.c.h.b16 %v2595
        %v2612 = vunpack.c.l.b16 %v2596
        %v2613 = vunpack.c.h.b16 %v2596
        %v2614 = vunpack.c.l.b16 %v2597
        %v2615 = vunpack.c.h.b16 %v2597
        %v2616 = vpack.c.b16 %v2610, %v2604
        %v2617 = vpack.c.b16 %v2611, %v2605
        %v2618 = vpack.c.b16 %v2612, %v2606
        %v2619 = vpack.c.b16 %v2613, %v2607
        %v2620 = vpack.c.b16 %v2614, %v2608
        %v2621 = vpack.c.b16 %v2615, %v2609
        %2622 = vrot.lane.b32.xlu0 %v2616, 36
        %v2623 = vpop.permute.xlu0 %2622
        %2624 = vrot.lane.b32.xlu0 %v2617, 36
        %v2625 = vpop.permute.xlu0 %2624
        %2626 = vrot.lane.b32.xlu0 %v2618, 36
        %v2627 = vpop.permute.xlu0 %2626
        %2628 = vrot.lane.b32.xlu0 %v2619, 36
        %v2629 = vpop.permute.xlu0 %2628
        %2630 = vrot.lane.b32.xlu0 %v2620, 36
        %v2631 = vpop.permute.xlu0 %2630
        %2632 = vrot.lane.b32.xlu0 %v2621, 36
        %v2633 = vpop.permute.xlu0 %2632
        %vm2634 = vcmask 293888
        %v2635 = vsel %vm2634, %v2623, %v2625
        %v2636 = vsel %vm2634, %v2625, %v2627
        %v2637 = vsel %vm2634, %v2627, %v2629
        %v2638 = vsel %vm2634, %v2629, %v2631
        %v2639 = vsel %vm2634, %v2631, %v2633
        %2645 = vst [vmem:[#allocation2 + $0x640] sm:$0xff] %v2635
        %2646 = vst [vmem:[#allocation2 + $0x648] sm:$0xff] %v2636
        %2647 = vst [vmem:[#allocation2 + $0x650] sm:$0xff] %v2637
        %2648 = vst [vmem:[#allocation2 + $0x658] sm:$0xff] %v2638
        %2649 = vst [vmem:[#allocation2 + $0x660] sm:$0xff] %v2639
        %v2650 = vld [vmem:[%s230 + $0x14] sm:$0xff]
        %v2651 = vld [vmem:[%s230 + $0x1c] sm:$0xff]
        %v2652 = vld [vmem:[%s230 + $0x24] sm:$0xff]
        %v2653 = vld [vmem:[%s230 + $0x48] sm:$0xff]
        %v2654 = vld [vmem:[%s230 + $0x50] sm:$0xff]
        %v2655 = vld [vmem:[%s230 + $0x58] sm:$0xff]
        %v2662 = vunpack.c.l.b16 %v2650
        %v2663 = vunpack.c.h.b16 %v2650
        %v2664 = vunpack.c.l.b16 %v2651
        %v2665 = vunpack.c.h.b16 %v2651
        %v2666 = vunpack.c.l.b16 %v2652
        %v2667 = vunpack.c.h.b16 %v2652
        %v2668 = vunpack.c.l.b16 %v2653
        %v2669 = vunpack.c.h.b16 %v2653
        %v2670 = vunpack.c.l.b16 %v2654
        %v2671 = vunpack.c.h.b16 %v2654
        %v2672 = vunpack.c.l.b16 %v2655
        %v2673 = vunpack.c.h.b16 %v2655
        %v2674 = vpack.c.b16 %v2668, %v2662
        %v2675 = vpack.c.b16 %v2669, %v2663
        %v2676 = vpack.c.b16 %v2670, %v2664
        %v2677 = vpack.c.b16 %v2671, %v2665
        %v2678 = vpack.c.b16 %v2672, %v2666
        %v2679 = vpack.c.b16 %v2673, %v2667
        %2680 = vrot.lane.b32.xlu0 %v2674, 33
        %v2681 = vpop.permute.xlu0 %2680
        %2682 = vrot.lane.b32.xlu0 %v2675, 33
        %v2683 = vpop.permute.xlu0 %2682
        %2684 = vrot.lane.b32.xlu0 %v2676, 33
        %v2685 = vpop.permute.xlu0 %2684
        %2686 = vrot.lane.b32.xlu0 %v2677, 33
        %v2687 = vpop.permute.xlu0 %2686
        %2688 = vrot.lane.b32.xlu0 %v2678, 33
        %v2689 = vpop.permute.xlu0 %2688
        %2690 = vrot.lane.b32.xlu0 %v2679, 33
        %v2691 = vpop.permute.xlu0 %2690
        %vm2692 = vcmask 269312
        %v2693 = vsel %vm2692, %v2681, %v2683
        %v2694 = vsel %vm2692, %v2683, %v2685
        %v2695 = vsel %vm2692, %v2685, %v2687
        %v2696 = vsel %vm2692, %v2687, %v2689
        %v2697 = vsel %vm2692, %v2689, %v2691
        %2703 = vst [vmem:[#allocation2 + $0x668] sm:$0xff] %v2693
        %2704 = vst [vmem:[#allocation2 + $0x670] sm:$0xff] %v2694
        %2705 = vst [vmem:[#allocation2 + $0x678] sm:$0xff] %v2695
        %2706 = vst [vmem:[#allocation2 + $0x680] sm:$0xff] %v2696
        %2707 = vst [vmem:[#allocation2 + $0x688] sm:$0xff] %v2697
        %v2708 = vld [vmem:[%s230 + $0x14] sm:$0xff]
        %v2709 = vld [vmem:[%s230 + $0x1c] sm:$0xff]
        %v2710 = vld [vmem:[%s230 + $0x24] sm:$0xff]
        %v2711 = vld [vmem:[%s230 + $0x48] sm:$0xff]
        %v2712 = vld [vmem:[%s230 + $0x50] sm:$0xff]
        %v2713 = vld [vmem:[%s230 + $0x58] sm:$0xff]
        %v2720 = vunpack.c.l.b16 %v2708
        %v2721 = vunpack.c.h.b16 %v2708
        %v2722 = vunpack.c.l.b16 %v2709
        %v2723 = vunpack.c.h.b16 %v2709
        %v2724 = vunpack.c.l.b16 %v2710
        %v2725 = vunpack.c.h.b16 %v2710
        %v2726 = vunpack.c.l.b16 %v2711
        %v2727 = vunpack.c.h.b16 %v2711
        %v2728 = vunpack.c.l.b16 %v2712
        %v2729 = vunpack.c.h.b16 %v2712
        %v2730 = vunpack.c.l.b16 %v2713
        %v2731 = vunpack.c.h.b16 %v2713
        %v2732 = vpack.c.b16 %v2726, %v2720
        %v2733 = vpack.c.b16 %v2727, %v2721
        %v2734 = vpack.c.b16 %v2728, %v2722
        %v2735 = vpack.c.b16 %v2729, %v2723
        %v2736 = vpack.c.b16 %v2730, %v2724
        %v2737 = vpack.c.b16 %v2731, %v2725
        %2738 = vrot.lane.b32.xlu0 %v2732, 30
        %v2739 = vpop.permute.xlu0 %2738
        %2740 = vrot.lane.b32.xlu0 %v2733, 30
        %v2741 = vpop.permute.xlu0 %2740
        %2742 = vrot.lane.b32.xlu0 %v2734, 30
        %v2743 = vpop.permute.xlu0 %2742
        %2744 = vrot.lane.b32.xlu0 %v2735, 30
        %v2745 = vpop.permute.xlu0 %2744
        %2746 = vrot.lane.b32.xlu0 %v2736, 30
        %v2747 = vpop.permute.xlu0 %2746
        %2748 = vrot.lane.b32.xlu0 %v2737, 30
        %v2749 = vpop.permute.xlu0 %2748
        %vm2750 = vcmask 244736
        %v2751 = vsel %vm2750, %v2739, %v2741
        %v2752 = vsel %vm2750, %v2741, %v2743
        %v2753 = vsel %vm2750, %v2743, %v2745
        %v2754 = vsel %vm2750, %v2745, %v2747
        %v2755 = vsel %vm2750, %v2747, %v2749
        %2761 = vst [vmem:[#allocation2 + $0x690] sm:$0xff] %v2751
        %2762 = vst [vmem:[#allocation2 + $0x698] sm:$0xff] %v2752
        %2763 = vst [vmem:[#allocation2 + $0x6a0] sm:$0xff] %v2753
        %2764 = vst [vmem:[#allocation2 + $0x6a8] sm:$0xff] %v2754
        %2765 = vst [vmem:[#allocation2 + $0x6b0] sm:$0xff] %v2755
        %v2766 = vld [vmem:[%s230] sm:$0xff]
        %v2767 = vld [vmem:[%s230 + $0x8] sm:$0xff]
        %v2768 = vld [vmem:[%s230 + $0x10] sm:$0xf]
        %v2769 = vld [vmem:[%s230 + $0x34] sm:$0xff]
        %v2770 = vld [vmem:[%s230 + $0x3c] sm:$0xff]
        %v2771 = vld [vmem:[%s230 + $0x44] sm:$0xf]
        %v2778 = vunpack.c.l.b16 %v2766
        %v2779 = vunpack.c.h.b16 %v2766
        %v2780 = vunpack.c.l.b16 %v2767
        %v2781 = vunpack.c.h.b16 %v2767
        %v2782 = vunpack.c.l.b16 %v2768
        %v2783 = vunpack.c.l.b16 %v2769
        %v2784 = vunpack.c.h.b16 %v2769
        %v2785 = vunpack.c.l.b16 %v2770
        %v2786 = vunpack.c.h.b16 %v2770
        %v2787 = vunpack.c.l.b16 %v2771
        %v2788 = vpack.c.b16 %v2783, %v2778
        %v2789 = vpack.c.b16 %v2784, %v2779
        %v2790 = vpack.c.b16 %v2785, %v2780
        %v2791 = vpack.c.b16 %v2786, %v2781
        %v2792 = vpack.c.b16 %v2787, %v2782
        %2798 = vst [vmem:[#allocation2 + $0x6b8] sm:$0xff] %v2788
        %2799 = vst [vmem:[#allocation2 + $0x6c0] sm:$0xff] %v2789
        %2800 = vst [vmem:[#allocation2 + $0x6c8] sm:$0xff] %v2790
        %2801 = vst [vmem:[#allocation2 + $0x6d0] sm:$0xff] %v2791
        %2802 = vst [vmem:[#allocation2 + $0x6d8] sm:$0xff] %v2792
        %v2803 = vld [vmem:[%s230] sm:$0xff]
        %v2804 = vld [vmem:[%s230 + $0x8] sm:$0xff]
        %v2805 = vld [vmem:[%s230 + $0x10] sm:$0xff]
        %v2806 = vld [vmem:[%s230 + $0x34] sm:$0xff]
        %v2807 = vld [vmem:[%s230 + $0x3c] sm:$0xff]
        %v2808 = vld [vmem:[%s230 + $0x44] sm:$0xff]
        %v2815 = vunpack.c.l.b16 %v2803
        %v2816 = vunpack.c.h.b16 %v2803
        %v2817 = vunpack.c.l.b16 %v2804
        %v2818 = vunpack.c.h.b16 %v2804
        %v2819 = vunpack.c.l.b16 %v2805
        %v2820 = vunpack.c.h.b16 %v2805
        %v2821 = vunpack.c.l.b16 %v2806
        %v2822 = vunpack.c.h.b16 %v2806
        %v2823 = vunpack.c.l.b16 %v2807
        %v2824 = vunpack.c.h.b16 %v2807
        %v2825 = vunpack.c.l.b16 %v2808
        %v2826 = vunpack.c.h.b16 %v2808
        %v2827 = vpack.c.b16 %v2821, %v2815
        %v2828 = vpack.c.b16 %v2822, %v2816
        %v2829 = vpack.c.b16 %v2823, %v2817
        %v2830 = vpack.c.b16 %v2824, %v2818
        %v2831 = vpack.c.b16 %v2825, %v2819
        %v2832 = vpack.c.b16 %v2826, %v2820
        %2833 = vrot.lane.b32.xlu0 %v2827, 122
        %v2834 = vpop.permute.xlu0 %2833
        %2835 = vrot.lane.b32.xlu0 %v2828, 122
        %v2836 = vpop.permute.xlu0 %2835
        %2837 = vrot.lane.b32.xlu0 %v2829, 122
        %v2838 = vpop.permute.xlu0 %2837
        %2839 = vrot.lane.b32.xlu0 %v2830, 122
        %v2840 = vpop.permute.xlu0 %2839
        %2841 = vrot.lane.b32.xlu0 %v2831, 122
        %v2842 = vpop.permute.xlu0 %2841
        %2843 = vrot.lane.b32.xlu0 %v2832, 122
        %v2844 = vpop.permute.xlu0 %2843
        %vm2845 = vcmask 998400
        %v2846 = vsel %vm2845, %v2834, %v2836
        %v2847 = vsel %vm2845, %v2836, %v2838
        %v2848 = vsel %vm2845, %v2838, %v2840
        %v2849 = vsel %vm2845, %v2840, %v2842
        %v2850 = vsel %vm2845, %v2842, %v2844
        %2856 = vst [vmem:[#allocation2 + $0x6e0] sm:$0xff] %v2846
        %2857 = vst [vmem:[#allocation2 + $0x6e8] sm:$0xff] %v2847
        %2858 = vst [vmem:[#allocation2 + $0x6f0] sm:$0xff] %v2848
        %2859 = vst [vmem:[#allocation2 + $0x6f8] sm:$0xff] %v2849
        %2860 = vst [vmem:[#allocation2 + $0x700] sm:$0xff] %v2850
        %v2861 = vld [vmem:[%s230] sm:$0xff]
        %v2862 = vld [vmem:[%s230 + $0x8] sm:$0xff]
        %v2863 = vld [vmem:[%s230 + $0x10] sm:$0xff]
        %v2864 = vld [vmem:[%s230 + $0x34] sm:$0xff]
        %v2865 = vld [vmem:[%s230 + $0x3c] sm:$0xff]
        %v2866 = vld [vmem:[%s230 + $0x44] sm:$0xff]
        %v2873 = vunpack.c.l.b16 %v2861
        %v2874 = vunpack.c.h.b16 %v2861
        %v2875 = vunpack.c.l.b16 %v2862
        %v2876 = vunpack.c.h.b16 %v2862
        %v2877 = vunpack.c.l.b16 %v2863
        %v2878 = vunpack.c.h.b16 %v2863
        %v2879 = vunpack.c.l.b16 %v2864
        %v2880 = vunpack.c.h.b16 %v2864
        %v2881 = vunpack.c.l.b16 %v2865
        %v2882 = vunpack.c.h.b16 %v2865
        %v2883 = vunpack.c.l.b16 %v2866
        %v2884 = vunpack.c.h.b16 %v2866
        %v2885 = vpack.c.b16 %v2879, %v2873
        %v2886 = vpack.c.b16 %v2880, %v2874
        %v2887 = vpack.c.b16 %v2881, %v2875
        %v2888 = vpack.c.b16 %v2882, %v2876
        %v2889 = vpack.c.b16 %v2883, %v2877
        %v2890 = vpack.c.b16 %v2884, %v2878
        %2891 = vrot.lane.b32.xlu0 %v2885, 116
        %v2892 = vpop.permute.xlu0 %2891
        %2893 = vrot.lane.b32.xlu0 %v2886, 116
        %v2894 = vpop.permute.xlu0 %2893
        %2895 = vrot.lane.b32.xlu0 %v2887, 116
        %v2896 = vpop.permute.xlu0 %2895
        %2897 = vrot.lane.b32.xlu0 %v2888, 116
        %v2898 = vpop.permute.xlu0 %2897
        %2899 = vrot.lane.b32.xlu0 %v2889, 116
        %v2900 = vpop.permute.xlu0 %2899
        %2901 = vrot.lane.b32.xlu0 %v2890, 116
        %v2902 = vpop.permute.xlu0 %2901
        %vm2903 = vcmask 949248
        %v2904 = vsel %vm2903, %v2892, %v2894
        %v2905 = vsel %vm2903, %v2894, %v2896
        %v2906 = vsel %vm2903, %v2896, %v2898
        %v2907 = vsel %vm2903, %v2898, %v2900
        %v2908 = vsel %vm2903, %v2900, %v2902
        %2914 = vst [vmem:[#allocation2 + $0x708] sm:$0xff] %v2904
        %2915 = vst [vmem:[#allocation2 + $0x710] sm:$0xff] %v2905
        %2916 = vst [vmem:[#allocation2 + $0x718] sm:$0xff] %v2906
        %2917 = vst [vmem:[#allocation2 + $0x720] sm:$0xff] %v2907
        %2918 = vst [vmem:[#allocation2 + $0x728] sm:$0xff] %v2908
        %v2919 = vld [vmem:[%s230] sm:$0xff]
        %v2920 = vld [vmem:[%s230 + $0x8] sm:$0xff]
        %v2921 = vld [vmem:[%s230 + $0x10] sm:$0xff]
        %v2922 = vld [vmem:[%s230 + $0x34] sm:$0xff]
        %v2923 = vld [vmem:[%s230 + $0x3c] sm:$0xff]
        %v2924 = vld [vmem:[%s230 + $0x44] sm:$0xff]
        %v2931 = vunpack.c.l.b16 %v2919
        %v2932 = vunpack.c.h.b16 %v2919
        %v2933 = vunpack.c.l.b16 %v2920
        %v2934 = vunpack.c.h.b16 %v2920
        %v2935 = vunpack.c.l.b16 %v2921
        %v2936 = vunpack.c.h.b16 %v2921
        %v2937 = vunpack.c.l.b16 %v2922
        %v2938 = vunpack.c.h.b16 %v2922
        %v2939 = vunpack.c.l.b16 %v2923
        %v2940 = vunpack.c.h.b16 %v2923
        %v2941 = vunpack.c.l.b16 %v2924
        %v2942 = vunpack.c.h.b16 %v2924
        %v2943 = vpack.c.b16 %v2937, %v2931
        %v2944 = vpack.c.b16 %v2938, %v2932
        %v2945 = vpack.c.b16 %v2939, %v2933
        %v2946 = vpack.c.b16 %v2940, %v2934
        %v2947 = vpack.c.b16 %v2941, %v2935
        %v2948 = vpack.c.b16 %v2942, %v2936
        %2949 = vrot.lane.b32.xlu0 %v2943, 110
        %v2950 = vpop.permute.xlu0 %2949
        %2951 = vrot.lane.b32.xlu0 %v2944, 110
        %v2952 = vpop.permute.xlu0 %2951
        %2953 = vrot.lane.b32.xlu0 %v2945, 110
        %v2954 = vpop.permute.xlu0 %2953
        %2955 = vrot.lane.b32.xlu0 %v2946, 110
        %v2956 = vpop.permute.xlu0 %2955
        %2957 = vrot.lane.b32.xlu0 %v2947, 110
        %v2958 = vpop.permute.xlu0 %2957
        %2959 = vrot.lane.b32.xlu0 %v2948, 110
        %v2960 = vpop.permute.xlu0 %2959
        %vm2961 = vcmask 900096
        %v2962 = vsel %vm2961, %v2950, %v2952
        %v2963 = vsel %vm2961, %v2952, %v2954
        %v2964 = vsel %vm2961, %v2954, %v2956
        %v2965 = vsel %vm2961, %v2956, %v2958
        %v2966 = vsel %vm2961, %v2958, %v2960
        %2972 = vst [vmem:[#allocation2 + $0x730] sm:$0xff] %v2962
        %2973 = vst [vmem:[#allocation2 + $0x738] sm:$0xff] %v2963
        %2974 = vst [vmem:[#allocation2 + $0x740] sm:$0xff] %v2964
        %2975 = vst [vmem:[#allocation2 + $0x748] sm:$0xff] %v2965
        %2976 = vst [vmem:[#allocation2 + $0x750] sm:$0xff] %v2966
        %v2977 = vld [vmem:[%s230] sm:$0xff]
        %v2978 = vld [vmem:[%s230 + $0x8] sm:$0xff]
        %v2979 = vld [vmem:[%s230 + $0x10] sm:$0xff]
        %v2980 = vld [vmem:[%s230 + $0x34] sm:$0xff]
        %v2981 = vld [vmem:[%s230 + $0x3c] sm:$0xff]
        %v2982 = vld [vmem:[%s230 + $0x44] sm:$0xff]
        %v2989 = vunpack.c.l.b16 %v2977
        %v2990 = vunpack.c.h.b16 %v2977
        %v2991 = vunpack.c.l.b16 %v2978
        %v2992 = vunpack.c.h.b16 %v2978
        %v2993 = vunpack.c.l.b16 %v2979
        %v2994 = vunpack.c.h.b16 %v2979
        %v2995 = vunpack.c.l.b16 %v2980
        %v2996 = vunpack.c.h.b16 %v2980
        %v2997 = vunpack.c.l.b16 %v2981
        %v2998 = vunpack.c.h.b16 %v2981
        %v2999 = vunpack.c.l.b16 %v2982
        %v3000 = vunpack.c.h.b16 %v2982
        %v3001 = vpack.c.b16 %v2995, %v2989
        %v3002 = vpack.c.b16 %v2996, %v2990
        %v3003 = vpack.c.b16 %v2997, %v2991
        %v3004 = vpack.c.b16 %v2998, %v2992
        %v3005 = vpack.c.b16 %v2999, %v2993
        %v3006 = vpack.c.b16 %v3000, %v2994
        %3007 = vrot.lane.b32.xlu0 %v3001, 104
        %v3008 = vpop.permute.xlu0 %3007
        %3009 = vrot.lane.b32.xlu0 %v3002, 104
        %v3010 = vpop.permute.xlu0 %3009
        %3011 = vrot.lane.b32.xlu0 %v3003, 104
        %v3012 = vpop.permute.xlu0 %3011
        %3013 = vrot.lane.b32.xlu0 %v3004, 104
        %v3014 = vpop.permute.xlu0 %3013
        %3015 = vrot.lane.b32.xlu0 %v3005, 104
        %v3016 = vpop.permute.xlu0 %3015
        %3017 = vrot.lane.b32.xlu0 %v3006, 104
        %v3018 = vpop.permute.xlu0 %3017
        %vm3019 = vcmask 850944
        %v3020 = vsel %vm3019, %v3008, %v3010
        %v3021 = vsel %vm3019, %v3010, %v3012
        %v3022 = vsel %vm3019, %v3012, %v3014
        %v3023 = vsel %vm3019, %v3014, %v3016
        %v3024 = vsel %vm3019, %v3016, %v3018
        %3030 = vst [vmem:[#allocation2 + $0x758] sm:$0xff] %v3020
        %3031 = vst [vmem:[#allocation2 + $0x760] sm:$0xff] %v3021
        %3032 = vst [vmem:[#allocation2 + $0x768] sm:$0xff] %v3022
        %3033 = vst [vmem:[#allocation2 + $0x770] sm:$0xff] %v3023
        %3034 = vst [vmem:[#allocation2 + $0x778] sm:$0xff] %v3024
        %v3035 = vld [vmem:[%s230 + $0x4] sm:$0xff]
        %v3036 = vld [vmem:[%s230 + $0xc] sm:$0xff]
        %v3037 = vld [vmem:[%s230 + $0x14] sm:$0xff]
        %v3038 = vld [vmem:[%s230 + $0x38] sm:$0xff]
        %v3039 = vld [vmem:[%s230 + $0x40] sm:$0xff]
        %v3040 = vld [vmem:[%s230 + $0x48] sm:$0xff]
        %v3047 = vunpack.c.l.b16 %v3035
        %v3048 = vunpack.c.h.b16 %v3035
        %v3049 = vunpack.c.l.b16 %v3036
        %v3050 = vunpack.c.h.b16 %v3036
        %v3051 = vunpack.c.l.b16 %v3037
        %v3052 = vunpack.c.h.b16 %v3037
        %v3053 = vunpack.c.l.b16 %v3038
        %v3054 = vunpack.c.h.b16 %v3038
        %v3055 = vunpack.c.l.b16 %v3039
        %v3056 = vunpack.c.h.b16 %v3039
        %v3057 = vunpack.c.l.b16 %v3040
        %v3058 = vunpack.c.h.b16 %v3040
        %v3059 = vpack.c.b16 %v3053, %v3047
        %v3060 = vpack.c.b16 %v3054, %v3048
        %v3061 = vpack.c.b16 %v3055, %v3049
        %v3062 = vpack.c.b16 %v3056, %v3050
        %v3063 = vpack.c.b16 %v3057, %v3051
        %v3064 = vpack.c.b16 %v3058, %v3052
        %3065 = vrot.lane.b32.xlu0 %v3059, 16
        %v3066 = vpop.permute.xlu0 %3065
        %3067 = vrot.lane.b32.xlu0 %v3060, 16
        %v3068 = vpop.permute.xlu0 %3067
        %3069 = vrot.lane.b32.xlu0 %v3061, 16
        %v3070 = vpop.permute.xlu0 %3069
        %3071 = vrot.lane.b32.xlu0 %v3062, 16
        %v3072 = vpop.permute.xlu0 %3071
        %3073 = vrot.lane.b32.xlu0 %v3063, 16
        %v3074 = vpop.permute.xlu0 %3073
        %3075 = vrot.lane.b32.xlu0 %v3064, 16
        %v3076 = vpop.permute.xlu0 %3075
        %vm3077 = vcmask 130048
        %v3078 = vsel %vm3077, %v3066, %v3068
        %v3079 = vsel %vm3077, %v3068, %v3070
        %v3080 = vsel %vm3077, %v3070, %v3072
        %v3081 = vsel %vm3077, %v3072, %v3074
        %v3082 = vsel %vm3077, %v3074, %v3076
        %3088 = vst [vmem:[#allocation2 + $0x780] sm:$0xff] %v3078
        %3089 = vst [vmem:[#allocation2 + $0x788] sm:$0xff] %v3079
        %3090 = vst [vmem:[#allocation2 + $0x790] sm:$0xff] %v3080
        %3091 = vst [vmem:[#allocation2 + $0x798] sm:$0xff] %v3081
        %3092 = vst [vmem:[#allocation2 + $0x7a0] sm:$0xff] %v3082
        %v3093 = vld [vmem:[%s230 + $0x4] sm:$0xff]
        %v3094 = vld [vmem:[%s230 + $0xc] sm:$0xff]
        %v3095 = vld [vmem:[%s230 + $0x14] sm:$0xff]
        %v3096 = vld [vmem:[%s230 + $0x38] sm:$0xff]
        %v3097 = vld [vmem:[%s230 + $0x40] sm:$0xff]
        %v3098 = vld [vmem:[%s230 + $0x48] sm:$0xff]
        %v3105 = vunpack.c.l.b16 %v3093
        %v3106 = vunpack.c.h.b16 %v3093
        %v3107 = vunpack.c.l.b16 %v3094
        %v3108 = vunpack.c.h.b16 %v3094
        %v3109 = vunpack.c.l.b16 %v3095
        %v3110 = vunpack.c.h.b16 %v3095
        %v3111 = vunpack.c.l.b16 %v3096
        %v3112 = vunpack.c.h.b16 %v3096
        %v3113 = vunpack.c.l.b16 %v3097
        %v3114 = vunpack.c.h.b16 %v3097
        %v3115 = vunpack.c.l.b16 %v3098
        %v3116 = vunpack.c.h.b16 %v3098
        %v3117 = vpack.c.b16 %v3111, %v3105
        %v3118 = vpack.c.b16 %v3112, %v3106
        %v3119 = vpack.c.b16 %v3113, %v3107
        %v3120 = vpack.c.b16 %v3114, %v3108
        %v3121 = vpack.c.b16 %v3115, %v3109
        %v3122 = vpack.c.b16 %v3116, %v3110
        %3123 = vrot.lane.b32.xlu0 %v3117, 10
        %v3124 = vpop.permute.xlu0 %3123
        %3125 = vrot.lane.b32.xlu0 %v3118, 10
        %v3126 = vpop.permute.xlu0 %3125
        %3127 = vrot.lane.b32.xlu0 %v3119, 10
        %v3128 = vpop.permute.xlu0 %3127
        %3129 = vrot.lane.b32.xlu0 %v3120, 10
        %v3130 = vpop.permute.xlu0 %3129
        %3131 = vrot.lane.b32.xlu0 %v3121, 10
        %v3132 = vpop.permute.xlu0 %3131
        %3133 = vrot.lane.b32.xlu0 %v3122, 10
        %v3134 = vpop.permute.xlu0 %3133
        %v3135 = vsel %vm1367, %v3124, %v3126
        %v3136 = vsel %vm1367, %v3126, %v3128
        %v3137 = vsel %vm1367, %v3128, %v3130
        %v3138 = vsel %vm1367, %v3130, %v3132
        %v3139 = vsel %vm1367, %v3132, %v3134
        %3145 = vst [vmem:[#allocation2 + $0x7a8] sm:$0xff] %v3135
        %3146 = vst [vmem:[#allocation2 + $0x7b0] sm:$0xff] %v3136
        %3147 = vst [vmem:[#allocation2 + $0x7b8] sm:$0xff] %v3137
        %3148 = vst [vmem:[#allocation2 + $0x7c0] sm:$0xff] %v3138
        %3149 = vst [vmem:[#allocation2 + $0x7c8] sm:$0xff] %v3139
        %v3150 = vld [vmem:[%s230 + $0x4] sm:$0xff]
        %v3151 = vld [vmem:[%s230 + $0xc] sm:$0xff]
        %v3152 = vld [vmem:[%s230 + $0x14] sm:$0xff]
        %v3153 = vld [vmem:[%s230 + $0x38] sm:$0xff]
        %v3154 = vld [vmem:[%s230 + $0x40] sm:$0xff]
        %v3155 = vld [vmem:[%s230 + $0x48] sm:$0xff]
        %v3162 = vunpack.c.l.b16 %v3150
        %v3163 = vunpack.c.h.b16 %v3150
        %v3164 = vunpack.c.l.b16 %v3151
        %v3165 = vunpack.c.h.b16 %v3151
        %v3166 = vunpack.c.l.b16 %v3152
        %v3167 = vunpack.c.h.b16 %v3152
        %v3168 = vunpack.c.l.b16 %v3153
        %v3169 = vunpack.c.h.b16 %v3153
        %v3170 = vunpack.c.l.b16 %v3154
        %v3171 = vunpack.c.h.b16 %v3154
        %v3172 = vunpack.c.l.b16 %v3155
        %v3173 = vunpack.c.h.b16 %v3155
        %v3174 = vpack.c.b16 %v3168, %v3162
        %v3175 = vpack.c.b16 %v3169, %v3163
        %v3176 = vpack.c.b16 %v3170, %v3164
        %v3177 = vpack.c.b16 %v3171, %v3165
        %v3178 = vpack.c.b16 %v3172, %v3166
        %v3179 = vpack.c.b16 %v3173, %v3167
        %3180 = vrot.lane.b32.xlu0 %v3174, 4
        %v3181 = vpop.permute.xlu0 %3180
        %3182 = vrot.lane.b32.xlu0 %v3175, 4
        %v3183 = vpop.permute.xlu0 %3182
        %3184 = vrot.lane.b32.xlu0 %v3176, 4
        %v3185 = vpop.permute.xlu0 %3184
        %3186 = vrot.lane.b32.xlu0 %v3177, 4
        %v3187 = vpop.permute.xlu0 %3186
        %3188 = vrot.lane.b32.xlu0 %v3178, 4
        %v3189 = vpop.permute.xlu0 %3188
        %3190 = vrot.lane.b32.xlu0 %v3179, 4
        %v3191 = vpop.permute.xlu0 %3190
        %v3192 = vsel %vm1483, %v3181, %v3183
        %v3193 = vsel %vm1483, %v3183, %v3185
        %v3194 = vsel %vm1483, %v3185, %v3187
        %v3195 = vsel %vm1483, %v3187, %v3189
        %v3196 = vsel %vm1483, %v3189, %v3191
        %3202 = vst [vmem:[#allocation2 + $0x7d0] sm:$0xff] %v3192
        %3203 = vst [vmem:[#allocation2 + $0x7d8] sm:$0xff] %v3193
        %3204 = vst [vmem:[#allocation2 + $0x7e0] sm:$0xff] %v3194
        %3205 = vst [vmem:[#allocation2 + $0x7e8] sm:$0xff] %v3195
        %3206 = vst [vmem:[#allocation2 + $0x7f0] sm:$0xff] %v3196
        %v3207 = vld [vmem:[%s230 + $0x8] sm:$0xff]
        %v3208 = vld [vmem:[%s230 + $0x10] sm:$0xff]
        %v3209 = vld [vmem:[%s230 + $0x18] sm:$0xff]
        %v3210 = vld [vmem:[%s230 + $0x3c] sm:$0xff]
        %v3211 = vld [vmem:[%s230 + $0x44] sm:$0xff]
        %v3212 = vld [vmem:[%s230 + $0x4c] sm:$0xff]
        %v3219 = vunpack.c.l.b16 %v3207
        %v3220 = vunpack.c.h.b16 %v3207
        %v3221 = vunpack.c.l.b16 %v3208
        %v3222 = vunpack.c.h.b16 %v3208
        %v3223 = vunpack.c.l.b16 %v3209
        %v3224 = vunpack.c.h.b16 %v3209
        %v3225 = vunpack.c.l.b16 %v3210
        %v3226 = vunpack.c.h.b16 %v3210
        %v3227 = vunpack.c.l.b16 %v3211
        %v3228 = vunpack.c.h.b16 %v3211
        %v3229 = vunpack.c.l.b16 %v3212
        %v3230 = vunpack.c.h.b16 %v3212
        %v3231 = vpack.c.b16 %v3225, %v3219
        %v3232 = vpack.c.b16 %v3226, %v3220
        %v3233 = vpack.c.b16 %v3227, %v3221
        %v3234 = vpack.c.b16 %v3228, %v3222
        %v3235 = vpack.c.b16 %v3229, %v3223
        %v3236 = vpack.c.b16 %v3230, %v3224
        %3237 = vrot.lane.b32.xlu0 %v3231, 126
        %v3238 = vpop.permute.xlu0 %3237
        %3239 = vrot.lane.b32.xlu0 %v3232, 126
        %v3240 = vpop.permute.xlu0 %3239
        %3241 = vrot.lane.b32.xlu0 %v3233, 126
        %v3242 = vpop.permute.xlu0 %3241
        %3243 = vrot.lane.b32.xlu0 %v3234, 126
        %v3244 = vpop.permute.xlu0 %3243
        %3245 = vrot.lane.b32.xlu0 %v3235, 126
        %v3246 = vpop.permute.xlu0 %3245
        %3247 = vrot.lane.b32.xlu0 %v3236, 126
        %v3248 = vpop.permute.xlu0 %3247
        %v3249 = vsel %vm1599, %v3238, %v3240
        %v3250 = vsel %vm1599, %v3240, %v3242
        %v3251 = vsel %vm1599, %v3242, %v3244
        %v3252 = vsel %vm1599, %v3244, %v3246
        %v3253 = vsel %vm1599, %v3246, %v3248
        %3259 = vst [vmem:[#allocation2 + $0x7f8] sm:$0xff] %v3249
        %3260 = vst [vmem:[#allocation2 + $0x800] sm:$0xff] %v3250
        %3261 = vst [vmem:[#allocation2 + $0x808] sm:$0xff] %v3251
        %3262 = vst [vmem:[#allocation2 + $0x810] sm:$0xff] %v3252
        %3263 = vst [vmem:[#allocation2 + $0x818] sm:$0xff] %v3253
        %v3264 = vld [vmem:[%s230 + $0x8] sm:$0xff]
        %v3265 = vld [vmem:[%s230 + $0x10] sm:$0xff]
        %v3266 = vld [vmem:[%s230 + $0x18] sm:$0xff]
        %v3267 = vld [vmem:[%s230 + $0x3c] sm:$0xff]
        %v3268 = vld [vmem:[%s230 + $0x44] sm:$0xff]
        %v3269 = vld [vmem:[%s230 + $0x4c] sm:$0xff]
        %v3276 = vunpack.c.l.b16 %v3264
        %v3277 = vunpack.c.h.b16 %v3264
        %v3278 = vunpack.c.l.b16 %v3265
        %v3279 = vunpack.c.h.b16 %v3265
        %v3280 = vunpack.c.l.b16 %v3266
        %v3281 = vunpack.c.h.b16 %v3266
        %v3282 = vunpack.c.l.b16 %v3267
        %v3283 = vunpack.c.h.b16 %v3267
        %v3284 = vunpack.c.l.b16 %v3268
        %v3285 = vunpack.c.h.b16 %v3268
        %v3286 = vunpack.c.l.b16 %v3269
        %v3287 = vunpack.c.h.b16 %v3269
        %v3288 = vpack.c.b16 %v3282, %v3276
        %v3289 = vpack.c.b16 %v3283, %v3277
        %v3290 = vpack.c.b16 %v3284, %v3278
        %v3291 = vpack.c.b16 %v3285, %v3279
        %v3292 = vpack.c.b16 %v3286, %v3280
        %v3293 = vpack.c.b16 %v3287, %v3281
        %3294 = vrot.lane.b32.xlu0 %v3288, 120
        %v3295 = vpop.permute.xlu0 %3294
        %3296 = vrot.lane.b32.xlu0 %v3289, 120
        %v3297 = vpop.permute.xlu0 %3296
        %3298 = vrot.lane.b32.xlu0 %v3290, 120
        %v3299 = vpop.permute.xlu0 %3298
        %3300 = vrot.lane.b32.xlu0 %v3291, 120
        %v3301 = vpop.permute.xlu0 %3300
        %3302 = vrot.lane.b32.xlu0 %v3292, 120
        %v3303 = vpop.permute.xlu0 %3302
        %3304 = vrot.lane.b32.xlu0 %v3293, 120
        %v3305 = vpop.permute.xlu0 %3304
        %vm3306 = vcmask 982016
        %v3307 = vsel %vm3306, %v3295, %v3297
        %v3308 = vsel %vm3306, %v3297, %v3299
        %v3309 = vsel %vm3306, %v3299, %v3301
        %v3310 = vsel %vm3306, %v3301, %v3303
        %v3311 = vsel %vm3306, %v3303, %v3305
        %3317 = vst [vmem:[#allocation2 + $0x820] sm:$0xff] %v3307
        %3318 = vst [vmem:[#allocation2 + $0x828] sm:$0xff] %v3308
        %3319 = vst [vmem:[#allocation2 + $0x830] sm:$0xff] %v3309
        %3320 = vst [vmem:[#allocation2 + $0x838] sm:$0xff] %v3310
        %3321 = vst [vmem:[#allocation2 + $0x840] sm:$0xff] %v3311
        %v3322 = vld [vmem:[%s230 + $0xc] sm:$0xff]
        %v3323 = vld [vmem:[%s230 + $0x14] sm:$0xff]
        %v3324 = vld [vmem:[%s230 + $0x1c] sm:$0xff]
        %v3325 = vld [vmem:[%s230 + $0x40] sm:$0xff]
        %v3326 = vld [vmem:[%s230 + $0x48] sm:$0xff]
        %v3327 = vld [vmem:[%s230 + $0x50] sm:$0xff]
        %v3334 = vunpack.c.l.b16 %v3322
        %v3335 = vunpack.c.h.b16 %v3322
        %v3336 = vunpack.c.l.b16 %v3323
        %v3337 = vunpack.c.h.b16 %v3323
        %v3338 = vunpack.c.l.b16 %v3324
        %v3339 = vunpack.c.h.b16 %v3324
        %v3340 = vunpack.c.l.b16 %v3325
        %v3341 = vunpack.c.h.b16 %v3325
        %v3342 = vunpack.c.l.b16 %v3326
        %v3343 = vunpack.c.h.b16 %v3326
        %v3344 = vunpack.c.l.b16 %v3327
        %v3345 = vunpack.c.h.b16 %v3327
        %v3346 = vpack.c.b16 %v3340, %v3334
        %v3347 = vpack.c.b16 %v3341, %v3335
        %v3348 = vpack.c.b16 %v3342, %v3336
        %v3349 = vpack.c.b16 %v3343, %v3337
        %v3350 = vpack.c.b16 %v3344, %v3338
        %v3351 = vpack.c.b16 %v3345, %v3339
        %3352 = vrot.lane.b32.xlu0 %v3346, 32
        %v3353 = vpop.permute.xlu0 %3352
        %3354 = vrot.lane.b32.xlu0 %v3347, 32
        %v3355 = vpop.permute.xlu0 %3354
        %3356 = vrot.lane.b32.xlu0 %v3348, 32
        %v3357 = vpop.permute.xlu0 %3356
        %3358 = vrot.lane.b32.xlu0 %v3349, 32
        %v3359 = vpop.permute.xlu0 %3358
        %3360 = vrot.lane.b32.xlu0 %v3350, 32
        %v3361 = vpop.permute.xlu0 %3360
        %3362 = vrot.lane.b32.xlu0 %v3351, 32
        %v3363 = vpop.permute.xlu0 %3362
        %vm3364 = vcmask 261120
        %v3365 = vsel %vm3364, %v3353, %v3355
        %v3366 = vsel %vm3364, %v3355, %v3357
        %v3367 = vsel %vm3364, %v3357, %v3359
        %v3368 = vsel %vm3364, %v3359, %v3361
        %v3369 = vsel %vm3364, %v3361, %v3363
        %3375 = vst [vmem:[#allocation2 + $0x848] sm:$0xff] %v3365
        %3376 = vst [vmem:[#allocation2 + $0x850] sm:$0xff] %v3366
        %3377 = vst [vmem:[#allocation2 + $0x858] sm:$0xff] %v3367
        %3378 = vst [vmem:[#allocation2 + $0x860] sm:$0xff] %v3368
        %3379 = vst [vmem:[#allocation2 + $0x868] sm:$0xff] %v3369
        %v3380 = vld [vmem:[%s230 + $0xc] sm:$0xff]
        %v3381 = vld [vmem:[%s230 + $0x14] sm:$0xff]
        %v3382 = vld [vmem:[%s230 + $0x1c] sm:$0xff]
        %v3383 = vld [vmem:[%s230 + $0x40] sm:$0xff]
        %v3384 = vld [vmem:[%s230 + $0x48] sm:$0xff]
        %v3385 = vld [vmem:[%s230 + $0x50] sm:$0xff]
        %v3392 = vunpack.c.l.b16 %v3380
        %v3393 = vunpack.c.h.b16 %v3380
        %v3394 = vunpack.c.l.b16 %v3381
        %v3395 = vunpack.c.h.b16 %v3381
        %v3396 = vunpack.c.l.b16 %v3382
        %v3397 = vunpack.c.h.b16 %v3382
        %v3398 = vunpack.c.l.b16 %v3383
        %v3399 = vunpack.c.h.b16 %v3383
        %v3400 = vunpack.c.l.b16 %v3384
        %v3401 = vunpack.c.h.b16 %v3384
        %v3402 = vunpack.c.l.b16 %v3385
        %v3403 = vunpack.c.h.b16 %v3385
        %v3404 = vpack.c.b16 %v3398, %v3392
        %v3405 = vpack.c.b16 %v3399, %v3393
        %v3406 = vpack.c.b16 %v3400, %v3394
        %v3407 = vpack.c.b16 %v3401, %v3395
        %v3408 = vpack.c.b16 %v3402, %v3396
        %v3409 = vpack.c.b16 %v3403, %v3397
        %3410 = vrot.lane.b32.xlu0 %v3404, 26
        %v3411 = vpop.permute.xlu0 %3410
        %3412 = vrot.lane.b32.xlu0 %v3405, 26
        %v3413 = vpop.permute.xlu0 %3412
        %3414 = vrot.lane.b32.xlu0 %v3406, 26
        %v3415 = vpop.permute.xlu0 %3414
        %3416 = vrot.lane.b32.xlu0 %v3407, 26
        %v3417 = vpop.permute.xlu0 %3416
        %3418 = vrot.lane.b32.xlu0 %v3408, 26
        %v3419 = vpop.permute.xlu0 %3418
        %3420 = vrot.lane.b32.xlu0 %v3409, 26
        %v3421 = vpop.permute.xlu0 %3420
        %v3422 = vsel %vm1944, %v3411, %v3413
        %v3423 = vsel %vm1944, %v3413, %v3415
        %v3424 = vsel %vm1944, %v3415, %v3417
        %v3425 = vsel %vm1944, %v3417, %v3419
        %v3426 = vsel %vm1944, %v3419, %v3421
        %3432 = vst [vmem:[#allocation2 + $0x870] sm:$0xff] %v3422
        %3433 = vst [vmem:[#allocation2 + $0x878] sm:$0xff] %v3423
        %3434 = vst [vmem:[#allocation2 + $0x880] sm:$0xff] %v3424
        %3435 = vst [vmem:[#allocation2 + $0x888] sm:$0xff] %v3425
        %3436 = vst [vmem:[#allocation2 + $0x890] sm:$0xff] %v3426
        %v3437 = vld [vmem:[%s230 + $0xc] sm:$0xff]
        %v3438 = vld [vmem:[%s230 + $0x14] sm:$0xff]
        %v3439 = vld [vmem:[%s230 + $0x1c] sm:$0xff]
        %v3440 = vld [vmem:[%s230 + $0x40] sm:$0xff]
        %v3441 = vld [vmem:[%s230 + $0x48] sm:$0xff]
        %v3442 = vld [vmem:[%s230 + $0x50] sm:$0xff]
        %v3449 = vunpack.c.l.b16 %v3437
        %v3450 = vunpack.c.h.b16 %v3437
        %v3451 = vunpack.c.l.b16 %v3438
        %v3452 = vunpack.c.h.b16 %v3438
        %v3453 = vunpack.c.l.b16 %v3439
        %v3454 = vunpack.c.h.b16 %v3439
        %v3455 = vunpack.c.l.b16 %v3440
        %v3456 = vunpack.c.h.b16 %v3440
        %v3457 = vunpack.c.l.b16 %v3441
        %v3458 = vunpack.c.h.b16 %v3441
        %v3459 = vunpack.c.l.b16 %v3442
        %v3460 = vunpack.c.h.b16 %v3442
        %v3461 = vpack.c.b16 %v3455, %v3449
        %v3462 = vpack.c.b16 %v3456, %v3450
        %v3463 = vpack.c.b16 %v3457, %v3451
        %v3464 = vpack.c.b16 %v3458, %v3452
        %v3465 = vpack.c.b16 %v3459, %v3453
        %v3466 = vpack.c.b16 %v3460, %v3454
        %3467 = vrot.lane.b32.xlu0 %v3461, 20
        %v3468 = vpop.permute.xlu0 %3467
        %3469 = vrot.lane.b32.xlu0 %v3462, 20
        %v3470 = vpop.permute.xlu0 %3469
        %3471 = vrot.lane.b32.xlu0 %v3463, 20
        %v3472 = vpop.permute.xlu0 %3471
        %3473 = vrot.lane.b32.xlu0 %v3464, 20
        %v3474 = vpop.permute.xlu0 %3473
        %3475 = vrot.lane.b32.xlu0 %v3465, 20
        %v3476 = vpop.permute.xlu0 %3475
        %3477 = vrot.lane.b32.xlu0 %v3466, 20
        %v3478 = vpop.permute.xlu0 %3477
        %v3479 = vsel %vm556, %v3468, %v3470
        %v3480 = vsel %vm556, %v3470, %v3472
        %v3481 = vsel %vm556, %v3472, %v3474
        %v3482 = vsel %vm556, %v3474, %v3476
        %v3483 = vsel %vm556, %v3476, %v3478
        %3489 = vst [vmem:[#allocation2 + $0x898] sm:$0xff] %v3479
        %3490 = vst [vmem:[#allocation2 + $0x8a0] sm:$0xff] %v3480
        %3491 = vst [vmem:[#allocation2 + $0x8a8] sm:$0xff] %v3481
        %3492 = vst [vmem:[#allocation2 + $0x8b0] sm:$0xff] %v3482
        %3493 = vst [vmem:[#allocation2 + $0x8b8] sm:$0xff] %v3483
        %v3494 = vld [vmem:[%s230 + $0xc] sm:$0xff]
        %v3495 = vld [vmem:[%s230 + $0x14] sm:$0xff]
        %v3496 = vld [vmem:[%s230 + $0x1c] sm:$0xff]
        %v3497 = vld [vmem:[%s230 + $0x40] sm:$0xff]
        %v3498 = vld [vmem:[%s230 + $0x48] sm:$0xff]
        %v3499 = vld [vmem:[%s230 + $0x50] sm:$0xff]
        %v3506 = vunpack.c.l.b16 %v3494
        %v3507 = vunpack.c.h.b16 %v3494
        %v3508 = vunpack.c.l.b16 %v3495
        %v3509 = vunpack.c.h.b16 %v3495
        %v3510 = vunpack.c.l.b16 %v3496
        %v3511 = vunpack.c.h.b16 %v3496
        %v3512 = vunpack.c.l.b16 %v3497
        %v3513 = vunpack.c.h.b16 %v3497
        %v3514 = vunpack.c.l.b16 %v3498
        %v3515 = vunpack.c.h.b16 %v3498
        %v3516 = vunpack.c.l.b16 %v3499
        %v3517 = vunpack.c.h.b16 %v3499
        %v3518 = vpack.c.b16 %v3512, %v3506
        %v3519 = vpack.c.b16 %v3513, %v3507
        %v3520 = vpack.c.b16 %v3514, %v3508
        %v3521 = vpack.c.b16 %v3515, %v3509
        %v3522 = vpack.c.b16 %v3516, %v3510
        %v3523 = vpack.c.b16 %v3517, %v3511
        %3524 = vrot.lane.b32.xlu0 %v3518, 14
        %v3525 = vpop.permute.xlu0 %3524
        %3526 = vrot.lane.b32.xlu0 %v3519, 14
        %v3527 = vpop.permute.xlu0 %3526
        %3528 = vrot.lane.b32.xlu0 %v3520, 14
        %v3529 = vpop.permute.xlu0 %3528
        %3530 = vrot.lane.b32.xlu0 %v3521, 14
        %v3531 = vpop.permute.xlu0 %3530
        %3532 = vrot.lane.b32.xlu0 %v3522, 14
        %v3533 = vpop.permute.xlu0 %3532
        %3534 = vrot.lane.b32.xlu0 %v3523, 14
        %v3535 = vpop.permute.xlu0 %3534
        %v3536 = vsel %vm2173, %v3525, %v3527
        %v3537 = vsel %vm2173, %v3527, %v3529
        %v3538 = vsel %vm2173, %v3529, %v3531
        %v3539 = vsel %vm2173, %v3531, %v3533
        %v3540 = vsel %vm2173, %v3533, %v3535
        %3546 = vst [vmem:[#allocation2 + $0x8c0] sm:$0xff] %v3536
        %3547 = vst [vmem:[#allocation2 + $0x8c8] sm:$0xff] %v3537
        %3548 = vst [vmem:[#allocation2 + $0x8d0] sm:$0xff] %v3538
        %3549 = vst [vmem:[#allocation2 + $0x8d8] sm:$0xff] %v3539
        %3550 = vst [vmem:[#allocation2 + $0x8e0] sm:$0xff] %v3540
        %v3551 = vld [vmem:[%s230 + $0xc] sm:$0xff]
        %v3552 = vld [vmem:[%s230 + $0x14] sm:$0xff]
        %v3553 = vld [vmem:[%s230 + $0x1c] sm:$0xff]
        %v3554 = vld [vmem:[%s230 + $0x40] sm:$0xff]
        %v3555 = vld [vmem:[%s230 + $0x48] sm:$0xff]
        %v3556 = vld [vmem:[%s230 + $0x50] sm:$0xff]
        %v3563 = vunpack.c.l.b16 %v3551
        %v3564 = vunpack.c.h.b16 %v3551
        %v3565 = vunpack.c.l.b16 %v3552
        %v3566 = vunpack.c.h.b16 %v3552
        %v3567 = vunpack.c.l.b16 %v3553
        %v3568 = vunpack.c.h.b16 %v3553
        %v3569 = vunpack.c.l.b16 %v3554
        %v3570 = vunpack.c.h.b16 %v3554
        %v3571 = vunpack.c.l.b16 %v3555
        %v3572 = vunpack.c.h.b16 %v3555
        %v3573 = vunpack.c.l.b16 %v3556
        %v3574 = vunpack.c.h.b16 %v3556
        %v3575 = vpack.c.b16 %v3569, %v3563
        %v3576 = vpack.c.b16 %v3570, %v3564
        %v3577 = vpack.c.b16 %v3571, %v3565
        %v3578 = vpack.c.b16 %v3572, %v3566
        %v3579 = vpack.c.b16 %v3573, %v3567
        %v3580 = vpack.c.b16 %v3574, %v3568
        %3581 = vrot.lane.b32.xlu0 %v3575, 8
        %v3582 = vpop.permute.xlu0 %3581
        %3583 = vrot.lane.b32.xlu0 %v3576, 8
        %v3584 = vpop.permute.xlu0 %3583
        %3585 = vrot.lane.b32.xlu0 %v3577, 8
        %v3586 = vpop.permute.xlu0 %3585
        %3587 = vrot.lane.b32.xlu0 %v3578, 8
        %v3588 = vpop.permute.xlu0 %3587
        %3589 = vrot.lane.b32.xlu0 %v3579, 8
        %v3590 = vpop.permute.xlu0 %3589
        %3591 = vrot.lane.b32.xlu0 %v3580, 8
        %v3592 = vpop.permute.xlu0 %3591
        %vm3593 = vcmask 64512
        %v3594 = vsel %vm3593, %v3582, %v3584
        %v3595 = vsel %vm3593, %v3584, %v3586
        %v3596 = vsel %vm3593, %v3586, %v3588
        %v3597 = vsel %vm3593, %v3588, %v3590
        %v3598 = vsel %vm3593, %v3590, %v3592
        %3604 = vst [vmem:[#allocation2 + $0x8e8] sm:$0xff] %v3594
        %3605 = vst [vmem:[#allocation2 + $0x8f0] sm:$0xff] %v3595
        %3606 = vst [vmem:[#allocation2 + $0x8f8] sm:$0xff] %v3596
        %3607 = vst [vmem:[#allocation2 + $0x900] sm:$0xff] %v3597
        %3608 = vst [vmem:[#allocation2 + $0x908] sm:$0xff] %v3598
        %v3609 = vld [vmem:[%s230 + $0x14] sm:$0xff]
        %v3610 = vld [vmem:[%s230 + $0x1c] sm:$0xff]
        %v3611 = vld [vmem:[%s230 + $0x24] sm:$0xff]
        %v3612 = vld [vmem:[%s230 + $0x48] sm:$0xff]
        %v3613 = vld [vmem:[%s230 + $0x50] sm:$0xff]
        %v3614 = vld [vmem:[%s230 + $0x58] sm:$0xff]
        %v3621 = vunpack.c.l.b16 %v3609
        %v3622 = vunpack.c.h.b16 %v3609
        %v3623 = vunpack.c.l.b16 %v3610
        %v3624 = vunpack.c.h.b16 %v3610
        %v3625 = vunpack.c.l.b16 %v3611
        %v3626 = vunpack.c.h.b16 %v3611
        %v3627 = vunpack.c.l.b16 %v3612
        %v3628 = vunpack.c.h.b16 %v3612
        %v3629 = vunpack.c.l.b16 %v3613
        %v3630 = vunpack.c.h.b16 %v3613
        %v3631 = vunpack.c.l.b16 %v3614
        %v3632 = vunpack.c.h.b16 %v3614
        %v3633 = vpack.c.b16 %v3627, %v3621
        %v3634 = vpack.c.b16 %v3628, %v3622
        %v3635 = vpack.c.b16 %v3629, %v3623
        %v3636 = vpack.c.b16 %v3630, %v3624
        %v3637 = vpack.c.b16 %v3631, %v3625
        %v3638 = vpack.c.b16 %v3632, %v3626
        %3639 = vrot.lane.b32.xlu0 %v3633, 48
        %v3640 = vpop.permute.xlu0 %3639
        %3641 = vrot.lane.b32.xlu0 %v3634, 48
        %v3642 = vpop.permute.xlu0 %3641
        %3643 = vrot.lane.b32.xlu0 %v3635, 48
        %v3644 = vpop.permute.xlu0 %3643
        %3645 = vrot.lane.b32.xlu0 %v3636, 48
        %v3646 = vpop.permute.xlu0 %3645
        %3647 = vrot.lane.b32.xlu0 %v3637, 48
        %v3648 = vpop.permute.xlu0 %3647
        %3649 = vrot.lane.b32.xlu0 %v3638, 48
        %v3650 = vpop.permute.xlu0 %3649
        %vm3651 = vcmask 392192
        %v3652 = vsel %vm3651, %v3640, %v3642
        %v3653 = vsel %vm3651, %v3642, %v3644
        %v3654 = vsel %vm3651, %v3644, %v3646
        %v3655 = vsel %vm3651, %v3646, %v3648
        %v3656 = vsel %vm3651, %v3648, %v3650
        %3662 = vst [vmem:[#allocation2 + $0x910] sm:$0xff] %v3652
        %3663 = vst [vmem:[#allocation2 + $0x918] sm:$0xff] %v3653
        %3664 = vst [vmem:[#allocation2 + $0x920] sm:$0xff] %v3654
        %3665 = vst [vmem:[#allocation2 + $0x928] sm:$0xff] %v3655
        %3666 = vst [vmem:[#allocation2 + $0x930] sm:$0xff] %v3656
        %v3667 = vld [vmem:[%s230 + $0x14] sm:$0xff]
        %v3668 = vld [vmem:[%s230 + $0x1c] sm:$0xff]
        %v3669 = vld [vmem:[%s230 + $0x24] sm:$0xff]
        %v3670 = vld [vmem:[%s230 + $0x48] sm:$0xff]
        %v3671 = vld [vmem:[%s230 + $0x50] sm:$0xff]
        %v3672 = vld [vmem:[%s230 + $0x58] sm:$0xff]
        %v3679 = vunpack.c.l.b16 %v3667
        %v3680 = vunpack.c.h.b16 %v3667
        %v3681 = vunpack.c.l.b16 %v3668
        %v3682 = vunpack.c.h.b16 %v3668
        %v3683 = vunpack.c.l.b16 %v3669
        %v3684 = vunpack.c.h.b16 %v3669
        %v3685 = vunpack.c.l.b16 %v3670
        %v3686 = vunpack.c.h.b16 %v3670
        %v3687 = vunpack.c.l.b16 %v3671
        %v3688 = vunpack.c.h.b16 %v3671
        %v3689 = vunpack.c.l.b16 %v3672
        %v3690 = vunpack.c.h.b16 %v3672
        %v3691 = vpack.c.b16 %v3685, %v3679
        %v3692 = vpack.c.b16 %v3686, %v3680
        %v3693 = vpack.c.b16 %v3687, %v3681
        %v3694 = vpack.c.b16 %v3688, %v3682
        %v3695 = vpack.c.b16 %v3689, %v3683
        %v3696 = vpack.c.b16 %v3690, %v3684
        %3697 = vrot.lane.b32.xlu0 %v3691, 42
        %v3698 = vpop.permute.xlu0 %3697
        %3699 = vrot.lane.b32.xlu0 %v3692, 42
        %v3700 = vpop.permute.xlu0 %3699
        %3701 = vrot.lane.b32.xlu0 %v3693, 42
        %v3702 = vpop.permute.xlu0 %3701
        %3703 = vrot.lane.b32.xlu0 %v3694, 42
        %v3704 = vpop.permute.xlu0 %3703
        %3705 = vrot.lane.b32.xlu0 %v3695, 42
        %v3706 = vpop.permute.xlu0 %3705
        %3707 = vrot.lane.b32.xlu0 %v3696, 42
        %v3708 = vpop.permute.xlu0 %3707
        %v3709 = vsel %vm2518, %v3698, %v3700
        %v3710 = vsel %vm2518, %v3700, %v3702
        %v3711 = vsel %vm2518, %v3702, %v3704
        %v3712 = vsel %vm2518, %v3704, %v3706
        %v3713 = vsel %vm2518, %v3706, %v3708
        %3719 = vst [vmem:[#allocation2 + $0x938] sm:$0xff] %v3709
        %3720 = vst [vmem:[#allocation2 + $0x940] sm:$0xff] %v3710
        %3721 = vst [vmem:[#allocation2 + $0x948] sm:$0xff] %v3711
        %3722 = vst [vmem:[#allocation2 + $0x950] sm:$0xff] %v3712
        %3723 = vst [vmem:[#allocation2 + $0x958] sm:$0xff] %v3713
        %v3724 = vld [vmem:[%s230 + $0x14] sm:$0xff]
        %v3725 = vld [vmem:[%s230 + $0x1c] sm:$0xff]
        %v3726 = vld [vmem:[%s230 + $0x24] sm:$0xff]
        %v3727 = vld [vmem:[%s230 + $0x48] sm:$0xff]
        %v3728 = vld [vmem:[%s230 + $0x50] sm:$0xff]
        %v3729 = vld [vmem:[%s230 + $0x58] sm:$0xff]
        %v3736 = vunpack.c.l.b16 %v3724
        %v3737 = vunpack.c.h.b16 %v3724
        %v3738 = vunpack.c.l.b16 %v3725
        %v3739 = vunpack.c.h.b16 %v3725
        %v3740 = vunpack.c.l.b16 %v3726
        %v3741 = vunpack.c.h.b16 %v3726
        %v3742 = vunpack.c.l.b16 %v3727
        %v3743 = vunpack.c.h.b16 %v3727
        %v3744 = vunpack.c.l.b16 %v3728
        %v3745 = vunpack.c.h.b16 %v3728
        %v3746 = vunpack.c.l.b16 %v3729
        %v3747 = vunpack.c.h.b16 %v3729
        %v3748 = vpack.c.b16 %v3742, %v3736
        %v3749 = vpack.c.b16 %v3743, %v3737
        %v3750 = vpack.c.b16 %v3744, %v3738
        %v3751 = vpack.c.b16 %v3745, %v3739
        %v3752 = vpack.c.b16 %v3746, %v3740
        %v3753 = vpack.c.b16 %v3747, %v3741
        %3754 = vrot.lane.b32.xlu0 %v3748, 36
        %v3755 = vpop.permute.xlu0 %3754
        %3756 = vrot.lane.b32.xlu0 %v3749, 36
        %v3757 = vpop.permute.xlu0 %3756
        %3758 = vrot.lane.b32.xlu0 %v3750, 36
        %v3759 = vpop.permute.xlu0 %3758
        %3760 = vrot.lane.b32.xlu0 %v3751, 36
        %v3761 = vpop.permute.xlu0 %3760
        %3762 = vrot.lane.b32.xlu0 %v3752, 36
        %v3763 = vpop.permute.xlu0 %3762
        %3764 = vrot.lane.b32.xlu0 %v3753, 36
        %v3765 = vpop.permute.xlu0 %3764
        %v3766 = vsel %vm2634, %v3755, %v3757
        %v3767 = vsel %vm2634, %v3757, %v3759
        %v3768 = vsel %vm2634, %v3759, %v3761
        %v3769 = vsel %vm2634, %v3761, %v3763
        %v3770 = vsel %vm2634, %v3763, %v3765
        %3776 = vst [vmem:[#allocation2 + $0x960] sm:$0xff] %v3766
        %3777 = vst [vmem:[#allocation2 + $0x968] sm:$0xff] %v3767
        %3778 = vst [vmem:[#allocation2 + $0x970] sm:$0xff] %v3768
        %3779 = vst [vmem:[#allocation2 + $0x978] sm:$0xff] %v3769
        %3780 = vst [vmem:[#allocation2 + $0x980] sm:$0xff] %v3770
        %v3781 = vld [vmem:[%s230 + $0x14] sm:$0xff]
        %v3782 = vld [vmem:[%s230 + $0x1c] sm:$0xff]
        %v3783 = vld [vmem:[%s230 + $0x24] sm:$0xff]
        %v3784 = vld [vmem:[%s230 + $0x48] sm:$0xff]
        %v3785 = vld [vmem:[%s230 + $0x50] sm:$0xff]
        %v3786 = vld [vmem:[%s230 + $0x58] sm:$0xff]
        %v3793 = vunpack.c.l.b16 %v3781
        %v3794 = vunpack.c.h.b16 %v3781
        %v3795 = vunpack.c.l.b16 %v3782
        %v3796 = vunpack.c.h.b16 %v3782
        %v3797 = vunpack.c.l.b16 %v3783
        %v3798 = vunpack.c.h.b16 %v3783
        %v3799 = vunpack.c.l.b16 %v3784
        %v3800 = vunpack.c.h.b16 %v3784
        %v3801 = vunpack.c.l.b16 %v3785
        %v3802 = vunpack.c.h.b16 %v3785
        %v3803 = vunpack.c.l.b16 %v3786
        %v3804 = vunpack.c.h.b16 %v3786
        %v3805 = vpack.c.b16 %v3799, %v3793
        %v3806 = vpack.c.b16 %v3800, %v3794
        %v3807 = vpack.c.b16 %v3801, %v3795
        %v3808 = vpack.c.b16 %v3802, %v3796
        %v3809 = vpack.c.b16 %v3803, %v3797
        %v3810 = vpack.c.b16 %v3804, %v3798
        %3811 = vrot.lane.b32.xlu0 %v3805, 30
        %v3812 = vpop.permute.xlu0 %3811
        %3813 = vrot.lane.b32.xlu0 %v3806, 30
        %v3814 = vpop.permute.xlu0 %3813
        %3815 = vrot.lane.b32.xlu0 %v3807, 30
        %v3816 = vpop.permute.xlu0 %3815
        %3817 = vrot.lane.b32.xlu0 %v3808, 30
        %v3818 = vpop.permute.xlu0 %3817
        %3819 = vrot.lane.b32.xlu0 %v3809, 30
        %v3820 = vpop.permute.xlu0 %3819
        %3821 = vrot.lane.b32.xlu0 %v3810, 30
        %v3822 = vpop.permute.xlu0 %3821
        %v3823 = vsel %vm2750, %v3812, %v3814
        %v3824 = vsel %vm2750, %v3814, %v3816
        %v3825 = vsel %vm2750, %v3816, %v3818
        %v3826 = vsel %vm2750, %v3818, %v3820
        %v3827 = vsel %vm2750, %v3820, %v3822
        %3833 = vst [vmem:[#allocation2 + $0x988] sm:$0xff] %v3823
        %3834 = vst [vmem:[#allocation2 + $0x990] sm:$0xff] %v3824
        %3835 = vst [vmem:[#allocation2 + $0x998] sm:$0xff] %v3825
        %3836 = vst [vmem:[#allocation2 + $0x9a0] sm:$0xff] %v3826
        %3837 = vst [vmem:[#allocation2 + $0x9a8] sm:$0xff] %v3827
        %v3838 = vld [vmem:[%s230 + $0x14] sm:$0xff]
        %v3839 = vld [vmem:[%s230 + $0x1c] sm:$0xff]
        %v3840 = vld [vmem:[%s230 + $0x24] sm:$0xff]
        %v3841 = vld [vmem:[%s230 + $0x48] sm:$0xff]
        %v3842 = vld [vmem:[%s230 + $0x50] sm:$0xff]
        %v3843 = vld [vmem:[%s230 + $0x58] sm:$0xff]
        %v3850 = vunpack.c.l.b16 %v3838
        %v3851 = vunpack.c.h.b16 %v3838
        %v3852 = vunpack.c.l.b16 %v3839
        %v3853 = vunpack.c.h.b16 %v3839
        %v3854 = vunpack.c.l.b16 %v3840
        %v3855 = vunpack.c.h.b16 %v3840
        %v3856 = vunpack.c.l.b16 %v3841
        %v3857 = vunpack.c.h.b16 %v3841
        %v3858 = vunpack.c.l.b16 %v3842
        %v3859 = vunpack.c.h.b16 %v3842
        %v3860 = vunpack.c.l.b16 %v3843
        %v3861 = vunpack.c.h.b16 %v3843
        %v3862 = vpack.c.b16 %v3856, %v3850
        %v3863 = vpack.c.b16 %v3857, %v3851
        %v3864 = vpack.c.b16 %v3858, %v3852
        %v3865 = vpack.c.b16 %v3859, %v3853
        %v3866 = vpack.c.b16 %v3860, %v3854
        %v3867 = vpack.c.b16 %v3861, %v3855
        %3868 = vrot.lane.b32.xlu0 %v3862, 24
        %v3869 = vpop.permute.xlu0 %3868
        %3870 = vrot.lane.b32.xlu0 %v3863, 24
        %v3871 = vpop.permute.xlu0 %3870
        %3872 = vrot.lane.b32.xlu0 %v3864, 24
        %v3873 = vpop.permute.xlu0 %3872
        %3874 = vrot.lane.b32.xlu0 %v3865, 24
        %v3875 = vpop.permute.xlu0 %3874
        %3876 = vrot.lane.b32.xlu0 %v3866, 24
        %v3877 = vpop.permute.xlu0 %3876
        %3878 = vrot.lane.b32.xlu0 %v3867, 24
        %v3879 = vpop.permute.xlu0 %3878
        %vm3880 = vcmask 195584
        %v3881 = vsel %vm3880, %v3869, %v3871
        %v3882 = vsel %vm3880, %v3871, %v3873
        %v3883 = vsel %vm3880, %v3873, %v3875
        %v3884 = vsel %vm3880, %v3875, %v3877
        %v3885 = vsel %vm3880, %v3877, %v3879
        %3891 = vst [vmem:[#allocation2 + $0x9b0] sm:$0xff] %v3881
        %3892 = vst [vmem:[#allocation2 + $0x9b8] sm:$0xff] %v3882
        %3893 = vst [vmem:[#allocation2 + $0x9c0] sm:$0xff] %v3883
        %3894 = vst [vmem:[#allocation2 + $0x9c8] sm:$0xff] %v3884
        %3895 = vst [vmem:[#allocation2 + $0x9d0] sm:$0xff] %v3885
        %v3896 = vld [vmem:[%s230 + $0x1c] sm:$0xff]
        %v3897 = vld [vmem:[%s230 + $0x24] sm:$0xff]
        %v3898 = vld [vmem:[%s230 + $0x2c] sm:$0xff]
        %v3899 = vld [vmem:[%s230 + $0x50] sm:$0xff]
        %v3900 = vld [vmem:[%s230 + $0x58] sm:$0xff]
        %v3901 = vld [vmem:[%s230 + $0x60] sm:$0xff]
        %v3908 = vunpack.c.l.b16 %v3896
        %v3909 = vunpack.c.h.b16 %v3896
        %v3910 = vunpack.c.l.b16 %v3897
        %v3911 = vunpack.c.h.b16 %v3897
        %v3912 = vunpack.c.l.b16 %v3898
        %v3913 = vunpack.c.h.b16 %v3898
        %v3914 = vunpack.c.l.b16 %v3899
        %v3915 = vunpack.c.h.b16 %v3899
        %v3916 = vunpack.c.l.b16 %v3900
        %v3917 = vunpack.c.h.b16 %v3900
        %v3918 = vunpack.c.l.b16 %v3901
        %v3919 = vunpack.c.h.b16 %v3901
        %v3920 = vpack.c.b16 %v3914, %v3908
        %v3921 = vpack.c.b16 %v3915, %v3909
        %v3922 = vpack.c.b16 %v3916, %v3910
        %v3923 = vpack.c.b16 %v3917, %v3911
        %v3924 = vpack.c.b16 %v3918, %v3912
        %v3925 = vpack.c.b16 %v3919, %v3913
        %3926 = vrot.lane.b32.xlu0 %v3920, 64
        %v3927 = vpop.permute.xlu0 %3926
        %3928 = vrot.lane.b32.xlu0 %v3921, 64
        %v3929 = vpop.permute.xlu0 %3928
        %3930 = vrot.lane.b32.xlu0 %v3922, 64
        %v3931 = vpop.permute.xlu0 %3930
        %3932 = vrot.lane.b32.xlu0 %v3923, 64
        %v3933 = vpop.permute.xlu0 %3932
        %3934 = vrot.lane.b32.xlu0 %v3924, 64
        %v3935 = vpop.permute.xlu0 %3934
        %3936 = vrot.lane.b32.xlu0 %v3925, 64
        %v3937 = vpop.permute.xlu0 %3936
        %vm3938 = vcmask 523264
        %v3939 = vsel %vm3938, %v3927, %v3929
        %v3940 = vsel %vm3938, %v3929, %v3931
        %v3941 = vsel %vm3938, %v3931, %v3933
        %v3942 = vsel %vm3938, %v3933, %v3935
        %v3943 = vsel %vm3938, %v3935, %v3937
        %3949 = vst [vmem:[#allocation2 + $0x9d8] sm:$0xff] %v3939
        %3950 = vst [vmem:[#allocation2 + $0x9e0] sm:$0xff] %v3940
        %3951 = vst [vmem:[#allocation2 + $0x9e8] sm:$0xff] %v3941
        %3952 = vst [vmem:[#allocation2 + $0x9f0] sm:$0xff] %v3942
        %3953 = vst [vmem:[#allocation2 + $0x9f8] sm:$0xff] %v3943
        %v3954 = vld [vmem:[%s230 + $0x1c] sm:$0xff]
        %v3955 = vld [vmem:[%s230 + $0x24] sm:$0xff]
        %v3956 = vld [vmem:[%s230 + $0x2c] sm:$0xff]
        %v3957 = vld [vmem:[%s230 + $0x50] sm:$0xff]
        %v3958 = vld [vmem:[%s230 + $0x58] sm:$0xff]
        %v3959 = vld [vmem:[%s230 + $0x60] sm:$0xff]
        %v3966 = vunpack.c.l.b16 %v3954
        %v3967 = vunpack.c.h.b16 %v3954
        %v3968 = vunpack.c.l.b16 %v3955
        %v3969 = vunpack.c.h.b16 %v3955
        %v3970 = vunpack.c.l.b16 %v3956
        %v3971 = vunpack.c.h.b16 %v3956
        %v3972 = vunpack.c.l.b16 %v3957
        %v3973 = vunpack.c.h.b16 %v3957
        %v3974 = vunpack.c.l.b16 %v3958
        %v3975 = vunpack.c.h.b16 %v3958
        %v3976 = vunpack.c.l.b16 %v3959
        %v3977 = vunpack.c.h.b16 %v3959
        %v3978 = vpack.c.b16 %v3972, %v3966
        %v3979 = vpack.c.b16 %v3973, %v3967
        %v3980 = vpack.c.b16 %v3974, %v3968
        %v3981 = vpack.c.b16 %v3975, %v3969
        %v3982 = vpack.c.b16 %v3976, %v3970
        %v3983 = vpack.c.b16 %v3977, %v3971
        %3984 = vrot.lane.b32.xlu0 %v3978, 58
        %v3985 = vpop.permute.xlu0 %3984
        %3986 = vrot.lane.b32.xlu0 %v3979, 58
        %v3987 = vpop.permute.xlu0 %3986
        %3988 = vrot.lane.b32.xlu0 %v3980, 58
        %v3989 = vpop.permute.xlu0 %3988
        %3990 = vrot.lane.b32.xlu0 %v3981, 58
        %v3991 = vpop.permute.xlu0 %3990
        %3992 = vrot.lane.b32.xlu0 %v3982, 58
        %v3993 = vpop.permute.xlu0 %3992
        %3994 = vrot.lane.b32.xlu0 %v3983, 58
        %v3995 = vpop.permute.xlu0 %3994
        %vm3996 = vcmask 474112
        %v3997 = vsel %vm3996, %v3985, %v3987
        %v3998 = vsel %vm3996, %v3987, %v3989
        %v3999 = vsel %vm3996, %v3989, %v3991
        %v4000 = vsel %vm3996, %v3991, %v3993
        %v4001 = vsel %vm3996, %v3993, %v3995
        %4007 = vst [vmem:[#allocation2 + $0xa00] sm:$0xff] %v3997
        %4008 = vst [vmem:[#allocation2 + $0xa08] sm:$0xff] %v3998
        %4009 = vst [vmem:[#allocation2 + $0xa10] sm:$0xff] %v3999
        %4010 = vst [vmem:[#allocation2 + $0xa18] sm:$0xff] %v4000
        %4011 = vst [vmem:[#allocation2 + $0xa20] sm:$0xff] %v4001
        %v4012 = vld [vmem:[%s230 + $0x1c] sm:$0xff]
        %v4013 = vld [vmem:[%s230 + $0x24] sm:$0xff]
        %v4014 = vld [vmem:[%s230 + $0x2c] sm:$0xff]
        %v4015 = vld [vmem:[%s230 + $0x50] sm:$0xff]
        %v4016 = vld [vmem:[%s230 + $0x58] sm:$0xff]
        %v4017 = vld [vmem:[%s230 + $0x60] sm:$0xff]
        %v4024 = vunpack.c.l.b16 %v4012
        %v4025 = vunpack.c.h.b16 %v4012
        %v4026 = vunpack.c.l.b16 %v4013
        %v4027 = vunpack.c.h.b16 %v4013
        %v4028 = vunpack.c.l.b16 %v4014
        %v4029 = vunpack.c.h.b16 %v4014
        %v4030 = vunpack.c.l.b16 %v4015
        %v4031 = vunpack.c.h.b16 %v4015
        %v4032 = vunpack.c.l.b16 %v4016
        %v4033 = vunpack.c.h.b16 %v4016
        %v4034 = vunpack.c.l.b16 %v4017
        %v4035 = vunpack.c.h.b16 %v4017
        %v4036 = vpack.c.b16 %v4030, %v4024
        %v4037 = vpack.c.b16 %v4031, %v4025
        %v4038 = vpack.c.b16 %v4032, %v4026
        %v4039 = vpack.c.b16 %v4033, %v4027
        %v4040 = vpack.c.b16 %v4034, %v4028
        %v4041 = vpack.c.b16 %v4035, %v4029
        %4042 = vrot.lane.b32.xlu0 %v4036, 52
        %v4043 = vpop.permute.xlu0 %4042
        %4044 = vrot.lane.b32.xlu0 %v4037, 52
        %v4045 = vpop.permute.xlu0 %4044
        %4046 = vrot.lane.b32.xlu0 %v4038, 52
        %v4047 = vpop.permute.xlu0 %4046
        %4048 = vrot.lane.b32.xlu0 %v4039, 52
        %v4049 = vpop.permute.xlu0 %4048
        %4050 = vrot.lane.b32.xlu0 %v4040, 52
        %v4051 = vpop.permute.xlu0 %4050
        %4052 = vrot.lane.b32.xlu0 %v4041, 52
        %v4053 = vpop.permute.xlu0 %4052
        %vm4054 = vcmask 424960
        %v4055 = vsel %vm4054, %v4043, %v4045
        %v4056 = vsel %vm4054, %v4045, %v4047
        %v4057 = vsel %vm4054, %v4047, %v4049
        %v4058 = vsel %vm4054, %v4049, %v4051
        %v4059 = vsel %vm4054, %v4051, %v4053
        %4065 = vst [vmem:[#allocation2 + $0xa28] sm:$0xff] %v4055
        %4066 = vst [vmem:[#allocation2 + $0xa30] sm:$0xff] %v4056
        %4067 = vst [vmem:[#allocation2 + $0xa38] sm:$0xff] %v4057
        %4068 = vst [vmem:[#allocation2 + $0xa40] sm:$0xff] %v4058
        %4069 = vst [vmem:[#allocation2 + $0xa48] sm:$0xff] %v4059
        %v4070 = vld [vmem:[%s230 + $0x1c] sm:$0xff]
        %v4071 = vld [vmem:[%s230 + $0x24] sm:$0xff]
        %v4072 = vld [vmem:[%s230 + $0x2c] sm:$0xff]
        %v4073 = vld [vmem:[%s230 + $0x50] sm:$0xff]
        %v4074 = vld [vmem:[%s230 + $0x58] sm:$0xff]
        %v4075 = vld [vmem:[%s230 + $0x60] sm:$0xff]
        %v4082 = vunpack.c.l.b16 %v4070
        %v4083 = vunpack.c.h.b16 %v4070
        %v4084 = vunpack.c.l.b16 %v4071
        %v4085 = vunpack.c.h.b16 %v4071
        %v4086 = vunpack.c.l.b16 %v4072
        %v4087 = vunpack.c.h.b16 %v4072
        %v4088 = vunpack.c.l.b16 %v4073
        %v4089 = vunpack.c.h.b16 %v4073
        %v4090 = vunpack.c.l.b16 %v4074
        %v4091 = vunpack.c.h.b16 %v4074
        %v4092 = vunpack.c.l.b16 %v4075
        %v4093 = vunpack.c.h.b16 %v4075
        %v4094 = vpack.c.b16 %v4088, %v4082
        %v4095 = vpack.c.b16 %v4089, %v4083
        %v4096 = vpack.c.b16 %v4090, %v4084
        %v4097 = vpack.c.b16 %v4091, %v4085
        %v4098 = vpack.c.b16 %v4092, %v4086
        %v4099 = vpack.c.b16 %v4093, %v4087
        %4100 = vrot.lane.b32.xlu0 %v4094, 46
        %v4101 = vpop.permute.xlu0 %4100
        %4102 = vrot.lane.b32.xlu0 %v4095, 46
        %v4103 = vpop.permute.xlu0 %4102
        %4104 = vrot.lane.b32.xlu0 %v4096, 46
        %v4105 = vpop.permute.xlu0 %4104
        %4106 = vrot.lane.b32.xlu0 %v4097, 46
        %v4107 = vpop.permute.xlu0 %4106
        %4108 = vrot.lane.b32.xlu0 %v4098, 46
        %v4109 = vpop.permute.xlu0 %4108
        %4110 = vrot.lane.b32.xlu0 %v4099, 46
        %v4111 = vpop.permute.xlu0 %4110
        %vm4112 = vcmask 375808
        %v4113 = vsel %vm4112, %v4101, %v4103
        %v4114 = vsel %vm4112, %v4103, %v4105
        %v4115 = vsel %vm4112, %v4105, %v4107
        %v4116 = vsel %vm4112, %v4107, %v4109
        %v4117 = vsel %vm4112, %v4109, %v4111
        %4123 = vst [vmem:[#allocation2 + $0xa50] sm:$0xff] %v4113
        %4124 = vst [vmem:[#allocation2 + $0xa58] sm:$0xff] %v4114
        %4125 = vst [vmem:[#allocation2 + $0xa60] sm:$0xff] %v4115
        %4126 = vst [vmem:[#allocation2 + $0xa68] sm:$0xff] %v4116
        %4127 = vst [vmem:[#allocation2 + $0xa70] sm:$0xff] %v4117
        %v4128 = vld [vmem:[%s230 + $0x1c] sm:$0xff]
        %v4129 = vld [vmem:[%s230 + $0x24] sm:$0xff]
        %v4130 = vld [vmem:[%s230 + $0x2c] sm:$0xff]
        %v4131 = vld [vmem:[%s230 + $0x50] sm:$0xff]
        %v4132 = vld [vmem:[%s230 + $0x58] sm:$0xff]
        %v4133 = vld [vmem:[%s230 + $0x60] sm:$0xff]
        %v4140 = vunpack.c.l.b16 %v4128
        %v4141 = vunpack.c.h.b16 %v4128
        %v4142 = vunpack.c.l.b16 %v4129
        %v4143 = vunpack.c.h.b16 %v4129
        %v4144 = vunpack.c.l.b16 %v4130
        %v4145 = vunpack.c.h.b16 %v4130
        %v4146 = vunpack.c.l.b16 %v4131
        %v4147 = vunpack.c.h.b16 %v4131
        %v4148 = vunpack.c.l.b16 %v4132
        %v4149 = vunpack.c.h.b16 %v4132
        %v4150 = vunpack.c.l.b16 %v4133
        %v4151 = vunpack.c.h.b16 %v4133
        %v4152 = vpack.c.b16 %v4146, %v4140
        %v4153 = vpack.c.b16 %v4147, %v4141
        %v4154 = vpack.c.b16 %v4148, %v4142
        %v4155 = vpack.c.b16 %v4149, %v4143
        %v4156 = vpack.c.b16 %v4150, %v4144
        %v4157 = vpack.c.b16 %v4151, %v4145
        %4158 = vrot.lane.b32.xlu0 %v4152, 40
        %v4159 = vpop.permute.xlu0 %4158
        %4160 = vrot.lane.b32.xlu0 %v4153, 40
        %v4161 = vpop.permute.xlu0 %4160
        %4162 = vrot.lane.b32.xlu0 %v4154, 40
        %v4163 = vpop.permute.xlu0 %4162
        %4164 = vrot.lane.b32.xlu0 %v4155, 40
        %v4165 = vpop.permute.xlu0 %4164
        %4166 = vrot.lane.b32.xlu0 %v4156, 40
        %v4167 = vpop.permute.xlu0 %4166
        %4168 = vrot.lane.b32.xlu0 %v4157, 40
        %v4169 = vpop.permute.xlu0 %4168
        %vm4170 = vcmask 326656
        %v4171 = vsel %vm4170, %v4159, %v4161
        %v4172 = vsel %vm4170, %v4161, %v4163
        %v4173 = vsel %vm4170, %v4163, %v4165
        %v4174 = vsel %vm4170, %v4165, %v4167
        %v4175 = vsel %vm4170, %v4167, %v4169
        %4181 = vst [vmem:[#allocation2 + $0xa78] sm:$0xff] %v4171
        %4182 = vst [vmem:[#allocation2 + $0xa80] sm:$0xff] %v4172
        %4183 = vst [vmem:[#allocation2 + $0xa88] sm:$0xff] %v4173
        %4184 = vst [vmem:[#allocation2 + $0xa90] sm:$0xff] %v4174
        %4185 = vst [vmem:[#allocation2 + $0xa98] sm:$0xff] %v4175
        %v4186 = vld [vmem:[%s2] sm:$0x1f]
        %v4187 = vld [vmem:[#allocation6] sm:$0xf]
        %v4188 = vld [vmem:[#allocation2] sm:$0xff]
        %v4189 = vld [vmem:[#allocation2 + $0x8] sm:$0xff]
        %v4190 = vld [vmem:[#allocation2 + $0x10] sm:$0xff]
        %v4191 = vld [vmem:[#allocation2 + $0x18] sm:$0xff]
        %v4192 = vld [vmem:[#allocation2 + $0x20] sm:$0xff]
        %v4193 = vld [vmem:[#allocation2 + $0x28] sm:$0xff]
        %v4194 = vld [vmem:[#allocation2 + $0x30] sm:$0xff]
        %v4195 = vld [vmem:[#allocation2 + $0x38] sm:$0xff]
        %v4196 = vld [vmem:[#allocation2 + $0x40] sm:$0xff]
        %v4197 = vld [vmem:[#allocation2 + $0x48] sm:$0xff]
        %v4198 = vld [vmem:[#allocation2 + $0x50] sm:$0xff]
        %v4199 = vld [vmem:[#allocation2 + $0x58] sm:$0xff]
        %v4200 = vld [vmem:[#allocation2 + $0x60] sm:$0xff]
        %v4201 = vld [vmem:[#allocation2 + $0x68] sm:$0xff]
        %v4202 = vld [vmem:[#allocation2 + $0x70] sm:$0xff]
        %v4203 = vld [vmem:[#allocation2 + $0x78] sm:$0xff]
        %v4204 = vld [vmem:[#allocation2 + $0x80] sm:$0xff]
        %v4205 = vld [vmem:[#allocation2 + $0x88] sm:$0xff]
        %v4206 = vld [vmem:[#allocation2 + $0x90] sm:$0xff]
        %v4207 = vld [vmem:[#allocation2 + $0x98] sm:$0xff]
        %v4208 = vld [vmem:[#allocation2 + $0xa0] sm:$0xff]
        %v4209 = vld [vmem:[#allocation2 + $0xa8] sm:$0xff]
        %v4210 = vld [vmem:[#allocation2 + $0xb0] sm:$0xff]
        %v4211 = vld [vmem:[#allocation2 + $0xb8] sm:$0xff]
        %v4212 = vld [vmem:[#allocation2 + $0xc0] sm:$0xff]
        %v4213 = vld [vmem:[#allocation2 + $0xc8] sm:$0xff]
        %v4214 = vld [vmem:[#allocation2 + $0xd0] sm:$0xff]
        %v4215 = vld [vmem:[#allocation2 + $0xd8] sm:$0xff]
        %v4216 = vld [vmem:[#allocation2 + $0xe0] sm:$0xff]
        %v4217 = vld [vmem:[#allocation2 + $0xe8] sm:$0xff]
        %v4218 = vld [vmem:[#allocation2 + $0xf0] sm:$0xff]
        %v4219 = vld [vmem:[#allocation2 + $0xf8] sm:$0xff]
        %v4220 = vld [vmem:[#allocation2 + $0x100] sm:$0xff]
        %v4221 = vld [vmem:[#allocation2 + $0x108] sm:$0xff]
        %v4222 = vld [vmem:[#allocation2 + $0x110] sm:$0xff]
        %v4223 = vld [vmem:[#allocation2 + $0x118] sm:$0xff]
        %v4224 = vld [vmem:[#allocation2 + $0x120] sm:$0xff]
        %v4225 = vld [vmem:[#allocation2 + $0x128] sm:$0xff]
        %v4226 = vld [vmem:[#allocation2 + $0x130] sm:$0xff]
        %v4227 = vld [vmem:[#allocation2 + $0x138] sm:$0xff]
        %v4228 = vld [vmem:[#allocation2 + $0x140] sm:$0xff]
        %v4229 = vld [vmem:[#allocation2 + $0x148] sm:$0xff]
        %v4230 = vld [vmem:[#allocation2 + $0x150] sm:$0xff]
        %v4231 = vld [vmem:[#allocation2 + $0x158] sm:$0xff]
        %v4232 = vld [vmem:[#allocation2 + $0x160] sm:$0xff]
        %v4235 = vunpack.c.l.s4 1983009808
        %v4236 = vunpack.c.0.s8 %v4235
        %v4237 = vlaneseq
        %v4238 = vshrl.u32 %v4237, 7
        %v4239 = vsub.s32 %v4236, %v4238
        %v4240 = vrot.slane %v4187, %v4239
        %v4241 = vcombine.high %v4240, %v4240
        %vm4243 = vcmask 130048
        %v4245 = vsel %vm4243, %v4241, 0
        %4247 = vmatprep.subr.bf16.mxu0 %v4189
        %4248 = vmatpush1.bf16.msra.mxu0 %v4188
        %4249 = vmatprep.subr.bf16.mxu0 %v4194
        %4250 = vmatpush1.bf16.msra.mxu0 %v4193
        %4251 = vmatprep.subr.bf16.mxu0 %v4199
        %4252 = vmatpush1.bf16.msra.mxu0 %v4198
        %4253 = vmatprep.subr.bf16.mxu0 %v4204
        %4254 = vmatpush1.bf16.msra.mxu0 %v4203
        %4255 = vmatprep.subr.bf16.mxu0 %v4209
        %4256 = vmatpush1.bf16.msra.mxu0 %v4208
        %4257 = vmatprep.subr.bf16.mxu0 %v4214
        %4258 = vmatpush1.bf16.msra.mxu0 %v4213
        %4259 = vmatprep.subr.bf16.mxu0 %v4219
        %4260 = vmatpush1.bf16.msra.mxu0 %v4218
        %4261 = vmatprep.subr.bf16.mxu0 %v4224
        %4262 = vmatpush1.bf16.msra.mxu0 %v4223
        %4263 = vmatprep.subr.bf16.mxu0 %v4229
        %4264 = vmatpush1.bf16.msra.mxu0 %v4228
        %4265 = vmatprep.subr.bf16.mxu0 0
        %4266 = vmatpush1.bf16.msra.mxu0 0
        %4267 = vmatprep.subr.bf16.mxu0 0
        %4268 = vmatpush1.bf16.msra.mxu0 0
        %4269 = vmatprep.subr.bf16.mxu0 0
        %4270 = vmatpush1.bf16.msra.mxu0 0
        %4271 = vmatprep.subr.bf16.mxu0 0
        %4272 = vmatpush1.bf16.msra.mxu0 0
        %4273 = vmatprep.subr.bf16.mxu0 0
        %4274 = vmatpush1.bf16.msra.mxu0 0
        %4275 = vmatprep.subr.bf16.mxu0 0
        %4276 = vmatpush1.bf16.msra.mxu0 0
        %4277 = vmatprep.subr.bf16.mxu0 0
        %4278 = vmatpush1.bf16.msra.mxu0 0
        %4279 = vmatprep.mubr.bf16.mxu0 %v4245
        %4280 = vmatmul.mubr.bf16.gmra.mrb[0].mxu0 %v4240
        %v4281 = vpop.f32.mrb[0].mxu0
        %v4282 = vadd.f32 0.0, %v4281
        %v4283 = vpop.f32.mrb[0].mxu0
        %v4284 = vadd.f32 0.0, %v4283
        %v4285 = vpop.f32.mrb[0].mxu0
        %v4286 = vpop.f32.mrb[0].mxu0
        %4287 = vdwg.mxu0
        %4288 = vmatprep.subr.bf16.mxu0 %v4191
        %4289 = vmatpush1.bf16.msra.mxu0 %v4190
        %4290 = vmatprep.subr.bf16.mxu0 %v4196
        %4291 = vmatpush1.bf16.msra.mxu0 %v4195
        %4292 = vmatprep.subr.bf16.mxu0 %v4201
        %4293 = vmatpush1.bf16.msra.mxu0 %v4200
        %4294 = vmatprep.subr.bf16.mxu0 %v4206
        %4295 = vmatpush1.bf16.msra.mxu0 %v4205
        %4296 = vmatprep.subr.bf16.mxu0 %v4211
        %4297 = vmatpush1.bf16.msra.mxu0 %v4210
        %4298 = vmatprep.subr.bf16.mxu0 %v4216
        %4299 = vmatpush1.bf16.msra.mxu0 %v4215
        %4300 = vmatprep.subr.bf16.mxu0 %v4221
        %4301 = vmatpush1.bf16.msra.mxu0 %v4220
        %4302 = vmatprep.subr.bf16.mxu0 %v4226
        %4303 = vmatpush1.bf16.msra.mxu0 %v4225
        %4304 = vmatprep.subr.bf16.mxu0 %v4231
        %4305 = vmatpush1.bf16.msra.mxu0 %v4230
        %4306 = vmatprep.subr.bf16.mxu0 0
        %4307 = vmatpush1.bf16.msra.mxu0 0
        %4308 = vmatprep.subr.bf16.mxu0 0
        %4309 = vmatpush1.bf16.msra.mxu0 0
        %4310 = vmatprep.subr.bf16.mxu0 0
        %4311 = vmatpush1.bf16.msra.mxu0 0
        %4312 = vmatprep.subr.bf16.mxu0 0
        %4313 = vmatpush1.bf16.msra.mxu0 0
        %4314 = vmatprep.subr.bf16.mxu0 0
        %4315 = vmatpush1.bf16.msra.mxu0 0
        %4316 = vmatprep.subr.bf16.mxu0 0
        %4317 = vmatpush1.bf16.msra.mxu0 0
        %4318 = vmatprep.subr.bf16.mxu0 0
        %4319 = vmatpush1.bf16.msra.mxu0 0
        %4320 = vmatprep.mubr.bf16.mxu0 %v4245
        %4321 = vmatmul.mubr.bf16.gmra.mrb[0].mxu0 %v4240
        %v4322 = vpop.f32.mrb[0].mxu0
        %v4323 = vadd.f32 0.0, %v4322
        %v4324 = vpop.f32.mrb[0].mxu0
        %v4325 = vadd.f32 0.0, %v4324
        %v4326 = vpop.f32.mrb[0].mxu0
        %v4327 = vpop.f32.mrb[0].mxu0
        %4328 = vdwg.mxu0
        %4329 = vmatprep.subr.bf16.mxu0 0
        %4330 = vmatpush1.bf16.msra.mxu0 %v4192
        %4331 = vmatprep.subr.bf16.mxu0 0
        %4332 = vmatpush1.bf16.msra.mxu0 %v4197
        %4333 = vmatprep.subr.bf16.mxu0 0
        %4334 = vmatpush1.bf16.msra.mxu0 %v4202
        %4335 = vmatprep.subr.bf16.mxu0 0
        %4336 = vmatpush1.bf16.msra.mxu0 %v4207
        %4337 = vmatprep.subr.bf16.mxu0 0
        %4338 = vmatpush1.bf16.msra.mxu0 %v4212
        %4339 = vmatprep.subr.bf16.mxu0 0
        %4340 = vmatpush1.bf16.msra.mxu0 %v4217
        %4341 = vmatprep.subr.bf16.mxu0 0
        %4342 = vmatpush1.bf16.msra.mxu0 %v4222
        %4343 = vmatprep.subr.bf16.mxu0 0
        %4344 = vmatpush1.bf16.msra.mxu0 %v4227
        %4345 = vmatprep.subr.bf16.mxu0 0
        %4346 = vmatpush1.bf16.msra.mxu0 %v4232
        %4347 = vmatprep.subr.bf16.mxu0 0
        %4348 = vmatpush1.bf16.msra.mxu0 0
        %4349 = vmatprep.subr.bf16.mxu0 0
        %4350 = vmatpush1.bf16.msra.mxu0 0
        %4351 = vmatprep.subr.bf16.mxu0 0
        %4352 = vmatpush1.bf16.msra.mxu0 0
        %4353 = vmatprep.subr.bf16.mxu0 0
        %4354 = vmatpush1.bf16.msra.mxu0 0
        %4355 = vmatprep.subr.bf16.mxu0 0
        %4356 = vmatpush1.bf16.msra.mxu0 0
        %4357 = vmatprep.subr.bf16.mxu0 0
        %4358 = vmatpush1.bf16.msra.mxu0 0
        %4359 = vmatprep.subr.bf16.mxu0 0
        %4360 = vmatpush1.bf16.msra.mxu0 0
        %4361 = vmatprep.mubr.bf16.mxu0 %v4245
        %4362 = vmatmul.mubr.bf16.gmra.mrb[0].mxu0 %v4240
        %v4363 = vpop.f32.mrb[0].mxu0
        %v4364 = vadd.f32 0.0, %v4363
        %v4365 = vpop.f32.mrb[0].mxu0
        %v4366 = vpop.f32.mrb[0].mxu0
        %v4367 = vpop.f32.mrb[0].mxu0
        %4368 = vdwg.mxu0
        %v4369 = vpack.c.bf16 %v4282, %v4282
        %v4370 = vpack.c.bf16 %v4284, %v4284
        %v4371 = vpack.c.bf16 %v4323, %v4323
        %v4372 = vpack.c.bf16 %v4325, %v4325
        %v4373 = vpack.c.bf16 %v4364, %v4364
        %v4379 = vcombine.low %v4369, %v4370
        %v4380 = vcombine.low %v4371, %v4372
        %v4382 = vunpack.c.l.s4 1983009808
        %v4383 = vunpack.c.0.s8 %v4382
        %v4384 = vlaneseq
        %v4385 = vshrl.u32 %v4384, 7
        %v4386 = vsub.s32 %v4383, %v4385
        %v4387 = vrot.slane %v4379, %v4386
        %v4389 = vunpack.c.l.s4 1983009808
        %v4390 = vunpack.c.0.s8 %v4389
        %v4391 = vlaneseq
        %v4392 = vshrl.u32 %v4391, 7
        %v4393 = vsub.s32 %v4390, %v4392
        %v4394 = vrot.slane %v4380, %v4393
        %v4395 = vcombine.low %v4387, %v4394
        %v4397 = vunpack.c.l.s4 1983009808
        %v4398 = vunpack.c.0.s8 %v4397
        %v4399 = vlaneseq
        %v4400 = vshrl.u32 %v4399, 7
        %v4401 = vsub.s32 %v4398, %v4400
        %v4402 = vrot.slane %v4373, %v4401
        %4405 = vst [vmem:[%s256] sm:$0xff] %v4395
        %4406 = vst [vmem:[%s256 + $0x8] sm:$0x3] %v4402
        %v4408 = vlaneseq
        %v4409 = vshrl.u32 %v4408, 7
        %v4410 = vsub.s32 0, %v4409
        %v4411 = vrot.slane %v4186, %v4410
        %v4412 = vlaneseq
        %v4413 = vshrl.u32 %v4412, 7
        %v4414 = vsub.s32 1, %v4413
        %v4415 = vrot.slane %v4186, %v4414
        %v4416 = vlaneseq
        %v4417 = vshrl.u32 %v4416, 7
        %v4418 = vsub.s32 2, %v4417
        %v4419 = vrot.slane %v4186, %v4418
        %v4420 = vlaneseq
        %v4421 = vshrl.u32 %v4420, 7
        %v4422 = vsub.s32 3, %v4421
        %v4423 = vrot.slane %v4186, %v4422
        %v4424 = vlaneseq
        %v4425 = vshrl.u32 %v4424, 7
        %v4426 = vsub.s32 4, %v4425
        %v4427 = vrot.slane %v4186, %v4426
        %v4433 = vmul.f32 %v4282, %v4411
        %v4434 = vmul.f32 %v4284, %v4415
        %v4435 = vmul.f32 %v4323, %v4419
        %v4436 = vmul.f32 %v4325, %v4423
        %v4437 = vmul.f32 %v4364, %v4427
        %vm4438 = vcmask 1043456
        %v4439 = vsel %vm4438, %v4433, 0.0
        %v4440 = vsel %vm4438, %v4434, 0.0
        %v4441 = vadd.f32 %v4439, %v4440
        %v4442 = vsel %vm4438, %v4435, 0.0
        %v4443 = vadd.f32 %v4441, %v4442
        %v4444 = vsel %vm4438, %v4436, 0.0
        %v4445 = vadd.f32 %v4443, %v4444
        %v4446 = vsel %vm4438, %v4437, 0.0
        %v4447 = vadd.f32 %v4445, %v4446
        %4448 = vadd.xlane.f32.xlu0 %v4447
        %v4449 = vpop.xlane.xlu0 %4448
        %vm4450 = vcmask 3072
        %4451 = vst.msk [vmem:[%s275] sm:$0xf] %vm4450, %v4449
        %v4452 = vmul.f32 %v4433, %v4282
        %v4453 = vmul.f32 %v4434, %v4284
        %v4454 = vmul.f32 %v4435, %v4323
        %v4455 = vmul.f32 %v4436, %v4325
        %v4456 = vmul.f32 %v4437, %v4364
        %v4457 = vsel %vm4438, %v4452, 0.0
        %v4458 = vsel %vm4438, %v4453, 0.0
        %v4459 = vadd.f32 %v4457, %v4458
        %v4460 = vsel %vm4438, %v4454, 0.0
        %v4461 = vadd.f32 %v4459, %v4460
        %v4462 = vsel %vm4438, %v4455, 0.0
        %v4463 = vadd.f32 %v4461, %v4462
        %v4464 = vsel %vm4438, %v4456, 0.0
        %v4465 = vadd.f32 %v4463, %v4464
        %4466 = vadd.xlane.f32.xlu0 %v4465
        %v4467 = vpop.xlane.xlu0 %4466
        %4468 = vst.msk [vmem:[%s280] sm:$0xf] %vm4450, %v4467
        %v4469 = vld [vmem:[#allocation6 + $0x2] sm:$0xf]
        %v4470 = vld [vmem:[#allocation2 + $0x168] sm:$0xff]
        %v4471 = vld [vmem:[#allocation2 + $0x170] sm:$0xff]
        %v4472 = vld [vmem:[#allocation2 + $0x178] sm:$0xff]
        %v4473 = vld [vmem:[#allocation2 + $0x180] sm:$0xff]
        %v4474 = vld [vmem:[#allocation2 + $0x188] sm:$0xff]
        %v4475 = vld [vmem:[#allocation2 + $0x190] sm:$0xff]
        %v4476 = vld [vmem:[#allocation2 + $0x198] sm:$0xff]
        %v4477 = vld [vmem:[#allocation2 + $0x1a0] sm:$0xff]
        %v4478 = vld [vmem:[#allocation2 + $0x1a8] sm:$0xff]
        %v4479 = vld [vmem:[#allocation2 + $0x1b0] sm:$0xff]
        %v4480 = vld [vmem:[#allocation2 + $0x1b8] sm:$0xff]
        %v4481 = vld [vmem:[#allocation2 + $0x1c0] sm:$0xff]
        %v4482 = vld [vmem:[#allocation2 + $0x1c8] sm:$0xff]
        %v4483 = vld [vmem:[#allocation2 + $0x1d0] sm:$0xff]
        %v4484 = vld [vmem:[#allocation2 + $0x1d8] sm:$0xff]
        %v4485 = vld [vmem:[#allocation2 + $0x1e0] sm:$0xff]
        %v4486 = vld [vmem:[#allocation2 + $0x1e8] sm:$0xff]
        %v4487 = vld [vmem:[#allocation2 + $0x1f0] sm:$0xff]
        %v4488 = vld [vmem:[#allocation2 + $0x1f8] sm:$0xff]
        %v4489 = vld [vmem:[#allocation2 + $0x200] sm:$0xff]
        %v4490 = vld [vmem:[#allocation2 + $0x208] sm:$0xff]
        %v4491 = vld [vmem:[#allocation2 + $0x210] sm:$0xff]
        %v4492 = vld [vmem:[#allocation2 + $0x218] sm:$0xff]
        %v4493 = vld [vmem:[#allocation2 + $0x220] sm:$0xff]
        %v4494 = vld [vmem:[#allocation2 + $0x228] sm:$0xff]
        %v4495 = vld [vmem:[#allocation2 + $0x230] sm:$0xff]
        %v4496 = vld [vmem:[#allocation2 + $0x238] sm:$0xff]
        %v4497 = vld [vmem:[#allocation2 + $0x240] sm:$0xff]
        %v4498 = vld [vmem:[#allocation2 + $0x248] sm:$0xff]
        %v4499 = vld [vmem:[#allocation2 + $0x250] sm:$0xff]
        %v4500 = vld [vmem:[#allocation2 + $0x258] sm:$0xff]
        %v4501 = vld [vmem:[#allocation2 + $0x260] sm:$0xff]
        %v4502 = vld [vmem:[#allocation2 + $0x268] sm:$0xff]
        %v4503 = vld [vmem:[#allocation2 + $0x270] sm:$0xff]
        %v4504 = vld [vmem:[#allocation2 + $0x278] sm:$0xff]
        %v4505 = vld [vmem:[#allocation2 + $0x280] sm:$0xff]
        %v4506 = vld [vmem:[#allocation2 + $0x288] sm:$0xff]
        %v4507 = vld [vmem:[#allocation2 + $0x290] sm:$0xff]
        %v4508 = vld [vmem:[#allocation2 + $0x298] sm:$0xff]
        %v4509 = vld [vmem:[#allocation2 + $0x2a0] sm:$0xff]
        %v4510 = vld [vmem:[#allocation2 + $0x2a8] sm:$0xff]
        %v4511 = vld [vmem:[#allocation2 + $0x2b0] sm:$0xff]
        %v4512 = vld [vmem:[#allocation2 + $0x2b8] sm:$0xff]
        %v4513 = vld [vmem:[#allocation2 + $0x2c0] sm:$0xff]
        %v4514 = vld [vmem:[#allocation2 + $0x2c8] sm:$0xff]
        %v4517 = vunpack.c.l.s4 1983009808
        %v4518 = vunpack.c.0.s8 %v4517
        %v4519 = vlaneseq
        %v4520 = vshrl.u32 %v4519, 7
        %v4521 = vsub.s32 %v4518, %v4520
        %v4522 = vrot.slane %v4469, %v4521
        %v4523 = vcombine.high %v4522, %v4522
        %4524 = vrot.lane.b32.xlu0 %v4522, 112
        %v4525 = vpop.permute.xlu0 %4524
        %4526 = vrot.lane.b32.xlu0 %v4523, 112
        %v4527 = vpop.permute.xlu0 %4526
        %vm4528 = vcmask 916480
        %v4529 = vsel %vm4528, %v4525, %v4527
        %v4532 = vsel %vm4243, %v4527, 0
        %4534 = vmatprep.subr.bf16.mxu0 %v4471
        %4535 = vmatpush1.bf16.msra.mxu0 %v4470
        %4536 = vmatprep.subr.bf16.mxu0 %v4476
        %4537 = vmatpush1.bf16.msra.mxu0 %v4475
        %4538 = vmatprep.subr.bf16.mxu0 %v4481
        %4539 = vmatpush1.bf16.msra.mxu0 %v4480
        %4540 = vmatprep.subr.bf16.mxu0 %v4486
        %4541 = vmatpush1.bf16.msra.mxu0 %v4485
        %4542 = vmatprep.subr.bf16.mxu0 %v4491
        %4543 = vmatpush1.bf16.msra.mxu0 %v4490
        %4544 = vmatprep.subr.bf16.mxu0 %v4496
        %4545 = vmatpush1.bf16.msra.mxu0 %v4495
        %4546 = vmatprep.subr.bf16.mxu0 %v4501
        %4547 = vmatpush1.bf16.msra.mxu0 %v4500
        %4548 = vmatprep.subr.bf16.mxu0 %v4506
        %4549 = vmatpush1.bf16.msra.mxu0 %v4505
        %4550 = vmatprep.subr.bf16.mxu0 %v4511
        %4551 = vmatpush1.bf16.msra.mxu0 %v4510
        %4552 = vmatprep.subr.bf16.mxu0 0
        %4553 = vmatpush1.bf16.msra.mxu0 0
        %4554 = vmatprep.subr.bf16.mxu0 0
        %4555 = vmatpush1.bf16.msra.mxu0 0
        %4556 = vmatprep.subr.bf16.mxu0 0
        %4557 = vmatpush1.bf16.msra.mxu0 0
        %4558 = vmatprep.subr.bf16.mxu0 0
        %4559 = vmatpush1.bf16.msra.mxu0 0
        %4560 = vmatprep.subr.bf16.mxu0 0
        %4561 = vmatpush1.bf16.msra.mxu0 0
        %4562 = vmatprep.subr.bf16.mxu0 0
        %4563 = vmatpush1.bf16.msra.mxu0 0
        %4564 = vmatprep.subr.bf16.mxu0 0
        %4565 = vmatpush1.bf16.msra.mxu0 0
        %4566 = vmatprep.mubr.bf16.mxu0 %v4532
        %4567 = vmatmul.mubr.bf16.gmra.mrb[0].mxu0 %v4529
        %v4568 = vpop.f32.mrb[0].mxu0
        %v4569 = vadd.f32 0.0, %v4568
        %v4570 = vpop.f32.mrb[0].mxu0
        %v4571 = vadd.f32 0.0, %v4570
        %v4572 = vpop.f32.mrb[0].mxu0
        %v4573 = vpop.f32.mrb[0].mxu0
        %4574 = vdwg.mxu0
        %4575 = vmatprep.subr.bf16.mxu0 %v4473
        %4576 = vmatpush1.bf16.msra.mxu0 %v4472
        %4577 = vmatprep.subr.bf16.mxu0 %v4478
        %4578 = vmatpush1.bf16.msra.mxu0 %v4477
        %4579 = vmatprep.subr.bf16.mxu0 %v4483
        %4580 = vmatpush1.bf16.msra.mxu0 %v4482
        %4581 = vmatprep.subr.bf16.mxu0 %v4488
        %4582 = vmatpush1.bf16.msra.mxu0 %v4487
        %4583 = vmatprep.subr.bf16.mxu0 %v4493
        %4584 = vmatpush1.bf16.msra.mxu0 %v4492
        %4585 = vmatprep.subr.bf16.mxu0 %v4498
        %4586 = vmatpush1.bf16.msra.mxu0 %v4497
        %4587 = vmatprep.subr.bf16.mxu0 %v4503
        %4588 = vmatpush1.bf16.msra.mxu0 %v4502
        %4589 = vmatprep.subr.bf16.mxu0 %v4508
        %4590 = vmatpush1.bf16.msra.mxu0 %v4507
        %4591 = vmatprep.subr.bf16.mxu0 %v4513
        %4592 = vmatpush1.bf16.msra.mxu0 %v4512
        %4593 = vmatprep.subr.bf16.mxu0 0
        %4594 = vmatpush1.bf16.msra.mxu0 0
        %4595 = vmatprep.subr.bf16.mxu0 0
        %4596 = vmatpush1.bf16.msra.mxu0 0
        %4597 = vmatprep.subr.bf16.mxu0 0
        %4598 = vmatpush1.bf16.msra.mxu0 0
        %4599 = vmatprep.subr.bf16.mxu0 0
        %4600 = vmatpush1.bf16.msra.mxu0 0
        %4601 = vmatprep.subr.bf16.mxu0 0
        %4602 = vmatpush1.bf16.msra.mxu0 0
        %4603 = vmatprep.subr.bf16.mxu0 0
        %4604 = vmatpush1.bf16.msra.mxu0 0
        %4605 = vmatprep.subr.bf16.mxu0 0
        %4606 = vmatpush1.bf16.msra.mxu0 0
        %4607 = vmatprep.mubr.bf16.mxu0 %v4532
        %4608 = vmatmul.mubr.bf16.gmra.mrb[0].mxu0 %v4529
        %v4609 = vpop.f32.mrb[0].mxu0
        %v4610 = vadd.f32 0.0, %v4609
        %v4611 = vpop.f32.mrb[0].mxu0
        %v4612 = vadd.f32 0.0, %v4611
        %v4613 = vpop.f32.mrb[0].mxu0
        %v4614 = vpop.f32.mrb[0].mxu0
        %4615 = vdwg.mxu0
        %4616 = vmatprep.subr.bf16.mxu0 0
        %4617 = vmatpush1.bf16.msra.mxu0 %v4474
        %4618 = vmatprep.subr.bf16.mxu0 0
        %4619 = vmatpush1.bf16.msra.mxu0 %v4479
        %4620 = vmatprep.subr.bf16.mxu0 0
        %4621 = vmatpush1.bf16.msra.mxu0 %v4484
        %4622 = vmatprep.subr.bf16.mxu0 0
        %4623 = vmatpush1.bf16.msra.mxu0 %v4489
        %4624 = vmatprep.subr.bf16.mxu0 0
        %4625 = vmatpush1.bf16.msra.mxu0 %v4494
        %4626 = vmatprep.subr.bf16.mxu0 0
        %4627 = vmatpush1.bf16.msra.mxu0 %v4499
        %4628 = vmatprep.subr.bf16.mxu0 0
        %4629 = vmatpush1.bf16.msra.mxu0 %v4504
        %4630 = vmatprep.subr.bf16.mxu0 0
        %4631 = vmatpush1.bf16.msra.mxu0 %v4509
        %4632 = vmatprep.subr.bf16.mxu0 0
        %4633 = vmatpush1.bf16.msra.mxu0 %v4514
        %4634 = vmatprep.subr.bf16.mxu0 0
        %4635 = vmatpush1.bf16.msra.mxu0 0
        %4636 = vmatprep.subr.bf16.mxu0 0
        %4637 = vmatpush1.bf16.msra.mxu0 0
        %4638 = vmatprep.subr.bf16.mxu0 0
        %4639 = vmatpush1.bf16.msra.mxu0 0
        %4640 = vmatprep.subr.bf16.mxu0 0
        %4641 = vmatpush1.bf16.msra.mxu0 0
        %4642 = vmatprep.subr.bf16.mxu0 0
        %4643 = vmatpush1.bf16.msra.mxu0 0
        %4644 = vmatprep.subr.bf16.mxu0 0
        %4645 = vmatpush1.bf16.msra.mxu0 0
        %4646 = vmatprep.subr.bf16.mxu0 0
        %4647 = vmatpush1.bf16.msra.mxu0 0
        %4648 = vmatprep.mubr.bf16.mxu0 %v4532
        %4649 = vmatmul.mubr.bf16.gmra.mrb[0].mxu0 %v4529
        %v4650 = vpop.f32.mrb[0].mxu0
        %v4651 = vadd.f32 0.0, %v4650
        %v4652 = vpop.f32.mrb[0].mxu0
        %v4653 = vpop.f32.mrb[0].mxu0
        %v4654 = vpop.f32.mrb[0].mxu0
        %4655 = vdwg.mxu0
        %v4656 = vpack.c.bf16 %v4569, %v4569
        %v4657 = vpack.c.bf16 %v4571, %v4571
        %v4658 = vpack.c.bf16 %v4610, %v4610
        %v4659 = vpack.c.bf16 %v4612, %v4612
        %v4660 = vpack.c.bf16 %v4651, %v4651
        %v4666 = vcombine.low %v4656, %v4657
        %v4667 = vcombine.low %v4658, %v4659
        %v4669 = vunpack.c.l.s4 1983009808
        %v4670 = vunpack.c.0.s8 %v4669
        %v4671 = vlaneseq
        %v4672 = vshrl.u32 %v4671, 7
        %v4673 = vsub.s32 %v4670, %v4672
        %v4674 = vrot.slane %v4666, %v4673
        %v4676 = vunpack.c.l.s4 1983009808
        %v4677 = vunpack.c.0.s8 %v4676
        %v4678 = vlaneseq
        %v4679 = vshrl.u32 %v4678, 7
        %v4680 = vsub.s32 %v4677, %v4679
        %v4681 = vrot.slane %v4667, %v4680
        %v4682 = vcombine.low %v4674, %v4681
        %v4684 = vunpack.c.l.s4 1983009808
        %v4685 = vunpack.c.0.s8 %v4684
        %v4686 = vlaneseq
        %v4687 = vshrl.u32 %v4686, 7
        %v4688 = vsub.s32 %v4685, %v4687
        %v4689 = vrot.slane %v4660, %v4688
        %s4692 = scalar_lea.vmem %s256, 10 [#allocation8]
        %4693 = vst [vmem:[%s4692] sm:$0xff] %v4682
        %4694 = vst [vmem:[%s4692 + $0x8] sm:$0x3] %v4689
        %v4695 = vmul.f32 %v4569, %v4411
        %v4696 = vmul.f32 %v4571, %v4415
        %v4697 = vmul.f32 %v4610, %v4419
        %v4698 = vmul.f32 %v4612, %v4423
        %v4699 = vmul.f32 %v4651, %v4427
        %v4700 = vsel %vm4438, %v4695, 0.0
        %v4701 = vsel %vm4438, %v4696, 0.0
        %v4702 = vadd.f32 %v4700, %v4701
        %v4703 = vsel %vm4438, %v4697, 0.0
        %v4704 = vadd.f32 %v4702, %v4703
        %v4705 = vsel %vm4438, %v4698, 0.0
        %v4706 = vadd.f32 %v4704, %v4705
        %v4707 = vsel %vm4438, %v4699, 0.0
        %v4708 = vadd.f32 %v4706, %v4707
        %4709 = vadd.xlane.f32.xlu0 %v4708
        %v4710 = vpop.xlane.xlu0 %4709
        %s4711 = scalar_lea.vmem %s275, 4
        %4712 = vst.msk [vmem:[%s4711] sm:$0xf] %vm4450, %v4710
        %v4713 = vmul.f32 %v4695, %v4569
        %v4714 = vmul.f32 %v4696, %v4571
        %v4715 = vmul.f32 %v4697, %v4610
        %v4716 = vmul.f32 %v4698, %v4612
        %v4717 = vmul.f32 %v4699, %v4651
        %v4718 = vsel %vm4438, %v4713, 0.0
        %v4719 = vsel %vm4438, %v4714, 0.0
        %v4720 = vadd.f32 %v4718, %v4719
        %v4721 = vsel %vm4438, %v4715, 0.0
        %v4722 = vadd.f32 %v4720, %v4721
        %v4723 = vsel %vm4438, %v4716, 0.0
        %v4724 = vadd.f32 %v4722, %v4723
        %v4725 = vsel %vm4438, %v4717, 0.0
        %v4726 = vadd.f32 %v4724, %v4725
        %4727 = vadd.xlane.f32.xlu0 %v4726
        %v4728 = vpop.xlane.xlu0 %4727
        %s4729 = scalar_lea.vmem %s280, 4
        %4730 = vst.msk [vmem:[%s4729] sm:$0xf] %vm4450, %v4728
        %v4731 = vld [vmem:[#allocation6 + $0x4] sm:$0xff]
        %v4732 = vld [vmem:[#allocation2 + $0x2d0] sm:$0xff]
        %v4733 = vld [vmem:[#allocation2 + $0x2d8] sm:$0xff]
        %v4734 = vld [vmem:[#allocation2 + $0x2e0] sm:$0xff]
        %v4735 = vld [vmem:[#allocation2 + $0x2e8] sm:$0xff]
        %v4736 = vld [vmem:[#allocation2 + $0x2f0] sm:$0xff]
        %v4737 = vld [vmem:[#allocation2 + $0x2f8] sm:$0xff]
        %v4738 = vld [vmem:[#allocation2 + $0x300] sm:$0xff]
        %v4739 = vld [vmem:[#allocation2 + $0x308] sm:$0xff]
        %v4740 = vld [vmem:[#allocation2 + $0x310] sm:$0xff]
        %v4741 = vld [vmem:[#allocation2 + $0x318] sm:$0xff]
        %v4742 = vld [vmem:[#allocation2 + $0x320] sm:$0xff]
        %v4743 = vld [vmem:[#allocation2 + $0x328] sm:$0xff]
        %v4744 = vld [vmem:[#allocation2 + $0x330] sm:$0xff]
        %v4745 = vld [vmem:[#allocation2 + $0x338] sm:$0xff]
        %v4746 = vld [vmem:[#allocation2 + $0x340] sm:$0xff]
        %v4747 = vld [vmem:[#allocation2 + $0x348] sm:$0xff]
        %v4748 = vld [vmem:[#allocation2 + $0x350] sm:$0xff]
        %v4749 = vld [vmem:[#allocation2 + $0x358] sm:$0xff]
        %v4750 = vld [vmem:[#allocation2 + $0x360] sm:$0xff]
        %v4751 = vld [vmem:[#allocation2 + $0x368] sm:$0xff]
        %v4752 = vld [vmem:[#allocation2 + $0x370] sm:$0xff]
        %v4753 = vld [vmem:[#allocation2 + $0x378] sm:$0xff]
        %v4754 = vld [vmem:[#allocation2 + $0x380] sm:$0xff]
        %v4755 = vld [vmem:[#allocation2 + $0x388] sm:$0xff]
        %v4756 = vld [vmem:[#allocation2 + $0x390] sm:$0xff]
        %v4757 = vld [vmem:[#allocation2 + $0x398] sm:$0xff]
        %v4758 = vld [vmem:[#allocation2 + $0x3a0] sm:$0xff]
        %v4759 = vld [vmem:[#allocation2 + $0x3a8] sm:$0xff]
        %v4760 = vld [vmem:[#allocation2 + $0x3b0] sm:$0xff]
        %v4761 = vld [vmem:[#allocation2 + $0x3b8] sm:$0xff]
        %v4762 = vld [vmem:[#allocation2 + $0x3c0] sm:$0xff]
        %v4763 = vld [vmem:[#allocation2 + $0x3c8] sm:$0xff]
        %v4764 = vld [vmem:[#allocation2 + $0x3d0] sm:$0xff]
        %v4765 = vld [vmem:[#allocation2 + $0x3d8] sm:$0xff]
        %v4766 = vld [vmem:[#allocation2 + $0x3e0] sm:$0xff]
        %v4767 = vld [vmem:[#allocation2 + $0x3e8] sm:$0xff]
        %v4768 = vld [vmem:[#allocation2 + $0x3f0] sm:$0xff]
        %v4769 = vld [vmem:[#allocation2 + $0x3f8] sm:$0xff]
        %v4770 = vld [vmem:[#allocation2 + $0x400] sm:$0xff]
        %v4771 = vld [vmem:[#allocation2 + $0x408] sm:$0xff]
        %v4772 = vld [vmem:[#allocation2 + $0x410] sm:$0xff]
        %v4773 = vld [vmem:[#allocation2 + $0x418] sm:$0xff]
        %v4774 = vld [vmem:[#allocation2 + $0x420] sm:$0xff]
        %v4775 = vld [vmem:[#allocation2 + $0x428] sm:$0xff]
        %v4776 = vld [vmem:[#allocation2 + $0x430] sm:$0xff]
        %v4777 = vld [vmem:[#allocation2 + $0x438] sm:$0xff]
        %v4778 = vld [vmem:[#allocation2 + $0x440] sm:$0xff]
        %v4779 = vld [vmem:[#allocation2 + $0x448] sm:$0xff]
        %v4780 = vld [vmem:[#allocation2 + $0x450] sm:$0xff]
        %v4781 = vld [vmem:[#allocation2 + $0x458] sm:$0xff]
        %v4782 = vld [vmem:[#allocation2 + $0x460] sm:$0xff]
        %v4783 = vld [vmem:[#allocation2 + $0x468] sm:$0xff]
        %v4784 = vld [vmem:[#allocation2 + $0x470] sm:$0xff]
        %v4785 = vld [vmem:[#allocation2 + $0x478] sm:$0xff]
        %v4786 = vld [vmem:[#allocation2 + $0x480] sm:$0xff]
        %v4787 = vld [vmem:[#allocation2 + $0x488] sm:$0xff]
        %v4788 = vld [vmem:[#allocation2 + $0x490] sm:$0xff]
        %v4789 = vld [vmem:[#allocation2 + $0x498] sm:$0xff]
        %v4790 = vld [vmem:[#allocation2 + $0x4a0] sm:$0xff]
        %v4791 = vld [vmem:[#allocation2 + $0x4a8] sm:$0xff]
        %v4792 = vld [vmem:[#allocation2 + $0x4b0] sm:$0xff]
        %v4793 = vld [vmem:[#allocation2 + $0x4b8] sm:$0xff]
        %v4794 = vld [vmem:[#allocation2 + $0x4c0] sm:$0xff]
        %v4795 = vld [vmem:[#allocation2 + $0x4c8] sm:$0xff]
        %v4796 = vld [vmem:[#allocation2 + $0x4d0] sm:$0xff]
        %v4797 = vld [vmem:[#allocation2 + $0x4d8] sm:$0xff]
        %v4798 = vld [vmem:[#allocation2 + $0x4e0] sm:$0xff]
        %v4799 = vld [vmem:[#allocation2 + $0x4e8] sm:$0xff]
        %v4800 = vld [vmem:[#allocation2 + $0x4f0] sm:$0xff]
        %v4801 = vld [vmem:[#allocation2 + $0x4f8] sm:$0xff]
        %v4802 = vld [vmem:[#allocation2 + $0x500] sm:$0xff]
        %v4803 = vld [vmem:[#allocation2 + $0x508] sm:$0xff]
        %v4804 = vld [vmem:[#allocation2 + $0x510] sm:$0xff]
        %v4805 = vld [vmem:[#allocation2 + $0x518] sm:$0xff]
        %v4806 = vld [vmem:[#allocation2 + $0x520] sm:$0xff]
        %v4807 = vld [vmem:[#allocation2 + $0x528] sm:$0xff]
        %v4808 = vld [vmem:[#allocation2 + $0x530] sm:$0xff]
        %v4809 = vld [vmem:[#allocation2 + $0x538] sm:$0xff]
        %v4810 = vld [vmem:[#allocation2 + $0x540] sm:$0xff]
        %v4811 = vld [vmem:[#allocation2 + $0x548] sm:$0xff]
        %v4812 = vld [vmem:[#allocation2 + $0x550] sm:$0xff]
        %v4813 = vld [vmem:[#allocation2 + $0x558] sm:$0xff]
        %v4814 = vld [vmem:[#allocation2 + $0x560] sm:$0xff]
        %v4815 = vld [vmem:[#allocation2 + $0x568] sm:$0xff]
        %v4816 = vld [vmem:[#allocation2 + $0x570] sm:$0xff]
        %v4817 = vld [vmem:[#allocation2 + $0x578] sm:$0xff]
        %v4818 = vld [vmem:[#allocation2 + $0x580] sm:$0xff]
        %v4819 = vld [vmem:[#allocation2 + $0x588] sm:$0xff]
        %v4820 = vld [vmem:[#allocation2 + $0x590] sm:$0xff]
        %v4821 = vld [vmem:[#allocation2 + $0x598] sm:$0xff]
        %v4822 = vld [vmem:[#allocation2 + $0x5a0] sm:$0xff]
        %v4823 = vld [vmem:[#allocation2 + $0x5a8] sm:$0xff]
        %v4824 = vld [vmem:[#allocation2 + $0x5b0] sm:$0xff]
        %v4825 = vld [vmem:[#allocation2 + $0x5b8] sm:$0xff]
        %v4826 = vld [vmem:[#allocation2 + $0x5c0] sm:$0xff]
        %v4827 = vld [vmem:[#allocation2 + $0x5c8] sm:$0xff]
        %v4828 = vld [vmem:[#allocation2 + $0x5d0] sm:$0xff]
        %v4829 = vld [vmem:[#allocation2 + $0x5d8] sm:$0xff]
        %v4830 = vld [vmem:[#allocation2 + $0x5e0] sm:$0xff]
        %v4831 = vld [vmem:[#allocation2 + $0x5e8] sm:$0xff]
        %v4832 = vld [vmem:[#allocation2 + $0x5f0] sm:$0xff]
        %v4833 = vld [vmem:[#allocation2 + $0x5f8] sm:$0xff]
        %v4834 = vld [vmem:[#allocation2 + $0x600] sm:$0xff]
        %v4835 = vld [vmem:[#allocation2 + $0x608] sm:$0xff]
        %v4836 = vld [vmem:[#allocation2 + $0x610] sm:$0xff]
        %v4837 = vld [vmem:[#allocation2 + $0x618] sm:$0xff]
        %v4838 = vld [vmem:[#allocation2 + $0x620] sm:$0xff]
        %v4839 = vld [vmem:[#allocation2 + $0x628] sm:$0xff]
        %v4840 = vld [vmem:[#allocation2 + $0x630] sm:$0xff]
        %v4841 = vld [vmem:[#allocation2 + $0x638] sm:$0xff]
        %v4842 = vld [vmem:[#allocation2 + $0x640] sm:$0xff]
        %v4843 = vld [vmem:[#allocation2 + $0x648] sm:$0xff]
        %v4844 = vld [vmem:[#allocation2 + $0x650] sm:$0xff]
        %v4845 = vld [vmem:[#allocation2 + $0x658] sm:$0xff]
        %v4846 = vld [vmem:[#allocation2 + $0x660] sm:$0xff]
        %v4847 = vld [vmem:[#allocation2 + $0x668] sm:$0xff]
        %v4848 = vld [vmem:[#allocation2 + $0x670] sm:$0xff]
        %v4849 = vld [vmem:[#allocation2 + $0x678] sm:$0xff]
        %v4850 = vld [vmem:[#allocation2 + $0x680] sm:$0xff]
        %v4851 = vld [vmem:[#allocation2 + $0x688] sm:$0xff]
        %v4852 = vld [vmem:[#allocation2 + $0x690] sm:$0xff]
        %v4853 = vld [vmem:[#allocation2 + $0x698] sm:$0xff]
        %v4854 = vld [vmem:[#allocation2 + $0x6a0] sm:$0xff]
        %v4855 = vld [vmem:[#allocation2 + $0x6a8] sm:$0xff]
        %v4856 = vld [vmem:[#allocation2 + $0x6b0] sm:$0xff]
        %v4858 = vcombine.high %v4731, %v4731
        %v4860 = vunpack.c.l.s4 1983009808
        %v4861 = vunpack.c.0.s8 %v4860
        %v4862 = vlaneseq
        %v4863 = vshrl.u32 %v4862, 7
        %v4864 = vsub.s32 %v4861, %v4863
        %v4865 = vrot.slane %v4731, %v4864
        %v4867 = vunpack.c.l.s4 1983009808
        %v4868 = vunpack.c.0.s8 %v4867
        %v4869 = vlaneseq
        %v4870 = vshrl.u32 %v4869, 7
        %v4871 = vsub.s32 %v4868, %v4870
        %v4872 = vrot.slane %v4858, %v4871
        %v4873 = vcombine.high %v4865, %v4865
        %v4874 = vcombine.high %v4872, %v4872
        %4875 = vrot.lane.b32.xlu0 %v4865, 96
        %v4876 = vpop.permute.xlu0 %4875
        %4877 = vrot.lane.b32.xlu0 %v4873, 96
        %v4878 = vpop.permute.xlu0 %4877
        %4879 = vrot.lane.b32.xlu0 %v4872, 96
        %v4880 = vpop.permute.xlu0 %4879
        %4881 = vrot.lane.b32.xlu0 %v4874, 96
        %v4882 = vpop.permute.xlu0 %4881
        %vm4883 = vcmask 785408
        %v4884 = vsel %vm4883, %v4876, %v4878
        %v4885 = vsel %vm4883, %v4878, %v4880
        %v4886 = vsel %vm4883, %v4880, %v4882
        %v4891 = vsel %vm4243, %v4882, 0
        %4893 = vmatprep.subr.bf16.mxu0 %v4733
        %4894 = vmatpush1.bf16.msra.mxu0 %v4732
        %4895 = vmatprep.subr.bf16.mxu0 %v4738
        %4896 = vmatpush1.bf16.msra.mxu0 %v4737
        %4897 = vmatprep.subr.bf16.mxu0 %v4743
        %4898 = vmatpush1.bf16.msra.mxu0 %v4742
        %4899 = vmatprep.subr.bf16.mxu0 %v4748
        %4900 = vmatpush1.bf16.msra.mxu0 %v4747
        %4901 = vmatprep.subr.bf16.mxu0 %v4753
        %4902 = vmatpush1.bf16.msra.mxu0 %v4752
        %4903 = vmatprep.subr.bf16.mxu0 %v4758
        %4904 = vmatpush1.bf16.msra.mxu0 %v4757
        %4905 = vmatprep.subr.bf16.mxu0 %v4763
        %4906 = vmatpush1.bf16.msra.mxu0 %v4762
        %4907 = vmatprep.subr.bf16.mxu0 %v4768
        %4908 = vmatpush1.bf16.msra.mxu0 %v4767
        %4909 = vmatprep.subr.bf16.mxu0 %v4773
        %4910 = vmatpush1.bf16.msra.mxu0 %v4772
        %4911 = vmatprep.subr.bf16.mxu0 %v4778
        %4912 = vmatpush1.bf16.msra.mxu0 %v4777
        %4913 = vmatprep.subr.bf16.mxu0 %v4783
        %4914 = vmatpush1.bf16.msra.mxu0 %v4782
        %4915 = vmatprep.subr.bf16.mxu0 %v4788
        %4916 = vmatpush1.bf16.msra.mxu0 %v4787
        %4917 = vmatprep.subr.bf16.mxu0 %v4793
        %4918 = vmatpush1.bf16.msra.mxu0 %v4792
        %4919 = vmatprep.subr.bf16.mxu0 %v4798
        %4920 = vmatpush1.bf16.msra.mxu0 %v4797
        %4921 = vmatprep.subr.bf16.mxu0 %v4803
        %4922 = vmatpush1.bf16.msra.mxu0 %v4802
        %4923 = vmatprep.subr.bf16.mxu0 %v4808
        %4924 = vmatpush1.bf16.msra.mxu0 %v4807
        %4925 = vmatprep.mubr.bf16.mxu0 %v4885
        %4926 = vmatmul.mubr.bf16.gmra.mrb[0].mxu0 %v4884
        %v4927 = vpop.f32.mrb[0].mxu0
        %v4928 = vadd.f32 0.0, %v4927
        %v4929 = vpop.f32.mrb[0].mxu0
        %v4930 = vadd.f32 0.0, %v4929
        %v4931 = vpop.f32.mrb[0].mxu0
        %v4932 = vpop.f32.mrb[0].mxu0
        %4933 = vdwg.mxu0
        %4934 = vmatprep.subr.bf16.mxu0 %v4813
        %4935 = vmatpush1.bf16.msra.mxu0 %v4812
        %4936 = vmatprep.subr.bf16.mxu0 %v4818
        %4937 = vmatpush1.bf16.msra.mxu0 %v4817
        %4938 = vmatprep.subr.bf16.mxu0 %v4823
        %4939 = vmatpush1.bf16.msra.mxu0 %v4822
        %4940 = vmatprep.subr.bf16.mxu0 %v4828
        %4941 = vmatpush1.bf16.msra.mxu0 %v4827
        %4942 = vmatprep.subr.bf16.mxu0 %v4833
        %4943 = vmatpush1.bf16.msra.mxu0 %v4832
        %4944 = vmatprep.subr.bf16.mxu0 %v4838
        %4945 = vmatpush1.bf16.msra.mxu0 %v4837
        %4946 = vmatprep.subr.bf16.mxu0 %v4843
        %4947 = vmatpush1.bf16.msra.mxu0 %v4842
        %4948 = vmatprep.subr.bf16.mxu0 %v4848
        %4949 = vmatpush1.bf16.msra.mxu0 %v4847
        %4950 = vmatprep.subr.bf16.mxu0 %v4853
        %4951 = vmatpush1.bf16.msra.mxu0 %v4852
        %4952 = vmatprep.subr.bf16.mxu0 0
        %4953 = vmatpush1.bf16.msra.mxu0 0
        %4954 = vmatprep.subr.bf16.mxu0 0
        %4955 = vmatpush1.bf16.msra.mxu0 0
        %4956 = vmatprep.subr.bf16.mxu0 0
        %4957 = vmatpush1.bf16.msra.mxu0 0
        %4958 = vmatprep.subr.bf16.mxu0 0
        %4959 = vmatpush1.bf16.msra.mxu0 0
        %4960 = vmatprep.subr.bf16.mxu0 0
        %4961 = vmatpush1.bf16.msra.mxu0 0
        %4962 = vmatprep.subr.bf16.mxu0 0
        %4963 = vmatpush1.bf16.msra.mxu0 0
        %4964 = vmatprep.subr.bf16.mxu0 0
        %4965 = vmatpush1.bf16.msra.mxu0 0
        %4966 = vmatprep.mubr.bf16.mxu0 %v4891
        %4967 = vmatmul.mubr.bf16.gmra.mrb[0].mxu0 %v4886
        %v4968 = vpop.f32.mrb[0].mxu0
        %v4969 = vadd.f32 %v4928, %v4968
        %v4970 = vpop.f32.mrb[0].mxu0
        %v4971 = vadd.f32 %v4930, %v4970
        %v4972 = vpop.f32.mrb[0].mxu0
        %v4973 = vpop.f32.mrb[0].mxu0
        %4974 = vdwg.mxu0
        %4975 = vmatprep.subr.bf16.mxu0 %v4735
        %4976 = vmatpush1.bf16.msra.mxu0 %v4734
        %4977 = vmatprep.subr.bf16.mxu0 %v4740
        %4978 = vmatpush1.bf16.msra.mxu0 %v4739
        %4979 = vmatprep.subr.bf16.mxu0 %v4745
        %4980 = vmatpush1.bf16.msra.mxu0 %v4744
        %4981 = vmatprep.subr.bf16.mxu0 %v4750
        %4982 = vmatpush1.bf16.msra.mxu0 %v4749
        %4983 = vmatprep.subr.bf16.mxu0 %v4755
        %4984 = vmatpush1.bf16.msra.mxu0 %v4754
        %4985 = vmatprep.subr.bf16.mxu0 %v4760
        %4986 = vmatpush1.bf16.msra.mxu0 %v4759
        %4987 = vmatprep.subr.bf16.mxu0 %v4765
        %4988 = vmatpush1.bf16.msra.mxu0 %v4764
        %4989 = vmatprep.subr.bf16.mxu0 %v4770
        %4990 = vmatpush1.bf16.msra.mxu0 %v4769
        %4991 = vmatprep.subr.bf16.mxu0 %v4775
        %4992 = vmatpush1.bf16.msra.mxu0 %v4774
        %4993 = vmatprep.subr.bf16.mxu0 %v4780
        %4994 = vmatpush1.bf16.msra.mxu0 %v4779
        %4995 = vmatprep.subr.bf16.mxu0 %v4785
        %4996 = vmatpush1.bf16.msra.mxu0 %v4784
        %4997 = vmatprep.subr.bf16.mxu0 %v4790
        %4998 = vmatpush1.bf16.msra.mxu0 %v4789
        %4999 = vmatprep.subr.bf16.mxu0 %v4795
        %5000 = vmatpush1.bf16.msra.mxu0 %v4794
        %5001 = vmatprep.subr.bf16.mxu0 %v4800
        %5002 = vmatpush1.bf16.msra.mxu0 %v4799
        %5003 = vmatprep.subr.bf16.mxu0 %v4805
        %5004 = vmatpush1.bf16.msra.mxu0 %v4804
        %5005 = vmatprep.subr.bf16.mxu0 %v4810
        %5006 = vmatpush1.bf16.msra.mxu0 %v4809
        %5007 = vmatprep.mubr.bf16.mxu0 %v4885
        %5008 = vmatmul.mubr.bf16.gmra.mrb[0].mxu0 %v4884
        %v5009 = vpop.f32.mrb[0].mxu0
        %v5010 = vadd.f32 0.0, %v5009
        %v5011 = vpop.f32.mrb[0].mxu0
        %v5012 = vadd.f32 0.0, %v5011
        %v5013 = vpop.f32.mrb[0].mxu0
        %v5014 = vpop.f32.mrb[0].mxu0
        %5015 = vdwg.mxu0
        %5016 = vmatprep.subr.bf16.mxu0 %v4815
        %5017 = vmatpush1.bf16.msra.mxu0 %v4814
        %5018 = vmatprep.subr.bf16.mxu0 %v4820
        %5019 = vmatpush1.bf16.msra.mxu0 %v4819
        %5020 = vmatprep.subr.bf16.mxu0 %v4825
        %5021 = vmatpush1.bf16.msra.mxu0 %v4824
        %5022 = vmatprep.subr.bf16.mxu0 %v4830
        %5023 = vmatpush1.bf16.msra.mxu0 %v4829
        %5024 = vmatprep.subr.bf16.mxu0 %v4835
        %5025 = vmatpush1.bf16.msra.mxu0 %v4834
        %5026 = vmatprep.subr.bf16.mxu0 %v4840
        %5027 = vmatpush1.bf16.msra.mxu0 %v4839
        %5028 = vmatprep.subr.bf16.mxu0 %v4845
        %5029 = vmatpush1.bf16.msra.mxu0 %v4844
        %5030 = vmatprep.subr.bf16.mxu0 %v4850
        %5031 = vmatpush1.bf16.msra.mxu0 %v4849
        %5032 = vmatprep.subr.bf16.mxu0 %v4855
        %5033 = vmatpush1.bf16.msra.mxu0 %v4854
        %5034 = vmatprep.subr.bf16.mxu0 0
        %5035 = vmatpush1.bf16.msra.mxu0 0
        %5036 = vmatprep.subr.bf16.mxu0 0
        %5037 = vmatpush1.bf16.msra.mxu0 0
        %5038 = vmatprep.subr.bf16.mxu0 0
        %5039 = vmatpush1.bf16.msra.mxu0 0
        %5040 = vmatprep.subr.bf16.mxu0 0
        %5041 = vmatpush1.bf16.msra.mxu0 0
        %5042 = vmatprep.subr.bf16.mxu0 0
        %5043 = vmatpush1.bf16.msra.mxu0 0
        %5044 = vmatprep.subr.bf16.mxu0 0
        %5045 = vmatpush1.bf16.msra.mxu0 0
        %5046 = vmatprep.subr.bf16.mxu0 0
        %5047 = vmatpush1.bf16.msra.mxu0 0
        %5048 = vmatprep.mubr.bf16.mxu0 %v4891
        %5049 = vmatmul.mubr.bf16.gmra.mrb[0].mxu0 %v4886
        %v5050 = vpop.f32.mrb[0].mxu0
        %v5051 = vadd.f32 %v5010, %v5050
        %v5052 = vpop.f32.mrb[0].mxu0
        %v5053 = vadd.f32 %v5012, %v5052
        %v5054 = vpop.f32.mrb[0].mxu0
        %v5055 = vpop.f32.mrb[0].mxu0
        %5056 = vdwg.mxu0
        %5057 = vmatprep.subr.bf16.mxu0 0
        %5058 = vmatpush1.bf16.msra.mxu0 %v4736
        %5059 = vmatprep.subr.bf16.mxu0 0
        %5060 = vmatpush1.bf16.msra.mxu0 %v4741
        %5061 = vmatprep.subr.bf16.mxu0 0
        %5062 = vmatpush1.bf16.msra.mxu0 %v4746
        %5063 = vmatprep.subr.bf16.mxu0 0
        %5064 = vmatpush1.bf16.msra.mxu0 %v4751
        %5065 = vmatprep.subr.bf16.mxu0 0
        %5066 = vmatpush1.bf16.msra.mxu0 %v4756
        %5067 = vmatprep.subr.bf16.mxu0 0
        %5068 = vmatpush1.bf16.msra.mxu0 %v4761
        %5069 = vmatprep.subr.bf16.mxu0 0
        %5070 = vmatpush1.bf16.msra.mxu0 %v4766
        %5071 = vmatprep.subr.bf16.mxu0 0
        %5072 = vmatpush1.bf16.msra.mxu0 %v4771
        %5073 = vmatprep.subr.bf16.mxu0 0
        %5074 = vmatpush1.bf16.msra.mxu0 %v4776
        %5075 = vmatprep.subr.bf16.mxu0 0
        %5076 = vmatpush1.bf16.msra.mxu0 %v4781
        %5077 = vmatprep.subr.bf16.mxu0 0
        %5078 = vmatpush1.bf16.msra.mxu0 %v4786
        %5079 = vmatprep.subr.bf16.mxu0 0
        %5080 = vmatpush1.bf16.msra.mxu0 %v4791
        %5081 = vmatprep.subr.bf16.mxu0 0
        %5082 = vmatpush1.bf16.msra.mxu0 %v4796
        %5083 = vmatprep.subr.bf16.mxu0 0
        %5084 = vmatpush1.bf16.msra.mxu0 %v4801
        %5085 = vmatprep.subr.bf16.mxu0 0
        %5086 = vmatpush1.bf16.msra.mxu0 %v4806
        %5087 = vmatprep.subr.bf16.mxu0 0
        %5088 = vmatpush1.bf16.msra.mxu0 %v4811
        %5089 = vmatprep.mubr.bf16.mxu0 %v4885
        %5090 = vmatmul.mubr.bf16.gmra.mrb[0].mxu0 %v4884
        %v5091 = vpop.f32.mrb[0].mxu0
        %v5092 = vadd.f32 0.0, %v5091
        %v5093 = vpop.f32.mrb[0].mxu0
        %v5094 = vpop.f32.mrb[0].mxu0
        %v5095 = vpop.f32.mrb[0].mxu0
        %5096 = vdwg.mxu0
        %5097 = vmatprep.subr.bf16.mxu0 0
        %5098 = vmatpush1.bf16.msra.mxu0 %v4816
        %5099 = vmatprep.subr.bf16.mxu0 0
        %5100 = vmatpush1.bf16.msra.mxu0 %v4821
        %5101 = vmatprep.subr.bf16.mxu0 0
        %5102 = vmatpush1.bf16.msra.mxu0 %v4826
        %5103 = vmatprep.subr.bf16.mxu0 0
        %5104 = vmatpush1.bf16.msra.mxu0 %v4831
        %5105 = vmatprep.subr.bf16.mxu0 0
        %5106 = vmatpush1.bf16.msra.mxu0 %v4836
        %5107 = vmatprep.subr.bf16.mxu0 0
        %5108 = vmatpush1.bf16.msra.mxu0 %v4841
        %5109 = vmatprep.subr.bf16.mxu0 0
        %5110 = vmatpush1.bf16.msra.mxu0 %v4846
        %5111 = vmatprep.subr.bf16.mxu0 0
        %5112 = vmatpush1.bf16.msra.mxu0 %v4851
        %5113 = vmatprep.subr.bf16.mxu0 0
        %5114 = vmatpush1.bf16.msra.mxu0 %v4856
        %5115 = vmatprep.subr.bf16.mxu0 0
        %5116 = vmatpush1.bf16.msra.mxu0 0
        %5117 = vmatprep.subr.bf16.mxu0 0
        %5118 = vmatpush1.bf16.msra.mxu0 0
        %5119 = vmatprep.subr.bf16.mxu0 0
        %5120 = vmatpush1.bf16.msra.mxu0 0
        %5121 = vmatprep.subr.bf16.mxu0 0
        %5122 = vmatpush1.bf16.msra.mxu0 0
        %5123 = vmatprep.subr.bf16.mxu0 0
        %5124 = vmatpush1.bf16.msra.mxu0 0
        %5125 = vmatprep.subr.bf16.mxu0 0
        %5126 = vmatpush1.bf16.msra.mxu0 0
        %5127 = vmatprep.subr.bf16.mxu0 0
        %5128 = vmatpush1.bf16.msra.mxu0 0
        %5129 = vmatprep.mubr.bf16.mxu0 %v4891
        %5130 = vmatmul.mubr.bf16.gmra.mrb[0].mxu0 %v4886
        %v5131 = vpop.f32.mrb[0].mxu0
        %v5132 = vadd.f32 %v5092, %v5131
        %v5133 = vpop.f32.mrb[0].mxu0
        %v5134 = vpop.f32.mrb[0].mxu0
        %v5135 = vpop.f32.mrb[0].mxu0
        %5136 = vdwg.mxu0
        %v5137 = vpack.c.bf16 %v4969, %v4969
        %v5138 = vpack.c.bf16 %v4971, %v4971
        %v5139 = vpack.c.bf16 %v5051, %v5051
        %v5140 = vpack.c.bf16 %v5053, %v5053
        %v5141 = vpack.c.bf16 %v5132, %v5132
        %v5147 = vcombine.low %v5137, %v5138
        %v5148 = vcombine.low %v5139, %v5140
        %v5150 = vunpack.c.l.s4 1983009808
        %v5151 = vunpack.c.0.s8 %v5150
        %v5152 = vlaneseq
        %v5153 = vshrl.u32 %v5152, 7
        %v5154 = vsub.s32 %v5151, %v5153
        %v5155 = vrot.slane %v5147, %v5154
        %v5157 = vunpack.c.l.s4 1983009808
        %v5158 = vunpack.c.0.s8 %v5157
        %v5159 = vlaneseq
        %v5160 = vshrl.u32 %v5159, 7
        %v5161 = vsub.s32 %v5158, %v5160
        %v5162 = vrot.slane %v5148, %v5161
        %v5163 = vcombine.low %v5155, %v5162
        %v5165 = vunpack.c.l.s4 1983009808
        %v5166 = vunpack.c.0.s8 %v5165
        %v5167 = vlaneseq
        %v5168 = vshrl.u32 %v5167, 7
        %v5169 = vsub.s32 %v5166, %v5168
        %v5170 = vrot.slane %v5141, %v5169
        %s5173 = scalar_lea.vmem %s256, 20 [#allocation8]
        %5174 = vst [vmem:[%s5173] sm:$0xff] %v5163
        %5175 = vst [vmem:[%s5173 + $0x8] sm:$0x3] %v5170
        %v5176 = vmul.f32 %v4969, %v4411
        %v5177 = vmul.f32 %v4971, %v4415
        %v5178 = vmul.f32 %v5051, %v4419
        %v5179 = vmul.f32 %v5053, %v4423
        %v5180 = vmul.f32 %v5132, %v4427
        %v5181 = vsel %vm4438, %v5176, 0.0
        %v5182 = vsel %vm4438, %v5177, 0.0
        %v5183 = vadd.f32 %v5181, %v5182
        %v5184 = vsel %vm4438, %v5178, 0.0
        %v5185 = vadd.f32 %v5183, %v5184
        %v5186 = vsel %vm4438, %v5179, 0.0
        %v5187 = vadd.f32 %v5185, %v5186
        %v5188 = vsel %vm4438, %v5180, 0.0
        %v5189 = vadd.f32 %v5187, %v5188
        %5190 = vadd.xlane.f32.xlu0 %v5189
        %v5191 = vpop.xlane.xlu0 %5190
        %s5192 = scalar_lea.vmem %s275, 8
        %5193 = vst.msk [vmem:[%s5192] sm:$0xf] %vm4450, %v5191
        %v5194 = vmul.f32 %v5176, %v4969
        %v5195 = vmul.f32 %v5177, %v4971
        %v5196 = vmul.f32 %v5178, %v5051
        %v5197 = vmul.f32 %v5179, %v5053
        %v5198 = vmul.f32 %v5180, %v5132
        %v5199 = vsel %vm4438, %v5194, 0.0
        %v5200 = vsel %vm4438, %v5195, 0.0
        %v5201 = vadd.f32 %v5199, %v5200
        %v5202 = vsel %vm4438, %v5196, 0.0
        %v5203 = vadd.f32 %v5201, %v5202
        %v5204 = vsel %vm4438, %v5197, 0.0
        %v5205 = vadd.f32 %v5203, %v5204
        %v5206 = vsel %vm4438, %v5198, 0.0
        %v5207 = vadd.f32 %v5205, %v5206
        %5208 = vadd.xlane.f32.xlu0 %v5207
        %v5209 = vpop.xlane.xlu0 %5208
        %s5210 = scalar_lea.vmem %s280, 8
        %5211 = vst.msk [vmem:[%s5210] sm:$0xf] %vm4450, %v5209
        %v5212 = vld [vmem:[#allocation6 + $0xa] sm:$0xff]
        %v5213 = vld [vmem:[#allocation2 + $0x6b8] sm:$0xff]
        %v5214 = vld [vmem:[#allocation2 + $0x6c0] sm:$0xff]
        %v5215 = vld [vmem:[#allocation2 + $0x6c8] sm:$0xff]
        %v5216 = vld [vmem:[#allocation2 + $0x6d0] sm:$0xff]
        %v5217 = vld [vmem:[#allocation2 + $0x6d8] sm:$0xff]
        %v5218 = vld [vmem:[#allocation2 + $0x6e0] sm:$0xff]
        %v5219 = vld [vmem:[#allocation2 + $0x6e8] sm:$0xff]
        %v5220 = vld [vmem:[#allocation2 + $0x6f0] sm:$0xff]
        %v5221 = vld [vmem:[#allocation2 + $0x6f8] sm:$0xff]
        %v5222 = vld [vmem:[#allocation2 + $0x700] sm:$0xff]
        %v5223 = vld [vmem:[#allocation2 + $0x708] sm:$0xff]
        %v5224 = vld [vmem:[#allocation2 + $0x710] sm:$0xff]
        %v5225 = vld [vmem:[#allocation2 + $0x718] sm:$0xff]
        %v5226 = vld [vmem:[#allocation2 + $0x720] sm:$0xff]
        %v5227 = vld [vmem:[#allocation2 + $0x728] sm:$0xff]
        %v5228 = vld [vmem:[#allocation2 + $0x730] sm:$0xff]
        %v5229 = vld [vmem:[#allocation2 + $0x738] sm:$0xff]
        %v5230 = vld [vmem:[#allocation2 + $0x740] sm:$0xff]
        %v5231 = vld [vmem:[#allocation2 + $0x748] sm:$0xff]
        %v5232 = vld [vmem:[#allocation2 + $0x750] sm:$0xff]
        %v5233 = vld [vmem:[#allocation2 + $0x758] sm:$0xff]
        %v5234 = vld [vmem:[#allocation2 + $0x760] sm:$0xff]
        %v5235 = vld [vmem:[#allocation2 + $0x768] sm:$0xff]
        %v5236 = vld [vmem:[#allocation2 + $0x770] sm:$0xff]
        %v5237 = vld [vmem:[#allocation2 + $0x778] sm:$0xff]
        %v5238 = vld [vmem:[#allocation2 + $0x780] sm:$0xff]
        %v5239 = vld [vmem:[#allocation2 + $0x788] sm:$0xff]
        %v5240 = vld [vmem:[#allocation2 + $0x790] sm:$0xff]
        %v5241 = vld [vmem:[#allocation2 + $0x798] sm:$0xff]
        %v5242 = vld [vmem:[#allocation2 + $0x7a0] sm:$0xff]
        %v5243 = vld [vmem:[#allocation2 + $0x7a8] sm:$0xff]
        %v5244 = vld [vmem:[#allocation2 + $0x7b0] sm:$0xff]
        %v5245 = vld [vmem:[#allocation2 + $0x7b8] sm:$0xff]
        %v5246 = vld [vmem:[#allocation2 + $0x7c0] sm:$0xff]
        %v5247 = vld [vmem:[#allocation2 + $0x7c8] sm:$0xff]
        %v5248 = vld [vmem:[#allocation2 + $0x7d0] sm:$0xff]
        %v5249 = vld [vmem:[#allocation2 + $0x7d8] sm:$0xff]
        %v5250 = vld [vmem:[#allocation2 + $0x7e0] sm:$0xff]
        %v5251 = vld [vmem:[#allocation2 + $0x7e8] sm:$0xff]
        %v5252 = vld [vmem:[#allocation2 + $0x7f0] sm:$0xff]
        %v5253 = vld [vmem:[#allocation2 + $0x7f8] sm:$0xff]
        %v5254 = vld [vmem:[#allocation2 + $0x800] sm:$0xff]
        %v5255 = vld [vmem:[#allocation2 + $0x808] sm:$0xff]
        %v5256 = vld [vmem:[#allocation2 + $0x810] sm:$0xff]
        %v5257 = vld [vmem:[#allocation2 + $0x818] sm:$0xff]
        %v5258 = vld [vmem:[#allocation2 + $0x820] sm:$0xff]
        %v5259 = vld [vmem:[#allocation2 + $0x828] sm:$0xff]
        %v5260 = vld [vmem:[#allocation2 + $0x830] sm:$0xff]
        %v5261 = vld [vmem:[#allocation2 + $0x838] sm:$0xff]
        %v5262 = vld [vmem:[#allocation2 + $0x840] sm:$0xff]
        %v5263 = vld [vmem:[#allocation2 + $0x848] sm:$0xff]
        %v5264 = vld [vmem:[#allocation2 + $0x850] sm:$0xff]
        %v5265 = vld [vmem:[#allocation2 + $0x858] sm:$0xff]
        %v5266 = vld [vmem:[#allocation2 + $0x860] sm:$0xff]
        %v5267 = vld [vmem:[#allocation2 + $0x868] sm:$0xff]
        %v5268 = vld [vmem:[#allocation2 + $0x870] sm:$0xff]
        %v5269 = vld [vmem:[#allocation2 + $0x878] sm:$0xff]
        %v5270 = vld [vmem:[#allocation2 + $0x880] sm:$0xff]
        %v5271 = vld [vmem:[#allocation2 + $0x888] sm:$0xff]
        %v5272 = vld [vmem:[#allocation2 + $0x890] sm:$0xff]
        %v5273 = vld [vmem:[#allocation2 + $0x898] sm:$0xff]
        %v5274 = vld [vmem:[#allocation2 + $0x8a0] sm:$0xff]
        %v5275 = vld [vmem:[#allocation2 + $0x8a8] sm:$0xff]
        %v5276 = vld [vmem:[#allocation2 + $0x8b0] sm:$0xff]
        %v5277 = vld [vmem:[#allocation2 + $0x8b8] sm:$0xff]
        %v5278 = vld [vmem:[#allocation2 + $0x8c0] sm:$0xff]
        %v5279 = vld [vmem:[#allocation2 + $0x8c8] sm:$0xff]
        %v5280 = vld [vmem:[#allocation2 + $0x8d0] sm:$0xff]
        %v5281 = vld [vmem:[#allocation2 + $0x8d8] sm:$0xff]
        %v5282 = vld [vmem:[#allocation2 + $0x8e0] sm:$0xff]
        %v5283 = vld [vmem:[#allocation2 + $0x8e8] sm:$0xff]
        %v5284 = vld [vmem:[#allocation2 + $0x8f0] sm:$0xff]
        %v5285 = vld [vmem:[#allocation2 + $0x8f8] sm:$0xff]
        %v5286 = vld [vmem:[#allocation2 + $0x900] sm:$0xff]
        %v5287 = vld [vmem:[#allocation2 + $0x908] sm:$0xff]
        %v5288 = vld [vmem:[#allocation2 + $0x910] sm:$0xff]
        %v5289 = vld [vmem:[#allocation2 + $0x918] sm:$0xff]
        %v5290 = vld [vmem:[#allocation2 + $0x920] sm:$0xff]
        %v5291 = vld [vmem:[#allocation2 + $0x928] sm:$0xff]
        %v5292 = vld [vmem:[#allocation2 + $0x930] sm:$0xff]
        %v5293 = vld [vmem:[#allocation2 + $0x938] sm:$0xff]
        %v5294 = vld [vmem:[#allocation2 + $0x940] sm:$0xff]
        %v5295 = vld [vmem:[#allocation2 + $0x948] sm:$0xff]
        %v5296 = vld [vmem:[#allocation2 + $0x950] sm:$0xff]
        %v5297 = vld [vmem:[#allocation2 + $0x958] sm:$0xff]
        %v5298 = vld [vmem:[#allocation2 + $0x960] sm:$0xff]
        %v5299 = vld [vmem:[#allocation2 + $0x968] sm:$0xff]
        %v5300 = vld [vmem:[#allocation2 + $0x970] sm:$0xff]
        %v5301 = vld [vmem:[#allocation2 + $0x978] sm:$0xff]
        %v5302 = vld [vmem:[#allocation2 + $0x980] sm:$0xff]
        %v5303 = vld [vmem:[#allocation2 + $0x988] sm:$0xff]
        %v5304 = vld [vmem:[#allocation2 + $0x990] sm:$0xff]
        %v5305 = vld [vmem:[#allocation2 + $0x998] sm:$0xff]
        %v5306 = vld [vmem:[#allocation2 + $0x9a0] sm:$0xff]
        %v5307 = vld [vmem:[#allocation2 + $0x9a8] sm:$0xff]
        %v5308 = vld [vmem:[#allocation2 + $0x9b0] sm:$0xff]
        %v5309 = vld [vmem:[#allocation2 + $0x9b8] sm:$0xff]
        %v5310 = vld [vmem:[#allocation2 + $0x9c0] sm:$0xff]
        %v5311 = vld [vmem:[#allocation2 + $0x9c8] sm:$0xff]
        %v5312 = vld [vmem:[#allocation2 + $0x9d0] sm:$0xff]
        %v5313 = vld [vmem:[#allocation2 + $0x9d8] sm:$0xff]
        %v5314 = vld [vmem:[#allocation2 + $0x9e0] sm:$0xff]
        %v5315 = vld [vmem:[#allocation2 + $0x9e8] sm:$0xff]
        %v5316 = vld [vmem:[#allocation2 + $0x9f0] sm:$0xff]
        %v5317 = vld [vmem:[#allocation2 + $0x9f8] sm:$0xff]
        %v5318 = vld [vmem:[#allocation2 + $0xa00] sm:$0xff]
        %v5319 = vld [vmem:[#allocation2 + $0xa08] sm:$0xff]
        %v5320 = vld [vmem:[#allocation2 + $0xa10] sm:$0xff]
        %v5321 = vld [vmem:[#allocation2 + $0xa18] sm:$0xff]
        %v5322 = vld [vmem:[#allocation2 + $0xa20] sm:$0xff]
        %v5323 = vld [vmem:[#allocation2 + $0xa28] sm:$0xff]
        %v5324 = vld [vmem:[#allocation2 + $0xa30] sm:$0xff]
        %v5325 = vld [vmem:[#allocation2 + $0xa38] sm:$0xff]
        %v5326 = vld [vmem:[#allocation2 + $0xa40] sm:$0xff]
        %v5327 = vld [vmem:[#allocation2 + $0xa48] sm:$0xff]
        %v5328 = vld [vmem:[#allocation2 + $0xa50] sm:$0xff]
        %v5329 = vld [vmem:[#allocation2 + $0xa58] sm:$0xff]
        %v5330 = vld [vmem:[#allocation2 + $0xa60] sm:$0xff]
        %v5331 = vld [vmem:[#allocation2 + $0xa68] sm:$0xff]
        %v5332 = vld [vmem:[#allocation2 + $0xa70] sm:$0xff]
        %v5333 = vld [vmem:[#allocation2 + $0xa78] sm:$0xff]
        %v5334 = vld [vmem:[#allocation2 + $0xa80] sm:$0xff]
        %v5335 = vld [vmem:[#allocation2 + $0xa88] sm:$0xff]
        %v5336 = vld [vmem:[#allocation2 + $0xa90] sm:$0xff]
        %v5337 = vld [vmem:[#allocation2 + $0xa98] sm:$0xff]
        %v5339 = vcombine.high %v5212, %v5212
        %v5341 = vunpack.c.l.s4 1983009808
        %v5342 = vunpack.c.0.s8 %v5341
        %v5343 = vlaneseq
        %v5344 = vshrl.u32 %v5343, 7
        %v5345 = vsub.s32 %v5342, %v5344
        %v5346 = vrot.slane %v5212, %v5345
        %v5348 = vunpack.c.l.s4 1983009808
        %v5349 = vunpack.c.0.s8 %v5348
        %v5350 = vlaneseq
        %v5351 = vshrl.u32 %v5350, 7
        %v5352 = vsub.s32 %v5349, %v5351
        %v5353 = vrot.slane %v5339, %v5352
        %v5354 = vcombine.high %v5346, %v5346
        %v5355 = vcombine.high %v5353, %v5353
        %5356 = vrot.lane.b32.xlu0 %v5346, 80
        %v5357 = vpop.permute.xlu0 %5356
        %5358 = vrot.lane.b32.xlu0 %v5354, 80
        %v5359 = vpop.permute.xlu0 %5358
        %5360 = vrot.lane.b32.xlu0 %v5353, 80
        %v5361 = vpop.permute.xlu0 %5360
        %5362 = vrot.lane.b32.xlu0 %v5355, 80
        %v5363 = vpop.permute.xlu0 %5362
        %vm5364 = vcmask 654336
        %v5365 = vsel %vm5364, %v5357, %v5359
        %v5366 = vsel %vm5364, %v5359, %v5361
        %v5367 = vsel %vm5364, %v5361, %v5363
        %v5372 = vsel %vm4243, %v5363, 0
        %5374 = vmatprep.subr.bf16.mxu0 %v5214
        %5375 = vmatpush1.bf16.msra.mxu0 %v5213
        %5376 = vmatprep.subr.bf16.mxu0 %v5219
        %5377 = vmatpush1.bf16.msra.mxu0 %v5218
        %5378 = vmatprep.subr.bf16.mxu0 %v5224
        %5379 = vmatpush1.bf16.msra.mxu0 %v5223
        %5380 = vmatprep.subr.bf16.mxu0 %v5229
        %5381 = vmatpush1.bf16.msra.mxu0 %v5228
        %5382 = vmatprep.subr.bf16.mxu0 %v5234
        %5383 = vmatpush1.bf16.msra.mxu0 %v5233
        %5384 = vmatprep.subr.bf16.mxu0 %v5239
        %5385 = vmatpush1.bf16.msra.mxu0 %v5238
        %5386 = vmatprep.subr.bf16.mxu0 %v5244
        %5387 = vmatpush1.bf16.msra.mxu0 %v5243
        %5388 = vmatprep.subr.bf16.mxu0 %v5249
        %5389 = vmatpush1.bf16.msra.mxu0 %v5248
        %5390 = vmatprep.subr.bf16.mxu0 %v5254
        %5391 = vmatpush1.bf16.msra.mxu0 %v5253
        %5392 = vmatprep.subr.bf16.mxu0 %v5259
        %5393 = vmatpush1.bf16.msra.mxu0 %v5258
        %5394 = vmatprep.subr.bf16.mxu0 %v5264
        %5395 = vmatpush1.bf16.msra.mxu0 %v5263
        %5396 = vmatprep.subr.bf16.mxu0 %v5269
        %5397 = vmatpush1.bf16.msra.mxu0 %v5268
        %5398 = vmatprep.subr.bf16.mxu0 %v5274
        %5399 = vmatpush1.bf16.msra.mxu0 %v5273
        %5400 = vmatprep.subr.bf16.mxu0 %v5279
        %5401 = vmatpush1.bf16.msra.mxu0 %v5278
        %5402 = vmatprep.subr.bf16.mxu0 %v5284
        %5403 = vmatpush1.bf16.msra.mxu0 %v5283
        %5404 = vmatprep.subr.bf16.mxu0 %v5289
        %5405 = vmatpush1.bf16.msra.mxu0 %v5288
        %5406 = vmatprep.mubr.bf16.mxu0 %v5366
        %5407 = vmatmul.mubr.bf16.gmra.mrb[0].mxu0 %v5365
        %v5408 = vpop.f32.mrb[0].mxu0
        %v5409 = vadd.f32 0.0, %v5408
        %v5410 = vpop.f32.mrb[0].mxu0
        %v5411 = vadd.f32 0.0, %v5410
        %v5412 = vpop.f32.mrb[0].mxu0
        %v5413 = vpop.f32.mrb[0].mxu0
        %5414 = vdwg.mxu0
        %5415 = vmatprep.subr.bf16.mxu0 %v5294
        %5416 = vmatpush1.bf16.msra.mxu0 %v5293
        %5417 = vmatprep.subr.bf16.mxu0 %v5299
        %5418 = vmatpush1.bf16.msra.mxu0 %v5298
        %5419 = vmatprep.subr.bf16.mxu0 %v5304
        %5420 = vmatpush1.bf16.msra.mxu0 %v5303
        %5421 = vmatprep.subr.bf16.mxu0 %v5309
        %5422 = vmatpush1.bf16.msra.mxu0 %v5308
        %5423 = vmatprep.subr.bf16.mxu0 %v5314
        %5424 = vmatpush1.bf16.msra.mxu0 %v5313
        %5425 = vmatprep.subr.bf16.mxu0 %v5319
        %5426 = vmatpush1.bf16.msra.mxu0 %v5318
        %5427 = vmatprep.subr.bf16.mxu0 %v5324
        %5428 = vmatpush1.bf16.msra.mxu0 %v5323
        %5429 = vmatprep.subr.bf16.mxu0 %v5329
        %5430 = vmatpush1.bf16.msra.mxu0 %v5328
        %5431 = vmatprep.subr.bf16.mxu0 %v5334
        %5432 = vmatpush1.bf16.msra.mxu0 %v5333
        %5433 = vmatprep.subr.bf16.mxu0 0
        %5434 = vmatpush1.bf16.msra.mxu0 0
        %5435 = vmatprep.subr.bf16.mxu0 0
        %5436 = vmatpush1.bf16.msra.mxu0 0
        %5437 = vmatprep.subr.bf16.mxu0 0
        %5438 = vmatpush1.bf16.msra.mxu0 0
        %5439 = vmatprep.subr.bf16.mxu0 0
        %5440 = vmatpush1.bf16.msra.mxu0 0
        %5441 = vmatprep.subr.bf16.mxu0 0
        %5442 = vmatpush1.bf16.msra.mxu0 0
        %5443 = vmatprep.subr.bf16.mxu0 0
        %5444 = vmatpush1.bf16.msra.mxu0 0
        %5445 = vmatprep.subr.bf16.mxu0 0
        %5446 = vmatpush1.bf16.msra.mxu0 0
        %5447 = vmatprep.mubr.bf16.mxu0 %v5372
        %5448 = vmatmul.mubr.bf16.gmra.mrb[0].mxu0 %v5367
        %v5449 = vpop.f32.mrb[0].mxu0
        %v5450 = vadd.f32 %v5409, %v5449
        %v5451 = vpop.f32.mrb[0].mxu0
        %v5452 = vadd.f32 %v5411, %v5451
        %v5453 = vpop.f32.mrb[0].mxu0
        %v5454 = vpop.f32.mrb[0].mxu0
        %5455 = vdwg.mxu0
        %5456 = vmatprep.subr.bf16.mxu0 %v5216
        %5457 = vmatpush1.bf16.msra.mxu0 %v5215
        %5458 = vmatprep.subr.bf16.mxu0 %v5221
        %5459 = vmatpush1.bf16.msra.mxu0 %v5220
        %5460 = vmatprep.subr.bf16.mxu0 %v5226
        %5461 = vmatpush1.bf16.msra.mxu0 %v5225
        %5462 = vmatprep.subr.bf16.mxu0 %v5231
        %5463 = vmatpush1.bf16.msra.mxu0 %v5230
        %5464 = vmatprep.subr.bf16.mxu0 %v5236
        %5465 = vmatpush1.bf16.msra.mxu0 %v5235
        %5466 = vmatprep.subr.bf16.mxu0 %v5241
        %5467 = vmatpush1.bf16.msra.mxu0 %v5240
        %5468 = vmatprep.subr.bf16.mxu0 %v5246
        %5469 = vmatpush1.bf16.msra.mxu0 %v5245
        %5470 = vmatprep.subr.bf16.mxu0 %v5251
        %5471 = vmatpush1.bf16.msra.mxu0 %v5250
        %5472 = vmatprep.subr.bf16.mxu0 %v5256
        %5473 = vmatpush1.bf16.msra.mxu0 %v5255
        %5474 = vmatprep.subr.bf16.mxu0 %v5261
        %5475 = vmatpush1.bf16.msra.mxu0 %v5260
        %5476 = vmatprep.subr.bf16.mxu0 %v5266
        %5477 = vmatpush1.bf16.msra.mxu0 %v5265
        %5478 = vmatprep.subr.bf16.mxu0 %v5271
        %5479 = vmatpush1.bf16.msra.mxu0 %v5270
        %5480 = vmatprep.subr.bf16.mxu0 %v5276
        %5481 = vmatpush1.bf16.msra.mxu0 %v5275
        %5482 = vmatprep.subr.bf16.mxu0 %v5281
        %5483 = vmatpush1.bf16.msra.mxu0 %v5280
        %5484 = vmatprep.subr.bf16.mxu0 %v5286
        %5485 = vmatpush1.bf16.msra.mxu0 %v5285
        %5486 = vmatprep.subr.bf16.mxu0 %v5291
        %5487 = vmatpush1.bf16.msra.mxu0 %v5290
        %5488 = vmatprep.mubr.bf16.mxu0 %v5366
        %5489 = vmatmul.mubr.bf16.gmra.mrb[0].mxu0 %v5365
        %v5490 = vpop.f32.mrb[0].mxu0
        %v5491 = vadd.f32 0.0, %v5490
        %v5492 = vpop.f32.mrb[0].mxu0
        %v5493 = vadd.f32 0.0, %v5492
        %v5494 = vpop.f32.mrb[0].mxu0
        %v5495 = vpop.f32.mrb[0].mxu0
        %5496 = vdwg.mxu0
        %5497 = vmatprep.subr.bf16.mxu0 %v5296
        %5498 = vmatpush1.bf16.msra.mxu0 %v5295
        %5499 = vmatprep.subr.bf16.mxu0 %v5301
        %5500 = vmatpush1.bf16.msra.mxu0 %v5300
        %5501 = vmatprep.subr.bf16.mxu0 %v5306
        %5502 = vmatpush1.bf16.msra.mxu0 %v5305
        %5503 = vmatprep.subr.bf16.mxu0 %v5311
        %5504 = vmatpush1.bf16.msra.mxu0 %v5310
        %5505 = vmatprep.subr.bf16.mxu0 %v5316
        %5506 = vmatpush1.bf16.msra.mxu0 %v5315
        %5507 = vmatprep.subr.bf16.mxu0 %v5321
        %5508 = vmatpush1.bf16.msra.mxu0 %v5320
        %5509 = vmatprep.subr.bf16.mxu0 %v5326
        %5510 = vmatpush1.bf16.msra.mxu0 %v5325
        %5511 = vmatprep.subr.bf16.mxu0 %v5331
        %5512 = vmatpush1.bf16.msra.mxu0 %v5330
        %5513 = vmatprep.subr.bf16.mxu0 %v5336
        %5514 = vmatpush1.bf16.msra.mxu0 %v5335
        %5515 = vmatprep.subr.bf16.mxu0 0
        %5516 = vmatpush1.bf16.msra.mxu0 0
        %5517 = vmatprep.subr.bf16.mxu0 0
        %5518 = vmatpush1.bf16.msra.mxu0 0
        %5519 = vmatprep.subr.bf16.mxu0 0
        %5520 = vmatpush1.bf16.msra.mxu0 0
        %5521 = vmatprep.subr.bf16.mxu0 0
        %5522 = vmatpush1.bf16.msra.mxu0 0
        %5523 = vmatprep.subr.bf16.mxu0 0
        %5524 = vmatpush1.bf16.msra.mxu0 0
        %5525 = vmatprep.subr.bf16.mxu0 0
        %5526 = vmatpush1.bf16.msra.mxu0 0
        %5527 = vmatprep.subr.bf16.mxu0 0
        %5528 = vmatpush1.bf16.msra.mxu0 0
        %5529 = vmatprep.mubr.bf16.mxu0 %v5372
        %5530 = vmatmul.mubr.bf16.gmra.mrb[0].mxu0 %v5367
        %v5531 = vpop.f32.mrb[0].mxu0
        %v5532 = vadd.f32 %v5491, %v5531
        %v5533 = vpop.f32.mrb[0].mxu0
        %v5534 = vadd.f32 %v5493, %v5533
        %v5535 = vpop.f32.mrb[0].mxu0
        %v5536 = vpop.f32.mrb[0].mxu0
        %5537 = vdwg.mxu0
        %5538 = vmatprep.subr.bf16.mxu0 0
        %5539 = vmatpush1.bf16.msra.mxu0 %v5217
        %5540 = vmatprep.subr.bf16.mxu0 0
        %5541 = vmatpush1.bf16.msra.mxu0 %v5222
        %5542 = vmatprep.subr.bf16.mxu0 0
        %5543 = vmatpush1.bf16.msra.mxu0 %v5227
        %5544 = vmatprep.subr.bf16.mxu0 0
        %5545 = vmatpush1.bf16.msra.mxu0 %v5232
        %5546 = vmatprep.subr.bf16.mxu0 0
        %5547 = vmatpush1.bf16.msra.mxu0 %v5237
        %5548 = vmatprep.subr.bf16.mxu0 0
        %5549 = vmatpush1.bf16.msra.mxu0 %v5242
        %5550 = vmatprep.subr.bf16.mxu0 0
        %5551 = vmatpush1.bf16.msra.mxu0 %v5247
        %5552 = vmatprep.subr.bf16.mxu0 0
        %5553 = vmatpush1.bf16.msra.mxu0 %v5252
        %5554 = vmatprep.subr.bf16.mxu0 0
        %5555 = vmatpush1.bf16.msra.mxu0 %v5257
        %5556 = vmatprep.subr.bf16.mxu0 0
        %5557 = vmatpush1.bf16.msra.mxu0 %v5262
        %5558 = vmatprep.subr.bf16.mxu0 0
        %5559 = vmatpush1.bf16.msra.mxu0 %v5267
        %5560 = vmatprep.subr.bf16.mxu0 0
        %5561 = vmatpush1.bf16.msra.mxu0 %v5272
        %5562 = vmatprep.subr.bf16.mxu0 0
        %5563 = vmatpush1.bf16.msra.mxu0 %v5277
        %5564 = vmatprep.subr.bf16.mxu0 0
        %5565 = vmatpush1.bf16.msra.mxu0 %v5282
        %5566 = vmatprep.subr.bf16.mxu0 0
        %5567 = vmatpush1.bf16.msra.mxu0 %v5287
        %5568 = vmatprep.subr.bf16.mxu0 0
        %5569 = vmatpush1.bf16.msra.mxu0 %v5292
        %5570 = vmatprep.mubr.bf16.mxu0 %v5366
        %5571 = vmatmul.mubr.bf16.gmra.mrb[0].mxu0 %v5365
        %v5572 = vpop.f32.mrb[0].mxu0
        %v5573 = vadd.f32 0.0, %v5572
        %v5574 = vpop.f32.mrb[0].mxu0
        %v5575 = vpop.f32.mrb[0].mxu0
        %v5576 = vpop.f32.mrb[0].mxu0
        %5577 = vdwg.mxu0
        %5578 = vmatprep.subr.bf16.mxu0 0
        %5579 = vmatpush1.bf16.msra.mxu0 %v5297
        %5580 = vmatprep.subr.bf16.mxu0 0
        %5581 = vmatpush1.bf16.msra.mxu0 %v5302
        %5582 = vmatprep.subr.bf16.mxu0 0
        %5583 = vmatpush1.bf16.msra.mxu0 %v5307
        %5584 = vmatprep.subr.bf16.mxu0 0
        %5585 = vmatpush1.bf16.msra.mxu0 %v5312
        %5586 = vmatprep.subr.bf16.mxu0 0
        %5587 = vmatpush1.bf16.msra.mxu0 %v5317
        %5588 = vmatprep.subr.bf16.mxu0 0
        %5589 = vmatpush1.bf16.msra.mxu0 %v5322
        %5590 = vmatprep.subr.bf16.mxu0 0
        %5591 = vmatpush1.bf16.msra.mxu0 %v5327
        %5592 = vmatprep.subr.bf16.mxu0 0
        %5593 = vmatpush1.bf16.msra.mxu0 %v5332
        %5594 = vmatprep.subr.bf16.mxu0 0
        %5595 = vmatpush1.bf16.msra.mxu0 %v5337
        %5596 = vmatprep.subr.bf16.mxu0 0
        %5597 = vmatpush1.bf16.msra.mxu0 0
        %5598 = vmatprep.subr.bf16.mxu0 0
        %5599 = vmatpush1.bf16.msra.mxu0 0
        %5600 = vmatprep.subr.bf16.mxu0 0
        %5601 = vmatpush1.bf16.msra.mxu0 0
        %5602 = vmatprep.subr.bf16.mxu0 0
        %5603 = vmatpush1.bf16.msra.mxu0 0
        %5604 = vmatprep.subr.bf16.mxu0 0
        %5605 = vmatpush1.bf16.msra.mxu0 0
        %5606 = vmatprep.subr.bf16.mxu0 0
        %5607 = vmatpush1.bf16.msra.mxu0 0
        %5608 = vmatprep.subr.bf16.mxu0 0
        %5609 = vmatpush1.bf16.msra.mxu0 0
        %5610 = vmatprep.mubr.bf16.mxu0 %v5372
        %5611 = vmatmul.mubr.bf16.gmra.mrb[0].mxu0 %v5367
        %v5612 = vpop.f32.mrb[0].mxu0
        %v5613 = vadd.f32 %v5573, %v5612
        %v5614 = vpop.f32.mrb[0].mxu0
        %v5615 = vpop.f32.mrb[0].mxu0
        %v5616 = vpop.f32.mrb[0].mxu0
        %5617 = vdwg.mxu0
        %v5618 = vpack.c.bf16 %v5450, %v5450
        %v5619 = vpack.c.bf16 %v5452, %v5452
        %v5620 = vpack.c.bf16 %v5532, %v5532
        %v5621 = vpack.c.bf16 %v5534, %v5534
        %v5622 = vpack.c.bf16 %v5613, %v5613
        %v5628 = vcombine.low %v5618, %v5619
        %v5629 = vcombine.low %v5620, %v5621
        %v5631 = vunpack.c.l.s4 1983009808
        %v5632 = vunpack.c.0.s8 %v5631
        %v5633 = vlaneseq
        %v5634 = vshrl.u32 %v5633, 7
        %v5635 = vsub.s32 %v5632, %v5634
        %v5636 = vrot.slane %v5628, %v5635
        %v5638 = vunpack.c.l.s4 1983009808
        %v5639 = vunpack.c.0.s8 %v5638
        %v5640 = vlaneseq
        %v5641 = vshrl.u32 %v5640, 7
        %v5642 = vsub.s32 %v5639, %v5641
        %v5643 = vrot.slane %v5629, %v5642
        %v5644 = vcombine.low %v5636, %v5643
        %v5646 = vunpack.c.l.s4 1983009808
        %v5647 = vunpack.c.0.s8 %v5646
        %v5648 = vlaneseq
        %v5649 = vshrl.u32 %v5648, 7
        %v5650 = vsub.s32 %v5647, %v5649
        %v5651 = vrot.slane %v5622, %v5650
        %s5654 = scalar_lea.vmem %s256, 30 [#allocation8]
        %5655 = vst [vmem:[%s5654] sm:$0xff] %v5644
        %5656 = vst [vmem:[%s5654 + $0x8] sm:$0x3] %v5651
        %v5657 = vmul.f32 %v5450, %v4411
        %v5658 = vmul.f32 %v5452, %v4415
        %v5659 = vmul.f32 %v5532, %v4419
        %v5660 = vmul.f32 %v5534, %v4423
        %v5661 = vmul.f32 %v5613, %v4427
        %v5662 = vsel %vm4438, %v5657, 0.0
        %v5663 = vsel %vm4438, %v5658, 0.0
        %v5664 = vadd.f32 %v5662, %v5663
        %v5665 = vsel %vm4438, %v5659, 0.0
        %v5666 = vadd.f32 %v5664, %v5665
        %v5667 = vsel %vm4438, %v5660, 0.0
        %v5668 = vadd.f32 %v5666, %v5667
        %v5669 = vsel %vm4438, %v5661, 0.0
        %v5670 = vadd.f32 %v5668, %v5669
        %5671 = vadd.xlane.f32.xlu0 %v5670
        %v5672 = vpop.xlane.xlu0 %5671
        %s5673 = scalar_lea.vmem %s275, 12
        %5674 = vst.msk [vmem:[%s5673] sm:$0xf] %vm4450, %v5672
        %v5675 = vmul.f32 %v5657, %v5450
        %v5676 = vmul.f32 %v5658, %v5452
        %v5677 = vmul.f32 %v5659, %v5532
        %v5678 = vmul.f32 %v5660, %v5534
        %v5679 = vmul.f32 %v5661, %v5613
        %v5680 = vsel %vm4438, %v5675, 0.0
        %v5681 = vsel %vm4438, %v5676, 0.0
        %v5682 = vadd.f32 %v5680, %v5681
        %v5683 = vsel %vm4438, %v5677, 0.0
        %v5684 = vadd.f32 %v5682, %v5683
        %v5685 = vsel %vm4438, %v5678, 0.0
        %v5686 = vadd.f32 %v5684, %v5685
        %v5687 = vsel %vm4438, %v5679, 0.0
        %v5688 = vadd.f32 %v5686, %v5687
        %5689 = vadd.xlane.f32.xlu0 %v5688
        %v5690 = vpop.xlane.xlu0 %5689
        %s5691 = scalar_lea.vmem %s280, 12
        %5692 = vst.msk [vmem:[%s5691] sm:$0xf] %vm4450, %v5690
        %s5693 = sand.u32 %s100, 1
        %s5694 = scalar_lea.sflag [#allocation5], %s5693
        %s5695 = sand.u32 %s100, 1
        %s5696 = smul.addr %s5695, 40
        %s5697 = scalar_lea.vmem [#allocation8], %s5696
        %p5698 = scmp.lt.s32.totalorder %s24, 1
        %s5699 = scalar_select %p5698, %s24, 1
        %s5700 = smul.addr %s5699, 4
        %s5701 = smul.addr %s5700, 4
        %s5702 = scalar_lea.vmem %s4, %s5701
        %p5703 = scmp.lt.s32.totalorder %s24, 1
        %s5704 = scalar_select %p5703, %s24, 1
        %s5705 = smul.addr %s5704, 4
        %s5706 = smul.addr %s5705, 4
        %s5707 = scalar_lea.vmem %s5, %s5706
        // Predicated region
        $region41: #{tpu_custom_call.1} parent=31 // pred_check
          %p5708 = pneg %p110
        $region42: #{tpu_custom_call.1} parent=31 // pred_check_branch
          %5710 = sbr.rel (%p5708) target = $region44
        $region43: #{tpu_custom_call.1} parent=31 // pred_region
          %s5712 = ssub.s32 640, 640
          %5713 = vsyncadd %s5694, %s5712
          %s5714 = smul.addr %s24, 20
          %s5715 = smul.addr %s5714, 32
          %s5716 = scalar_lea.hbm %s3, %s5715
          %s5717 = sshll.u32 %s5697, 4
          %s5718 = int_to_ptr.vmem [resolvable:$true] %s5717
          %5723 = dma.vmem_to_hbm [thread:$0]  %s5718, 640, %s5716, %s5694, 160, 160, 10
        $region44: #{tpu_custom_call.1} parent=31 // pred_fallthru
          _
        // Predicated region
        $region45: #{tpu_custom_call.1} parent=31 // pred_check
          %p5724 = pneg %p136
        $region46: #{tpu_custom_call.1} parent=31 // pred_check_branch
          %5726 = sbr.rel (%p5724) target = $region48
        $region47: #{tpu_custom_call.1} parent=31 // pred_region
          _
        $region48: #{tpu_custom_call.1} parent=31 // pred_fallthru
          _
        // Predicated region
        $region49: #{tpu_custom_call.1} parent=31 // pred_check
          %p5727 = pneg %p162
        $region50: #{tpu_custom_call.1} parent=31 // pred_check_branch
          %5729 = sbr.rel (%p5727) target = $region52
        $region51: #{tpu_custom_call.1} parent=31 // pred_region
          _
        $region52: #{tpu_custom_call.1} parent=31 // pred_fallthru
          _
      $region32: #{tpu_custom_call.1} parent=5 // pred_fallthru
        _
      %p5730 = scmp.le.s32.totalorder 2, %s19
      // Predicated region
      $region53: #{tpu_custom_call.1} parent=5 // pred_check
        %p5731 = pneg %p5730
      $region54: #{tpu_custom_call.1} parent=5 // pred_check_branch
        %5733 = sbr.rel (%p5731) target = $region56
      $region55: #{tpu_custom_call.1} parent=5 // pred_region
        %s5734 = ssub.s32 %s19, 2
        // Predicated region
        $region57: #{tpu_custom_call.1} parent=55 // pred_check
          %p5735 = pneg %p116
        $region58: #{tpu_custom_call.1} parent=55 // pred_check_branch
          %5737 = sbr.rel (%p5735) target = $region60
        $region59: #{tpu_custom_call.1} parent=55 // pred_region
          %s5738 = sand.u32 %s101, 1
          %s5739 = scalar_lea.sflag [#allocation5], %s5738
          %s5740 = sand.u32 %s101, 1
          %s5741 = smul.addr %s5740, 40
          %s5742 = scalar_lea.vmem [#allocation8], %s5741
          %5743 = dma.done %s5739, 640
        $region60: #{tpu_custom_call.1} parent=55 // pred_fallthru
          _
        // Predicated region
        $region61: #{tpu_custom_call.1} parent=55 // pred_check
          %p5744 = pneg %p142
        $region62: #{tpu_custom_call.1} parent=55 // pred_check_branch
          %5746 = sbr.rel (%p5744) target = $region64
        $region63: #{tpu_custom_call.1} parent=55 // pred_region
          %p5747 = scmp.lt.s32.totalorder %s25, 1
          %s5748 = scalar_select %p5747, %s25, 1
          %s5749 = smul.addr %s5748, 4
          %s5750 = smul.addr %s5749, 4
          %s5751 = scalar_lea.vmem %s4, %s5750
        $region64: #{tpu_custom_call.1} parent=55 // pred_fallthru
          _
        // Predicated region
        $region65: #{tpu_custom_call.1} parent=55 // pred_check
          %p5752 = pneg %p168
        $region66: #{tpu_custom_call.1} parent=55 // pred_check_branch
          %5754 = sbr.rel (%p5752) target = $region68
        $region67: #{tpu_custom_call.1} parent=55 // pred_region
          %p5755 = scmp.lt.s32.totalorder %s25, 1
          %s5756 = scalar_select %p5755, %s25, 1
          %s5757 = smul.addr %s5756, 4
          %s5758 = smul.addr %s5757, 4
          %s5759 = scalar_lea.vmem %s5, %s5758
        $region68: #{tpu_custom_call.1} parent=55 // pred_fallthru
          _
      $region56: #{tpu_custom_call.1} parent=5 // pred_fallthru
        _
    $region6: #{tpu_custom_call.1} parent=1 // loop_footer
      %s23 = sadd.s32 1, %s19
    $region7: #{tpu_custom_call.1} parent=1 // loop_footer_branch
      %18 = sbr.rel target = $region3
    $region8: #{tpu_custom_call.1} parent=1 // loop_exit
      _
    %5760 = vsyncpa [#allocation4], 1
    %s5761 = scalar_lea.sflag [#allocation4], 1
    %5762 = vsyncpa %s5761, 1
    %5763 = vsyncpa [#allocation7], 1
    %5764 = vsyncpa [#allocation5], 1
    %s5765 = scalar_lea.sflag [#allocation5], 1
    %5766 = vsyncpa %s5765, 1

</llo_original>
